<compile_context>
chip_gen: v7x
topology: tpu7x:2x2x1
jax: 0.10.0
libtpu: 0.0.40
codegen_flags: <defaults>
</compile_context>

<pallas_src>
import functools
import numpy as np
import jax
import jax.numpy as jnp
from jax.experimental import pallas as pl
from jax.experimental.pallas import tpu as pltpu

# ----------------------- model hyper-parameters (small, synthetic) -----------------------
VOCAB         = 40
D_MODEL       = 32          # encoder_hidden == decoder_hidden
N_HEAD        = 2
D_K = D_V     = D_MODEL // N_HEAD
N_ENC_LAYERS  = 2
N_DEC_LAYERS  = 2
D_FFN         = 64
FFN_K1        = 9           # conv_kernel_size[0] of PositionwiseFeedForward (second conv is 1x1)
VP_FILTER     = 32          # variance predictor filter size
VP_KERNEL     = 3
N_BINS        = 16
N_MEL         = 80
POSTNET_DIM   = 128         # lane-padded channel count for the mel / postnet path
POSTNET_K     = 5
POSTNET_NCONV = 5
LN_EPS        = 1e-5
BN_EPS        = 1e-5
PRED_LANES    = 128         # lane-dense variance-predictor output width


# ================================ in-kernel helpers ======================================
def _ln(v, g, b, eps=LN_EPS):
    mu = jnp.mean(v, axis=-1, keepdims=True)
    var = jnp.mean(jnp.square(v - mu), axis=-1, keepdims=True)
    return (v - mu) * jax.lax.rsqrt(var + eps) * g + b


def _unfold_conv(h, w, bias, T, k):
    """k-tap 'same' 1D conv as ONE matmul: (T,Cin) -> (T,k*Cin) unfold @ (k*Cin,Cout)."""
    cin = h.shape[-1]
    pad = (k - 1) // 2
    zp = jnp.zeros((pad, cin), jnp.float32)
    hp = jnp.concatenate([zp, h, zp], axis=0)                       # (T + 2*pad, Cin)
    unf = jnp.concatenate([hp[j:j + T, :] for j in range(k)], axis=-1)  # (T, k*Cin)
    return jnp.dot(unf, w, preferred_element_type=jnp.float32) + bias


# ================================ fused FFT-stack kernel =================================
def _fft_stack_kernel(x_ref, mkey_ref, mrow_ref, wqkv_ref, wo_ref, w1_ref, w2_ref, vec_ref,
                      o_ref, *, T, H, DK, k1, d_ffn):
    l = pl.program_id(1)
    D = x_ref.shape[-1]
    HDK = H * DK

    @pl.when(l == 0)
    def _():                                   # activation is carried in the resident output block
        o_ref[...] = x_ref[...]

    x = o_ref[0]                               # (T, D)
    mkey = mkey_ref[0]                         # (1, T)  1.0 at padded key positions
    keep = 1.0 - mrow_ref[0]                   # (T, 1)  0.0 at padded query rows

    wqkv = wqkv_ref[0]                         # (D, 3*H*DK)
    wo = wo_ref[0]                             # (H*DV, D)
    w1 = w1_ref[0]                             # (k1*D, d_ffn)   pre-stacked conv taps
    w2 = w2_ref[0]                             # (d_ffn, D)      1x1 conv
    vec = vec_ref[0]                           # (8, 128) packed small vectors
    b_qkv = vec[0:1, :3 * HDK]
    b_o   = vec[1:2, :D]
    ln1_g = vec[2:3, :D]
    ln1_b = vec[3:4, :D]
    b1    = vec[4:5, :d_ffn]
    b2    = vec[5:6, :D]
    ln2_g = vec[6:7, :D]
    ln2_b = vec[7:8, :D]

    # ---- multi-head self-attention: fused QKV matmul, per-head softmax, fused out-proj ----
    qkv = jnp.dot(x, wqkv, preferred_element_type=jnp.float32) + b_qkv    # (T, 3*H*DK)
    ctxs = []
    for h in range(H):                                                    # H == 2, unrolled
        q = qkv[:, h * DK:(h + 1) * DK]                                   # 1/sqrt(d_k) folded in
        k = qkv[:, HDK + h * DK:HDK + (h + 1) * DK]
        v = qkv[:, 2 * HDK + h * DK:2 * HDK + (h + 1) * DK]
        s = jnp.einsum("td,sd->ts", q, k, preferred_element_type=jnp.float32)
        s = jnp.where(mkey > 0.5, -1e30, s)                               # masked_fill(mask, -inf)
        s = s - jnp.max(s, axis=-1, keepdims=True)
        p = jnp.exp(s)
        p = p * pl.reciprocal(jnp.sum(p, axis=-1, keepdims=True), approx=True)
        ctxs.append(jnp.dot(p, v, preferred_element_type=jnp.float32))
    ctx = jnp.concatenate(ctxs, axis=-1)                                  # (T, H*DV)
    attn = jnp.dot(ctx, wo, preferred_element_type=jnp.float32) + b_o
    h1 = _ln(attn + x, ln1_g, ln1_b) * keep                               # residual + LN + mask

    # ---- position-wise FFN: conv(k1) as ONE deep-K matmul, then 1x1 conv, residual + LN ----
    a = jnp.maximum(_unfold_conv(h1, w1, b1, T, k1), 0.0)                 # (T, d_ffn)
    h2 = jnp.dot(a, w2, preferred_element_type=jnp.float32) + b2
    out = _ln(h2 + h1, ln2_g, ln2_b) * keep
    o_ref[...] = out.reshape(1, T, D)


def fft_stack_pallas(x, mask_key, mask_row, stack):
    B, T, D = x.shape
    L = stack["wqkv"].shape[0]
    kernel = functools.partial(_fft_stack_kernel, T=T, H=N_HEAD, DK=D_K,
                               k1=FFN_K1, d_ffn=D_FFN)
    wspec = lambda a: pl.BlockSpec((1,) + a.shape[1:], lambda b, l: (l, 0, 0))
    return pl.pallas_call(
        kernel,
        out_shape=jax.ShapeDtypeStruct((B, T, D), jnp.float32),
        grid=(B, L),
        in_specs=[pl.BlockSpec((1, T, D), lambda b, l: (b, 0, 0)),
                  pl.BlockSpec((1, 1, T), lambda b, l: (b, 0, 0)),
                  pl.BlockSpec((1, T, 1), lambda b, l: (b, 0, 0)),
                  wspec(stack["wqkv"]), wspec(stack["wo"]),
                  wspec(stack["w1"]), wspec(stack["w2"]), wspec(stack["vec"])],
        out_specs=pl.BlockSpec((1, T, D), lambda b, l: (b, 0, 0)),   # resident across l
        compiler_params=pltpu.CompilerParams(
            dimension_semantics=("parallel", "arbitrary")),
    )(x, mask_key, mask_row, stack["wqkv"], stack["wo"], stack["w1"], stack["w2"], stack["vec"])


# ============================ fused variance-adaptor kernel ==============================
def _var_adaptor_kernel(x_ref, mrow_ref, pemb_ref, eemb_ref,
                        w1_ref, w2_ref, lw_ref, vec_ref,
                        xout_ref, pred_ref, *, T, k, F):
    D = x_ref.shape[-1]
    x = x_ref[0]                               # (T, D)
    keep = 1.0 - mrow_ref[0]                   # (T, 1)

    def predictor(h, i):                       # i: 0=duration, 1=pitch, 2=energy
        w1 = w1_ref[i]                         # (k*D, F)
        w2 = w2_ref[i]                         # (k*F, F)
        lw = lw_ref[i]                         # (F, 128)   lane-mapped final linear
        vec = vec_ref[i]                       # (8, 128)
        b1, g1, be1 = vec[0:1, :F], vec[1:2, :F], vec[2:3, :F]
        b2, g2, be2 = vec[3:4, :F], vec[4:5, :F], vec[5:6, :F]
        lb = vec[6:7, :]                       # (1, 128)
        a = _ln(jnp.maximum(_unfold_conv(h, w1, b1, T, k), 0.0), g1, be1)
        a = _ln(jnp.maximum(_unfold_conv(a, w2, b2, T, k), 0.0), g2, be2)
        return (jnp.dot(a, lw, preferred_element_type=jnp.float32) + lb) * keep  # (T, 128)

    dur = predictor(x, 0)                      # log-duration from x
    pit = predictor(x, 1)                      # pitch from x
    x2 = x + pemb_ref[0]                       # + pitch embedding (ground-truth buckets)
    ene = predictor(x2, 2)                     # energy from x + pitch_emb
    x3 = x2 + eemb_ref[0]                      # + energy embedding
    xout_ref[...] = x3.reshape(1, T, D)
    pred_ref[...] = (dur + pit + ene).reshape(1, T, PRED_LANES)   # lanes 0/1/2 = d/p/e


def variance_adaptor_pallas(x, mask_row, pemb, eemb, p):
    B, T, D = x.shape
    kernel = functools.partial(_var_adaptor_kernel, T=T, k=VP_KERNEL, F=VP_FILTER)
    cspec = lambda a: pl.BlockSpec(a.shape, lambda b: (0,) * a.ndim)
    xout, preds = pl.pallas_call(
        kernel,
        out_shape=(jax.ShapeDtypeStruct((B, T, D), jnp.float32),
                   jax.ShapeDtypeStruct((B, T, PRED_LANES), jnp.float32)),
        grid=(B,),
        in_specs=[pl.BlockSpec((1, T, D), lambda b: (b, 0, 0)),
                  pl.BlockSpec((1, T, 1), lambda b: (b, 0, 0)),
                  pl.BlockSpec((1, T, D), lambda b: (b, 0, 0)),
                  pl.BlockSpec((1, T, D), lambda b: (b, 0, 0)),
                  cspec(p["w1"]), cspec(p["w2"]), cspec(p["lw"]), cspec(p["vec"])],
        out_specs=(pl.BlockSpec((1, T, D), lambda b: (b, 0, 0)),
                   pl.BlockSpec((1, T, PRED_LANES), lambda b: (b, 0, 0))),
        compiler_params=pltpu.CompilerParams(dimension_semantics=("parallel",)),
    )(x, mask_row, pemb, eemb, p["w1"], p["w2"], p["lw"], p["vec"])
    return xout, preds


# =========================== fused mel_linear + PostNet kernel ===========================
def _mel_postnet_kernel(x_ref, mw_ref, mb_ref, pw_ref, pb_ref, mel_ref, post_ref,
                        *, T, n_conv, k):
    C = mw_ref.shape[-1]                       # 128; mel channels 80..127 are exactly zero
    x = x_ref[0]                               # (T, D)
    mel = jnp.dot(x, mw_ref[...], preferred_element_type=jnp.float32) + mb_ref[...]
    mel_ref[...] = mel.reshape(1, T, C)

    h = mel
    for i in range(n_conv):
        acc = _unfold_conv(h, pw_ref[i], pb_ref[i], T, k)   # eval-mode BN folded into w/b
        h = jnp.tanh(acc) if i < n_conv - 1 else acc
    post_ref[...] = (h + mel).reshape(1, T, C)              # postnet residual fused in-kernel


def mel_postnet_pallas(x, params):
    B, T, D = x.shape
    C = POSTNET_DIM
    kernel = functools.partial(_mel_postnet_kernel, T=T, n_conv=POSTNET_NCONV, k=POSTNET_K)
    cspec = lambda a: pl.BlockSpec(a.shape, lambda b: (0,) * a.ndim)
    mel128, post128 = pl.pallas_call(
        kernel,
        out_shape=(jax.ShapeDtypeStruct((B, T, C), jnp.float32),
                   jax.ShapeDtypeStruct((B, T, C), jnp.float32)),
        grid=(B,),
        in_specs=[pl.BlockSpec((1, T, D), lambda b: (b, 0, 0)),
                  cspec(params["mel_w"]), cspec(params["mel_b"]),
                  cspec(params["postnet"]["w"]), cspec(params["postnet"]["b"])],
        out_specs=(pl.BlockSpec((1, T, C), lambda b: (b, 0, 0)),
                   pl.BlockSpec((1, T, C), lambda b: (b, 0, 0))),
        compiler_params=pltpu.CompilerParams(dimension_semantics=("parallel",)),
    )(x, params["mel_w"], params["mel_b"], params["postnet"]["w"], params["postnet"]["b"])
    return mel128, post128


# ====================================== model pieces =====================================
def get_mask_from_lengths(lengths, max_len):
    ids = jnp.arange(max_len, dtype=jnp.int32)
    return ids[None, :] >= lengths[:, None]        # True == padded position


def length_regulate(x, durations, max_len):
    """Expand each phoneme hidden state by its duration, pad/truncate to max_len."""
    # TODO(synk): at production lengths this should be a PrefetchScalarGridSpec + pl.Element
    #             row-gather Pallas kernel; at toy sizes the XLA version is negligible.
    B, T, _ = x.shape
    cum = jnp.cumsum(durations.astype(jnp.int32), axis=1)          # (B, T)
    mel_len = cum[:, -1]
    frame = jnp.arange(max_len, dtype=jnp.int32)                   # (max_len,)
    idx = jnp.sum((cum[:, None, :] <= frame[None, :, None]).astype(jnp.int32), axis=-1)
    idx = jnp.clip(idx, 0, T - 1)
    expanded = jnp.take_along_axis(x, idx[:, :, None], axis=1)
    valid = (frame[None, :] < mel_len[:, None]).astype(x.dtype)
    return expanded * valid[:, :, None], mel_len


def fastspeech2_forward(params, speakers, texts, src_lens, max_src_len,
                        mel_lens, max_mel_len, p_targets, e_targets, d_targets):
    del speakers  # multi_speaker=False -> speaker_emb is None
    src_masks = get_mask_from_lengths(src_lens, max_src_len)
    mel_masks = get_mask_from_lengths(mel_lens, max_mel_len)
    src_key = src_masks.astype(jnp.float32)[:, None, :]   # (B,1,T)  key mask
    src_row = src_masks.astype(jnp.float32)[:, :, None]   # (B,T,1)  row (output) mask
    mel_key = mel_masks.astype(jnp.float32)[:, None, :]
    mel_row = mel_masks.astype(jnp.float32)[:, :, None]

    # ---------------- encoder (one fused pallas_call for all layers) ----------------
    B, T = texts.shape
    # TODO(synk): embedding gather + positional-encoding add stay in XLA (no clean Pallas win).
    x = params["word_emb"][texts] + params["pos_enc"][:T][None, :, :]
    x = fft_stack_pallas(x, src_key, src_row, params["encoder"])

    # ------------- variance adaptor (training branch: ground-truth targets) -------------
    p_idx = jnp.searchsorted(params["pitch_bins"], p_targets, side="left")
    e_idx = jnp.searchsorted(params["energy_bins"], e_targets, side="left")
    pemb = params["pitch_embedding"][p_idx]                # (B,T,D) gathered in XLA
    eemb = params["energy_embedding"][e_idx]
    x, preds = variance_adaptor_pallas(x, src_row, pemb, eemb, params["variance"])
    log_d_pred = preds[..., 0]
    p_pred = preds[..., 1]
    e_pred = preds[..., 2]
    x, mel_len_out = length_regulate(x, d_targets, max_mel_len)
    d_rounded = d_targets

    # ---------------- decoder (one fused pallas_call for all layers) ----------------
    Tm = x.shape[1]
    x = x + params["pos_enc"][:Tm][None, :, :]
    x = fft_stack_pallas(x, mel_key, mel_row, params["decoder"])

    # ------------- mel_linear + postnet (channels zero-padded to 128 lanes) -------------
    mel128, post128 = mel_postnet_pallas(x, params)
    output = mel128[:, :, :N_MEL]
    postnet_output = post128[:, :, :N_MEL]
    return (output, postnet_output, p_pred, e_pred, log_d_pred, d_rounded,
            src_masks, mel_masks, src_lens, mel_len_out)


# =================================== parameter init ======================================
def sinusoid_table(n_position, d_hid):
    pos = np.arange(n_position, dtype=np.float64)[:, None]
    i = np.arange(d_hid, dtype=np.float64)[None, :]
    angle = pos / np.power(10000.0, 2.0 * np.floor(i / 2.0) / d_hid)
    table = np.where(np.arange(d_hid)[None, :] % 2 == 0, np.sin(angle), np.cos(angle))
    return jnp.asarray(table, dtype=jnp.float32)


class _Keys:
    def __init__(self, key):
        self._k = key

    def __call__(self):
        self._k, sub = jax.random.split(self._k)
        return sub


def _nrm(kg, shape, scale=0.1):
    return scale * jax.random.normal(kg(), shape, dtype=jnp.float32)


def init_fft_stack(kg, n_layers):
    """Per-layer weights stacked on a leading L axis; small vectors packed into (8,128)."""
    inv_t = 1.0 / np.sqrt(D_K)          # 1/sqrt(d_k) folded into q projection (exact)
    HDK = N_HEAD * D_K
    wqkv, wo, w1, w2, vec = [], [], [], [], []
    for _ in range(n_layers):
        wq = _nrm(kg, (D_MODEL, HDK)) * inv_t
        bq = _nrm(kg, (HDK,)) * inv_t
        wk = _nrm(kg, (D_MODEL, HDK))
        bk = _nrm(kg, (HDK,))
        wv = _nrm(kg, (D_MODEL, HDK))
        bv = _nrm(kg, (HDK,))
        wqkv.append(jnp.concatenate([wq, wk, wv], axis=-1))          # (D, 3*HDK)
        wo.append(_nrm(kg, (HDK, D_MODEL)))
        w1.append(_nrm(kg, (FFN_K1 * D_MODEL, D_FFN)))               # pre-stacked conv taps
        w2.append(_nrm(kg, (D_FFN, D_MODEL)))                        # 1x1 conv
        v = np.zeros((8, 128), np.float32)
        v[0, :3 * HDK] = np.concatenate([np.asarray(bq), np.asarray(bk), np.asarray(bv)])
        v[1, :D_MODEL] = np.asarray(_nrm(kg, (D_MODEL,)))            # b_o
        v[2, :D_MODEL] = 1.0                                         # ln1_g
        v[3, :D_MODEL] = 0.0                                         # ln1_b
        v[4, :D_FFN] = np.asarray(_nrm(kg, (D_FFN,)))                # b1
        v[5, :D_MODEL] = np.asarray(_nrm(kg, (D_MODEL,)))            # b2
        v[6, :D_MODEL] = 1.0                                         # ln2_g
        v[7, :D_MODEL] = 0.0                                         # ln2_b
        vec.append(jnp.asarray(v))
    return {"wqkv": jnp.stack(wqkv), "wo": jnp.stack(wo),
            "w1": jnp.stack(w1), "w2": jnp.stack(w2), "vec": jnp.stack(vec)}


def init_variance_adaptor(kg):
    """3 predictors (duration, pitch, energy), final linear lane-mapped to output lane 0/1/2."""
    w1, w2, lw, vec = [], [], [], []
    for c in range(3):
        w1.append(_nrm(kg, (VP_KERNEL * D_MODEL, VP_FILTER)))
        w2.append(_nrm(kg, (VP_KERNEL * VP_FILTER, VP_FILTER)))
        lwc = np.zeros((VP_FILTER, PRED_LANES), np.float32)
        lwc[:, c] = np.asarray(_nrm(kg, (VP_FILTER,)))
        lw.append(jnp.asarray(lwc))
        v = np.zeros((8, 128), np.float32)
        v[0, :VP_FILTER] = np.asarray(_nrm(kg, (VP_FILTER,)))        # b1
        v[1, :VP_FILTER] = 1.0                                       # ln1_g
        v[2, :VP_FILTER] = 0.0                                       # ln1_b
        v[3, :VP_FILTER] = np.asarray(_nrm(kg, (VP_FILTER,)))        # b2
        v[4, :VP_FILTER] = 1.0                                       # ln2_g
        v[5, :VP_FILTER] = 0.0                                       # ln2_b
        v[6, c] = float(np.asarray(_nrm(kg, (1,)))[0])               # lin_b on lane c
        vec.append(jnp.asarray(v))
    return {"w1": jnp.stack(w1), "w2": jnp.stack(w2),
            "lw": jnp.stack(lw), "vec": jnp.stack(vec)}


def init_postnet(kg):
    """Postnet convs with eval-mode BatchNorm folded in; channels zero-padded to 128;
    taps pre-stacked so each conv is one (k*C, C) matmul."""
    chans = [N_MEL] + [POSTNET_DIM] * (POSTNET_NCONV - 1) + [N_MEL]
    pw = np.zeros((POSTNET_NCONV, POSTNET_K * POSTNET_DIM, POSTNET_DIM), np.float32)
    pb = np.zeros((POSTNET_NCONV, 1, POSTNET_DIM), np.float32)
    for i in range(POSTNET_NCONV):
        cin, cout = chans[i], chans[i + 1]
        w = np.asarray(_nrm(kg, (POSTNET_K, cin, cout)))
        b = np.asarray(_nrm(kg, (cout,)))
        gamma = 1.0 + np.asarray(_nrm(kg, (cout,)))
        beta = np.asarray(_nrm(kg, (cout,)))
        # eval-mode BN (running_mean=0, running_var=1):  y = conv(x)*scale + (b*scale + beta)
        scale = gamma / np.sqrt(1.0 + BN_EPS)
        for j in range(POSTNET_K):
            pw[i, j * POSTNET_DIM:j * POSTNET_DIM + cin, :cout] = w[j] * scale[None, :]
        pb[i, 0, :cout] = b * scale + beta
    return {"w": jnp.asarray(pw), "b": jnp.asarray(pb)}


def init_params(key, max_pos):
    kg = _Keys(key)
    word_emb = _nrm(kg, (VOCAB, D_MODEL), scale=0.3)
    word_emb = word_emb.at[0].set(0.0)                      # padding_idx=0

    # mel_linear, output columns zero-padded to 128 (lane-dense stores; padded cols are exactly 0)
    mel_w = _nrm(kg, (D_MODEL, N_MEL))
    mel_b = _nrm(kg, (N_MEL,))
    mel_w128 = jnp.zeros((D_MODEL, POSTNET_DIM), jnp.float32).at[:, :N_MEL].set(mel_w)
    mel_b128 = jnp.zeros((1, POSTNET_DIM), jnp.float32).at[:, :N_MEL].set(mel_b)

    return {
        "word_emb": word_emb,
        "pos_enc": sinusoid_table(max_pos + 1, D_MODEL),
        "encoder": init_fft_stack(kg, N_ENC_LAYERS),
        "decoder": init_fft_stack(kg, N_DEC_LAYERS),
        "variance": init_variance_adaptor(kg),
        "pitch_bins": jnp.linspace(0.0, 1.0, N_BINS - 1, dtype=jnp.float32),
        "energy_bins": jnp.linspace(0.0, 1.0, N_BINS - 1, dtype=jnp.float32),
        "pitch_embedding": _nrm(kg, (N_BINS, D_MODEL), scale=0.3),
        "energy_embedding": _nrm(kg, (N_BINS, D_MODEL), scale=0.3),
        "mel_w": mel_w128, "mel_b": mel_b128,
        "postnet": init_postnet(kg),
    }


# ========================================= main ==========================================
if __name__ == "__main__":
    B, T_SRC, MAX_MEL = 2, 8, 24
    key = jax.random.PRNGKey(0)
    k_params, k_text, k_pitch, k_energy = jax.random.split(key, 4)

    params = init_params(k_params, max_pos=max(T_SRC, MAX_MEL))

    src_lens = jnp.array([8, 6], dtype=jnp.int32)
    texts = jax.random.randint(k_text, (B, T_SRC), 1, VOCAB, dtype=jnp.int32)
    texts = jnp.where(jnp.arange(T_SRC)[None, :] < src_lens[:, None], texts, 0)  # pad ids = 0
    d_targets = jnp.array([[3, 2, 1, 4, 2, 3, 2, 3],
                           [2, 3, 1, 2, 4, 2, 0, 0]], dtype=jnp.int32)
    mel_lens = jnp.sum(d_targets, axis=1).astype(jnp.int32)      # [20, 14], MAX_MEL = 24
    p_targets = jax.random.uniform(k_pitch, (B, T_SRC), minval=0.0, maxval=1.0)
    e_targets = jax.random.uniform(k_energy, (B, T_SRC), minval=0.0, maxval=1.0)
    speakers = jnp.zeros((B,), dtype=jnp.int32)                  # multi_speaker=False -> unused

    fwd = jax.jit(fastspeech2_forward, static_argnums=(4, 6))
    outs = fwd(params, speakers, texts, src_lens, T_SRC,
               mel_lens, MAX_MEL, p_targets, e_targets, d_targets)
    jax.block_until_ready(outs)
    print("KERNEL_OK")
</pallas_src>

<mosaic_0001>
module attributes {stable_mosaic.version = 11 : i64} {
  func.func @_fft_stack_kernel(%arg0: i32, %arg1: i32, %arg2: memref<1x8x32xf32, #tpu.memory_space<vmem>>, %arg3: memref<1x1x8xf32, #tpu.memory_space<vmem>>, %arg4: memref<1x8x1xf32, #tpu.memory_space<vmem>>, %arg5: memref<1x32x96xf32, #tpu.memory_space<vmem>>, %arg6: memref<1x32x32xf32, #tpu.memory_space<vmem>>, %arg7: memref<1x288x64xf32, #tpu.memory_space<vmem>>, %arg8: memref<1x64x32xf32, #tpu.memory_space<vmem>>, %arg9: memref<1x8x128xf32, #tpu.memory_space<vmem>>, %arg10: memref<1x8x32xf32, #tpu.memory_space<vmem>>) attributes {dimension_semantics = [#tpu.dimension_semantics<parallel>, #tpu.dimension_semantics<arbitrary>], iteration_bounds = array<i64: 2, 2>, scalar_prefetch = 0 : i64, scratch_operands = 0 : i64, tpu.core_type = #tpu.core_type<tc>, window_params = [{transform_indices = @transform_0, window_bounds = array<i64: 1, 8, 32>}, {transform_indices = @transform_1, window_bounds = array<i64: 1, 1, 8>}, {transform_indices = @transform_2, window_bounds = array<i64: 1, 8, 1>}, {transform_indices = @transform_3, window_bounds = array<i64: 1, 32, 96>}, {transform_indices = @transform_4, window_bounds = array<i64: 1, 32, 32>}, {transform_indices = @transform_5, window_bounds = array<i64: 1, 288, 64>}, {transform_indices = @transform_6, window_bounds = array<i64: 1, 64, 32>}, {transform_indices = @transform_7, window_bounds = array<i64: 1, 8, 128>}, {transform_indices = @transform_8, window_bounds = array<i64: 1, 8, 32>}]} {
    %c0_i32 = arith.constant 0 : i32
    %0 = arith.cmpi eq, %arg1, %c0_i32 : i32
    %1 = arith.extui %0 : i1 to i32
    %c0_i32_0 = arith.constant 0 : i32
    %2 = arith.cmpi ne, %1, %c0_i32_0 : i32
    scf.if %2 {
      %c0_55 = arith.constant 0 : index
      %c0_56 = arith.constant 0 : index
      %c0_57 = arith.constant 0 : index
      %150 = vector.load %arg2[%c0_55, %c0_56, %c0_57] : memref<1x8x32xf32, #tpu.memory_space<vmem>>, vector<1x8x32xf32>
      %c0_58 = arith.constant 0 : index
      %c0_59 = arith.constant 0 : index
      %c0_60 = arith.constant 0 : index
      %151 = vector.load %arg10[%c0_58, %c0_59, %c0_60] : memref<1x8x32xf32, #tpu.memory_space<vmem>>, vector<1x8x32xf32>
      tpu.vector_store %arg10[%c0_58, %c0_59, %c0_60], %150 {strides = array<i32>} : memref<1x8x32xf32, #tpu.memory_space<vmem>>, vector<1x8x32xf32>,
    } else {
    }
    %c0 = arith.constant 0 : index
    %c0_1 = arith.constant 0 : index
    %c0_2 = arith.constant 0 : index
    %3 = vector.load %arg10[%c0, %c0_1, %c0_2] : memref<1x8x32xf32, #tpu.memory_space<vmem>>, vector<1x8x32xf32>
    %4 = vector.shape_cast %3 : vector<1x8x32xf32> to vector<8x32xf32>
    %c0_3 = arith.constant 0 : index
    %c0_4 = arith.constant 0 : index
    %c0_5 = arith.constant 0 : index
    %5 = vector.load %arg3[%c0_3, %c0_4, %c0_5] : memref<1x1x8xf32, #tpu.memory_space<vmem>>, vector<1x1x8xf32>
    %6 = vector.shape_cast %5 : vector<1x1x8xf32> to vector<1x8xf32>
    %c0_6 = arith.constant 0 : index
    %c0_7 = arith.constant 0 : index
    %c0_8 = arith.constant 0 : index
    %7 = vector.load %arg4[%c0_6, %c0_7, %c0_8] : memref<1x8x1xf32, #tpu.memory_space<vmem>>, vector<1x8x1xf32>
    %8 = vector.shape_cast %7 : vector<1x8x1xf32> to vector<8x1xf32>
    %cst = arith.constant 1.000000e+00 : f32
    %9 = vector.broadcast %cst : f32 to vector<8x1xf32>
    %10 = arith.subf %9, %8 : vector<8x1xf32>
    %c0_9 = arith.constant 0 : index
    %c0_10 = arith.constant 0 : index
    %c0_11 = arith.constant 0 : index
    %11 = vector.load %arg5[%c0_9, %c0_10, %c0_11] : memref<1x32x96xf32, #tpu.memory_space<vmem>>, vector<1x32x96xf32>
    %12 = vector.shape_cast %11 : vector<1x32x96xf32> to vector<32x96xf32>
    %c0_12 = arith.constant 0 : index
    %c0_13 = arith.constant 0 : index
    %c0_14 = arith.constant 0 : index
    %13 = vector.load %arg6[%c0_12, %c0_13, %c0_14] : memref<1x32x32xf32, #tpu.memory_space<vmem>>, vector<1x32x32xf32>
    %14 = vector.shape_cast %13 : vector<1x32x32xf32> to vector<32x32xf32>
    %c0_15 = arith.constant 0 : index
    %c0_16 = arith.constant 0 : index
    %c0_17 = arith.constant 0 : index
    %15 = vector.load %arg7[%c0_15, %c0_16, %c0_17] : memref<1x288x64xf32, #tpu.memory_space<vmem>>, vector<1x288x64xf32>
    %16 = vector.shape_cast %15 : vector<1x288x64xf32> to vector<288x64xf32>
    %c0_18 = arith.constant 0 : index
    %c0_19 = arith.constant 0 : index
    %c0_20 = arith.constant 0 : index
    %17 = vector.load %arg8[%c0_18, %c0_19, %c0_20] : memref<1x64x32xf32, #tpu.memory_space<vmem>>, vector<1x64x32xf32>
    %18 = vector.shape_cast %17 : vector<1x64x32xf32> to vector<64x32xf32>
    %c0_21 = arith.constant 0 : index
    %c0_22 = arith.constant 0 : index
    %c0_23 = arith.constant 0 : index
    %19 = vector.load %arg9[%c0_21, %c0_22, %c0_23] : memref<1x8x128xf32, #tpu.memory_space<vmem>>, vector<1x8x128xf32>
    %20 = vector.shape_cast %19 : vector<1x8x128xf32> to vector<8x128xf32>
    %21 = vector.extract_strided_slice %20 {offsets = [0, 0], sizes = [1, 96], strides = [1, 1]} : vector<8x128xf32> to vector<1x96xf32>
    %22 = vector.extract_strided_slice %20 {offsets = [1, 0], sizes = [1, 32], strides = [1, 1]} : vector<8x128xf32> to vector<1x32xf32>
    %23 = vector.extract_strided_slice %20 {offsets = [2, 0], sizes = [1, 32], strides = [1, 1]} : vector<8x128xf32> to vector<1x32xf32>
    %24 = vector.extract_strided_slice %20 {offsets = [3, 0], sizes = [1, 32], strides = [1, 1]} : vector<8x128xf32> to vector<1x32xf32>
    %25 = vector.extract_strided_slice %20 {offsets = [4, 0], sizes = [1, 64], strides = [1, 1]} : vector<8x128xf32> to vector<1x64xf32>
    %26 = vector.extract_strided_slice %20 {offsets = [5, 0], sizes = [1, 32], strides = [1, 1]} : vector<8x128xf32> to vector<1x32xf32>
    %27 = vector.extract_strided_slice %20 {offsets = [6, 0], sizes = [1, 32], strides = [1, 1]} : vector<8x128xf32> to vector<1x32xf32>
    %28 = vector.extract_strided_slice %20 {offsets = [7, 0], sizes = [1, 32], strides = [1, 1]} : vector<8x128xf32> to vector<1x32xf32>
    %cst_24 = arith.constant dense<0.000000e+00> : vector<8x96xf32>
    %29 = tpu.matmul %4, %12, %cst_24 {dimension_numbers = #tpu.dot_dimension_numbers<[1], [0], [0], [1], [0, 0, 1, 1], [], []>} : vector<8x32xf32>, vector<32x96xf32>, vector<8x96xf32> -> vector<8x96xf32>
    %30 = vector.broadcast %21 : vector<1x96xf32> to vector<8x96xf32>
    %31 = arith.addf %29, %30 : vector<8x96xf32>
    %32 = vector.extract_strided_slice %31 {offsets = [0, 0], sizes = [8, 16], strides = [1, 1]} : vector<8x96xf32> to vector<8x16xf32>
    %33 = vector.extract_strided_slice %31 {offsets = [0, 32], sizes = [8, 16], strides = [1, 1]} : vector<8x96xf32> to vector<8x16xf32>
    %34 = vector.extract_strided_slice %31 {offsets = [0, 64], sizes = [8, 16], strides = [1, 1]} : vector<8x96xf32> to vector<8x16xf32>
    "tpu.trace_start"() <{level = 10 : i32, message = "td,sd->ts"}> : () -> ()
    %cst_25 = arith.constant dense<0.000000e+00> : vector<8x8xf32>
    %35 = tpu.matmul %32, %33, %cst_25 {dimension_numbers = #tpu.dot_dimension_numbers<[1], [1], [0], [0], [0, 0, 1, 0], [], []>} : vector<8x16xf32>, vector<8x16xf32>, vector<8x8xf32> -> vector<8x8xf32>
    %cst_26 = arith.constant 5.000000e-01 : f32
    "tpu.trace_stop"() : () -> ()
    %36 = vector.broadcast %cst_26 : f32 to vector<1x8xf32>
    %37 = arith.cmpf ogt, %6, %36 : vector<1x8xf32>
    %cst_27 = arith.constant -1.000000e+30 : f32
    %38 = vector.shape_cast %37 : vector<1x8xi1> to vector<1x8xi1>
    %39 = vector.broadcast %38 : vector<1x8xi1> to vector<8x8xi1>
    %40 = vector.broadcast %cst_27 : f32 to vector<8x8xf32>
    %41 = arith.select %39, %40, %35 : vector<8x8xi1>, vector<8x8xf32>
    %cst_28 = arith.constant dense<0xFF800000> : vector<8xf32>
    %42 = vector.multi_reduction <maximumf>, %41, %cst_28 [1] : vector<8x8xf32> to vector<8xf32>
    %43 = vector.shape_cast %42 : vector<8xf32> to vector<8x1xf32>
    %44 = vector.broadcast %43 : vector<8x1xf32> to vector<8x8xf32>
    %45 = arith.subf %41, %44 : vector<8x8xf32>
    %46 = math.exp %45 : vector<8x8xf32>
    %cst_29 = arith.constant dense<0.000000e+00> : vector<8xf32>
    %47 = vector.multi_reduction <add>, %46, %cst_29 [1] : vector<8x8xf32> to vector<8xf32>
    %48 = vector.shape_cast %47 : vector<8xf32> to vector<8x1xf32>
    %49 = tpu.reciprocal %48 {approx = true} : vector<8x1xf32> -> vector<8x1xf32>
    %50 = vector.broadcast %49 : vector<8x1xf32> to vector<8x8xf32>
    %51 = arith.mulf %46, %50 : vector<8x8xf32>
    %cst_30 = arith.constant dense<0.000000e+00> : vector<8x16xf32>
    %52 = tpu.matmul %51, %34, %cst_30 {dimension_numbers = #tpu.dot_dimension_numbers<[1], [0], [0], [1], [0, 0, 1, 1], [], []>} : vector<8x8xf32>, vector<8x16xf32>, vector<8x16xf32> -> vector<8x16xf32>
    %53 = vector.extract_strided_slice %31 {offsets = [0, 16], sizes = [8, 16], strides = [1, 1]} : vector<8x96xf32> to vector<8x16xf32>
    %54 = vector.extract_strided_slice %31 {offsets = [0, 48], sizes = [8, 16], strides = [1, 1]} : vector<8x96xf32> to vector<8x16xf32>
    %55 = vector.extract_strided_slice %31 {offsets = [0, 80], sizes = [8, 16], strides = [1, 1]} : vector<8x96xf32> to vector<8x16xf32>
    "tpu.trace_start"() <{level = 10 : i32, message = "td,sd->ts"}> : () -> ()
    %cst_31 = arith.constant dense<0.000000e+00> : vector<8x8xf32>
    %56 = tpu.matmul %53, %54, %cst_31 {dimension_numbers = #tpu.dot_dimension_numbers<[1], [1], [0], [0], [0, 0, 1, 0], [], []>} : vector<8x16xf32>, vector<8x16xf32>, vector<8x8xf32> -> vector<8x8xf32>
    %cst_32 = arith.constant 5.000000e-01 : f32
    "tpu.trace_stop"() : () -> ()
    %57 = vector.broadcast %cst_32 : f32 to vector<1x8xf32>
    %58 = arith.cmpf ogt, %6, %57 : vector<1x8xf32>
    %cst_33 = arith.constant -1.000000e+30 : f32
    %59 = vector.shape_cast %58 : vector<1x8xi1> to vector<1x8xi1>
    %60 = vector.broadcast %59 : vector<1x8xi1> to vector<8x8xi1>
    %61 = vector.broadcast %cst_33 : f32 to vector<8x8xf32>
    %62 = arith.select %60, %61, %56 : vector<8x8xi1>, vector<8x8xf32>
    %cst_34 = arith.constant dense<0xFF800000> : vector<8xf32>
    %63 = vector.multi_reduction <maximumf>, %62, %cst_34 [1] : vector<8x8xf32> to vector<8xf32>
    %64 = vector.shape_cast %63 : vector<8xf32> to vector<8x1xf32>
    %65 = vector.broadcast %64 : vector<8x1xf32> to vector<8x8xf32>
    %66 = arith.subf %62, %65 : vector<8x8xf32>
    %67 = math.exp %66 : vector<8x8xf32>
    %cst_35 = arith.constant dense<0.000000e+00> : vector<8xf32>
    %68 = vector.multi_reduction <add>, %67, %cst_35 [1] : vector<8x8xf32> to vector<8xf32>
    %69 = vector.shape_cast %68 : vector<8xf32> to vector<8x1xf32>
    %70 = tpu.reciprocal %69 {approx = true} : vector<8x1xf32> -> vector<8x1xf32>
    %71 = vector.broadcast %70 : vector<8x1xf32> to vector<8x8xf32>
    %72 = arith.mulf %67, %71 : vector<8x8xf32>
    %cst_36 = arith.constant dense<0.000000e+00> : vector<8x16xf32>
    %73 = tpu.matmul %72, %55, %cst_36 {dimension_numbers = #tpu.dot_dimension_numbers<[1], [0], [0], [1], [0, 0, 1, 1], [], []>} : vector<8x8xf32>, vector<8x16xf32>, vector<8x16xf32> -> vector<8x16xf32>
    %74 = tpu.concatenate %52, %73 in 1 : vector<8x16xf32>, vector<8x16xf32> -> vector<8x32xf32>
    %cst_37 = arith.constant dense<0.000000e+00> : vector<8x32xf32>
    %75 = tpu.matmul %74, %14, %cst_37 {dimension_numbers = #tpu.dot_dimension_numbers<[1], [0], [0], [1], [0, 0, 1, 1], [], []>} : vector<8x32xf32>, vector<32x32xf32>, vector<8x32xf32> -> vector<8x32xf32>
    %76 = vector.broadcast %22 : vector<1x32xf32> to vector<8x32xf32>
    %77 = arith.addf %75, %76 : vector<8x32xf32>
    %78 = arith.addf %77, %4 : vector<8x32xf32>
    %cst_38 = arith.constant dense<0.000000e+00> : vector<8xf32>
    %79 = vector.multi_reduction <add>, %78, %cst_38 [1] : vector<8x32xf32> to vector<8xf32>
    %80 = vector.shape_cast %79 : vector<8xf32> to vector<8x1xf32>
    %cst_39 = arith.constant 3.200000e+01 : f32
    %81 = vector.broadcast %cst_39 : f32 to vector<8x1xf32>
    %82 = arith.divf %80, %81 : vector<8x1xf32>
    %83 = vector.broadcast %82 : vector<8x1xf32> to vector<8x32xf32>
    %84 = arith.subf %78, %83 : vector<8x32xf32>
    %85 = arith.mulf %84, %84 : vector<8x32xf32>
    %cst_40 = arith.constant dense<0.000000e+00> : vector<8xf32>
    %86 = vector.multi_reduction <add>, %85, %cst_40 [1] : vector<8x32xf32> to vector<8xf32>
    %87 = vector.shape_cast %86 : vector<8xf32> to vector<8x1xf32>
    %cst_41 = arith.constant 3.200000e+01 : f32
    %88 = vector.broadcast %cst_41 : f32 to vector<8x1xf32>
    %89 = arith.divf %87, %88 : vector<8x1xf32>
    %90 = vector.broadcast %82 : vector<8x1xf32> to vector<8x32xf32>
    %91 = arith.subf %78, %90 : vector<8x32xf32>
    %cst_42 = arith.constant 9.99999974E-6 : f32
    %92 = vector.broadcast %cst_42 : f32 to vector<8x1xf32>
    %93 = arith.addf %89, %92 : vector<8x1xf32>
    %94 = math.rsqrt %93 : vector<8x1xf32>
    %95 = vector.broadcast %94 : vector<8x1xf32> to vector<8x32xf32>
    %96 = arith.mulf %91, %95 : vector<8x32xf32>
    %97 = vector.broadcast %23 : vector<1x32xf32> to vector<8x32xf32>
    %98 = arith.mulf %96, %97 : vector<8x32xf32>
    %99 = vector.broadcast %24 : vector<1x32xf32> to vector<8x32xf32>
    %100 = arith.addf %98, %99 : vector<8x32xf32>
    %101 = vector.broadcast %10 : vector<8x1xf32> to vector<8x32xf32>
    %102 = arith.mulf %100, %101 : vector<8x32xf32>
    %cst_43 = arith.constant 0.000000e+00 : f32
    %103 = vector.broadcast %cst_43 : f32 to vector<4x32xf32>
    %104 = tpu.concatenate %103, %102, %103 in 0 : vector<4x32xf32>, vector<8x32xf32>, vector<4x32xf32> -> vector<16x32xf32>
    %105 = vector.extract_strided_slice %104 {offsets = [0, 0], sizes = [8, 32], strides = [1, 1]} : vector<16x32xf32> to vector<8x32xf32>
    %106 = vector.extract_strided_slice %104 {offsets = [1, 0], sizes = [8, 32], strides = [1, 1]} : vector<16x32xf32> to vector<8x32xf32>
    %107 = vector.extract_strided_slice %104 {offsets = [2, 0], sizes = [8, 32], strides = [1, 1]} : vector<16x32xf32> to vector<8x32xf32>
    %108 = vector.extract_strided_slice %104 {offsets = [3, 0], sizes = [8, 32], strides = [1, 1]} : vector<16x32xf32> to vector<8x32xf32>
    %109 = vector.extract_strided_slice %104 {offsets = [4, 0], sizes = [8, 32], strides = [1, 1]} : vector<16x32xf32> to vector<8x32xf32>
    %110 = vector.extract_strided_slice %104 {offsets = [5, 0], sizes = [8, 32], strides = [1, 1]} : vector<16x32xf32> to vector<8x32xf32>
    %111 = vector.extract_strided_slice %104 {offsets = [6, 0], sizes = [8, 32], strides = [1, 1]} : vector<16x32xf32> to vector<8x32xf32>
    %112 = vector.extract_strided_slice %104 {offsets = [7, 0], sizes = [8, 32], strides = [1, 1]} : vector<16x32xf32> to vector<8x32xf32>
    %113 = vector.extract_strided_slice %104 {offsets = [8, 0], sizes = [8, 32], strides = [1, 1]} : vector<16x32xf32> to vector<8x32xf32>
    %114 = tpu.concatenate %105, %106, %107, %108, %109, %110, %111, %112, %113 in 1 : vector<8x32xf32>, vector<8x32xf32>, vector<8x32xf32>, vector<8x32xf32>, vector<8x32xf32>, vector<8x32xf32>, vector<8x32xf32>, vector<8x32xf32>, vector<8x32xf32> -> vector<8x288xf32>
    %cst_44 = arith.constant dense<0.000000e+00> : vector<8x64xf32>
    %115 = tpu.matmul %114, %16, %cst_44 {dimension_numbers = #tpu.dot_dimension_numbers<[1], [0], [0], [1], [0, 0, 1, 1], [], []>} : vector<8x288xf32>, vector<288x64xf32>, vector<8x64xf32> -> vector<8x64xf32>
    %116 = vector.broadcast %25 : vector<1x64xf32> to vector<8x64xf32>
    %117 = arith.addf %115, %116 : vector<8x64xf32>
    %cst_45 = arith.constant 0.000000e+00 : f32
    %118 = vector.broadcast %cst_45 : f32 to vector<8x64xf32>
    %119 = arith.maximumf %117, %118 : vector<8x64xf32>
    %cst_46 = arith.constant dense<0.000000e+00> : vector<8x32xf32>
    %120 = tpu.matmul %119, %18, %cst_46 {dimension_numbers = #tpu.dot_dimension_numbers<[1], [0], [0], [1], [0, 0, 1, 1], [], []>} : vector<8x64xf32>, vector<64x32xf32>, vector<8x32xf32> -> vector<8x32xf32>
    %121 = vector.broadcast %26 : vector<1x32xf32> to vector<8x32xf32>
    %122 = arith.addf %120, %121 : vector<8x32xf32>
    %123 = arith.addf %122, %102 : vector<8x32xf32>
    %cst_47 = arith.constant dense<0.000000e+00> : vector<8xf32>
    %124 = vector.multi_reduction <add>, %123, %cst_47 [1] : vector<8x32xf32> to vector<8xf32>
    %125 = vector.shape_cast %124 : vector<8xf32> to vector<8x1xf32>
    %cst_48 = arith.constant 3.200000e+01 : f32
    %126 = vector.broadcast %cst_48 : f32 to vector<8x1xf32>
    %127 = arith.divf %125, %126 : vector<8x1xf32>
    %128 = vector.broadcast %127 : vector<8x1xf32> to vector<8x32xf32>
    %129 = arith.subf %123, %128 : vector<8x32xf32>
    %130 = arith.mulf %129, %129 : vector<8x32xf32>
    %cst_49 = arith.constant dense<0.000000e+00> : vector<8xf32>
    %131 = vector.multi_reduction <add>, %130, %cst_49 [1] : vector<8x32xf32> to vector<8xf32>
    %132 = vector.shape_cast %131 : vector<8xf32> to vector<8x1xf32>
    %cst_50 = arith.constant 3.200000e+01 : f32
    %133 = vector.broadcast %cst_50 : f32 to vector<8x1xf32>
    %134 = arith.divf %132, %133 : vector<8x1xf32>
    %135 = vector.broadcast %127 : vector<8x1xf32> to vector<8x32xf32>
    %136 = arith.subf %123, %135 : vector<8x32xf32>
    %cst_51 = arith.constant 9.99999974E-6 : f32
    %137 = vector.broadcast %cst_51 : f32 to vector<8x1xf32>
    %138 = arith.addf %134, %137 : vector<8x1xf32>
    %139 = math.rsqrt %138 : vector<8x1xf32>
    %140 = vector.broadcast %139 : vector<8x1xf32> to vector<8x32xf32>
    %141 = arith.mulf %136, %140 : vector<8x32xf32>
    %142 = vector.broadcast %27 : vector<1x32xf32> to vector<8x32xf32>
    %143 = arith.mulf %141, %142 : vector<8x32xf32>
    %144 = vector.broadcast %28 : vector<1x32xf32> to vector<8x32xf32>
    %145 = arith.addf %143, %144 : vector<8x32xf32>
    %146 = vector.broadcast %10 : vector<8x1xf32> to vector<8x32xf32>
    %147 = arith.mulf %145, %146 : vector<8x32xf32>
    %148 = vector.shape_cast %147 : vector<8x32xf32> to vector<1x8x32xf32>
    %c0_52 = arith.constant 0 : index
    %c0_53 = arith.constant 0 : index
    %c0_54 = arith.constant 0 : index
    %149 = vector.load %arg10[%c0_52, %c0_53, %c0_54] : memref<1x8x32xf32, #tpu.memory_space<vmem>>, vector<1x8x32xf32>
    tpu.vector_store %arg10[%c0_52, %c0_53, %c0_54], %148 {strides = array<i32>} : memref<1x8x32xf32, #tpu.memory_space<vmem>>, vector<1x8x32xf32>,
    return
  }
  func.func @transform_0(%arg0: i32, %arg1: i32) -> (i32, i32, i32) {
    %c0_i32 = arith.constant 0 : i32
    %c0_i32_0 = arith.constant 0 : i32
    %c0_i32_1 = arith.constant 0 : i32
    return %arg0, %c0_i32, %c0_i32_0 : i32, i32, i32
  }
  func.func @transform_1(%arg0: i32, %arg1: i32) -> (i32, i32, i32) {
    %c0_i32 = arith.constant 0 : i32
    %c0_i32_0 = arith.constant 0 : i32
    %c0_i32_1 = arith.constant 0 : i32
    return %arg0, %c0_i32, %c0_i32_0 : i32, i32, i32
  }
  func.func @transform_2(%arg0: i32, %arg1: i32) -> (i32, i32, i32) {
    %c0_i32 = arith.constant 0 : i32
    %c0_i32_0 = arith.constant 0 : i32
    %c0_i32_1 = arith.constant 0 : i32
    return %arg0, %c0_i32, %c0_i32_0 : i32, i32, i32
  }
  func.func @transform_3(%arg0: i32, %arg1: i32) -> (i32, i32, i32) {
    %c0_i32 = arith.constant 0 : i32
    %c0_i32_0 = arith.constant 0 : i32
    %c0_i32_1 = arith.constant 0 : i32
    return %arg1, %c0_i32, %c0_i32_0 : i32, i32, i32
  }
  func.func @transform_4(%arg0: i32, %arg1: i32) -> (i32, i32, i32) {
    %c0_i32 = arith.constant 0 : i32
    %c0_i32_0 = arith.constant 0 : i32
    %c0_i32_1 = arith.constant 0 : i32
    return %arg1, %c0_i32, %c0_i32_0 : i32, i32, i32
  }
  func.func @transform_5(%arg0: i32, %arg1: i32) -> (i32, i32, i32) {
    %c0_i32 = arith.constant 0 : i32
    %c0_i32_0 = arith.constant 0 : i32
    %c0_i32_1 = arith.constant 0 : i32
    return %arg1, %c0_i32, %c0_i32_0 : i32, i32, i32
  }
  func.func @transform_6(%arg0: i32, %arg1: i32) -> (i32, i32, i32) {
    %c0_i32 = arith.constant 0 : i32
    %c0_i32_0 = arith.constant 0 : i32
    %c0_i32_1 = arith.constant 0 : i32
    return %arg1, %c0_i32, %c0_i32_0 : i32, i32, i32
  }
  func.func @transform_7(%arg0: i32, %arg1: i32) -> (i32, i32, i32) {
    %c0_i32 = arith.constant 0 : i32
    %c0_i32_0 = arith.constant 0 : i32
    %c0_i32_1 = arith.constant 0 : i32
    return %arg1, %c0_i32, %c0_i32_0 : i32, i32, i32
  }
  func.func @transform_8(%arg0: i32, %arg1: i32) -> (i32, i32, i32) {
    %c0_i32 = arith.constant 0 : i32
    %c0_i32_0 = arith.constant 0 : i32
    %c0_i32_1 = arith.constant 0 : i32
    return %arg0, %c0_i32, %c0_i32_0 : i32, i32, i32
  }
}

module attributes {stable_mosaic.version = 11 : i64} {
  func.func @_var_adaptor_kernel(%arg0: i32, %arg1: memref<1x8x32xf32, #tpu.memory_space<vmem>>, %arg2: memref<1x8x1xf32, #tpu.memory_space<vmem>>, %arg3: memref<1x8x32xf32, #tpu.memory_space<vmem>>, %arg4: memref<1x8x32xf32, #tpu.memory_space<vmem>>, %arg5: memref<3x96x32xf32, #tpu.memory_space<vmem>>, %arg6: memref<3x96x32xf32, #tpu.memory_space<vmem>>, %arg7: memref<3x32x128xf32, #tpu.memory_space<vmem>>, %arg8: memref<3x8x128xf32, #tpu.memory_space<vmem>>, %arg9: memref<1x8x32xf32, #tpu.memory_space<vmem>>, %arg10: memref<1x8x128xf32, #tpu.memory_space<vmem>>) attributes {dimension_semantics = [#tpu.dimension_semantics<parallel>], iteration_bounds = array<i64: 2>, scalar_prefetch = 0 : i64, scratch_operands = 0 : i64, tpu.core_type = #tpu.core_type<tc>, window_params = [{transform_indices = @transform_0, window_bounds = array<i64: 1, 8, 32>}, {transform_indices = @transform_1, window_bounds = array<i64: 1, 8, 1>}, {transform_indices = @transform_2, window_bounds = array<i64: 1, 8, 32>}, {transform_indices = @transform_3, window_bounds = array<i64: 1, 8, 32>}, {pipeline_mode = #tpu.pipeline_mode<synchronous>, transform_indices = @transform_4, window_bounds = array<i64: 3, 96, 32>}, {pipeline_mode = #tpu.pipeline_mode<synchronous>, transform_indices = @transform_5, window_bounds = array<i64: 3, 96, 32>}, {pipeline_mode = #tpu.pipeline_mode<synchronous>, transform_indices = @transform_6, window_bounds = array<i64: 3, 32, 128>}, {pipeline_mode = #tpu.pipeline_mode<synchronous>, transform_indices = @transform_7, window_bounds = array<i64: 3, 8, 128>}, {transform_indices = @transform_8, window_bounds = array<i64: 1, 8, 32>}, {transform_indices = @transform_9, window_bounds = array<i64: 1, 8, 128>}]} {
    %c0 = arith.constant 0 : index
    %c0_0 = arith.constant 0 : index
    %c0_1 = arith.constant 0 : index
    %0 = vector.load %arg1[%c0, %c0_0, %c0_1] : memref<1x8x32xf32, #tpu.memory_space<vmem>>, vector<1x8x32xf32>
    %1 = vector.shape_cast %0 : vector<1x8x32xf32> to vector<8x32xf32>
    %c0_2 = arith.constant 0 : index
    %c0_3 = arith.constant 0 : index
    %c0_4 = arith.constant 0 : index
    %2 = vector.load %arg2[%c0_2, %c0_3, %c0_4] : memref<1x8x1xf32, #tpu.memory_space<vmem>>, vector<1x8x1xf32>
    %3 = vector.shape_cast %2 : vector<1x8x1xf32> to vector<8x1xf32>
    %cst = arith.constant 1.000000e+00 : f32
    %4 = vector.broadcast %cst : f32 to vector<8x1xf32>
    %5 = arith.subf %4, %3 : vector<8x1xf32>
    %c0_5 = arith.constant 0 : index
    %c0_6 = arith.constant 0 : index
    %c0_7 = arith.constant 0 : index
    %6 = vector.load %arg5[%c0_5, %c0_6, %c0_7] : memref<3x96x32xf32, #tpu.memory_space<vmem>>, vector<1x96x32xf32>
    %7 = vector.shape_cast %6 : vector<1x96x32xf32> to vector<96x32xf32>
    %c0_8 = arith.constant 0 : index
    %c0_9 = arith.constant 0 : index
    %c0_10 = arith.constant 0 : index
    %8 = vector.load %arg6[%c0_8, %c0_9, %c0_10] : memref<3x96x32xf32, #tpu.memory_space<vmem>>, vector<1x96x32xf32>
    %9 = vector.shape_cast %8 : vector<1x96x32xf32> to vector<96x32xf32>
    %c0_11 = arith.constant 0 : index
    %c0_12 = arith.constant 0 : index
    %c0_13 = arith.constant 0 : index
    %10 = vector.load %arg7[%c0_11, %c0_12, %c0_13] : memref<3x32x128xf32, #tpu.memory_space<vmem>>, vector<1x32x128xf32>
    %11 = vector.shape_cast %10 : vector<1x32x128xf32> to vector<32x128xf32>
    %c0_14 = arith.constant 0 : index
    %c0_15 = arith.constant 0 : index
    %c0_16 = arith.constant 0 : index
    %12 = vector.load %arg8[%c0_14, %c0_15, %c0_16] : memref<3x8x128xf32, #tpu.memory_space<vmem>>, vector<1x8x128xf32>
    %13 = vector.shape_cast %12 : vector<1x8x128xf32> to vector<8x128xf32>
    %14 = vector.extract_strided_slice %13 {offsets = [0, 0], sizes = [1, 32], strides = [1, 1]} : vector<8x128xf32> to vector<1x32xf32>
    %15 = vector.extract_strided_slice %13 {offsets = [1, 0], sizes = [1, 32], strides = [1, 1]} : vector<8x128xf32> to vector<1x32xf32>
    %16 = vector.extract_strided_slice %13 {offsets = [2, 0], sizes = [1, 32], strides = [1, 1]} : vector<8x128xf32> to vector<1x32xf32>
    %17 = vector.extract_strided_slice %13 {offsets = [3, 0], sizes = [1, 32], strides = [1, 1]} : vector<8x128xf32> to vector<1x32xf32>
    %18 = vector.extract_strided_slice %13 {offsets = [4, 0], sizes = [1, 32], strides = [1, 1]} : vector<8x128xf32> to vector<1x32xf32>
    %19 = vector.extract_strided_slice %13 {offsets = [5, 0], sizes = [1, 32], strides = [1, 1]} : vector<8x128xf32> to vector<1x32xf32>
    %20 = vector.extract_strided_slice %13 {offsets = [6, 0], sizes = [1, 128], strides = [1, 1]} : vector<8x128xf32> to vector<1x128xf32>
    %cst_17 = arith.constant 0.000000e+00 : f32
    %21 = vector.broadcast %cst_17 : f32 to vector<1x32xf32>
    %22 = tpu.concatenate %21, %1, %21 in 0 : vector<1x32xf32>, vector<8x32xf32>, vector<1x32xf32> -> vector<10x32xf32>
    %23 = vector.extract_strided_slice %22 {offsets = [0, 0], sizes = [8, 32], strides = [1, 1]} : vector<10x32xf32> to vector<8x32xf32>
    %24 = vector.extract_strided_slice %22 {offsets = [1, 0], sizes = [8, 32], strides = [1, 1]} : vector<10x32xf32> to vector<8x32xf32>
    %25 = vector.extract_strided_slice %22 {offsets = [2, 0], sizes = [8, 32], strides = [1, 1]} : vector<10x32xf32> to vector<8x32xf32>
    %26 = tpu.concatenate %23, %24, %25 in 1 : vector<8x32xf32>, vector<8x32xf32>, vector<8x32xf32> -> vector<8x96xf32>
    %cst_18 = arith.constant dense<0.000000e+00> : vector<8x32xf32>
    %27 = tpu.matmul %26, %7, %cst_18 {dimension_numbers = #tpu.dot_dimension_numbers<[1], [0], [0], [1], [0, 0, 1, 1], [], []>} : vector<8x96xf32>, vector<96x32xf32>, vector<8x32xf32> -> vector<8x32xf32>
    %28 = vector.broadcast %14 : vector<1x32xf32> to vector<8x32xf32>
    %29 = arith.addf %27, %28 : vector<8x32xf32>
    %cst_19 = arith.constant 0.000000e+00 : f32
    %30 = vector.broadcast %cst_19 : f32 to vector<8x32xf32>
    %31 = arith.maximumf %29, %30 : vector<8x32xf32>
    %cst_20 = arith.constant dense<0.000000e+00> : vector<8xf32>
    %32 = vector.multi_reduction <add>, %31, %cst_20 [1] : vector<8x32xf32> to vector<8xf32>
    %33 = vector.shape_cast %32 : vector<8xf32> to vector<8x1xf32>
    %cst_21 = arith.constant 3.200000e+01 : f32
    %34 = vector.broadcast %cst_21 : f32 to vector<8x1xf32>
    %35 = arith.divf %33, %34 : vector<8x1xf32>
    %36 = vector.broadcast %35 : vector<8x1xf32> to vector<8x32xf32>
    %37 = arith.subf %31, %36 : vector<8x32xf32>
    %38 = arith.mulf %37, %37 : vector<8x32xf32>
    %cst_22 = arith.constant dense<0.000000e+00> : vector<8xf32>
    %39 = vector.multi_reduction <add>, %38, %cst_22 [1] : vector<8x32xf32> to vector<8xf32>
    %40 = vector.shape_cast %39 : vector<8xf32> to vector<8x1xf32>
    %cst_23 = arith.constant 3.200000e+01 : f32
    %41 = vector.broadcast %cst_23 : f32 to vector<8x1xf32>
    %42 = arith.divf %40, %41 : vector<8x1xf32>
    %43 = vector.broadcast %35 : vector<8x1xf32> to vector<8x32xf32>
    %44 = arith.subf %31, %43 : vector<8x32xf32>
    %cst_24 = arith.constant 9.99999974E-6 : f32
    %45 = vector.broadcast %cst_24 : f32 to vector<8x1xf32>
    %46 = arith.addf %42, %45 : vector<8x1xf32>
    %47 = math.rsqrt %46 : vector<8x1xf32>
    %48 = vector.broadcast %47 : vector<8x1xf32> to vector<8x32xf32>
    %49 = arith.mulf %44, %48 : vector<8x32xf32>
    %50 = vector.broadcast %15 : vector<1x32xf32> to vector<8x32xf32>
    %51 = arith.mulf %49, %50 : vector<8x32xf32>
    %52 = vector.broadcast %16 : vector<1x32xf32> to vector<8x32xf32>
    %53 = arith.addf %51, %52 : vector<8x32xf32>
    %cst_25 = arith.constant 0.000000e+00 : f32
    %54 = vector.broadcast %cst_25 : f32 to vector<1x32xf32>
    %55 = tpu.concatenate %54, %53, %54 in 0 : vector<1x32xf32>, vector<8x32xf32>, vector<1x32xf32> -> vector<10x32xf32>
    %56 = vector.extract_strided_slice %55 {offsets = [0, 0], sizes = [8, 32], strides = [1, 1]} : vector<10x32xf32> to vector<8x32xf32>
    %57 = vector.extract_strided_slice %55 {offsets = [1, 0], sizes = [8, 32], strides = [1, 1]} : vector<10x32xf32> to vector<8x32xf32>
    %58 = vector.extract_strided_slice %55 {offsets = [2, 0], sizes = [8, 32], strides = [1, 1]} : vector<10x32xf32> to vector<8x32xf32>
    %59 = tpu.concatenate %56, %57, %58 in 1 : vector<8x32xf32>, vector<8x32xf32>, vector<8x32xf32> -> vector<8x96xf32>
    %cst_26 = arith.constant dense<0.000000e+00> : vector<8x32xf32>
    %60 = tpu.matmul %59, %9, %cst_26 {dimension_numbers = #tpu.dot_dimension_numbers<[1], [0], [0], [1], [0, 0, 1, 1], [], []>} : vector<8x96xf32>, vector<96x32xf32>, vector<8x32xf32> -> vector<8x32xf32>
    %61 = vector.broadcast %17 : vector<1x32xf32> to vector<8x32xf32>
    %62 = arith.addf %60, %61 : vector<8x32xf32>
    %cst_27 = arith.constant 0.000000e+00 : f32
    %63 = vector.broadcast %cst_27 : f32 to vector<8x32xf32>
    %64 = arith.maximumf %62, %63 : vector<8x32xf32>
    %cst_28 = arith.constant dense<0.000000e+00> : vector<8xf32>
    %65 = vector.multi_reduction <add>, %64, %cst_28 [1] : vector<8x32xf32> to vector<8xf32>
    %66 = vector.shape_cast %65 : vector<8xf32> to vector<8x1xf32>
    %cst_29 = arith.constant 3.200000e+01 : f32
    %67 = vector.broadcast %cst_29 : f32 to vector<8x1xf32>
    %68 = arith.divf %66, %67 : vector<8x1xf32>
    %69 = vector.broadcast %68 : vector<8x1xf32> to vector<8x32xf32>
    %70 = arith.subf %64, %69 : vector<8x32xf32>
    %71 = arith.mulf %70, %70 : vector<8x32xf32>
    %cst_30 = arith.constant dense<0.000000e+00> : vector<8xf32>
    %72 = vector.multi_reduction <add>, %71, %cst_30 [1] : vector<8x32xf32> to vector<8xf32>
    %73 = vector.shape_cast %72 : vector<8xf32> to vector<8x1xf32>
    %cst_31 = arith.constant 3.200000e+01 : f32
    %74 = vector.broadcast %cst_31 : f32 to vector<8x1xf32>
    %75 = arith.divf %73, %74 : vector<8x1xf32>
    %76 = vector.broadcast %68 : vector<8x1xf32> to vector<8x32xf32>
    %77 = arith.subf %64, %76 : vector<8x32xf32>
    %cst_32 = arith.constant 9.99999974E-6 : f32
    %78 = vector.broadcast %cst_32 : f32 to vector<8x1xf32>
    %79 = arith.addf %75, %78 : vector<8x1xf32>
    %80 = math.rsqrt %79 : vector<8x1xf32>
    %81 = vector.broadcast %80 : vector<8x1xf32> to vector<8x32xf32>
    %82 = arith.mulf %77, %81 : vector<8x32xf32>
    %83 = vector.broadcast %18 : vector<1x32xf32> to vector<8x32xf32>
    %84 = arith.mulf %82, %83 : vector<8x32xf32>
    %85 = vector.broadcast %19 : vector<1x32xf32> to vector<8x32xf32>
    %86 = arith.addf %84, %85 : vector<8x32xf32>
    %cst_33 = arith.constant dense<0.000000e+00> : vector<8x128xf32>
    %87 = tpu.matmul %86, %11, %cst_33 {dimension_numbers = #tpu.dot_dimension_numbers<[1], [0], [0], [1], [0, 0, 1, 1], [], []>} : vector<8x32xf32>, vector<32x128xf32>, vector<8x128xf32> -> vector<8x128xf32>
    %88 = vector.broadcast %20 : vector<1x128xf32> to vector<8x128xf32>
    %89 = arith.addf %87, %88 : vector<8x128xf32>
    %90 = vector.broadcast %5 : vector<8x1xf32> to vector<8x128xf32>
    %91 = arith.mulf %89, %90 : vector<8x128xf32>
    %c1 = arith.constant 1 : index
    %c0_34 = arith.constant 0 : index
    %c0_35 = arith.constant 0 : index
    %92 = vector.load %arg5[%c1, %c0_34, %c0_35] : memref<3x96x32xf32, #tpu.memory_space<vmem>>, vector<1x96x32xf32>
    %93 = vector.shape_cast %92 : vector<1x96x32xf32> to vector<96x32xf32>
    %c1_36 = arith.constant 1 : index
    %c0_37 = arith.constant 0 : index
    %c0_38 = arith.constant 0 : index
    %94 = vector.load %arg6[%c1_36, %c0_37, %c0_38] : memref<3x96x32xf32, #tpu.memory_space<vmem>>, vector<1x96x32xf32>
    %95 = vector.shape_cast %94 : vector<1x96x32xf32> to vector<96x32xf32>
    %c1_39 = arith.constant 1 : index
    %c0_40 = arith.constant 0 : index
    %c0_41 = arith.constant 0 : index
    %96 = vector.load %arg7[%c1_39, %c0_40, %c0_41] : memref<3x32x128xf32, #tpu.memory_space<vmem>>, vector<1x32x128xf32>
    %97 = vector.shape_cast %96 : vector<1x32x128xf32> to vector<32x128xf32>
    %c1_42 = arith.constant 1 : index
    %c0_43 = arith.constant 0 : index
    %c0_44 = arith.constant 0 : index
    %98 = vector.load %arg8[%c1_42, %c0_43, %c0_44] : memref<3x8x128xf32, #tpu.memory_space<vmem>>, vector<1x8x128xf32>
    %99 = vector.shape_cast %98 : vector<1x8x128xf32> to vector<8x128xf32>
    %100 = vector.extract_strided_slice %99 {offsets = [0, 0], sizes = [1, 32], strides = [1, 1]} : vector<8x128xf32> to vector<1x32xf32>
    %101 = vector.extract_strided_slice %99 {offsets = [1, 0], sizes = [1, 32], strides = [1, 1]} : vector<8x128xf32> to vector<1x32xf32>
    %102 = vector.extract_strided_slice %99 {offsets = [2, 0], sizes = [1, 32], strides = [1, 1]} : vector<8x128xf32> to vector<1x32xf32>
    %103 = vector.extract_strided_slice %99 {offsets = [3, 0], sizes = [1, 32], strides = [1, 1]} : vector<8x128xf32> to vector<1x32xf32>
    %104 = vector.extract_strided_slice %99 {offsets = [4, 0], sizes = [1, 32], strides = [1, 1]} : vector<8x128xf32> to vector<1x32xf32>
    %105 = vector.extract_strided_slice %99 {offsets = [5, 0], sizes = [1, 32], strides = [1, 1]} : vector<8x128xf32> to vector<1x32xf32>
    %106 = vector.extract_strided_slice %99 {offsets = [6, 0], sizes = [1, 128], strides = [1, 1]} : vector<8x128xf32> to vector<1x128xf32>
    %cst_45 = arith.constant 0.000000e+00 : f32
    %107 = vector.broadcast %cst_45 : f32 to vector<1x32xf32>
    %108 = tpu.concatenate %107, %1, %107 in 0 : vector<1x32xf32>, vector<8x32xf32>, vector<1x32xf32> -> vector<10x32xf32>
    %109 = vector.extract_strided_slice %108 {offsets = [0, 0], sizes = [8, 32], strides = [1, 1]} : vector<10x32xf32> to vector<8x32xf32>
    %110 = vector.extract_strided_slice %108 {offsets = [1, 0], sizes = [8, 32], strides = [1, 1]} : vector<10x32xf32> to vector<8x32xf32>
    %111 = vector.extract_strided_slice %108 {offsets = [2, 0], sizes = [8, 32], strides = [1, 1]} : vector<10x32xf32> to vector<8x32xf32>
    %112 = tpu.concatenate %109, %110, %111 in 1 : vector<8x32xf32>, vector<8x32xf32>, vector<8x32xf32> -> vector<8x96xf32>
    %cst_46 = arith.constant dense<0.000000e+00> : vector<8x32xf32>
    %113 = tpu.matmul %112, %93, %cst_46 {dimension_numbers = #tpu.dot_dimension_numbers<[1], [0], [0], [1], [0, 0, 1, 1], [], []>} : vector<8x96xf32>, vector<96x32xf32>, vector<8x32xf32> -> vector<8x32xf32>
    %114 = vector.broadcast %100 : vector<1x32xf32> to vector<8x32xf32>
    %115 = arith.addf %113, %114 : vector<8x32xf32>
    %cst_47 = arith.constant 0.000000e+00 : f32
    %116 = vector.broadcast %cst_47 : f32 to vector<8x32xf32>
    %117 = arith.maximumf %115, %116 : vector<8x32xf32>
    %cst_48 = arith.constant dense<0.000000e+00> : vector<8xf32>
    %118 = vector.multi_reduction <add>, %117, %cst_48 [1] : vector<8x32xf32> to vector<8xf32>
    %119 = vector.shape_cast %118 : vector<8xf32> to vector<8x1xf32>
    %cst_49 = arith.constant 3.200000e+01 : f32
    %120 = vector.broadcast %cst_49 : f32 to vector<8x1xf32>
    %121 = arith.divf %119, %120 : vector<8x1xf32>
    %122 = vector.broadcast %121 : vector<8x1xf32> to vector<8x32xf32>
    %123 = arith.subf %117, %122 : vector<8x32xf32>
    %124 = arith.mulf %123, %123 : vector<8x32xf32>
    %cst_50 = arith.constant dense<0.000000e+00> : vector<8xf32>
    %125 = vector.multi_reduction <add>, %124, %cst_50 [1] : vector<8x32xf32> to vector<8xf32>
    %126 = vector.shape_cast %125 : vector<8xf32> to vector<8x1xf32>
    %cst_51 = arith.constant 3.200000e+01 : f32
    %127 = vector.broadcast %cst_51 : f32 to vector<8x1xf32>
    %128 = arith.divf %126, %127 : vector<8x1xf32>
    %129 = vector.broadcast %121 : vector<8x1xf32> to vector<8x32xf32>
    %130 = arith.subf %117, %129 : vector<8x32xf32>
    %cst_52 = arith.constant 9.99999974E-6 : f32
    %131 = vector.broadcast %cst_52 : f32 to vector<8x1xf32>
    %132 = arith.addf %128, %131 : vector<8x1xf32>
    %133 = math.rsqrt %132 : vector<8x1xf32>
    %134 = vector.broadcast %133 : vector<8x1xf32> to vector<8x32xf32>
    %135 = arith.mulf %130, %134 : vector<8x32xf32>
    %136 = vector.broadcast %101 : vector<1x32xf32> to vector<8x32xf32>
    %137 = arith.mulf %135, %136 : vector<8x32xf32>
    %138 = vector.broadcast %102 : vector<1x32xf32> to vector<8x32xf32>
    %139 = arith.addf %137, %138 : vector<8x32xf32>
    %cst_53 = arith.constant 0.000000e+00 : f32
    %140 = vector.broadcast %cst_53 : f32 to vector<1x32xf32>
    %141 = tpu.concatenate %140, %139, %140 in 0 : vector<1x32xf32>, vector<8x32xf32>, vector<1x32xf32> -> vector<10x32xf32>
    %142 = vector.extract_strided_slice %141 {offsets = [0, 0], sizes = [8, 32], strides = [1, 1]} : vector<10x32xf32> to vector<8x32xf32>
    %143 = vector.extract_strided_slice %141 {offsets = [1, 0], sizes = [8, 32], strides = [1, 1]} : vector<10x32xf32> to vector<8x32xf32>
    %144 = vector.extract_strided_slice %141 {offsets = [2, 0], sizes = [8, 32], strides = [1, 1]} : vector<10x32xf32> to vector<8x32xf32>
    %145 = tpu.concatenate %142, %143, %144 in 1 : vector<8x32xf32>, vector<8x32xf32>, vector<8x32xf32> -> vector<8x96xf32>
    %cst_54 = arith.constant dense<0.000000e+00> : vector<8x32xf32>
    %146 = tpu.matmul %145, %95, %cst_54 {dimension_numbers = #tpu.dot_dimension_numbers<[1], [0], [0], [1], [0, 0, 1, 1], [], []>} : vector<8x96xf32>, vector<96x32xf32>, vector<8x32xf32> -> vector<8x32xf32>
    %147 = vector.broadcast %103 : vector<1x32xf32> to vector<8x32xf32>
    %148 = arith.addf %146, %147 : vector<8x32xf32>
    %cst_55 = arith.constant 0.000000e+00 : f32
    %149 = vector.broadcast %cst_55 : f32 to vector<8x32xf32>
    %150 = arith.maximumf %148, %149 : vector<8x32xf32>
    %cst_56 = arith.constant dense<0.000000e+00> : vector<8xf32>
    %151 = vector.multi_reduction <add>, %150, %cst_56 [1] : vector<8x32xf32> to vector<8xf32>
    %152 = vector.shape_cast %151 : vector<8xf32> to vector<8x1xf32>
    %cst_57 = arith.constant 3.200000e+01 : f32
    %153 = vector.broadcast %cst_57 : f32 to vector<8x1xf32>
    %154 = arith.divf %152, %153 : vector<8x1xf32>
    %155 = vector.broadcast %154 : vector<8x1xf32> to vector<8x32xf32>
    %156 = arith.subf %150, %155 : vector<8x32xf32>
    %157 = arith.mulf %156, %156 : vector<8x32xf32>
    %cst_58 = arith.constant dense<0.000000e+00> : vector<8xf32>
    %158 = vector.multi_reduction <add>, %157, %cst_58 [1] : vector<8x32xf32> to vector<8xf32>
    %159 = vector.shape_cast %158 : vector<8xf32> to vector<8x1xf32>
    %cst_59 = arith.constant 3.200000e+01 : f32
    %160 = vector.broadcast %cst_59 : f32 to vector<8x1xf32>
    %161 = arith.divf %159, %160 : vector<8x1xf32>
    %162 = vector.broadcast %154 : vector<8x1xf32> to vector<8x32xf32>
    %163 = arith.subf %150, %162 : vector<8x32xf32>
    %cst_60 = arith.constant 9.99999974E-6 : f32
    %164 = vector.broadcast %cst_60 : f32 to vector<8x1xf32>
    %165 = arith.addf %161, %164 : vector<8x1xf32>
    %166 = math.rsqrt %165 : vector<8x1xf32>
    %167 = vector.broadcast %166 : vector<8x1xf32> to vector<8x32xf32>
    %168 = arith.mulf %163, %167 : vector<8x32xf32>
    %169 = vector.broadcast %104 : vector<1x32xf32> to vector<8x32xf32>
    %170 = arith.mulf %168, %169 : vector<8x32xf32>
    %171 = vector.broadcast %105 : vector<1x32xf32> to vector<8x32xf32>
    %172 = arith.addf %170, %171 : vector<8x32xf32>
    %cst_61 = arith.constant dense<0.000000e+00> : vector<8x128xf32>
    %173 = tpu.matmul %172, %97, %cst_61 {dimension_numbers = #tpu.dot_dimension_numbers<[1], [0], [0], [1], [0, 0, 1, 1], [], []>} : vector<8x32xf32>, vector<32x128xf32>, vector<8x128xf32> -> vector<8x128xf32>
    %174 = vector.broadcast %106 : vector<1x128xf32> to vector<8x128xf32>
    %175 = arith.addf %173, %174 : vector<8x128xf32>
    %176 = vector.broadcast %5 : vector<8x1xf32> to vector<8x128xf32>
    %177 = arith.mulf %175, %176 : vector<8x128xf32>
    %c0_62 = arith.constant 0 : index
    %c0_63 = arith.constant 0 : index
    %c0_64 = arith.constant 0 : index
    %178 = vector.load %arg3[%c0_62, %c0_63, %c0_64] : memref<1x8x32xf32, #tpu.memory_space<vmem>>, vector<1x8x32xf32>
    %179 = vector.shape_cast %178 : vector<1x8x32xf32> to vector<8x32xf32>
    %180 = arith.addf %1, %179 : vector<8x32xf32>
    %c2 = arith.constant 2 : index
    %c0_65 = arith.constant 0 : index
    %c0_66 = arith.constant 0 : index
    %181 = vector.load %arg5[%c2, %c0_65, %c0_66] : memref<3x96x32xf32, #tpu.memory_space<vmem>>, vector<1x96x32xf32>
    %182 = vector.shape_cast %181 : vector<1x96x32xf32> to vector<96x32xf32>
    %c2_67 = arith.constant 2 : index
    %c0_68 = arith.constant 0 : index
    %c0_69 = arith.constant 0 : index
    %183 = vector.load %arg6[%c2_67, %c0_68, %c0_69] : memref<3x96x32xf32, #tpu.memory_space<vmem>>, vector<1x96x32xf32>
    %184 = vector.shape_cast %183 : vector<1x96x32xf32> to vector<96x32xf32>
    %c2_70 = arith.constant 2 : index
    %c0_71 = arith.constant 0 : index
    %c0_72 = arith.constant 0 : index
    %185 = vector.load %arg7[%c2_70, %c0_71, %c0_72] : memref<3x32x128xf32, #tpu.memory_space<vmem>>, vector<1x32x128xf32>
    %186 = vector.shape_cast %185 : vector<1x32x128xf32> to vector<32x128xf32>
    %c2_73 = arith.constant 2 : index
    %c0_74 = arith.constant 0 : index
    %c0_75 = arith.constant 0 : index
    %187 = vector.load %arg8[%c2_73, %c0_74, %c0_75] : memref<3x8x128xf32, #tpu.memory_space<vmem>>, vector<1x8x128xf32>
    %188 = vector.shape_cast %187 : vector<1x8x128xf32> to vector<8x128xf32>
    %189 = vector.extract_strided_slice %188 {offsets = [0, 0], sizes = [1, 32], strides = [1, 1]} : vector<8x128xf32> to vector<1x32xf32>
    %190 = vector.extract_strided_slice %188 {offsets = [1, 0], sizes = [1, 32], strides = [1, 1]} : vector<8x128xf32> to vector<1x32xf32>
    %191 = vector.extract_strided_slice %188 {offsets = [2, 0], sizes = [1, 32], strides = [1, 1]} : vector<8x128xf32> to vector<1x32xf32>
    %192 = vector.extract_strided_slice %188 {offsets = [3, 0], sizes = [1, 32], strides = [1, 1]} : vector<8x128xf32> to vector<1x32xf32>
    %193 = vector.extract_strided_slice %188 {offsets = [4, 0], sizes = [1, 32], strides = [1, 1]} : vector<8x128xf32> to vector<1x32xf32>
    %194 = vector.extract_strided_slice %188 {offsets = [5, 0], sizes = [1, 32], strides = [1, 1]} : vector<8x128xf32> to vector<1x32xf32>
    %195 = vector.extract_strided_slice %188 {offsets = [6, 0], sizes = [1, 128], strides = [1, 1]} : vector<8x128xf32> to vector<1x128xf32>
    %cst_76 = arith.constant 0.000000e+00 : f32
    %196 = vector.broadcast %cst_76 : f32 to vector<1x32xf32>
    %197 = tpu.concatenate %196, %180, %196 in 0 : vector<1x32xf32>, vector<8x32xf32>, vector<1x32xf32> -> vector<10x32xf32>
    %198 = vector.extract_strided_slice %197 {offsets = [0, 0], sizes = [8, 32], strides = [1, 1]} : vector<10x32xf32> to vector<8x32xf32>
    %199 = vector.extract_strided_slice %197 {offsets = [1, 0], sizes = [8, 32], strides = [1, 1]} : vector<10x32xf32> to vector<8x32xf32>
    %200 = vector.extract_strided_slice %197 {offsets = [2, 0], sizes = [8, 32], strides = [1, 1]} : vector<10x32xf32> to vector<8x32xf32>
    %201 = tpu.concatenate %198, %199, %200 in 1 : vector<8x32xf32>, vector<8x32xf32>, vector<8x32xf32> -> vector<8x96xf32>
    %cst_77 = arith.constant dense<0.000000e+00> : vector<8x32xf32>
    %202 = tpu.matmul %201, %182, %cst_77 {dimension_numbers = #tpu.dot_dimension_numbers<[1], [0], [0], [1], [0, 0, 1, 1], [], []>} : vector<8x96xf32>, vector<96x32xf32>, vector<8x32xf32> -> vector<8x32xf32>
    %203 = vector.broadcast %189 : vector<1x32xf32> to vector<8x32xf32>
    %204 = arith.addf %202, %203 : vector<8x32xf32>
    %cst_78 = arith.constant 0.000000e+00 : f32
    %205 = vector.broadcast %cst_78 : f32 to vector<8x32xf32>
    %206 = arith.maximumf %204, %205 : vector<8x32xf32>
    %cst_79 = arith.constant dense<0.000000e+00> : vector<8xf32>
    %207 = vector.multi_reduction <add>, %206, %cst_79 [1] : vector<8x32xf32> to vector<8xf32>
    %208 = vector.shape_cast %207 : vector<8xf32> to vector<8x1xf32>
    %cst_80 = arith.constant 3.200000e+01 : f32
    %209 = vector.broadcast %cst_80 : f32 to vector<8x1xf32>
    %210 = arith.divf %208, %209 : vector<8x1xf32>
    %211 = vector.broadcast %210 : vector<8x1xf32> to vector<8x32xf32>
    %212 = arith.subf %206, %211 : vector<8x32xf32>
    %213 = arith.mulf %212, %212 : vector<8x32xf32>
    %cst_81 = arith.constant dense<0.000000e+00> : vector<8xf32>
    %214 = vector.multi_reduction <add>, %213, %cst_81 [1] : vector<8x32xf32> to vector<8xf32>
    %215 = vector.shape_cast %214 : vector<8xf32> to vector<8x1xf32>
    %cst_82 = arith.constant 3.200000e+01 : f32
    %216 = vector.broadcast %cst_82 : f32 to vector<8x1xf32>
    %217 = arith.divf %215, %216 : vector<8x1xf32>
    %218 = vector.broadcast %210 : vector<8x1xf32> to vector<8x32xf32>
    %219 = arith.subf %206, %218 : vector<8x32xf32>
    %cst_83 = arith.constant 9.99999974E-6 : f32
    %220 = vector.broadcast %cst_83 : f32 to vector<8x1xf32>
    %221 = arith.addf %217, %220 : vector<8x1xf32>
    %222 = math.rsqrt %221 : vector<8x1xf32>
    %223 = vector.broadcast %222 : vector<8x1xf32> to vector<8x32xf32>
    %224 = arith.mulf %219, %223 : vector<8x32xf32>
    %225 = vector.broadcast %190 : vector<1x32xf32> to vector<8x32xf32>
    %226 = arith.mulf %224, %225 : vector<8x32xf32>
    %227 = vector.broadcast %191 : vector<1x32xf32> to vector<8x32xf32>
    %228 = arith.addf %226, %227 : vector<8x32xf32>
    %cst_84 = arith.constant 0.000000e+00 : f32
    %229 = vector.broadcast %cst_84 : f32 to vector<1x32xf32>
    %230 = tpu.concatenate %229, %228, %229 in 0 : vector<1x32xf32>, vector<8x32xf32>, vector<1x32xf32> -> vector<10x32xf32>
    %231 = vector.extract_strided_slice %230 {offsets = [0, 0], sizes = [8, 32], strides = [1, 1]} : vector<10x32xf32> to vector<8x32xf32>
    %232 = vector.extract_strided_slice %230 {offsets = [1, 0], sizes = [8, 32], strides = [1, 1]} : vector<10x32xf32> to vector<8x32xf32>
    %233 = vector.extract_strided_slice %230 {offsets = [2, 0], sizes = [8, 32], strides = [1, 1]} : vector<10x32xf32> to vector<8x32xf32>
    %234 = tpu.concatenate %231, %232, %233 in 1 : vector<8x32xf32>, vector<8x32xf32>, vector<8x32xf32> -> vector<8x96xf32>
    %cst_85 = arith.constant dense<0.000000e+00> : vector<8x32xf32>
    %235 = tpu.matmul %234, %184, %cst_85 {dimension_numbers = #tpu.dot_dimension_numbers<[1], [0], [0], [1], [0, 0, 1, 1], [], []>} : vector<8x96xf32>, vector<96x32xf32>, vector<8x32xf32> -> vector<8x32xf32>
    %236 = vector.broadcast %192 : vector<1x32xf32> to vector<8x32xf32>
    %237 = arith.addf %235, %236 : vector<8x32xf32>
    %cst_86 = arith.constant 0.000000e+00 : f32
    %238 = vector.broadcast %cst_86 : f32 to vector<8x32xf32>
    %239 = arith.maximumf %237, %238 : vector<8x32xf32>
    %cst_87 = arith.constant dense<0.000000e+00> : vector<8xf32>
    %240 = vector.multi_reduction <add>, %239, %cst_87 [1] : vector<8x32xf32> to vector<8xf32>
    %241 = vector.shape_cast %240 : vector<8xf32> to vector<8x1xf32>
    %cst_88 = arith.constant 3.200000e+01 : f32
    %242 = vector.broadcast %cst_88 : f32 to vector<8x1xf32>
    %243 = arith.divf %241, %242 : vector<8x1xf32>
    %244 = vector.broadcast %243 : vector<8x1xf32> to vector<8x32xf32>
    %245 = arith.subf %239, %244 : vector<8x32xf32>
    %246 = arith.mulf %245, %245 : vector<8x32xf32>
    %cst_89 = arith.constant dense<0.000000e+00> : vector<8xf32>
    %247 = vector.multi_reduction <add>, %246, %cst_89 [1] : vector<8x32xf32> to vector<8xf32>
    %248 = vector.shape_cast %247 : vector<8xf32> to vector<8x1xf32>
    %cst_90 = arith.constant 3.200000e+01 : f32
    %249 = vector.broadcast %cst_90 : f32 to vector<8x1xf32>
    %250 = arith.divf %248, %249 : vector<8x1xf32>
    %251 = vector.broadcast %243 : vector<8x1xf32> to vector<8x32xf32>
    %252 = arith.subf %239, %251 : vector<8x32xf32>
    %cst_91 = arith.constant 9.99999974E-6 : f32
    %253 = vector.broadcast %cst_91 : f32 to vector<8x1xf32>
    %254 = arith.addf %250, %253 : vector<8x1xf32>
    %255 = math.rsqrt %254 : vector<8x1xf32>
    %256 = vector.broadcast %255 : vector<8x1xf32> to vector<8x32xf32>
    %257 = arith.mulf %252, %256 : vector<8x32xf32>
    %258 = vector.broadcast %193 : vector<1x32xf32> to vector<8x32xf32>
    %259 = arith.mulf %257, %258 : vector<8x32xf32>
    %260 = vector.broadcast %194 : vector<1x32xf32> to vector<8x32xf32>
    %261 = arith.addf %259, %260 : vector<8x32xf32>
    %cst_92 = arith.constant dense<0.000000e+00> : vector<8x128xf32>
    %262 = tpu.matmul %261, %186, %cst_92 {dimension_numbers = #tpu.dot_dimension_numbers<[1], [0], [0], [1], [0, 0, 1, 1], [], []>} : vector<8x32xf32>, vector<32x128xf32>, vector<8x128xf32> -> vector<8x128xf32>
    %263 = vector.broadcast %195 : vector<1x128xf32> to vector<8x128xf32>
    %264 = arith.addf %262, %263 : vector<8x128xf32>
    %265 = vector.broadcast %5 : vector<8x1xf32> to vector<8x128xf32>
    %266 = arith.mulf %264, %265 : vector<8x128xf32>
    %c0_93 = arith.constant 0 : index
    %c0_94 = arith.constant 0 : index
    %c0_95 = arith.constant 0 : index
    %267 = vector.load %arg4[%c0_93, %c0_94, %c0_95] : memref<1x8x32xf32, #tpu.memory_space<vmem>>, vector<1x8x32xf32>
    %268 = vector.shape_cast %267 : vector<1x8x32xf32> to vector<8x32xf32>
    %269 = arith.addf %180, %268 : vector<8x32xf32>
    %270 = vector.shape_cast %269 : vector<8x32xf32> to vector<1x8x32xf32>
    %c0_96 = arith.constant 0 : index
    %c0_97 = arith.constant 0 : index
    %c0_98 = arith.constant 0 : index
    %271 = vector.load %arg9[%c0_96, %c0_97, %c0_98] : memref<1x8x32xf32, #tpu.memory_space<vmem>>, vector<1x8x32xf32>
    tpu.vector_store %arg9[%c0_96, %c0_97, %c0_98], %270 {strides = array<i32>} : memref<1x8x32xf32, #tpu.memory_space<vmem>>, vector<1x8x32xf32>,
    %272 = arith.addf %91, %177 : vector<8x128xf32>
    %273 = arith.addf %272, %266 : vector<8x128xf32>
    %274 = vector.shape_cast %273 : vector<8x128xf32> to vector<1x8x128xf32>
    %c0_99 = arith.constant 0 : index
    %c0_100 = arith.constant 0 : index
    %c0_101 = arith.constant 0 : index
    %275 = vector.load %arg10[%c0_99, %c0_100, %c0_101] : memref<1x8x128xf32, #tpu.memory_space<vmem>>, vector<1x8x128xf32>
    tpu.vector_store %arg10[%c0_99, %c0_100, %c0_101], %274 {strides = array<i32>} : memref<1x8x128xf32, #tpu.memory_space<vmem>>, vector<1x8x128xf32>,
    return
  }
  func.func @transform_0(%arg0: i32) -> (i32, i32, i32) {
    %c0_i32 = arith.constant 0 : i32
    %c0_i32_0 = arith.constant 0 : i32
    %c0_i32_1 = arith.constant 0 : i32
    return %arg0, %c0_i32, %c0_i32_0 : i32, i32, i32
  }
  func.func @transform_1(%arg0: i32) -> (i32, i32, i32) {
    %c0_i32 = arith.constant 0 : i32
    %c0_i32_0 = arith.constant 0 : i32
    %c0_i32_1 = arith.constant 0 : i32
    return %arg0, %c0_i32, %c0_i32_0 : i32, i32, i32
  }
  func.func @transform_2(%arg0: i32) -> (i32, i32, i32) {
    %c0_i32 = arith.constant 0 : i32
    %c0_i32_0 = arith.constant 0 : i32
    %c0_i32_1 = arith.constant 0 : i32
    return %arg0, %c0_i32, %c0_i32_0 : i32, i32, i32
  }
  func.func @transform_3(%arg0: i32) -> (i32, i32, i32) {
    %c0_i32 = arith.constant 0 : i32
    %c0_i32_0 = arith.constant 0 : i32
    %c0_i32_1 = arith.constant 0 : i32
    return %arg0, %c0_i32, %c0_i32_0 : i32, i32, i32
  }
  func.func @transform_4(%arg0: i32) -> (i32, i32, i32) {
    %c0_i32 = arith.constant 0 : i32
    %c0_i32_0 = arith.constant 0 : i32
    %c0_i32_1 = arith.constant 0 : i32
    %c0_i32_2 = arith.constant 0 : i32
    return %c0_i32, %c0_i32_0, %c0_i32_1 : i32, i32, i32
  }
  func.func @transform_5(%arg0: i32) -> (i32, i32, i32) {
    %c0_i32 = arith.constant 0 : i32
    %c0_i32_0 = arith.constant 0 : i32
    %c0_i32_1 = arith.constant 0 : i32
    %c0_i32_2 = arith.constant 0 : i32
    return %c0_i32, %c0_i32_0, %c0_i32_1 : i32, i32, i32
  }
  func.func @transform_6(%arg0: i32) -> (i32, i32, i32) {
    %c0_i32 = arith.constant 0 : i32
    %c0_i32_0 = arith.constant 0 : i32
    %c0_i32_1 = arith.constant 0 : i32
    %c0_i32_2 = arith.constant 0 : i32
    return %c0_i32, %c0_i32_0, %c0_i32_1 : i32, i32, i32
  }
  func.func @transform_7(%arg0: i32) -> (i32, i32, i32) {
    %c0_i32 = arith.constant 0 : i32
    %c0_i32_0 = arith.constant 0 : i32
    %c0_i32_1 = arith.constant 0 : i32
    %c0_i32_2 = arith.constant 0 : i32
    return %c0_i32, %c0_i32_0, %c0_i32_1 : i32, i32, i32
  }
  func.func @transform_8(%arg0: i32) -> (i32, i32, i32) {
    %c0_i32 = arith.constant 0 : i32
    %c0_i32_0 = arith.constant 0 : i32
    %c0_i32_1 = arith.constant 0 : i32
    return %arg0, %c0_i32, %c0_i32_0 : i32, i32, i32
  }
  func.func @transform_9(%arg0: i32) -> (i32, i32, i32) {
    %c0_i32 = arith.constant 0 : i32
    %c0_i32_0 = arith.constant 0 : i32
    %c0_i32_1 = arith.constant 0 : i32
    return %arg0, %c0_i32, %c0_i32_0 : i32, i32, i32
  }
}

module attributes {stable_mosaic.version = 11 : i64} {
  func.func @_mel_postnet_kernel(%arg0: i32, %arg1: memref<1x24x32xf32, #tpu.memory_space<vmem>>, %arg2: memref<32x128xf32, #tpu.memory_space<vmem>>, %arg3: memref<1x128xf32, #tpu.memory_space<vmem>>, %arg4: memref<5x640x128xf32, #tpu.memory_space<vmem>>, %arg5: memref<5x1x128xf32, #tpu.memory_space<vmem>>, %arg6: memref<1x24x128xf32, #tpu.memory_space<vmem>>, %arg7: memref<1x24x128xf32, #tpu.memory_space<vmem>>) attributes {dimension_semantics = [#tpu.dimension_semantics<parallel>], iteration_bounds = array<i64: 2>, scalar_prefetch = 0 : i64, scratch_operands = 0 : i64, tpu.core_type = #tpu.core_type<tc>, window_params = [{transform_indices = @transform_0, window_bounds = array<i64: 1, 24, 32>}, {pipeline_mode = #tpu.pipeline_mode<synchronous>, transform_indices = @transform_1, window_bounds = array<i64: 32, 128>}, {pipeline_mode = #tpu.pipeline_mode<synchronous>, transform_indices = @transform_2, window_bounds = array<i64: 1, 128>}, {pipeline_mode = #tpu.pipeline_mode<synchronous>, transform_indices = @transform_3, window_bounds = array<i64: 5, 640, 128>}, {pipeline_mode = #tpu.pipeline_mode<synchronous>, transform_indices = @transform_4, window_bounds = array<i64: 5, 1, 128>}, {transform_indices = @transform_5, window_bounds = array<i64: 1, 24, 128>}, {transform_indices = @transform_6, window_bounds = array<i64: 1, 24, 128>}]} {
    %c0 = arith.constant 0 : index
    %c0_0 = arith.constant 0 : index
    %c0_1 = arith.constant 0 : index
    %0 = vector.load %arg1[%c0, %c0_0, %c0_1] : memref<1x24x32xf32, #tpu.memory_space<vmem>>, vector<1x24x32xf32>
    %1 = vector.shape_cast %0 : vector<1x24x32xf32> to vector<24x32xf32>
    %c0_2 = arith.constant 0 : index
    %c0_3 = arith.constant 0 : index
    %2 = vector.load %arg2[%c0_2, %c0_3] : memref<32x128xf32, #tpu.memory_space<vmem>>, vector<32x128xf32>
    %cst = arith.constant dense<0.000000e+00> : vector<24x128xf32>
    %3 = tpu.matmul %1, %2, %cst {dimension_numbers = #tpu.dot_dimension_numbers<[1], [0], [0], [1], [0, 0, 1, 1], [], []>} : vector<24x32xf32>, vector<32x128xf32>, vector<24x128xf32> -> vector<24x128xf32>
    %c0_4 = arith.constant 0 : index
    %c0_5 = arith.constant 0 : index
    %4 = vector.load %arg3[%c0_4, %c0_5] : memref<1x128xf32, #tpu.memory_space<vmem>>, vector<1x128xf32>
    %5 = vector.broadcast %4 : vector<1x128xf32> to vector<24x128xf32>
    %6 = arith.addf %3, %5 : vector<24x128xf32>
    %7 = vector.shape_cast %6 : vector<24x128xf32> to vector<1x24x128xf32>
    %c0_6 = arith.constant 0 : index
    %c0_7 = arith.constant 0 : index
    %c0_8 = arith.constant 0 : index
    %8 = vector.load %arg6[%c0_6, %c0_7, %c0_8] : memref<1x24x128xf32, #tpu.memory_space<vmem>>, vector<1x24x128xf32>
    tpu.vector_store %arg6[%c0_6, %c0_7, %c0_8], %7 {strides = array<i32>} : memref<1x24x128xf32, #tpu.memory_space<vmem>>, vector<1x24x128xf32>,
    %c0_9 = arith.constant 0 : index
    %c0_10 = arith.constant 0 : index
    %c0_11 = arith.constant 0 : index
    %9 = vector.load %arg4[%c0_9, %c0_10, %c0_11] : memref<5x640x128xf32, #tpu.memory_space<vmem>>, vector<1x640x128xf32>
    %10 = vector.shape_cast %9 : vector<1x640x128xf32> to vector<640x128xf32>
    %c0_12 = arith.constant 0 : index
    %c0_13 = arith.constant 0 : index
    %c0_14 = arith.constant 0 : index
    %11 = vector.load %arg5[%c0_12, %c0_13, %c0_14] : memref<5x1x128xf32, #tpu.memory_space<vmem>>, vector<1x1x128xf32>
    %12 = vector.shape_cast %11 : vector<1x1x128xf32> to vector<1x128xf32>
    %cst_15 = arith.constant 0.000000e+00 : f32
    %13 = vector.broadcast %cst_15 : f32 to vector<2x128xf32>
    %14 = tpu.concatenate %13, %6, %13 in 0 : vector<2x128xf32>, vector<24x128xf32>, vector<2x128xf32> -> vector<28x128xf32>
    %15 = vector.extract_strided_slice %14 {offsets = [0, 0], sizes = [24, 128], strides = [1, 1]} : vector<28x128xf32> to vector<24x128xf32>
    %16 = vector.extract_strided_slice %14 {offsets = [1, 0], sizes = [24, 128], strides = [1, 1]} : vector<28x128xf32> to vector<24x128xf32>
    %17 = vector.extract_strided_slice %14 {offsets = [2, 0], sizes = [24, 128], strides = [1, 1]} : vector<28x128xf32> to vector<24x128xf32>
    %18 = vector.extract_strided_slice %14 {offsets = [3, 0], sizes = [24, 128], strides = [1, 1]} : vector<28x128xf32> to vector<24x128xf32>
    %19 = vector.extract_strided_slice %14 {offsets = [4, 0], sizes = [24, 128], strides = [1, 1]} : vector<28x128xf32> to vector<24x128xf32>
    %20 = tpu.concatenate %15, %16, %17, %18, %19 in 1 : vector<24x128xf32>, vector<24x128xf32>, vector<24x128xf32>, vector<24x128xf32>, vector<24x128xf32> -> vector<24x640xf32>
    %cst_16 = arith.constant dense<0.000000e+00> : vector<24x128xf32>
    %21 = tpu.matmul %20, %10, %cst_16 {dimension_numbers = #tpu.dot_dimension_numbers<[1], [0], [0], [1], [0, 0, 1, 1], [], []>} : vector<24x640xf32>, vector<640x128xf32>, vector<24x128xf32> -> vector<24x128xf32>
    %22 = vector.broadcast %12 : vector<1x128xf32> to vector<24x128xf32>
    %23 = arith.addf %21, %22 : vector<24x128xf32>
    %24 = math.tanh %23 : vector<24x128xf32>
    %c1 = arith.constant 1 : index
    %c0_17 = arith.constant 0 : index
    %c0_18 = arith.constant 0 : index
    %25 = vector.load %arg4[%c1, %c0_17, %c0_18] : memref<5x640x128xf32, #tpu.memory_space<vmem>>, vector<1x640x128xf32>
    %26 = vector.shape_cast %25 : vector<1x640x128xf32> to vector<640x128xf32>
    %c1_19 = arith.constant 1 : index
    %c0_20 = arith.constant 0 : index
    %c0_21 = arith.constant 0 : index
    %27 = vector.load %arg5[%c1_19, %c0_20, %c0_21] : memref<5x1x128xf32, #tpu.memory_space<vmem>>, vector<1x1x128xf32>
    %28 = vector.shape_cast %27 : vector<1x1x128xf32> to vector<1x128xf32>
    %cst_22 = arith.constant 0.000000e+00 : f32
    %29 = vector.broadcast %cst_22 : f32 to vector<2x128xf32>
    %30 = tpu.concatenate %29, %24, %29 in 0 : vector<2x128xf32>, vector<24x128xf32>, vector<2x128xf32> -> vector<28x128xf32>
    %31 = vector.extract_strided_slice %30 {offsets = [0, 0], sizes = [24, 128], strides = [1, 1]} : vector<28x128xf32> to vector<24x128xf32>
    %32 = vector.extract_strided_slice %30 {offsets = [1, 0], sizes = [24, 128], strides = [1, 1]} : vector<28x128xf32> to vector<24x128xf32>
    %33 = vector.extract_strided_slice %30 {offsets = [2, 0], sizes = [24, 128], strides = [1, 1]} : vector<28x128xf32> to vector<24x128xf32>
    %34 = vector.extract_strided_slice %30 {offsets = [3, 0], sizes = [24, 128], strides = [1, 1]} : vector<28x128xf32> to vector<24x128xf32>
    %35 = vector.extract_strided_slice %30 {offsets = [4, 0], sizes = [24, 128], strides = [1, 1]} : vector<28x128xf32> to vector<24x128xf32>
    %36 = tpu.concatenate %31, %32, %33, %34, %35 in 1 : vector<24x128xf32>, vector<24x128xf32>, vector<24x128xf32>, vector<24x128xf32>, vector<24x128xf32> -> vector<24x640xf32>
    %cst_23 = arith.constant dense<0.000000e+00> : vector<24x128xf32>
    %37 = tpu.matmul %36, %26, %cst_23 {dimension_numbers = #tpu.dot_dimension_numbers<[1], [0], [0], [1], [0, 0, 1, 1], [], []>} : vector<24x640xf32>, vector<640x128xf32>, vector<24x128xf32> -> vector<24x128xf32>
    %38 = vector.broadcast %28 : vector<1x128xf32> to vector<24x128xf32>
    %39 = arith.addf %37, %38 : vector<24x128xf32>
    %40 = math.tanh %39 : vector<24x128xf32>
    %c2 = arith.constant 2 : index
    %c0_24 = arith.constant 0 : index
    %c0_25 = arith.constant 0 : index
    %41 = vector.load %arg4[%c2, %c0_24, %c0_25] : memref<5x640x128xf32, #tpu.memory_space<vmem>>, vector<1x640x128xf32>
    %42 = vector.shape_cast %41 : vector<1x640x128xf32> to vector<640x128xf32>
    %c2_26 = arith.constant 2 : index
    %c0_27 = arith.constant 0 : index
    %c0_28 = arith.constant 0 : index
    %43 = vector.load %arg5[%c2_26, %c0_27, %c0_28] : memref<5x1x128xf32, #tpu.memory_space<vmem>>, vector<1x1x128xf32>
    %44 = vector.shape_cast %43 : vector<1x1x128xf32> to vector<1x128xf32>
    %cst_29 = arith.constant 0.000000e+00 : f32
    %45 = vector.broadcast %cst_29 : f32 to vector<2x128xf32>
    %46 = tpu.concatenate %45, %40, %45 in 0 : vector<2x128xf32>, vector<24x128xf32>, vector<2x128xf32> -> vector<28x128xf32>
    %47 = vector.extract_strided_slice %46 {offsets = [0, 0], sizes = [24, 128], strides = [1, 1]} : vector<28x128xf32> to vector<24x128xf32>
    %48 = vector.extract_strided_slice %46 {offsets = [1, 0], sizes = [24, 128], strides = [1, 1]} : vector<28x128xf32> to vector<24x128xf32>
    %49 = vector.extract_strided_slice %46 {offsets = [2, 0], sizes = [24, 128], strides = [1, 1]} : vector<28x128xf32> to vector<24x128xf32>
    %50 = vector.extract_strided_slice %46 {offsets = [3, 0], sizes = [24, 128], strides = [1, 1]} : vector<28x128xf32> to vector<24x128xf32>
    %51 = vector.extract_strided_slice %46 {offsets = [4, 0], sizes = [24, 128], strides = [1, 1]} : vector<28x128xf32> to vector<24x128xf32>
    %52 = tpu.concatenate %47, %48, %49, %50, %51 in 1 : vector<24x128xf32>, vector<24x128xf32>, vector<24x128xf32>, vector<24x128xf32>, vector<24x128xf32> -> vector<24x640xf32>
    %cst_30 = arith.constant dense<0.000000e+00> : vector<24x128xf32>
    %53 = tpu.matmul %52, %42, %cst_30 {dimension_numbers = #tpu.dot_dimension_numbers<[1], [0], [0], [1], [0, 0, 1, 1], [], []>} : vector<24x640xf32>, vector<640x128xf32>, vector<24x128xf32> -> vector<24x128xf32>
    %54 = vector.broadcast %44 : vector<1x128xf32> to vector<24x128xf32>
    %55 = arith.addf %53, %54 : vector<24x128xf32>
    %56 = math.tanh %55 : vector<24x128xf32>
    %c3 = arith.constant 3 : index
    %c0_31 = arith.constant 0 : index
    %c0_32 = arith.constant 0 : index
    %57 = vector.load %arg4[%c3, %c0_31, %c0_32] : memref<5x640x128xf32, #tpu.memory_space<vmem>>, vector<1x640x128xf32>
    %58 = vector.shape_cast %57 : vector<1x640x128xf32> to vector<640x128xf32>
    %c3_33 = arith.constant 3 : index
    %c0_34 = arith.constant 0 : index
    %c0_35 = arith.constant 0 : index
    %59 = vector.load %arg5[%c3_33, %c0_34, %c0_35] : memref<5x1x128xf32, #tpu.memory_space<vmem>>, vector<1x1x128xf32>
    %60 = vector.shape_cast %59 : vector<1x1x128xf32> to vector<1x128xf32>
    %cst_36 = arith.constant 0.000000e+00 : f32
    %61 = vector.broadcast %cst_36 : f32 to vector<2x128xf32>
    %62 = tpu.concatenate %61, %56, %61 in 0 : vector<2x128xf32>, vector<24x128xf32>, vector<2x128xf32> -> vector<28x128xf32>
    %63 = vector.extract_strided_slice %62 {offsets = [0, 0], sizes = [24, 128], strides = [1, 1]} : vector<28x128xf32> to vector<24x128xf32>
    %64 = vector.extract_strided_slice %62 {offsets = [1, 0], sizes = [24, 128], strides = [1, 1]} : vector<28x128xf32> to vector<24x128xf32>
    %65 = vector.extract_strided_slice %62 {offsets = [2, 0], sizes = [24, 128], strides = [1, 1]} : vector<28x128xf32> to vector<24x128xf32>
    %66 = vector.extract_strided_slice %62 {offsets = [3, 0], sizes = [24, 128], strides = [1, 1]} : vector<28x128xf32> to vector<24x128xf32>
    %67 = vector.extract_strided_slice %62 {offsets = [4, 0], sizes = [24, 128], strides = [1, 1]} : vector<28x128xf32> to vector<24x128xf32>
    %68 = tpu.concatenate %63, %64, %65, %66, %67 in 1 : vector<24x128xf32>, vector<24x128xf32>, vector<24x128xf32>, vector<24x128xf32>, vector<24x128xf32> -> vector<24x640xf32>
    %cst_37 = arith.constant dense<0.000000e+00> : vector<24x128xf32>
    %69 = tpu.matmul %68, %58, %cst_37 {dimension_numbers = #tpu.dot_dimension_numbers<[1], [0], [0], [1], [0, 0, 1, 1], [], []>} : vector<24x640xf32>, vector<640x128xf32>, vector<24x128xf32> -> vector<24x128xf32>
    %70 = vector.broadcast %60 : vector<1x128xf32> to vector<24x128xf32>
    %71 = arith.addf %69, %70 : vector<24x128xf32>
    %72 = math.tanh %71 : vector<24x128xf32>
    %c4 = arith.constant 4 : index
    %c0_38 = arith.constant 0 : index
    %c0_39 = arith.constant 0 : index
    %73 = vector.load %arg4[%c4, %c0_38, %c0_39] : memref<5x640x128xf32, #tpu.memory_space<vmem>>, vector<1x640x128xf32>
    %74 = vector.shape_cast %73 : vector<1x640x128xf32> to vector<640x128xf32>
    %c4_40 = arith.constant 4 : index
    %c0_41 = arith.constant 0 : index
    %c0_42 = arith.constant 0 : index
    %75 = vector.load %arg5[%c4_40, %c0_41, %c0_42] : memref<5x1x128xf32, #tpu.memory_space<vmem>>, vector<1x1x128xf32>
    %76 = vector.shape_cast %75 : vector<1x1x128xf32> to vector<1x128xf32>
    %cst_43 = arith.constant 0.000000e+00 : f32
    %77 = vector.broadcast %cst_43 : f32 to vector<2x128xf32>
    %78 = tpu.concatenate %77, %72, %77 in 0 : vector<2x128xf32>, vector<24x128xf32>, vector<2x128xf32> -> vector<28x128xf32>
    %79 = vector.extract_strided_slice %78 {offsets = [0, 0], sizes = [24, 128], strides = [1, 1]} : vector<28x128xf32> to vector<24x128xf32>
    %80 = vector.extract_strided_slice %78 {offsets = [1, 0], sizes = [24, 128], strides = [1, 1]} : vector<28x128xf32> to vector<24x128xf32>
    %81 = vector.extract_strided_slice %78 {offsets = [2, 0], sizes = [24, 128], strides = [1, 1]} : vector<28x128xf32> to vector<24x128xf32>
    %82 = vector.extract_strided_slice %78 {offsets = [3, 0], sizes = [24, 128], strides = [1, 1]} : vector<28x128xf32> to vector<24x128xf32>
    %83 = vector.extract_strided_slice %78 {offsets = [4, 0], sizes = [24, 128], strides = [1, 1]} : vector<28x128xf32> to vector<24x128xf32>
    %84 = tpu.concatenate %79, %80, %81, %82, %83 in 1 : vector<24x128xf32>, vector<24x128xf32>, vector<24x128xf32>, vector<24x128xf32>, vector<24x128xf32> -> vector<24x640xf32>
    %cst_44 = arith.constant dense<0.000000e+00> : vector<24x128xf32>
    %85 = tpu.matmul %84, %74, %cst_44 {dimension_numbers = #tpu.dot_dimension_numbers<[1], [0], [0], [1], [0, 0, 1, 1], [], []>} : vector<24x640xf32>, vector<640x128xf32>, vector<24x128xf32> -> vector<24x128xf32>
    %86 = vector.broadcast %76 : vector<1x128xf32> to vector<24x128xf32>
    %87 = arith.addf %85, %86 : vector<24x128xf32>
    %88 = arith.addf %87, %6 : vector<24x128xf32>
    %89 = vector.shape_cast %88 : vector<24x128xf32> to vector<1x24x128xf32>
    %c0_45 = arith.constant 0 : index
    %c0_46 = arith.constant 0 : index
    %c0_47 = arith.constant 0 : index
    %90 = vector.load %arg7[%c0_45, %c0_46, %c0_47] : memref<1x24x128xf32, #tpu.memory_space<vmem>>, vector<1x24x128xf32>
    tpu.vector_store %arg7[%c0_45, %c0_46, %c0_47], %89 {strides = array<i32>} : memref<1x24x128xf32, #tpu.memory_space<vmem>>, vector<1x24x128xf32>,
    return
  }
  func.func @transform_0(%arg0: i32) -> (i32, i32, i32) {
    %c0_i32 = arith.constant 0 : i32
    %c0_i32_0 = arith.constant 0 : i32
    %c0_i32_1 = arith.constant 0 : i32
    return %arg0, %c0_i32, %c0_i32_0 : i32, i32, i32
  }
  func.func @transform_1(%arg0: i32) -> (i32, i32) {
    %c0_i32 = arith.constant 0 : i32
    %c0_i32_0 = arith.constant 0 : i32
    %c0_i32_1 = arith.constant 0 : i32
    return %c0_i32, %c0_i32_0 : i32, i32
  }
  func.func @transform_2(%arg0: i32) -> (i32, i32) {
    %c0_i32 = arith.constant 0 : i32
    %c0_i32_0 = arith.constant 0 : i32
    %c0_i32_1 = arith.constant 0 : i32
    return %c0_i32, %c0_i32_0 : i32, i32
  }
  func.func @transform_3(%arg0: i32) -> (i32, i32, i32) {
    %c0_i32 = arith.constant 0 : i32
    %c0_i32_0 = arith.constant 0 : i32
    %c0_i32_1 = arith.constant 0 : i32
    %c0_i32_2 = arith.constant 0 : i32
    return %c0_i32, %c0_i32_0, %c0_i32_1 : i32, i32, i32
  }
  func.func @transform_4(%arg0: i32) -> (i32, i32, i32) {
    %c0_i32 = arith.constant 0 : i32
    %c0_i32_0 = arith.constant 0 : i32
    %c0_i32_1 = arith.constant 0 : i32
    %c0_i32_2 = arith.constant 0 : i32
    return %c0_i32, %c0_i32_0, %c0_i32_1 : i32, i32, i32
  }
  func.func @transform_5(%arg0: i32) -> (i32, i32, i32) {
    %c0_i32 = arith.constant 0 : i32
    %c0_i32_0 = arith.constant 0 : i32
    %c0_i32_1 = arith.constant 0 : i32
    return %arg0, %c0_i32, %c0_i32_0 : i32, i32, i32
  }
  func.func @transform_6(%arg0: i32) -> (i32, i32, i32) {
    %c0_i32 = arith.constant 0 : i32
    %c0_i32_0 = arith.constant 0 : i32
    %c0_i32_1 = arith.constant 0 : i32
    return %arg0, %c0_i32, %c0_i32_0 : i32, i32, i32
  }
}

module attributes {stable_mosaic.version = 11 : i64} {
  func.func @_fft_stack_kernel(%arg0: i32, %arg1: i32, %arg2: memref<1x24x32xf32, #tpu.memory_space<vmem>>, %arg3: memref<1x1x24xf32, #tpu.memory_space<vmem>>, %arg4: memref<1x24x1xf32, #tpu.memory_space<vmem>>, %arg5: memref<1x32x96xf32, #tpu.memory_space<vmem>>, %arg6: memref<1x32x32xf32, #tpu.memory_space<vmem>>, %arg7: memref<1x288x64xf32, #tpu.memory_space<vmem>>, %arg8: memref<1x64x32xf32, #tpu.memory_space<vmem>>, %arg9: memref<1x8x128xf32, #tpu.memory_space<vmem>>, %arg10: memref<1x24x32xf32, #tpu.memory_space<vmem>>) attributes {dimension_semantics = [#tpu.dimension_semantics<parallel>, #tpu.dimension_semantics<arbitrary>], iteration_bounds = array<i64: 2, 2>, scalar_prefetch = 0 : i64, scratch_operands = 0 : i64, tpu.core_type = #tpu.core_type<tc>, window_params = [{transform_indices = @transform_0, window_bounds = array<i64: 1, 24, 32>}, {transform_indices = @transform_1, window_bounds = array<i64: 1, 1, 24>}, {transform_indices = @transform_2, window_bounds = array<i64: 1, 24, 1>}, {transform_indices = @transform_3, window_bounds = array<i64: 1, 32, 96>}, {transform_indices = @transform_4, window_bounds = array<i64: 1, 32, 32>}, {transform_indices = @transform_5, window_bounds = array<i64: 1, 288, 64>}, {transform_indices = @transform_6, window_bounds = array<i64: 1, 64, 32>}, {transform_indices = @transform_7, window_bounds = array<i64: 1, 8, 128>}, {transform_indices = @transform_8, window_bounds = array<i64: 1, 24, 32>}]} {
    %c0_i32 = arith.constant 0 : i32
    %0 = arith.cmpi eq, %arg1, %c0_i32 : i32
    %1 = arith.extui %0 : i1 to i32
    %c0_i32_0 = arith.constant 0 : i32
    %2 = arith.cmpi ne, %1, %c0_i32_0 : i32
    scf.if %2 {
      %c0_55 = arith.constant 0 : index
      %c0_56 = arith.constant 0 : index
      %c0_57 = arith.constant 0 : index
      %150 = vector.load %arg2[%c0_55, %c0_56, %c0_57] : memref<1x24x32xf32, #tpu.memory_space<vmem>>, vector<1x24x32xf32>
      %c0_58 = arith.constant 0 : index
      %c0_59 = arith.constant 0 : index
      %c0_60 = arith.constant 0 : index
      %151 = vector.load %arg10[%c0_58, %c0_59, %c0_60] : memref<1x24x32xf32, #tpu.memory_space<vmem>>, vector<1x24x32xf32>
      tpu.vector_store %arg10[%c0_58, %c0_59, %c0_60], %150 {strides = array<i32>} : memref<1x24x32xf32, #tpu.memory_space<vmem>>, vector<1x24x32xf32>,
    } else {
    }
    %c0 = arith.constant 0 : index
    %c0_1 = arith.constant 0 : index
    %c0_2 = arith.constant 0 : index
    %3 = vector.load %arg10[%c0, %c0_1, %c0_2] : memref<1x24x32xf32, #tpu.memory_space<vmem>>, vector<1x24x32xf32>
    %4 = vector.shape_cast %3 : vector<1x24x32xf32> to vector<24x32xf32>
    %c0_3 = arith.constant 0 : index
    %c0_4 = arith.constant 0 : index
    %c0_5 = arith.constant 0 : index
    %5 = vector.load %arg3[%c0_3, %c0_4, %c0_5] : memref<1x1x24xf32, #tpu.memory_space<vmem>>, vector<1x1x24xf32>
    %6 = vector.shape_cast %5 : vector<1x1x24xf32> to vector<1x24xf32>
    %c0_6 = arith.constant 0 : index
    %c0_7 = arith.constant 0 : index
    %c0_8 = arith.constant 0 : index
    %7 = vector.load %arg4[%c0_6, %c0_7, %c0_8] : memref<1x24x1xf32, #tpu.memory_space<vmem>>, vector<1x24x1xf32>
    %8 = vector.shape_cast %7 : vector<1x24x1xf32> to vector<24x1xf32>
    %cst = arith.constant 1.000000e+00 : f32
    %9 = vector.broadcast %cst : f32 to vector<24x1xf32>
    %10 = arith.subf %9, %8 : vector<24x1xf32>
    %c0_9 = arith.constant 0 : index
    %c0_10 = arith.constant 0 : index
    %c0_11 = arith.constant 0 : index
    %11 = vector.load %arg5[%c0_9, %c0_10, %c0_11] : memref<1x32x96xf32, #tpu.memory_space<vmem>>, vector<1x32x96xf32>
    %12 = vector.shape_cast %11 : vector<1x32x96xf32> to vector<32x96xf32>
    %c0_12 = arith.constant 0 : index
    %c0_13 = arith.constant 0 : index
    %c0_14 = arith.constant 0 : index
    %13 = vector.load %arg6[%c0_12, %c0_13, %c0_14] : memref<1x32x32xf32, #tpu.memory_space<vmem>>, vector<1x32x32xf32>
    %14 = vector.shape_cast %13 : vector<1x32x32xf32> to vector<32x32xf32>
    %c0_15 = arith.constant 0 : index
    %c0_16 = arith.constant 0 : index
    %c0_17 = arith.constant 0 : index
    %15 = vector.load %arg7[%c0_15, %c0_16, %c0_17] : memref<1x288x64xf32, #tpu.memory_space<vmem>>, vector<1x288x64xf32>
    %16 = vector.shape_cast %15 : vector<1x288x64xf32> to vector<288x64xf32>
    %c0_18 = arith.constant 0 : index
    %c0_19 = arith.constant 0 : index
    %c0_20 = arith.constant 0 : index
    %17 = vector.load %arg8[%c0_18, %c0_19, %c0_20] : memref<1x64x32xf32, #tpu.memory_space<vmem>>, vector<1x64x32xf32>
    %18 = vector.shape_cast %17 : vector<1x64x32xf32> to vector<64x32xf32>
    %c0_21 = arith.constant 0 : index
    %c0_22 = arith.constant 0 : index
    %c0_23 = arith.constant 0 : index
    %19 = vector.load %arg9[%c0_21, %c0_22, %c0_23] : memref<1x8x128xf32, #tpu.memory_space<vmem>>, vector<1x8x128xf32>
    %20 = vector.shape_cast %19 : vector<1x8x128xf32> to vector<8x128xf32>
    %21 = vector.extract_strided_slice %20 {offsets = [0, 0], sizes = [1, 96], strides = [1, 1]} : vector<8x128xf32> to vector<1x96xf32>
    %22 = vector.extract_strided_slice %20 {offsets = [1, 0], sizes = [1, 32], strides = [1, 1]} : vector<8x128xf32> to vector<1x32xf32>
    %23 = vector.extract_strided_slice %20 {offsets = [2, 0], sizes = [1, 32], strides = [1, 1]} : vector<8x128xf32> to vector<1x32xf32>
    %24 = vector.extract_strided_slice %20 {offsets = [3, 0], sizes = [1, 32], strides = [1, 1]} : vector<8x128xf32> to vector<1x32xf32>
    %25 = vector.extract_strided_slice %20 {offsets = [4, 0], sizes = [1, 64], strides = [1, 1]} : vector<8x128xf32> to vector<1x64xf32>
    %26 = vector.extract_strided_slice %20 {offsets = [5, 0], sizes = [1, 32], strides = [1, 1]} : vector<8x128xf32> to vector<1x32xf32>
    %27 = vector.extract_strided_slice %20 {offsets = [6, 0], sizes = [1, 32], strides = [1, 1]} : vector<8x128xf32> to vector<1x32xf32>
    %28 = vector.extract_strided_slice %20 {offsets = [7, 0], sizes = [1, 32], strides = [1, 1]} : vector<8x128xf32> to vector<1x32xf32>
    %cst_24 = arith.constant dense<0.000000e+00> : vector<24x96xf32>
    %29 = tpu.matmul %4, %12, %cst_24 {dimension_numbers = #tpu.dot_dimension_numbers<[1], [0], [0], [1], [0, 0, 1, 1], [], []>} : vector<24x32xf32>, vector<32x96xf32>, vector<24x96xf32> -> vector<24x96xf32>
    %30 = vector.broadcast %21 : vector<1x96xf32> to vector<24x96xf32>
    %31 = arith.addf %29, %30 : vector<24x96xf32>
    %32 = vector.extract_strided_slice %31 {offsets = [0, 0], sizes = [24, 16], strides = [1, 1]} : vector<24x96xf32> to vector<24x16xf32>
    %33 = vector.extract_strided_slice %31 {offsets = [0, 32], sizes = [24, 16], strides = [1, 1]} : vector<24x96xf32> to vector<24x16xf32>
    %34 = vector.extract_strided_slice %31 {offsets = [0, 64], sizes = [24, 16], strides = [1, 1]} : vector<24x96xf32> to vector<24x16xf32>
    "tpu.trace_start"() <{level = 10 : i32, message = "td,sd->ts"}> : () -> ()
    %cst_25 = arith.constant dense<0.000000e+00> : vector<24x24xf32>
    %35 = tpu.matmul %32, %33, %cst_25 {dimension_numbers = #tpu.dot_dimension_numbers<[1], [1], [0], [0], [0, 0, 1, 0], [], []>} : vector<24x16xf32>, vector<24x16xf32>, vector<24x24xf32> -> vector<24x24xf32>
    %cst_26 = arith.constant 5.000000e-01 : f32
    "tpu.trace_stop"() : () -> ()
    %36 = vector.broadcast %cst_26 : f32 to vector<1x24xf32>
    %37 = arith.cmpf ogt, %6, %36 : vector<1x24xf32>
    %cst_27 = arith.constant -1.000000e+30 : f32
    %38 = vector.shape_cast %37 : vector<1x24xi1> to vector<1x24xi1>
    %39 = vector.broadcast %38 : vector<1x24xi1> to vector<24x24xi1>
    %40 = vector.broadcast %cst_27 : f32 to vector<24x24xf32>
    %41 = arith.select %39, %40, %35 : vector<24x24xi1>, vector<24x24xf32>
    %cst_28 = arith.constant dense<0xFF800000> : vector<24xf32>
    %42 = vector.multi_reduction <maximumf>, %41, %cst_28 [1] : vector<24x24xf32> to vector<24xf32>
    %43 = vector.shape_cast %42 : vector<24xf32> to vector<24x1xf32>
    %44 = vector.broadcast %43 : vector<24x1xf32> to vector<24x24xf32>
    %45 = arith.subf %41, %44 : vector<24x24xf32>
    %46 = math.exp %45 : vector<24x24xf32>
    %cst_29 = arith.constant dense<0.000000e+00> : vector<24xf32>
    %47 = vector.multi_reduction <add>, %46, %cst_29 [1] : vector<24x24xf32> to vector<24xf32>
    %48 = vector.shape_cast %47 : vector<24xf32> to vector<24x1xf32>
    %49 = tpu.reciprocal %48 {approx = true} : vector<24x1xf32> -> vector<24x1xf32>
    %50 = vector.broadcast %49 : vector<24x1xf32> to vector<24x24xf32>
    %51 = arith.mulf %46, %50 : vector<24x24xf32>
    %cst_30 = arith.constant dense<0.000000e+00> : vector<24x16xf32>
    %52 = tpu.matmul %51, %34, %cst_30 {dimension_numbers = #tpu.dot_dimension_numbers<[1], [0], [0], [1], [0, 0, 1, 1], [], []>} : vector<24x24xf32>, vector<24x16xf32>, vector<24x16xf32> -> vector<24x16xf32>
    %53 = vector.extract_strided_slice %31 {offsets = [0, 16], sizes = [24, 16], strides = [1, 1]} : vector<24x96xf32> to vector<24x16xf32>
    %54 = vector.extract_strided_slice %31 {offsets = [0, 48], sizes = [24, 16], strides = [1, 1]} : vector<24x96xf32> to vector<24x16xf32>
    %55 = vector.extract_strided_slice %31 {offsets = [0, 80], sizes = [24, 16], strides = [1, 1]} : vector<24x96xf32> to vector<24x16xf32>
    "tpu.trace_start"() <{level = 10 : i32, message = "td,sd->ts"}> : () -> ()
    %cst_31 = arith.constant dense<0.000000e+00> : vector<24x24xf32>
    %56 = tpu.matmul %53, %54, %cst_31 {dimension_numbers = #tpu.dot_dimension_numbers<[1], [1], [0], [0], [0, 0, 1, 0], [], []>} : vector<24x16xf32>, vector<24x16xf32>, vector<24x24xf32> -> vector<24x24xf32>
    %cst_32 = arith.constant 5.000000e-01 : f32
    "tpu.trace_stop"() : () -> ()
    %57 = vector.broadcast %cst_32 : f32 to vector<1x24xf32>
    %58 = arith.cmpf ogt, %6, %57 : vector<1x24xf32>
    %cst_33 = arith.constant -1.000000e+30 : f32
    %59 = vector.shape_cast %58 : vector<1x24xi1> to vector<1x24xi1>
    %60 = vector.broadcast %59 : vector<1x24xi1> to vector<24x24xi1>
    %61 = vector.broadcast %cst_33 : f32 to vector<24x24xf32>
    %62 = arith.select %60, %61, %56 : vector<24x24xi1>, vector<24x24xf32>
    %cst_34 = arith.constant dense<0xFF800000> : vector<24xf32>
    %63 = vector.multi_reduction <maximumf>, %62, %cst_34 [1] : vector<24x24xf32> to vector<24xf32>
    %64 = vector.shape_cast %63 : vector<24xf32> to vector<24x1xf32>
    %65 = vector.broadcast %64 : vector<24x1xf32> to vector<24x24xf32>
    %66 = arith.subf %62, %65 : vector<24x24xf32>
    %67 = math.exp %66 : vector<24x24xf32>
    %cst_35 = arith.constant dense<0.000000e+00> : vector<24xf32>
    %68 = vector.multi_reduction <add>, %67, %cst_35 [1] : vector<24x24xf32> to vector<24xf32>
    %69 = vector.shape_cast %68 : vector<24xf32> to vector<24x1xf32>
    %70 = tpu.reciprocal %69 {approx = true} : vector<24x1xf32> -> vector<24x1xf32>
    %71 = vector.broadcast %70 : vector<24x1xf32> to vector<24x24xf32>
    %72 = arith.mulf %67, %71 : vector<24x24xf32>
    %cst_36 = arith.constant dense<0.000000e+00> : vector<24x16xf32>
    %73 = tpu.matmul %72, %55, %cst_36 {dimension_numbers = #tpu.dot_dimension_numbers<[1], [0], [0], [1], [0, 0, 1, 1], [], []>} : vector<24x24xf32>, vector<24x16xf32>, vector<24x16xf32> -> vector<24x16xf32>
    %74 = tpu.concatenate %52, %73 in 1 : vector<24x16xf32>, vector<24x16xf32> -> vector<24x32xf32>
    %cst_37 = arith.constant dense<0.000000e+00> : vector<24x32xf32>
    %75 = tpu.matmul %74, %14, %cst_37 {dimension_numbers = #tpu.dot_dimension_numbers<[1], [0], [0], [1], [0, 0, 1, 1], [], []>} : vector<24x32xf32>, vector<32x32xf32>, vector<24x32xf32> -> vector<24x32xf32>
    %76 = vector.broadcast %22 : vector<1x32xf32> to vector<24x32xf32>
    %77 = arith.addf %75, %76 : vector<24x32xf32>
    %78 = arith.addf %77, %4 : vector<24x32xf32>
    %cst_38 = arith.constant dense<0.000000e+00> : vector<24xf32>
    %79 = vector.multi_reduction <add>, %78, %cst_38 [1] : vector<24x32xf32> to vector<24xf32>
    %80 = vector.shape_cast %79 : vector<24xf32> to vector<24x1xf32>
    %cst_39 = arith.constant 3.200000e+01 : f32
    %81 = vector.broadcast %cst_39 : f32 to vector<24x1xf32>
    %82 = arith.divf %80, %81 : vector<24x1xf32>
    %83 = vector.broadcast %82 : vector<24x1xf32> to vector<24x32xf32>
    %84 = arith.subf %78, %83 : vector<24x32xf32>
    %85 = arith.mulf %84, %84 : vector<24x32xf32>
    %cst_40 = arith.constant dense<0.000000e+00> : vector<24xf32>
    %86 = vector.multi_reduction <add>, %85, %cst_40 [1] : vector<24x32xf32> to vector<24xf32>
    %87 = vector.shape_cast %86 : vector<24xf32> to vector<24x1xf32>
    %cst_41 = arith.constant 3.200000e+01 : f32
    %88 = vector.broadcast %cst_41 : f32 to vector<24x1xf32>
    %89 = arith.divf %87, %88 : vector<24x1xf32>
    %90 = vector.broadcast %82 : vector<24x1xf32> to vector<24x32xf32>
    %91 = arith.subf %78, %90 : vector<24x32xf32>
    %cst_42 = arith.constant 9.99999974E-6 : f32
    %92 = vector.broadcast %cst_42 : f32 to vector<24x1xf32>
    %93 = arith.addf %89, %92 : vector<24x1xf32>
    %94 = math.rsqrt %93 : vector<24x1xf32>
    %95 = vector.broadcast %94 : vector<24x1xf32> to vector<24x32xf32>
    %96 = arith.mulf %91, %95 : vector<24x32xf32>
    %97 = vector.broadcast %23 : vector<1x32xf32> to vector<24x32xf32>
    %98 = arith.mulf %96, %97 : vector<24x32xf32>
    %99 = vector.broadcast %24 : vector<1x32xf32> to vector<24x32xf32>
    %100 = arith.addf %98, %99 : vector<24x32xf32>
    %101 = vector.broadcast %10 : vector<24x1xf32> to vector<24x32xf32>
    %102 = arith.mulf %100, %101 : vector<24x32xf32>
    %cst_43 = arith.constant 0.000000e+00 : f32
    %103 = vector.broadcast %cst_43 : f32 to vector<4x32xf32>
    %104 = tpu.concatenate %103, %102, %103 in 0 : vector<4x32xf32>, vector<24x32xf32>, vector<4x32xf32> -> vector<32x32xf32>
    %105 = vector.extract_strided_slice %104 {offsets = [0, 0], sizes = [24, 32], strides = [1, 1]} : vector<32x32xf32> to vector<24x32xf32>
    %106 = vector.extract_strided_slice %104 {offsets = [1, 0], sizes = [24, 32], strides = [1, 1]} : vector<32x32xf32> to vector<24x32xf32>
    %107 = vector.extract_strided_slice %104 {offsets = [2, 0], sizes = [24, 32], strides = [1, 1]} : vector<32x32xf32> to vector<24x32xf32>
    %108 = vector.extract_strided_slice %104 {offsets = [3, 0], sizes = [24, 32], strides = [1, 1]} : vector<32x32xf32> to vector<24x32xf32>
    %109 = vector.extract_strided_slice %104 {offsets = [4, 0], sizes = [24, 32], strides = [1, 1]} : vector<32x32xf32> to vector<24x32xf32>
    %110 = vector.extract_strided_slice %104 {offsets = [5, 0], sizes = [24, 32], strides = [1, 1]} : vector<32x32xf32> to vector<24x32xf32>
    %111 = vector.extract_strided_slice %104 {offsets = [6, 0], sizes = [24, 32], strides = [1, 1]} : vector<32x32xf32> to vector<24x32xf32>
    %112 = vector.extract_strided_slice %104 {offsets = [7, 0], sizes = [24, 32], strides = [1, 1]} : vector<32x32xf32> to vector<24x32xf32>
    %113 = vector.extract_strided_slice %104 {offsets = [8, 0], sizes = [24, 32], strides = [1, 1]} : vector<32x32xf32> to vector<24x32xf32>
    %114 = tpu.concatenate %105, %106, %107, %108, %109, %110, %111, %112, %113 in 1 : vector<24x32xf32>, vector<24x32xf32>, vector<24x32xf32>, vector<24x32xf32>, vector<24x32xf32>, vector<24x32xf32>, vector<24x32xf32>, vector<24x32xf32>, vector<24x32xf32> -> vector<24x288xf32>
    %cst_44 = arith.constant dense<0.000000e+00> : vector<24x64xf32>
    %115 = tpu.matmul %114, %16, %cst_44 {dimension_numbers = #tpu.dot_dimension_numbers<[1], [0], [0], [1], [0, 0, 1, 1], [], []>} : vector<24x288xf32>, vector<288x64xf32>, vector<24x64xf32> -> vector<24x64xf32>
    %116 = vector.broadcast %25 : vector<1x64xf32> to vector<24x64xf32>
    %117 = arith.addf %115, %116 : vector<24x64xf32>
    %cst_45 = arith.constant 0.000000e+00 : f32
    %118 = vector.broadcast %cst_45 : f32 to vector<24x64xf32>
    %119 = arith.maximumf %117, %118 : vector<24x64xf32>
    %cst_46 = arith.constant dense<0.000000e+00> : vector<24x32xf32>
    %120 = tpu.matmul %119, %18, %cst_46 {dimension_numbers = #tpu.dot_dimension_numbers<[1], [0], [0], [1], [0, 0, 1, 1], [], []>} : vector<24x64xf32>, vector<64x32xf32>, vector<24x32xf32> -> vector<24x32xf32>
    %121 = vector.broadcast %26 : vector<1x32xf32> to vector<24x32xf32>
    %122 = arith.addf %120, %121 : vector<24x32xf32>
    %123 = arith.addf %122, %102 : vector<24x32xf32>
    %cst_47 = arith.constant dense<0.000000e+00> : vector<24xf32>
    %124 = vector.multi_reduction <add>, %123, %cst_47 [1] : vector<24x32xf32> to vector<24xf32>
    %125 = vector.shape_cast %124 : vector<24xf32> to vector<24x1xf32>
    %cst_48 = arith.constant 3.200000e+01 : f32
    %126 = vector.broadcast %cst_48 : f32 to vector<24x1xf32>
    %127 = arith.divf %125, %126 : vector<24x1xf32>
    %128 = vector.broadcast %127 : vector<24x1xf32> to vector<24x32xf32>
    %129 = arith.subf %123, %128 : vector<24x32xf32>
    %130 = arith.mulf %129, %129 : vector<24x32xf32>
    %cst_49 = arith.constant dense<0.000000e+00> : vector<24xf32>
    %131 = vector.multi_reduction <add>, %130, %cst_49 [1] : vector<24x32xf32> to vector<24xf32>
    %132 = vector.shape_cast %131 : vector<24xf32> to vector<24x1xf32>
    %cst_50 = arith.constant 3.200000e+01 : f32
    %133 = vector.broadcast %cst_50 : f32 to vector<24x1xf32>
    %134 = arith.divf %132, %133 : vector<24x1xf32>
    %135 = vector.broadcast %127 : vector<24x1xf32> to vector<24x32xf32>
    %136 = arith.subf %123, %135 : vector<24x32xf32>
    %cst_51 = arith.constant 9.99999974E-6 : f32
    %137 = vector.broadcast %cst_51 : f32 to vector<24x1xf32>
    %138 = arith.addf %134, %137 : vector<24x1xf32>
    %139 = math.rsqrt %138 : vector<24x1xf32>
    %140 = vector.broadcast %139 : vector<24x1xf32> to vector<24x32xf32>
    %141 = arith.mulf %136, %140 : vector<24x32xf32>
    %142 = vector.broadcast %27 : vector<1x32xf32> to vector<24x32xf32>
    %143 = arith.mulf %141, %142 : vector<24x32xf32>
    %144 = vector.broadcast %28 : vector<1x32xf32> to vector<24x32xf32>
    %145 = arith.addf %143, %144 : vector<24x32xf32>
    %146 = vector.broadcast %10 : vector<24x1xf32> to vector<24x32xf32>
    %147 = arith.mulf %145, %146 : vector<24x32xf32>
    %148 = vector.shape_cast %147 : vector<24x32xf32> to vector<1x24x32xf32>
    %c0_52 = arith.constant 0 : index
    %c0_53 = arith.constant 0 : index
    %c0_54 = arith.constant 0 : index
    %149 = vector.load %arg10[%c0_52, %c0_53, %c0_54] : memref<1x24x32xf32, #tpu.memory_space<vmem>>, vector<1x24x32xf32>
    tpu.vector_store %arg10[%c0_52, %c0_53, %c0_54], %148 {strides = array<i32>} : memref<1x24x32xf32, #tpu.memory_space<vmem>>, vector<1x24x32xf32>,
    return
  }
  func.func @transform_0(%arg0: i32, %arg1: i32) -> (i32, i32, i32) {
    %c0_i32 = arith.constant 0 : i32
    %c0_i32_0 = arith.constant 0 : i32
    %c0_i32_1 = arith.constant 0 : i32
    return %arg0, %c0_i32, %c0_i32_0 : i32, i32, i32
  }
  func.func @transform_1(%arg0: i32, %arg1: i32) -> (i32, i32, i32) {
    %c0_i32 = arith.constant 0 : i32
    %c0_i32_0 = arith.constant 0 : i32
    %c0_i32_1 = arith.constant 0 : i32
    return %arg0, %c0_i32, %c0_i32_0 : i32, i32, i32
  }
  func.func @transform_2(%arg0: i32, %arg1: i32) -> (i32, i32, i32) {
    %c0_i32 = arith.constant 0 : i32
    %c0_i32_0 = arith.constant 0 : i32
    %c0_i32_1 = arith.constant 0 : i32
    return %arg0, %c0_i32, %c0_i32_0 : i32, i32, i32
  }
  func.func @transform_3(%arg0: i32, %arg1: i32) -> (i32, i32, i32) {
    %c0_i32 = arith.constant 0 : i32
    %c0_i32_0 = arith.constant 0 : i32
    %c0_i32_1 = arith.constant 0 : i32
    return %arg1, %c0_i32, %c0_i32_0 : i32, i32, i32
  }
  func.func @transform_4(%arg0: i32, %arg1: i32) -> (i32, i32, i32) {
    %c0_i32 = arith.constant 0 : i32
    %c0_i32_0 = arith.constant 0 : i32
    %c0_i32_1 = arith.constant 0 : i32
    return %arg1, %c0_i32, %c0_i32_0 : i32, i32, i32
  }
  func.func @transform_5(%arg0: i32, %arg1: i32) -> (i32, i32, i32) {
    %c0_i32 = arith.constant 0 : i32
    %c0_i32_0 = arith.constant 0 : i32
    %c0_i32_1 = arith.constant 0 : i32
    return %arg1, %c0_i32, %c0_i32_0 : i32, i32, i32
  }
  func.func @transform_6(%arg0: i32, %arg1: i32) -> (i32, i32, i32) {
    %c0_i32 = arith.constant 0 : i32
    %c0_i32_0 = arith.constant 0 : i32
    %c0_i32_1 = arith.constant 0 : i32
    return %arg1, %c0_i32, %c0_i32_0 : i32, i32, i32
  }
  func.func @transform_7(%arg0: i32, %arg1: i32) -> (i32, i32, i32) {
    %c0_i32 = arith.constant 0 : i32
    %c0_i32_0 = arith.constant 0 : i32
    %c0_i32_1 = arith.constant 0 : i32
    return %arg1, %c0_i32, %c0_i32_0 : i32, i32, i32
  }
  func.func @transform_8(%arg0: i32, %arg1: i32) -> (i32, i32, i32) {
    %c0_i32 = arith.constant 0 : i32
    %c0_i32_0 = arith.constant 0 : i32
    %c0_i32_1 = arith.constant 0 : i32
    return %arg0, %c0_i32, %c0_i32_0 : i32, i32, i32
  }
}

</mosaic_0001>

<llo_original>
// kernel: custom-call.2
$region0: #{custom-call.2}
  %s0 = inlined_call_operand.vmem [shape: u32[2,8], index: 0, kind: output, shape index: {}]

// kernel: ne.4
$region0: #{ne.4}
  #allocation0 [shape = 's32[1]{0}', space=sflag, size = 0x4, scoped, tag = 'scoped memory for ne.4']
  %s0 = inlined_call_operand.vmem [shape: f32[2,8], index: 0, kind: input, shape index: {}, may-alias: {0,1}]
  %s1 = inlined_call_operand.vmem [shape: f32[2,8], index: 1, kind: input, shape index: {}, may-alias: {0,1}]
  %s2 = inlined_call_operand.vmem [shape: pred[2,8], index: 2, kind: output, shape index: {}]
  %v3 = vld [vmem:[%s0] sm:$0x3]
  %v4 = vld [vmem:[%s1] sm:$0x3]
  %5 = xla_tuple %v3, %v4
  %6 = xla_tuple %5
  %vm7 = vcmp.ne.f32.partialorder %v3, %v4
  %v8 = vsel %vm7, 1, 0
  %9 = xla_tuple %v8
  %v10 = vpack.c.b16 0, %v8
  %v11 = vpack.c.b8 0, %v10
  %13 = vst [vmem:[%s2] sm:$0x1] %v11

// kernel: squeeze.16
$region0: #{squeeze.16}
  %s0 = inlined_call_operand.vmem [shape: f32[16], index: 0, kind: input, shape index: {}]
  %s1 = inlined_call_operand.vmem [shape: f32[2,8], index: 1, kind: output, shape index: {}]
  $region1: #{squeeze.16} parent=0
    #allocation0 [shape = 'u8[4096]{0}', space=vmem, size = 0x1000, scoped, tag = 'scoped mem for output reshape']
    #allocation1 [shape = 'u8[4096]{0}', space=vmem, size = 0x1000, scoped, tag = 'scoped mem for input reshape']
    %s3 = sshllo.u32 0, 1
    %v4 = vld [vmem:[%s0] sm:%s3]
    %5 = vst [vmem:[#allocation1] sm:%s3] %v4
    %v6 = vld [vmem:[#allocation1] sm:$0x1]
    %vm7 = vcmask 64512
    %8 = vst.msk [vmem:[#allocation0] sm:$0x1] %vm7, %v6
    %v9 = vld [vmem:[#allocation1] sm:$0x1]
    %10 = vrot.lane.b32.xlu0 %v9, 120
    %v11 = vpop.permute.xlu0 %10
    %vm12 = vcmask 64512
    %s13 = scalar_lea.vmem [#allocation0], 1
    %14 = vst.msk [vmem:[%s13] sm:$0x1] %vm12, %v11
    %s16 = sshllo.u32 0, 2
    %v18 = vld [vmem:[#allocation0] sm:%s16]
    %s19 = sshllo.u32 0, 2
    %20 = vst [vmem:[%s1] sm:%s19] %v18

// kernel: fastspeech2_forward.4
$region0: #{fastspeech2_forward.4}
  #allocation0 [shape = 'u32[]', space=smem, size = 0x4, offset = 0x4, fixed_abs, tag = 'smem constant byte address 0x4 - core index']
  #allocation1 [shape = 'u32[144,128]{1,0:T(1,128)}', space=vmem, size = 0x12000, scoped, tag = 'internal scratch']
  %s0 = inlined_call_operand.vmem [shape: f32[2,8,32], index: 0, kind: input, shape index: {}]
  %s1 = inlined_call_operand.vmem [shape: f32[2,1,8], index: 1, kind: input, shape index: {}]
  %s2 = inlined_call_operand.vmem [shape: f32[2,8,1], index: 2, kind: input, shape index: {}]
  %s3 = inlined_call_operand.hbm [shape: f32[2,32,96], index: 3, kind: input, shape index: {}]
  %s4 = inlined_call_operand.hbm [shape: f32[2,32,32], index: 4, kind: input, shape index: {}]
  %s5 = inlined_call_operand.vmem [shape: f32[2,288,64], index: 5, kind: input, shape index: {}]
  %s6 = inlined_call_operand.vmem [shape: f32[2,64,32], index: 6, kind: input, shape index: {}]
  %s7 = inlined_call_operand.hbm [shape: f32[2,8,128], index: 7, kind: input, shape index: {}]
  %s8 = inlined_call_operand.vmem [shape: f32[2,8,32], index: 8, kind: output, shape index: {}]
  %s9 = sld [smem:[#allocation0]]
  $region81: #{fastspeech2_forward.4} parent=0
    _
  %s11 = ssub.s32 1, %s9
  %s12 = scalar_select 0, %s11, %s9
  $region1: #{fastspeech2_forward.4} parent=0
    #allocation2 [shape = 'u8[32768]{0}', space=vmem, size = 0x8000, scoped, tag = 'input window, operand 3']
    #allocation3 [shape = 's32[2]{0}', space=sflag, size = 0x8, scoped, tag = 'scoped memory for fastspeech2_forward.4']
    #allocation4 [shape = 'u8[32768]{0}', space=vmem, size = 0x8000, scoped, tag = 'input window, operand 4']
    #allocation5 [shape = 's32[2]{0}', space=sflag, size = 0x8, scoped, tag = 'scoped memory for fastspeech2_forward.4']
    #allocation6 [shape = 'u8[8192]{0}', space=vmem, size = 0x2000, scoped, tag = 'input window, operand 7']
    %13 = vsyncpa [#allocation3], 0
    %s14 = scalar_lea.sflag [#allocation3], 1
    %15 = vsyncpa %s14, 0
    %16 = vsyncpa [#allocation5], 0
    %s17 = scalar_lea.sflag [#allocation5], 1
    %18 = vsyncpa %s17, 0
    loop: start=0, step=1, limit=6
    $region2: #{fastspeech2_forward.4} parent=1 // loop_pre_header
      _
    $region3: #{fastspeech2_forward.4} parent=1 // loop_header
      %s20 = sphi 0, %s24
      %p21 = scmp.ge.s32.totalorder %s20, 6
      %s27 = sphi 0, %s39
      %s28 = sphi 0, %s35
      %s29 = sphi 0, %s27
      %s30 = sphi 0, %s28
      %s31 = sphi 0, %s29
      %s32 = sphi 0, %s30
      %s42 = sphi 0, %s44
      %s45 = sphi 0, %s42
      %s46 = sphi 0, %s45
      %s62 = sphi 0, %s46
      %s68 = sphi 0, %s70
      %s71 = sphi 0, %s68
      %s72 = sphi 0, %s71
      %s88 = sphi 0, %s72
      %s94 = sphi 0, %s96
      %s97 = sphi 0, %s94
      %s98 = sphi 0, %s97
      %s114 = sphi 0, %s98
      %s120 = sphi 0, %s122
      %s123 = sphi 0, %s120
      %s124 = sphi 0, %s123
      %s140 = sphi 0, %s124
      %s146 = sphi 0, %s148
      %s149 = sphi 0, %s146
      %s150 = sphi 0, %s149
      %s166 = sphi 0, %s150
      %s172 = sphi 0, %s174
      %s175 = sphi 0, %s172
      %s176 = sphi 0, %s175
      %s192 = sphi 0, %s176
      %s198 = sphi 0, %s200
      %s201 = sphi 0, %s198
      %s202 = sphi 0, %s201
      %s218 = sphi 0, %s202
      %s224 = sphi 0, %s226
      %s227 = sphi 0, %s224
      %s228 = sphi 0, %s227
      %s244 = sphi 0, %s228
      %s250 = sphi 0, %s252
      %s253 = sphi 0, %s250
      %s254 = sphi 0, %s253
      %s270 = sphi 0, %s254
    $region4: #{fastspeech2_forward.4} parent=1 // loop_header_branch
      %23 = sbr.rel (%p21) target = $region8
    $region5: #{fastspeech2_forward.4} parent=1 // loop_body
      %s25 = ssub.s32 %s20, 1
      %s26 = ssub.s32 %s20, 2
      %s33 = sadd.s32 1, %s28
      %p34 = scmp.ge.s32.totalorder %s33, 2
      %s35 = scalar_select %p34, 0, %s33
      %s36 = sadd.s32 1, %s27
      %s37 = scalar_select %p34, %s36, %s27
      %p38 = scmp.ge.s32.totalorder %s37, 2
      %s39 = scalar_select %p38, 0, %s37
      %s40 = ssub.s32 %s27, %s39
      %p41 = scmp.eq.s32.totalorder %s40, 0
      %s43 = sadd.s32 %s42, 1
      %s44 = scalar_select %p41, %s42, %s43
      %p47 = pneg %p41
      %p48 = scmp.eq.s32.totalorder %s20, 3
      %p49 = por %p47, %p48
      %p50 = scmp.ne.s32.totalorder %s42, %s45
      %p51 = scmp.eq.s32.totalorder %s20, 0
      %p52 = por %p50, %p51
      %p53 = scmp.ne.s32.totalorder %s42, %s45
      %p54 = scmp.eq.s32.totalorder %s25, 3
      %p55 = por %p53, %p54
      %p56 = scmp.ne.s32.totalorder %s45, %s46
      %p57 = scmp.eq.s32.totalorder %s25, 0
      %p58 = por %p56, %p57
      %p59 = scmp.ne.s32.totalorder %s45, %s46
      %p60 = scmp.eq.s32.totalorder %s26, 3
      %p61 = por %p59, %p60
      %p63 = scmp.ne.s32.totalorder %s46, %s62
      %p64 = scmp.eq.s32.totalorder %s26, 0
      %p65 = por %p63, %p64
      %s66 = ssub.s32 %s27, %s39
      %p67 = scmp.eq.s32.totalorder %s66, 0
      %s69 = sadd.s32 %s68, 1
      %s70 = scalar_select %p67, %s68, %s69
      %p73 = pneg %p67
      %p74 = scmp.eq.s32.totalorder %s20, 3
      %p75 = por %p73, %p74
      %p76 = scmp.ne.s32.totalorder %s68, %s71
      %p77 = scmp.eq.s32.totalorder %s20, 0
      %p78 = por %p76, %p77
      %p79 = scmp.ne.s32.totalorder %s68, %s71
      %p80 = scmp.eq.s32.totalorder %s25, 3
      %p81 = por %p79, %p80
      %p82 = scmp.ne.s32.totalorder %s71, %s72
      %p83 = scmp.eq.s32.totalorder %s25, 0
      %p84 = por %p82, %p83
      %p85 = scmp.ne.s32.totalorder %s71, %s72
      %p86 = scmp.eq.s32.totalorder %s26, 3
      %p87 = por %p85, %p86
      %p89 = scmp.ne.s32.totalorder %s72, %s88
      %p90 = scmp.eq.s32.totalorder %s26, 0
      %p91 = por %p89, %p90
      %s92 = ssub.s32 %s27, %s39
      %p93 = scmp.eq.s32.totalorder %s92, 0
      %s95 = sadd.s32 %s94, 1
      %s96 = scalar_select %p93, %s94, %s95
      %p99 = pneg %p93
      %p100 = scmp.eq.s32.totalorder %s20, 3
      %p101 = por %p99, %p100
      %p102 = scmp.ne.s32.totalorder %s94, %s97
      %p103 = scmp.eq.s32.totalorder %s20, 0
      %p104 = por %p102, %p103
      %p105 = scmp.ne.s32.totalorder %s94, %s97
      %p106 = scmp.eq.s32.totalorder %s25, 3
      %p107 = por %p105, %p106
      %p108 = scmp.ne.s32.totalorder %s97, %s98
      %p109 = scmp.eq.s32.totalorder %s25, 0
      %p110 = por %p108, %p109
      %p111 = scmp.ne.s32.totalorder %s97, %s98
      %p112 = scmp.eq.s32.totalorder %s26, 3
      %p113 = por %p111, %p112
      %p115 = scmp.ne.s32.totalorder %s98, %s114
      %p116 = scmp.eq.s32.totalorder %s26, 0
      %p117 = por %p115, %p116
      %s118 = ssub.s32 %s28, %s35
      %p119 = scmp.eq.s32.totalorder %s118, 0
      %s121 = sadd.s32 %s120, 1
      %s122 = scalar_select %p119, %s120, %s121
      %p125 = pneg %p119
      %p126 = scmp.eq.s32.totalorder %s20, 3
      %p127 = por %p125, %p126
      %p128 = scmp.ne.s32.totalorder %s120, %s123
      %p129 = scmp.eq.s32.totalorder %s20, 0
      %p130 = por %p128, %p129
      %p131 = scmp.ne.s32.totalorder %s120, %s123
      %p132 = scmp.eq.s32.totalorder %s25, 3
      %p133 = por %p131, %p132
      %p134 = scmp.ne.s32.totalorder %s123, %s124
      %p135 = scmp.eq.s32.totalorder %s25, 0
      %p136 = por %p134, %p135
      %p137 = scmp.ne.s32.totalorder %s123, %s124
      %p138 = scmp.eq.s32.totalorder %s26, 3
      %p139 = por %p137, %p138
      %p141 = scmp.ne.s32.totalorder %s124, %s140
      %p142 = scmp.eq.s32.totalorder %s26, 0
      %p143 = por %p141, %p142
      %s144 = ssub.s32 %s28, %s35
      %p145 = scmp.eq.s32.totalorder %s144, 0
      %s147 = sadd.s32 %s146, 1
      %s148 = scalar_select %p145, %s146, %s147
      %p151 = pneg %p145
      %p152 = scmp.eq.s32.totalorder %s20, 3
      %p153 = por %p151, %p152
      %p154 = scmp.ne.s32.totalorder %s146, %s149
      %p155 = scmp.eq.s32.totalorder %s20, 0
      %p156 = por %p154, %p155
      %p157 = scmp.ne.s32.totalorder %s146, %s149
      %p158 = scmp.eq.s32.totalorder %s25, 3
      %p159 = por %p157, %p158
      %p160 = scmp.ne.s32.totalorder %s149, %s150
      %p161 = scmp.eq.s32.totalorder %s25, 0
      %p162 = por %p160, %p161
      %p163 = scmp.ne.s32.totalorder %s149, %s150
      %p164 = scmp.eq.s32.totalorder %s26, 3
      %p165 = por %p163, %p164
      %p167 = scmp.ne.s32.totalorder %s150, %s166
      %p168 = scmp.eq.s32.totalorder %s26, 0
      %p169 = por %p167, %p168
      %s170 = ssub.s32 %s28, %s35
      %p171 = scmp.eq.s32.totalorder %s170, 0
      %s173 = sadd.s32 %s172, 1
      %s174 = scalar_select %p171, %s172, %s173
      %p177 = pneg %p171
      %p178 = scmp.eq.s32.totalorder %s20, 3
      %p179 = por %p177, %p178
      %p180 = scmp.ne.s32.totalorder %s172, %s175
      %p181 = scmp.eq.s32.totalorder %s20, 0
      %p182 = por %p180, %p181
      %p183 = scmp.ne.s32.totalorder %s172, %s175
      %p184 = scmp.eq.s32.totalorder %s25, 3
      %p185 = por %p183, %p184
      %p186 = scmp.ne.s32.totalorder %s175, %s176
      %p187 = scmp.eq.s32.totalorder %s25, 0
      %p188 = por %p186, %p187
      %p189 = scmp.ne.s32.totalorder %s175, %s176
      %p190 = scmp.eq.s32.totalorder %s26, 3
      %p191 = por %p189, %p190
      %p193 = scmp.ne.s32.totalorder %s176, %s192
      %p194 = scmp.eq.s32.totalorder %s26, 0
      %p195 = por %p193, %p194
      %s196 = ssub.s32 %s28, %s35
      %p197 = scmp.eq.s32.totalorder %s196, 0
      %s199 = sadd.s32 %s198, 1
      %s200 = scalar_select %p197, %s198, %s199
      %p203 = pneg %p197
      %p204 = scmp.eq.s32.totalorder %s20, 3
      %p205 = por %p203, %p204
      %p206 = scmp.ne.s32.totalorder %s198, %s201
      %p207 = scmp.eq.s32.totalorder %s20, 0
      %p208 = por %p206, %p207
      %p209 = scmp.ne.s32.totalorder %s198, %s201
      %p210 = scmp.eq.s32.totalorder %s25, 3
      %p211 = por %p209, %p210
      %p212 = scmp.ne.s32.totalorder %s201, %s202
      %p213 = scmp.eq.s32.totalorder %s25, 0
      %p214 = por %p212, %p213
      %p215 = scmp.ne.s32.totalorder %s201, %s202
      %p216 = scmp.eq.s32.totalorder %s26, 3
      %p217 = por %p215, %p216
      %p219 = scmp.ne.s32.totalorder %s202, %s218
      %p220 = scmp.eq.s32.totalorder %s26, 0
      %p221 = por %p219, %p220
      %s222 = ssub.s32 %s28, %s35
      %p223 = scmp.eq.s32.totalorder %s222, 0
      %s225 = sadd.s32 %s224, 1
      %s226 = scalar_select %p223, %s224, %s225
      %p229 = pneg %p223
      %p230 = scmp.eq.s32.totalorder %s20, 3
      %p231 = por %p229, %p230
      %p232 = scmp.ne.s32.totalorder %s224, %s227
      %p233 = scmp.eq.s32.totalorder %s20, 0
      %p234 = por %p232, %p233
      %p235 = scmp.ne.s32.totalorder %s224, %s227
      %p236 = scmp.eq.s32.totalorder %s25, 3
      %p237 = por %p235, %p236
      %p238 = scmp.ne.s32.totalorder %s227, %s228
      %p239 = scmp.eq.s32.totalorder %s25, 0
      %p240 = por %p238, %p239
      %p241 = scmp.ne.s32.totalorder %s227, %s228
      %p242 = scmp.eq.s32.totalorder %s26, 3
      %p243 = por %p241, %p242
      %p245 = scmp.ne.s32.totalorder %s228, %s244
      %p246 = scmp.eq.s32.totalorder %s26, 0
      %p247 = por %p245, %p246
      %s248 = ssub.s32 %s27, %s39
      %p249 = scmp.eq.s32.totalorder %s248, 0
      %s251 = sadd.s32 %s250, 1
      %s252 = scalar_select %p249, %s250, %s251
      %p255 = pneg %p249
      %p256 = scmp.eq.s32.totalorder %s20, 3
      %p257 = por %p255, %p256
      %p258 = scmp.ne.s32.totalorder %s250, %s253
      %p259 = scmp.eq.s32.totalorder %s20, 0
      %p260 = por %p258, %p259
      %p261 = scmp.ne.s32.totalorder %s250, %s253
      %p262 = scmp.eq.s32.totalorder %s25, 3
      %p263 = por %p261, %p262
      %p264 = scmp.ne.s32.totalorder %s253, %s254
      %p265 = scmp.eq.s32.totalorder %s25, 0
      %p266 = por %p264, %p265
      %p267 = scmp.ne.s32.totalorder %s253, %s254
      %p268 = scmp.eq.s32.totalorder %s26, 3
      %p269 = por %p267, %p268
      %p271 = scmp.ne.s32.totalorder %s254, %s270
      %p272 = scmp.eq.s32.totalorder %s26, 0
      %p273 = por %p271, %p272
      %p274 = scmp.le.s32.totalorder 1, %s20
      %p275 = scmp.lt.s32.totalorder %s20, 5
      %p276 = pnand %p274, %p275
      %p277 = pneg %p276
      // Predicated region
      $region9: #{fastspeech2_forward.4} parent=5 // pred_check
        _
      $region10: #{fastspeech2_forward.4} parent=5 // pred_check_branch
        %279 = sbr.rel (%p276) target = $region12
      $region11: #{fastspeech2_forward.4} parent=5 // pred_region
        %s280 = ssub.s32 %s20, 1
      $region12: #{fastspeech2_forward.4} parent=5 // pred_fallthru
        _
      %p281 = scmp.lt.s32.totalorder %s20, 4
      // Predicated region
      $region13: #{fastspeech2_forward.4} parent=5 // pred_check
        %p282 = pneg %p281
      $region14: #{fastspeech2_forward.4} parent=5 // pred_check_branch
        %284 = sbr.rel (%p282) target = $region16
      $region15: #{fastspeech2_forward.4} parent=5 // pred_region
        // Predicated region
        $region17: #{fastspeech2_forward.4} parent=15 // pred_check
          %p285 = pneg %p52
        $region18: #{fastspeech2_forward.4} parent=15 // pred_check_branch
          %287 = sbr.rel (%p285) target = $region20
        $region19: #{fastspeech2_forward.4} parent=15 // pred_region
          %p288 = scmp.lt.s32.totalorder %s27, 1
          %s289 = scalar_select %p288, %s27, 1
          %s290 = smul.addr %s289, 8
          %s291 = scalar_lea.vmem %s0, %s290
        $region20: #{fastspeech2_forward.4} parent=15 // pred_fallthru
          _
        // Predicated region
        $region21: #{fastspeech2_forward.4} parent=15 // pred_check
          %p292 = pneg %p78
        $region22: #{fastspeech2_forward.4} parent=15 // pred_check_branch
          %294 = sbr.rel (%p292) target = $region24
        $region23: #{fastspeech2_forward.4} parent=15 // pred_region
          %p295 = scmp.lt.s32.totalorder %s27, 1
          %s296 = scalar_select %p295, %s27, 1
          %s297 = scalar_lea.vmem %s1, %s296
        $region24: #{fastspeech2_forward.4} parent=15 // pred_fallthru
          _
        // Predicated region
        $region25: #{fastspeech2_forward.4} parent=15 // pred_check
          %p298 = pneg %p104
        $region26: #{fastspeech2_forward.4} parent=15 // pred_check_branch
          %300 = sbr.rel (%p298) target = $region28
        $region27: #{fastspeech2_forward.4} parent=15 // pred_region
          %p301 = scmp.lt.s32.totalorder %s27, 1
          %s302 = scalar_select %p301, %s27, 1
          %s303 = smul.addr %s302, 8
          %s304 = scalar_lea.vmem %s2, %s303
        $region28: #{fastspeech2_forward.4} parent=15 // pred_fallthru
          _
        // Predicated region
        $region29: #{fastspeech2_forward.4} parent=15 // pred_check
          %p305 = pneg %p130
        $region30: #{fastspeech2_forward.4} parent=15 // pred_check_branch
          %307 = sbr.rel (%p305) target = $region32
        $region31: #{fastspeech2_forward.4} parent=15 // pred_region
          %s308 = sand.u32 %s120, 1
          %s309 = scalar_lea.sflag [#allocation3], %s308
          %s310 = sand.u32 %s120, 1
          %s311 = smul.addr %s310, 32
          %s312 = scalar_lea.vmem [#allocation2], %s311
          %s314 = ssub.s32 512, 512
          %315 = vsyncadd %s309, %s314
          %s316 = smul.addr %s28, 4
          %s317 = smul.addr %s316, 128
          %s318 = scalar_lea.hbm %s3, %s317
          %s319 = sshll.u32 %s312, 4
          %s320 = int_to_ptr.vmem [resolvable:$true] %s319
          %325 = dma.hbm_to_vmem [thread:$0]  %s318, 512, %s320, %s309, 128, 128, 8
        $region32: #{fastspeech2_forward.4} parent=15 // pred_fallthru
          _
        // Predicated region
        $region33: #{fastspeech2_forward.4} parent=15 // pred_check
          %p326 = pneg %p156
        $region34: #{fastspeech2_forward.4} parent=15 // pred_check_branch
          %328 = sbr.rel (%p326) target = $region36
        $region35: #{fastspeech2_forward.4} parent=15 // pred_region
          %s329 = sand.u32 %s20, 1
          %s330 = scalar_lea.sflag [#allocation5], %s329
          %s331 = sand.u32 %s146, 1
          %s332 = smul.addr %s331, 32
          %s333 = scalar_lea.vmem [#allocation4], %s332
          %s335 = ssub.s32 512, 512
          %336 = vsyncadd %s330, %s335
          %s337 = smul.addr %s28, 4
          %s338 = smul.addr %s337, 128
          %s339 = scalar_lea.hbm %s4, %s338
          %s340 = sshll.u32 %s333, 4
          %s341 = int_to_ptr.vmem [resolvable:$true] %s340
          %346 = dma.hbm_to_vmem [thread:$0]  %s339, 512, %s341, %s330, 128, 128, 8
        $region36: #{fastspeech2_forward.4} parent=15 // pred_fallthru
          _
        // Predicated region
        $region37: #{fastspeech2_forward.4} parent=15 // pred_check
          %p347 = pneg %p182
        $region38: #{fastspeech2_forward.4} parent=15 // pred_check_branch
          %349 = sbr.rel (%p347) target = $region40
        $region39: #{fastspeech2_forward.4} parent=15 // pred_region
          %p350 = scmp.lt.s32.totalorder %s28, 1
          %s351 = scalar_select %p350, %s28, 1
          %s352 = smul.addr %s351, 36
          %s353 = smul.addr %s352, 8
          %s354 = scalar_lea.vmem %s5, %s353
        $region40: #{fastspeech2_forward.4} parent=15 // pred_fallthru
          _
        // Predicated region
        $region41: #{fastspeech2_forward.4} parent=15 // pred_check
          %p355 = pneg %p208
        $region42: #{fastspeech2_forward.4} parent=15 // pred_check_branch
          %357 = sbr.rel (%p355) target = $region44
        $region43: #{fastspeech2_forward.4} parent=15 // pred_region
          %p358 = scmp.lt.s32.totalorder %s28, 1
          %s359 = scalar_select %p358, %s28, 1
          %s360 = smul.addr %s359, 8
          %s361 = smul.addr %s360, 8
          %s362 = scalar_lea.vmem %s6, %s361
        $region44: #{fastspeech2_forward.4} parent=15 // pred_fallthru
          _
        // Predicated region
        $region45: #{fastspeech2_forward.4} parent=15 // pred_check
          %p363 = pneg %p234
        $region46: #{fastspeech2_forward.4} parent=15 // pred_check_branch
          %365 = sbr.rel (%p363) target = $region48
        $region47: #{fastspeech2_forward.4} parent=15 // pred_region
          %s366 = sand.u32 %s20, 1
          %s367 = scalar_lea.sflag [#allocation5], %s366
          %s368 = sand.u32 %s224, 1
          %s369 = smul.addr %s368, 8
          %s370 = scalar_lea.vmem [#allocation6], %s369
          %s372 = ssub.s32 128, 128
          %373 = vsyncadd %s367, %s372
          %s374 = smul.addr %s28, 128
          %s375 = scalar_lea.hbm %s7, %s374
          %s377 = sshll.u32 %s370, 4
          %s378 = int_to_ptr.vmem [resolvable:$true] %s377
          %380 = dma.hbm_to_vmem [thread:$0]  %s375, 128, %s378, %s367
        $region48: #{fastspeech2_forward.4} parent=15 // pred_fallthru
          _
      $region16: #{fastspeech2_forward.4} parent=5 // pred_fallthru
        _
      %p381 = scmp.le.s32.totalorder 1, %s20
      %p382 = scmp.lt.s32.totalorder %s20, 5
      %p383 = pnand %p381, %p382
      %p384 = pneg %p383
      // Predicated region
      $region49: #{fastspeech2_forward.4} parent=5 // pred_check
        _
      $region50: #{fastspeech2_forward.4} parent=5 // pred_check_branch
        %386 = sbr.rel (%p383) target = $region52
      $region51: #{fastspeech2_forward.4} parent=5 // pred_region
        %s387 = ssub.s32 %s20, 1
        %s388 = sand.u32 %s123, 1
        %s389 = scalar_lea.sflag [#allocation3], %s388
        %s390 = sand.u32 %s123, 1
        %s391 = smul.addr %s390, 32
        %s392 = scalar_lea.vmem [#allocation2], %s391
        // Predicated region
        $region53: #{fastspeech2_forward.4} parent=51 // pred_check
          %p393 = pneg %p136
        $region54: #{fastspeech2_forward.4} parent=51 // pred_check_branch
          %395 = sbr.rel (%p393) target = $region56
        $region55: #{fastspeech2_forward.4} parent=51 // pred_region
          %396 = dma.done %s389, 512
        $region56: #{fastspeech2_forward.4} parent=51 // pred_fallthru
          _
        %s397 = sand.u32 %s25, 1
        %s398 = scalar_lea.sflag [#allocation5], %s397
        %s399 = sand.u32 %s149, 1
        %s400 = smul.addr %s399, 32
        %s401 = scalar_lea.vmem [#allocation4], %s400
        // Predicated region
        $region57: #{fastspeech2_forward.4} parent=51 // pred_check
          %p402 = pneg %p162
        $region58: #{fastspeech2_forward.4} parent=51 // pred_check_branch
          %404 = sbr.rel (%p402) target = $region60
        $region59: #{fastspeech2_forward.4} parent=51 // pred_region
          %405 = dma.done %s398, 512
        $region60: #{fastspeech2_forward.4} parent=51 // pred_fallthru
          _
        %s406 = sand.u32 %s25, 1
        %s407 = scalar_lea.sflag [#allocation5], %s406
        %s408 = sand.u32 %s227, 1
        %s409 = smul.addr %s408, 8
        %s410 = scalar_lea.vmem [#allocation6], %s409
        // Predicated region
        $region61: #{fastspeech2_forward.4} parent=51 // pred_check
          %p411 = pneg %p240
        $region62: #{fastspeech2_forward.4} parent=51 // pred_check_branch
          %413 = sbr.rel (%p411) target = $region64
        $region63: #{fastspeech2_forward.4} parent=51 // pred_region
          %414 = dma.done %s407, 128
        $region64: #{fastspeech2_forward.4} parent=51 // pred_fallthru
          _
        %p415 = scmp.lt.s32.totalorder %s29, 1
        %s416 = scalar_select %p415, %s29, 1
        %s417 = smul.addr %s416, 8
        %s418 = scalar_lea.vmem %s0, %s417
        %p419 = pneg %p58
        %p420 = pneg %p55
        %p421 = scmp.lt.s32.totalorder %s29, 1
        %s422 = scalar_select %p421, %s29, 1
        %s423 = scalar_lea.vmem %s1, %s422
        %p424 = pneg %p84
        %p425 = pneg %p81
        %p426 = scmp.lt.s32.totalorder %s29, 1
        %s427 = scalar_select %p426, %s29, 1
        %s428 = smul.addr %s427, 8
        %s429 = scalar_lea.vmem %s2, %s428
        %p430 = pneg %p110
        %p431 = pneg %p107
        %s432 = sand.u32 %s123, 1
        %s433 = scalar_lea.sflag [#allocation3], %s432
        %s434 = sand.u32 %s123, 1
        %s435 = smul.addr %s434, 32
        %s436 = scalar_lea.vmem [#allocation2], %s435
        %p437 = pneg %p136
        %p438 = pneg %p133
        %s439 = sand.u32 %s25, 1
        %s440 = scalar_lea.sflag [#allocation5], %s439
        %s441 = sand.u32 %s149, 1
        %s442 = smul.addr %s441, 32
        %s443 = scalar_lea.vmem [#allocation4], %s442
        %p444 = pneg %p162
        %p445 = pneg %p159
        %p446 = scmp.lt.s32.totalorder %s30, 1
        %s447 = scalar_select %p446, %s30, 1
        %s448 = smul.addr %s447, 36
        %s449 = smul.addr %s448, 8
        %s450 = scalar_lea.vmem %s5, %s449
        %p451 = pneg %p188
        %p452 = pneg %p185
        %p453 = scmp.lt.s32.totalorder %s30, 1
        %s454 = scalar_select %p453, %s30, 1
        %s455 = smul.addr %s454, 8
        %s456 = smul.addr %s455, 8
        %s457 = scalar_lea.vmem %s6, %s456
        %p458 = pneg %p214
        %p459 = pneg %p211
        %s460 = sand.u32 %s25, 1
        %s461 = scalar_lea.sflag [#allocation5], %s460
        %s462 = sand.u32 %s227, 1
        %s463 = smul.addr %s462, 8
        %s464 = scalar_lea.vmem [#allocation6], %s463
        %p465 = pneg %p240
        %p466 = pneg %p237
        %p467 = pneg %p266
        %p468 = pneg %p263
        %p469 = scmp.lt.s32.totalorder %s29, 1
        %s470 = scalar_select %p469, %s29, 1
        %s471 = smul.addr %s470, 8
        %s472 = scalar_lea.vmem %s8, %s471
        %p473 = scmp.lt.s32.totalorder %s29, 1
        %s474 = scalar_select %p473, %s29, 1
        %s475 = smul.addr %s474, 8
        %s476 = scalar_lea.vmem %s0, %s475
        %p477 = scmp.lt.s32.totalorder %s29, 1
        %s478 = scalar_select %p477, %s29, 1
        %s479 = scalar_lea.vmem %s1, %s478
        %p480 = scmp.lt.s32.totalorder %s29, 1
        %s481 = scalar_select %p480, %s29, 1
        %s482 = smul.addr %s481, 8
        %s483 = scalar_lea.vmem %s2, %s482
        %p484 = scmp.lt.s32.totalorder %s30, 1
        %s485 = scalar_select %p484, %s30, 1
        %s486 = smul.addr %s485, 36
        %s487 = smul.addr %s486, 8
        %s488 = scalar_lea.vmem %s5, %s487
        %p489 = scmp.lt.s32.totalorder %s30, 1
        %s490 = scalar_select %p489, %s30, 1
        %s491 = smul.addr %s490, 8
        %s492 = smul.addr %s491, 8
        %s493 = scalar_lea.vmem %s6, %s492
        %p494 = scmp.lt.s32.totalorder %s29, 1
        %s495 = scalar_select %p494, %s29, 1
        %s496 = smul.addr %s495, 8
        %s497 = scalar_lea.vmem %s8, %s496
        %p498 = scmp.eq.s32.totalorder %s30, 0
        // Predicated region
        $region65: #{fastspeech2_forward.4} parent=51 // pred_check
          %p499 = pneg %p498
        $region66: #{fastspeech2_forward.4} parent=51 // pred_check_branch
          %501 = sbr.rel (%p499) target = $region68
        $region67: #{fastspeech2_forward.4} parent=51 // pred_region
          %v502 = vld [vmem:[%s476] sm:$0xff]
          %vm503 = vcmask 261120
          %504 = vst.msk [vmem:[%s497] sm:$0xff] %vm503, %v502
        $region68: #{fastspeech2_forward.4} parent=51 // pred_fallthru
          _
        %v505 = vld [vmem:[%s497] sm:$0xff]
        %v506 = vld [vmem:[%s479] sm:$0x1]
        %v507 = vld [vmem:[%s483] sm:$0xff]
        %v508 = vsub.f32 1.0, %v507
        %v509 = vld [vmem:[%s392] sm:$0xff]
        %v510 = vld [vmem:[%s392 + $0x8] sm:$0xff]
        %v511 = vld [vmem:[%s392 + $0x10] sm:$0xff]
        %v512 = vld [vmem:[%s392 + $0x18] sm:$0xff]
        %v513 = vld [vmem:[%s401] sm:$0xff]
        %v514 = vld [vmem:[%s401 + $0x8] sm:$0xff]
        %v515 = vld [vmem:[%s401 + $0x10] sm:$0xff]
        %v516 = vld [vmem:[%s401 + $0x18] sm:$0xff]
        %v517 = vld [vmem:[%s488] sm:$0xff]
        %v518 = vld [vmem:[%s488 + $0x8] sm:$0xff]
        %v519 = vld [vmem:[%s488 + $0x10] sm:$0xff]
        %v520 = vld [vmem:[%s488 + $0x18] sm:$0xff]
        %v521 = vld [vmem:[%s488 + $0x20] sm:$0xff]
        %v522 = vld [vmem:[%s488 + $0x28] sm:$0xff]
        %v523 = vld [vmem:[%s488 + $0x30] sm:$0xff]
        %v524 = vld [vmem:[%s488 + $0x38] sm:$0xff]
        %v525 = vld [vmem:[%s488 + $0x40] sm:$0xff]
        %v526 = vld [vmem:[%s488 + $0x48] sm:$0xff]
        %v527 = vld [vmem:[%s488 + $0x50] sm:$0xff]
        %v528 = vld [vmem:[%s488 + $0x58] sm:$0xff]
        %v529 = vld [vmem:[%s488 + $0x60] sm:$0xff]
        %v530 = vld [vmem:[%s488 + $0x68] sm:$0xff]
        %v531 = vld [vmem:[%s488 + $0x70] sm:$0xff]
        %v532 = vld [vmem:[%s488 + $0x78] sm:$0xff]
        %v533 = vld [vmem:[%s488 + $0x80] sm:$0xff]
        %v534 = vld [vmem:[%s488 + $0x88] sm:$0xff]
        %v535 = vld [vmem:[%s488 + $0x90] sm:$0xff]
        %v536 = vld [vmem:[%s488 + $0x98] sm:$0xff]
        %v537 = vld [vmem:[%s488 + $0xa0] sm:$0xff]
        %v538 = vld [vmem:[%s488 + $0xa8] sm:$0xff]
        %v539 = vld [vmem:[%s488 + $0xb0] sm:$0xff]
        %v540 = vld [vmem:[%s488 + $0xb8] sm:$0xff]
        %v541 = vld [vmem:[%s488 + $0xc0] sm:$0xff]
        %v542 = vld [vmem:[%s488 + $0xc8] sm:$0xff]
        %v543 = vld [vmem:[%s488 + $0xd0] sm:$0xff]
        %v544 = vld [vmem:[%s488 + $0xd8] sm:$0xff]
        %v545 = vld [vmem:[%s488 + $0xe0] sm:$0xff]
        %v546 = vld [vmem:[%s488 + $0xe8] sm:$0xff]
        %v547 = vld [vmem:[%s488 + $0xf0] sm:$0xff]
        %v548 = vld [vmem:[%s488 + $0xf8] sm:$0xff]
        %v549 = vld [vmem:[%s488 + $0x100] sm:$0xff]
        %v550 = vld [vmem:[%s488 + $0x108] sm:$0xff]
        %v551 = vld [vmem:[%s488 + $0x110] sm:$0xff]
        %v552 = vld [vmem:[%s488 + $0x118] sm:$0xff]
        %v553 = vld [vmem:[%s493] sm:$0xff]
        %v554 = vld [vmem:[%s493 + $0x8] sm:$0xff]
        %v555 = vld [vmem:[%s493 + $0x10] sm:$0xff]
        %v556 = vld [vmem:[%s493 + $0x18] sm:$0xff]
        %v557 = vld [vmem:[%s493 + $0x20] sm:$0xff]
        %v558 = vld [vmem:[%s493 + $0x28] sm:$0xff]
        %v559 = vld [vmem:[%s493 + $0x30] sm:$0xff]
        %v560 = vld [vmem:[%s493 + $0x38] sm:$0xff]
        %v561 = vld [vmem:[%s410] sm:$0xff]
        %v562 = vlaneseq
        %v563 = vshrl.u32 %v562, 7
        %v564 = vsub.s32 0, %v563
        %v565 = vrot.slane %v561, %v564
        %vm566 = vcmask 261120
        %v568 = vsel %vm566, %v505, 0
        %570 = vmatprep.subr.mxu0 0.0
        %571 = vmatpush1.msra.mxu0 %v509
        %572 = vmatprep.subr.mxu0 0.0
        %573 = vmatpush1.msra.mxu0 %v510
        %574 = vmatprep.subr.mxu0 0.0
        %575 = vmatpush1.msra.mxu0 %v511
        %576 = vmatprep.subr.mxu0 0.0
        %577 = vmatpush1.msra.mxu0 %v512
        %578 = vmatprep.subr.mxu0 0.0
        %579 = vmatpush1.msra.mxu0 0.0
        %580 = vmatprep.subr.mxu0 0.0
        %581 = vmatpush1.msra.mxu0 0.0
        %582 = vmatprep.subr.mxu0 0.0
        %583 = vmatpush1.msra.mxu0 0.0
        %584 = vmatprep.subr.mxu0 0.0
        %585 = vmatpush1.msra.mxu0 0.0
        %586 = vmatprep.subr.mxu0 0.0
        %587 = vmatpush1.msra.mxu0 0.0
        %588 = vmatprep.subr.mxu0 0.0
        %589 = vmatpush1.msra.mxu0 0.0
        %590 = vmatprep.subr.mxu0 0.0
        %591 = vmatpush1.msra.mxu0 0.0
        %592 = vmatprep.subr.mxu0 0.0
        %593 = vmatpush1.msra.mxu0 0.0
        %594 = vmatprep.subr.mxu0 0.0
        %595 = vmatpush1.msra.mxu0 0.0
        %596 = vmatprep.subr.mxu0 0.0
        %597 = vmatpush1.msra.mxu0 0.0
        %598 = vmatprep.subr.mxu0 0.0
        %599 = vmatpush1.msra.mxu0 0.0
        %600 = vmatprep.subr.mxu0 0.0
        %601 = vmatpush1.msra.mxu0 0.0
        %602 = vmatprep.subr.mxu0 0.0
        %603 = vmatpush1.msra.mxu0 0.0
        %604 = vmatprep.subr.mxu0 0.0
        %605 = vmatpush1.msra.mxu0 0.0
        %606 = vmatprep.subr.mxu0 0.0
        %607 = vmatpush1.msra.mxu0 0.0
        %608 = vmatprep.subr.mxu0 0.0
        %609 = vmatpush1.msra.mxu0 0.0
        %610 = vmatprep.subr.mxu0 0.0
        %611 = vmatpush1.msra.mxu0 0.0
        %612 = vmatprep.subr.mxu0 0.0
        %613 = vmatpush1.msra.mxu0 0.0
        %614 = vmatprep.subr.mxu0 0.0
        %615 = vmatpush1.msra.mxu0 0.0
        %616 = vmatprep.subr.mxu0 0.0
        %617 = vmatpush1.msra.mxu0 0.0
        %618 = vmatprep.subr.mxu0 0.0
        %619 = vmatpush1.msra.mxu0 0.0
        %620 = vmatprep.subr.mxu0 0.0
        %621 = vmatpush1.msra.mxu0 0.0
        %622 = vmatprep.subr.mxu0 0.0
        %623 = vmatpush1.msra.mxu0 0.0
        %624 = vmatprep.subr.mxu0 0.0
        %625 = vmatpush1.msra.mxu0 0.0
        %626 = vmatprep.subr.mxu0 0.0
        %627 = vmatpush1.msra.mxu0 0.0
        %628 = vmatprep.subr.mxu0 0.0
        %629 = vmatpush1.msra.mxu0 0.0
        %630 = vmatprep.subr.mxu0 0.0
        %631 = vmatpush1.msra.mxu0 0.0
        %632 = vmatprep.subr.mxu0 0.0
        %633 = vmatpush1.msra.mxu0 0.0
        %634 = vmatprep.mubr.f32.mxu0 0.0
        %635 = vmatmul.mubr.f32.gmra.mrb[0].mxu0 %v568
        %v636 = vpop.f32.mrb[0].mxu0
        %v637 = vadd.f32 %v565, %v636
        %v638 = vpop.f32.mrb[0].mxu0
        %639 = vdwg.mxu0
        %641 = vrot.lane.b32.xlu0 %v637, 96
        %v642 = vpop.permute.xlu0 %641
        %vm643 = vcmask 130048
        %v644 = vsel %vm643, %v637, 0
        %v646 = vsel %vm643, %v642, 0
        %648 = vmatprep.subr.mxu0 0.0
        %649 = vmatpush1.xpose.msra.mxu0 %v646
        %650 = vmatprep.subr.mxu0 0.0
        %651 = vmatpush1.xpose.msra.mxu0 0.0
        %652 = vmatprep.subr.mxu0 0.0
        %653 = vmatpush1.xpose.msra.mxu0 0.0
        %654 = vmatprep.subr.mxu0 0.0
        %655 = vmatpush1.xpose.msra.mxu0 0.0
        %656 = vmatprep.subr.mxu0 0.0
        %657 = vmatpush1.xpose.msra.mxu0 0.0
        %658 = vmatprep.subr.mxu0 0.0
        %659 = vmatpush1.xpose.msra.mxu0 0.0
        %660 = vmatprep.subr.mxu0 0.0
        %661 = vmatpush1.xpose.msra.mxu0 0.0
        %662 = vmatprep.subr.mxu0 0.0
        %663 = vmatpush1.xpose.msra.mxu0 0.0
        %664 = vmatprep.subr.mxu0 0.0
        %665 = vmatpush1.xpose.msra.mxu0 0.0
        %666 = vmatprep.subr.mxu0 0.0
        %667 = vmatpush1.xpose.msra.mxu0 0.0
        %668 = vmatprep.subr.mxu0 0.0
        %669 = vmatpush1.xpose.msra.mxu0 0.0
        %670 = vmatprep.subr.mxu0 0.0
        %671 = vmatpush1.xpose.msra.mxu0 0.0
        %672 = vmatprep.subr.mxu0 0.0
        %673 = vmatpush1.xpose.msra.mxu0 0.0
        %674 = vmatprep.subr.mxu0 0.0
        %675 = vmatpush1.xpose.msra.mxu0 0.0
        %676 = vmatprep.subr.mxu0 0.0
        %677 = vmatpush1.xpose.msra.mxu0 0.0
        %678 = vmatprep.subr.mxu0 0.0
        %679 = vmatpush1.xpose.msra.mxu0 0.0
        %680 = vmatprep.subr.mxu0 0.0
        %681 = vmatpush1.xpose.msra.mxu0 0.0
        %682 = vmatprep.subr.mxu0 0.0
        %683 = vmatpush1.xpose.msra.mxu0 0.0
        %684 = vmatprep.subr.mxu0 0.0
        %685 = vmatpush1.xpose.msra.mxu0 0.0
        %686 = vmatprep.subr.mxu0 0.0
        %687 = vmatpush1.xpose.msra.mxu0 0.0
        %688 = vmatprep.subr.mxu0 0.0
        %689 = vmatpush1.xpose.msra.mxu0 0.0
        %690 = vmatprep.subr.mxu0 0.0
        %691 = vmatpush1.xpose.msra.mxu0 0.0
        %692 = vmatprep.subr.mxu0 0.0
        %693 = vmatpush1.xpose.msra.mxu0 0.0
        %694 = vmatprep.subr.mxu0 0.0
        %695 = vmatpush1.xpose.msra.mxu0 0.0
        %696 = vmatprep.subr.mxu0 0.0
        %697 = vmatpush1.xpose.msra.mxu0 0.0
        %698 = vmatprep.subr.mxu0 0.0
        %699 = vmatpush1.xpose.msra.mxu0 0.0
        %700 = vmatprep.subr.mxu0 0.0
        %701 = vmatpush1.xpose.msra.mxu0 0.0
        %702 = vmatprep.subr.mxu0 0.0
        %703 = vmatpush1.xpose.msra.mxu0 0.0
        %704 = vmatprep.subr.mxu0 0.0
        %705 = vmatpush1.xpose.msra.mxu0 0.0
        %706 = vmatprep.subr.mxu0 0.0
        %707 = vmatpush1.xpose.msra.mxu0 0.0
        %708 = vmatprep.subr.mxu0 0.0
        %709 = vmatpush1.xpose.msra.mxu0 0.0
        %710 = vmatprep.subr.mxu0 0.0
        %711 = vmatpush1.xpose.msra.mxu0 0.0
        %712 = vmatprep.mubr.f32.mxu0 0.0
        %713 = vmatmul.mubr.f32.gmra.mrb[0].mxu0 %v644
        %v714 = vpop.f32.mrb[0].mxu0
        %v715 = vadd.f32 0.0, %v714
        %v716 = vpop.f32.mrb[0].mxu0
        %717 = vdwg.mxu0
        %vm718 = vcmp.gt.f32.partialorder %v506, 0.5
        %v719 = vsel %vm718, 1, 0
        %v720 = vlaneseq
        %v721 = vshrl.u32 %v720, 7
        %v722 = vsub.s32 0, %v721
        %v723 = vrot.slane %v719, %v722
        %vm724 = vcmp.eq.s32.totalorder %v723, 1
        %v725 = vsel %vm724, -1e+30, %v715
        %vm726 = vcmask 64512
        %v727 = vsel %vm726, %v725, -inf
        %728 = vmax.xlane.f32.xlu0 %v727
        %v729 = vpop.xlane.xlu0 %728
        %v730 = vsub.f32 %v725, %v729
        %v731 = vmul.f32 %v730, 1.442695
        %v732 = vpow.pop %v731
        %v733 = vsel %vm726, %v732, 0.0
        %734 = vadd.xlane.f32.xlu0 %v733
        %v735 = vpop.xlane.xlu0 %734
        %v736 = vrcp.pop %v735
        %v737 = vmul.f32 %v732, %v736
        %738 = vrot.lane.b32.xlu0 %v637, 64
        %v739 = vpop.permute.xlu0 %738
        %v742 = vsel %vm726, %v737, 0
        %744 = vmatprep.subr.mxu0 0.0
        %745 = vmatpush1.msra.mxu0 %v739
        %746 = vmatprep.subr.mxu0 0.0
        %747 = vmatpush1.msra.mxu0 0.0
        %748 = vmatprep.subr.mxu0 0.0
        %749 = vmatpush1.msra.mxu0 0.0
        %750 = vmatprep.subr.mxu0 0.0
        %751 = vmatpush1.msra.mxu0 0.0
        %752 = vmatprep.subr.mxu0 0.0
        %753 = vmatpush1.msra.mxu0 0.0
        %754 = vmatprep.subr.mxu0 0.0
        %755 = vmatpush1.msra.mxu0 0.0
        %756 = vmatprep.subr.mxu0 0.0
        %757 = vmatpush1.msra.mxu0 0.0
        %758 = vmatprep.subr.mxu0 0.0
        %759 = vmatpush1.msra.mxu0 0.0
        %760 = vmatprep.subr.mxu0 0.0
        %761 = vmatpush1.msra.mxu0 0.0
        %762 = vmatprep.subr.mxu0 0.0
        %763 = vmatpush1.msra.mxu0 0.0
        %764 = vmatprep.subr.mxu0 0.0
        %765 = vmatpush1.msra.mxu0 0.0
        %766 = vmatprep.subr.mxu0 0.0
        %767 = vmatpush1.msra.mxu0 0.0
        %768 = vmatprep.subr.mxu0 0.0
        %769 = vmatpush1.msra.mxu0 0.0
        %770 = vmatprep.subr.mxu0 0.0
        %771 = vmatpush1.msra.mxu0 0.0
        %772 = vmatprep.subr.mxu0 0.0
        %773 = vmatpush1.msra.mxu0 0.0
        %774 = vmatprep.subr.mxu0 0.0
        %775 = vmatpush1.msra.mxu0 0.0
        %776 = vmatprep.subr.mxu0 0.0
        %777 = vmatpush1.msra.mxu0 0.0
        %778 = vmatprep.subr.mxu0 0.0
        %779 = vmatpush1.msra.mxu0 0.0
        %780 = vmatprep.subr.mxu0 0.0
        %781 = vmatpush1.msra.mxu0 0.0
        %782 = vmatprep.subr.mxu0 0.0
        %783 = vmatpush1.msra.mxu0 0.0
        %784 = vmatprep.subr.mxu0 0.0
        %785 = vmatpush1.msra.mxu0 0.0
        %786 = vmatprep.subr.mxu0 0.0
        %787 = vmatpush1.msra.mxu0 0.0
        %788 = vmatprep.subr.mxu0 0.0
        %789 = vmatpush1.msra.mxu0 0.0
        %790 = vmatprep.subr.mxu0 0.0
        %791 = vmatpush1.msra.mxu0 0.0
        %792 = vmatprep.subr.mxu0 0.0
        %793 = vmatpush1.msra.mxu0 0.0
        %794 = vmatprep.subr.mxu0 0.0
        %795 = vmatpush1.msra.mxu0 0.0
        %796 = vmatprep.subr.mxu0 0.0
        %797 = vmatpush1.msra.mxu0 0.0
        %798 = vmatprep.subr.mxu0 0.0
        %799 = vmatpush1.msra.mxu0 0.0
        %800 = vmatprep.subr.mxu0 0.0
        %801 = vmatpush1.msra.mxu0 0.0
        %802 = vmatprep.subr.mxu0 0.0
        %803 = vmatpush1.msra.mxu0 0.0
        %804 = vmatprep.subr.mxu0 0.0
        %805 = vmatpush1.msra.mxu0 0.0
        %806 = vmatprep.subr.mxu0 0.0
        %807 = vmatpush1.msra.mxu0 0.0
        %808 = vmatprep.mubr.f32.mxu0 0.0
        %809 = vmatmul.mubr.f32.gmra.mrb[0].mxu0 %v742
        %v810 = vpop.f32.mrb[0].mxu0
        %v811 = vadd.f32 0.0, %v810
        %v812 = vpop.f32.mrb[0].mxu0
        %813 = vdwg.mxu0
        %814 = vrot.lane.b32.xlu0 %v637, 112
        %v815 = vpop.permute.xlu0 %814
        %816 = vrot.lane.b32.xlu0 %v637, 80
        %v817 = vpop.permute.xlu0 %816
        %v818 = vsel %vm643, %v815, 0
        %v820 = vsel %vm643, %v817, 0
        %822 = vmatprep.subr.mxu0 0.0
        %823 = vmatpush1.xpose.msra.mxu0 %v820
        %824 = vmatprep.subr.mxu0 0.0
        %825 = vmatpush1.xpose.msra.mxu0 0.0
        %826 = vmatprep.subr.mxu0 0.0
        %827 = vmatpush1.xpose.msra.mxu0 0.0
        %828 = vmatprep.subr.mxu0 0.0
        %829 = vmatpush1.xpose.msra.mxu0 0.0
        %830 = vmatprep.subr.mxu0 0.0
        %831 = vmatpush1.xpose.msra.mxu0 0.0
        %832 = vmatprep.subr.mxu0 0.0
        %833 = vmatpush1.xpose.msra.mxu0 0.0
        %834 = vmatprep.subr.mxu0 0.0
        %835 = vmatpush1.xpose.msra.mxu0 0.0
        %836 = vmatprep.subr.mxu0 0.0
        %837 = vmatpush1.xpose.msra.mxu0 0.0
        %838 = vmatprep.subr.mxu0 0.0
        %839 = vmatpush1.xpose.msra.mxu0 0.0
        %840 = vmatprep.subr.mxu0 0.0
        %841 = vmatpush1.xpose.msra.mxu0 0.0
        %842 = vmatprep.subr.mxu0 0.0
        %843 = vmatpush1.xpose.msra.mxu0 0.0
        %844 = vmatprep.subr.mxu0 0.0
        %845 = vmatpush1.xpose.msra.mxu0 0.0
        %846 = vmatprep.subr.mxu0 0.0
        %847 = vmatpush1.xpose.msra.mxu0 0.0
        %848 = vmatprep.subr.mxu0 0.0
        %849 = vmatpush1.xpose.msra.mxu0 0.0
        %850 = vmatprep.subr.mxu0 0.0
        %851 = vmatpush1.xpose.msra.mxu0 0.0
        %852 = vmatprep.subr.mxu0 0.0
        %853 = vmatpush1.xpose.msra.mxu0 0.0
        %854 = vmatprep.subr.mxu0 0.0
        %855 = vmatpush1.xpose.msra.mxu0 0.0
        %856 = vmatprep.subr.mxu0 0.0
        %857 = vmatpush1.xpose.msra.mxu0 0.0
        %858 = vmatprep.subr.mxu0 0.0
        %859 = vmatpush1.xpose.msra.mxu0 0.0
        %860 = vmatprep.subr.mxu0 0.0
        %861 = vmatpush1.xpose.msra.mxu0 0.0
        %862 = vmatprep.subr.mxu0 0.0
        %863 = vmatpush1.xpose.msra.mxu0 0.0
        %864 = vmatprep.subr.mxu0 0.0
        %865 = vmatpush1.xpose.msra.mxu0 0.0
        %866 = vmatprep.subr.mxu0 0.0
        %867 = vmatpush1.xpose.msra.mxu0 0.0
        %868 = vmatprep.subr.mxu0 0.0
        %869 = vmatpush1.xpose.msra.mxu0 0.0
        %870 = vmatprep.subr.mxu0 0.0
        %871 = vmatpush1.xpose.msra.mxu0 0.0
        %872 = vmatprep.subr.mxu0 0.0
        %873 = vmatpush1.xpose.msra.mxu0 0.0
        %874 = vmatprep.subr.mxu0 0.0
        %875 = vmatpush1.xpose.msra.mxu0 0.0
        %876 = vmatprep.subr.mxu0 0.0
        %877 = vmatpush1.xpose.msra.mxu0 0.0
        %878 = vmatprep.subr.mxu0 0.0
        %879 = vmatpush1.xpose.msra.mxu0 0.0
        %880 = vmatprep.subr.mxu0 0.0
        %881 = vmatpush1.xpose.msra.mxu0 0.0
        %882 = vmatprep.subr.mxu0 0.0
        %883 = vmatpush1.xpose.msra.mxu0 0.0
        %884 = vmatprep.subr.mxu0 0.0
        %885 = vmatpush1.xpose.msra.mxu0 0.0
        %886 = vmatprep.mubr.f32.mxu0 0.0
        %887 = vmatmul.mubr.f32.gmra.mrb[0].mxu0 %v818
        %v888 = vpop.f32.mrb[0].mxu0
        %v889 = vadd.f32 0.0, %v888
        %v890 = vpop.f32.mrb[0].mxu0
        %891 = vdwg.mxu0
        %v892 = vsel %vm724, -1e+30, %v889
        %v893 = vsel %vm726, %v892, -inf
        %894 = vmax.xlane.f32.xlu0 %v893
        %v895 = vpop.xlane.xlu0 %894
        %v896 = vsub.f32 %v892, %v895
        %v897 = vmul.f32 %v896, 1.442695
        %v898 = vpow.pop %v897
        %v899 = vsel %vm726, %v898, 0.0
        %900 = vadd.xlane.f32.xlu0 %v899
        %v901 = vpop.xlane.xlu0 %900
        %v902 = vrcp.pop %v901
        %v903 = vmul.f32 %v898, %v902
        %904 = vrot.lane.b32.xlu0 %v637, 48
        %v905 = vpop.permute.xlu0 %904
        %v908 = vsel %vm726, %v903, 0
        %910 = vmatprep.subr.mxu0 0.0
        %911 = vmatpush1.msra.mxu0 %v905
        %912 = vmatprep.subr.mxu0 0.0
        %913 = vmatpush1.msra.mxu0 0.0
        %914 = vmatprep.subr.mxu0 0.0
        %915 = vmatpush1.msra.mxu0 0.0
        %916 = vmatprep.subr.mxu0 0.0
        %917 = vmatpush1.msra.mxu0 0.0
        %918 = vmatprep.subr.mxu0 0.0
        %919 = vmatpush1.msra.mxu0 0.0
        %920 = vmatprep.subr.mxu0 0.0
        %921 = vmatpush1.msra.mxu0 0.0
        %922 = vmatprep.subr.mxu0 0.0
        %923 = vmatpush1.msra.mxu0 0.0
        %924 = vmatprep.subr.mxu0 0.0
        %925 = vmatpush1.msra.mxu0 0.0
        %926 = vmatprep.subr.mxu0 0.0
        %927 = vmatpush1.msra.mxu0 0.0
        %928 = vmatprep.subr.mxu0 0.0
        %929 = vmatpush1.msra.mxu0 0.0
        %930 = vmatprep.subr.mxu0 0.0
        %931 = vmatpush1.msra.mxu0 0.0
        %932 = vmatprep.subr.mxu0 0.0
        %933 = vmatpush1.msra.mxu0 0.0
        %934 = vmatprep.subr.mxu0 0.0
        %935 = vmatpush1.msra.mxu0 0.0
        %936 = vmatprep.subr.mxu0 0.0
        %937 = vmatpush1.msra.mxu0 0.0
        %938 = vmatprep.subr.mxu0 0.0
        %939 = vmatpush1.msra.mxu0 0.0
        %940 = vmatprep.subr.mxu0 0.0
        %941 = vmatpush1.msra.mxu0 0.0
        %942 = vmatprep.subr.mxu0 0.0
        %943 = vmatpush1.msra.mxu0 0.0
        %944 = vmatprep.subr.mxu0 0.0
        %945 = vmatpush1.msra.mxu0 0.0
        %946 = vmatprep.subr.mxu0 0.0
        %947 = vmatpush1.msra.mxu0 0.0
        %948 = vmatprep.subr.mxu0 0.0
        %949 = vmatpush1.msra.mxu0 0.0
        %950 = vmatprep.subr.mxu0 0.0
        %951 = vmatpush1.msra.mxu0 0.0
        %952 = vmatprep.subr.mxu0 0.0
        %953 = vmatpush1.msra.mxu0 0.0
        %954 = vmatprep.subr.mxu0 0.0
        %955 = vmatpush1.msra.mxu0 0.0
        %956 = vmatprep.subr.mxu0 0.0
        %957 = vmatpush1.msra.mxu0 0.0
        %958 = vmatprep.subr.mxu0 0.0
        %959 = vmatpush1.msra.mxu0 0.0
        %960 = vmatprep.subr.mxu0 0.0
        %961 = vmatpush1.msra.mxu0 0.0
        %962 = vmatprep.subr.mxu0 0.0
        %963 = vmatpush1.msra.mxu0 0.0
        %964 = vmatprep.subr.mxu0 0.0
        %965 = vmatpush1.msra.mxu0 0.0
        %966 = vmatprep.subr.mxu0 0.0
        %967 = vmatpush1.msra.mxu0 0.0
        %968 = vmatprep.subr.mxu0 0.0
        %969 = vmatpush1.msra.mxu0 0.0
        %970 = vmatprep.subr.mxu0 0.0
        %971 = vmatpush1.msra.mxu0 0.0
        %972 = vmatprep.subr.mxu0 0.0
        %973 = vmatpush1.msra.mxu0 0.0
        %974 = vmatprep.mubr.f32.mxu0 0.0
        %975 = vmatmul.mubr.f32.gmra.mrb[0].mxu0 %v908
        %v976 = vpop.f32.mrb[0].mxu0
        %v977 = vadd.f32 0.0, %v976
        %v978 = vpop.f32.mrb[0].mxu0
        %979 = vdwg.mxu0
        %981 = vrot.lane.b32.xlu0 %v977, 16
        %v982 = vpop.permute.xlu0 %981
        %v984 = vsel %vm643, %v811, %v982
        %v985 = vlaneseq
        %v986 = vshrl.u32 %v985, 7
        %v987 = vsub.s32 1, %v986
        %v988 = vrot.slane %v561, %v987
        %v990 = vsel %vm566, %v984, 0
        %992 = vmatprep.subr.mxu0 0.0
        %993 = vmatpush1.msra.mxu0 %v513
        %994 = vmatprep.subr.mxu0 0.0
        %995 = vmatpush1.msra.mxu0 %v514
        %996 = vmatprep.subr.mxu0 0.0
        %997 = vmatpush1.msra.mxu0 %v515
        %998 = vmatprep.subr.mxu0 0.0
        %999 = vmatpush1.msra.mxu0 %v516
        %1000 = vmatprep.subr.mxu0 0.0
        %1001 = vmatpush1.msra.mxu0 0.0
        %1002 = vmatprep.subr.mxu0 0.0
        %1003 = vmatpush1.msra.mxu0 0.0
        %1004 = vmatprep.subr.mxu0 0.0
        %1005 = vmatpush1.msra.mxu0 0.0
        %1006 = vmatprep.subr.mxu0 0.0
        %1007 = vmatpush1.msra.mxu0 0.0
        %1008 = vmatprep.subr.mxu0 0.0
        %1009 = vmatpush1.msra.mxu0 0.0
        %1010 = vmatprep.subr.mxu0 0.0
        %1011 = vmatpush1.msra.mxu0 0.0
        %1012 = vmatprep.subr.mxu0 0.0
        %1013 = vmatpush1.msra.mxu0 0.0
        %1014 = vmatprep.subr.mxu0 0.0
        %1015 = vmatpush1.msra.mxu0 0.0
        %1016 = vmatprep.subr.mxu0 0.0
        %1017 = vmatpush1.msra.mxu0 0.0
        %1018 = vmatprep.subr.mxu0 0.0
        %1019 = vmatpush1.msra.mxu0 0.0
        %1020 = vmatprep.subr.mxu0 0.0
        %1021 = vmatpush1.msra.mxu0 0.0
        %1022 = vmatprep.subr.mxu0 0.0
        %1023 = vmatpush1.msra.mxu0 0.0
        %1024 = vmatprep.subr.mxu0 0.0
        %1025 = vmatpush1.msra.mxu0 0.0
        %1026 = vmatprep.subr.mxu0 0.0
        %1027 = vmatpush1.msra.mxu0 0.0
        %1028 = vmatprep.subr.mxu0 0.0
        %1029 = vmatpush1.msra.mxu0 0.0
        %1030 = vmatprep.subr.mxu0 0.0
        %1031 = vmatpush1.msra.mxu0 0.0
        %1032 = vmatprep.subr.mxu0 0.0
        %1033 = vmatpush1.msra.mxu0 0.0
        %1034 = vmatprep.subr.mxu0 0.0
        %1035 = vmatpush1.msra.mxu0 0.0
        %1036 = vmatprep.subr.mxu0 0.0
        %1037 = vmatpush1.msra.mxu0 0.0
        %1038 = vmatprep.subr.mxu0 0.0
        %1039 = vmatpush1.msra.mxu0 0.0
        %1040 = vmatprep.subr.mxu0 0.0
        %1041 = vmatpush1.msra.mxu0 0.0
        %1042 = vmatprep.subr.mxu0 0.0
        %1043 = vmatpush1.msra.mxu0 0.0
        %1044 = vmatprep.subr.mxu0 0.0
        %1045 = vmatpush1.msra.mxu0 0.0
        %1046 = vmatprep.subr.mxu0 0.0
        %1047 = vmatpush1.msra.mxu0 0.0
        %1048 = vmatprep.subr.mxu0 0.0
        %1049 = vmatpush1.msra.mxu0 0.0
        %1050 = vmatprep.subr.mxu0 0.0
        %1051 = vmatpush1.msra.mxu0 0.0
        %1052 = vmatprep.subr.mxu0 0.0
        %1053 = vmatpush1.msra.mxu0 0.0
        %1054 = vmatprep.subr.mxu0 0.0
        %1055 = vmatpush1.msra.mxu0 0.0
        %1056 = vmatprep.mubr.f32.mxu0 0.0
        %1057 = vmatmul.mubr.f32.gmra.mrb[0].mxu0 %v990
        %v1058 = vpop.f32.mrb[0].mxu0
        %v1059 = vadd.f32 %v988, %v1058
        %v1060 = vpop.f32.mrb[0].mxu0
        %1061 = vdwg.mxu0
        %v1062 = vadd.f32 %v1059, %v505
        %v1063 = vsel %vm566, %v1062, 0.0
        %1064 = vadd.xlane.f32.xlu0 %v1063
        %v1065 = vpop.xlane.xlu0 %1064
        %v1066 = vrcp.pop 32.0
        %v1067 = vmul.f32 %v1065, %v1066
        %v1068 = vsub.f32 %v1062, %v1067
        %v1069 = vmul.f32 %v1068, %v1068
        %v1070 = vsel %vm566, %v1069, 0.0
        %1071 = vadd.xlane.f32.xlu0 %v1070
        %v1072 = vpop.xlane.xlu0 %1071
        %v1073 = vmul.f32 %v1072, %v1066
        %v1074 = vadd.f32 %v1073, 1e-05
        %v1075 = vrsqrt.pop %v1074
        %v1076 = vmul.f32 %v1068, %v1075
        %v1077 = vlaneseq
        %v1078 = vshrl.u32 %v1077, 7
        %v1079 = vsub.s32 2, %v1078
        %v1080 = vrot.slane %v561, %v1079
        %v1081 = vmul.f32 %v1076, %v1080
        %v1082 = vlaneseq
        %v1083 = vshrl.u32 %v1082, 7
        %v1084 = vsub.s32 3, %v1083
        %v1085 = vrot.slane %v561, %v1084
        %v1086 = vadd.f32 %v1081, %v1085
        %1088 = vset.pattern.permute.xlu0 0
        %1089 = vperm.xlu0 %1088, %v508
        %v1090 = vpop.permute.xlu0 %1089
        %v1092 = vmul.f32 %v1086, %v1090
        %v1094 = vrot.slane %v1092, 4
        %vm1096 = vcmask 1043456
        %v1097 = vsel %vm1096, 0.0, %v1094
        %v1098 = vsel %vm1096, %v1094, 0.0
        %vm1101 = vcmask 1046528
        %v1102 = vrot.slane %v1097, 1
        %v1103 = vrot.slane %v1098, 1
        %v1104 = vsel %vm1101, %v1102, %v1103
        %1105 = vrot.lane.b32.xlu0 %v1104, 32
        %v1106 = vpop.permute.xlu0 %1105
        %vm1108 = vcmask 1045504
        %v1109 = vrot.slane %v1097, 2
        %v1110 = vrot.slane %v1098, 2
        %v1111 = vsel %vm1108, %v1109, %v1110
        %1112 = vrot.lane.b32.xlu0 %v1111, 64
        %v1113 = vpop.permute.xlu0 %1112
        %vm1115 = vcmask 1044480
        %v1116 = vrot.slane %v1097, 3
        %v1117 = vrot.slane %v1098, 3
        %v1118 = vsel %vm1115, %v1116, %v1117
        %1119 = vrot.lane.b32.xlu0 %v1118, 96
        %v1120 = vpop.permute.xlu0 %1119
        %v1122 = vrot.slane %v1097, 4
        %v1123 = vrot.slane %v1098, 4
        %v1124 = vsel %vm1096, %v1122, %v1123
        %vm1126 = vcmask 1042432
        %v1127 = vrot.slane %v1097, 5
        %v1128 = vrot.slane %v1098, 5
        %v1129 = vsel %vm1126, %v1127, %v1128
        %1130 = vrot.lane.b32.xlu0 %v1129, 32
        %v1131 = vpop.permute.xlu0 %1130
        %vm1133 = vcmask 1041408
        %v1134 = vrot.slane %v1097, 6
        %v1135 = vrot.slane %v1098, 6
        %v1136 = vsel %vm1133, %v1134, %v1135
        %1137 = vrot.lane.b32.xlu0 %v1136, 64
        %v1138 = vpop.permute.xlu0 %1137
        %vm1140 = vcmask 1040384
        %v1141 = vrot.slane %v1097, 7
        %v1142 = vrot.slane %v1098, 7
        %v1143 = vsel %vm1140, %v1141, %v1142
        %1144 = vrot.lane.b32.xlu0 %v1143, 96
        %v1145 = vpop.permute.xlu0 %1144
        %v1147 = vsel %vm566, %v1097, %v1106
        %vm1148 = vcmask 523264
        %v1149 = vsel %vm1148, %v1147, %v1113
        %vm1150 = vcmask 785408
        %v1151 = vsel %vm1150, %v1149, %v1120
        %v1152 = vsel %vm566, %v1124, %v1131
        %v1153 = vsel %vm1148, %v1152, %v1138
        %v1154 = vsel %vm1150, %v1153, %v1145
        %v1155 = vlaneseq
        %v1156 = vshrl.u32 %v1155, 7
        %v1157 = vsub.s32 4, %v1156
        %v1158 = vrot.slane %v561, %v1157
        %v1159 = vsel %vm566, %v1098, 0
        %1161 = vmatprep.subr.mxu0 0.0
        %1162 = vmatpush1.msra.mxu0 %v517
        %1163 = vmatprep.subr.mxu0 0.0
        %1164 = vmatpush1.msra.mxu0 %v518
        %1165 = vmatprep.subr.mxu0 0.0
        %1166 = vmatpush1.msra.mxu0 %v519
        %1167 = vmatprep.subr.mxu0 0.0
        %1168 = vmatpush1.msra.mxu0 %v520
        %1169 = vmatprep.subr.mxu0 0.0
        %1170 = vmatpush1.msra.mxu0 %v521
        %1171 = vmatprep.subr.mxu0 0.0
        %1172 = vmatpush1.msra.mxu0 %v522
        %1173 = vmatprep.subr.mxu0 0.0
        %1174 = vmatpush1.msra.mxu0 %v523
        %1175 = vmatprep.subr.mxu0 0.0
        %1176 = vmatpush1.msra.mxu0 %v524
        %1177 = vmatprep.subr.mxu0 0.0
        %1178 = vmatpush1.msra.mxu0 %v525
        %1179 = vmatprep.subr.mxu0 0.0
        %1180 = vmatpush1.msra.mxu0 %v526
        %1181 = vmatprep.subr.mxu0 0.0
        %1182 = vmatpush1.msra.mxu0 %v527
        %1183 = vmatprep.subr.mxu0 0.0
        %1184 = vmatpush1.msra.mxu0 %v528
        %1185 = vmatprep.subr.mxu0 0.0
        %1186 = vmatpush1.msra.mxu0 %v529
        %1187 = vmatprep.subr.mxu0 0.0
        %1188 = vmatpush1.msra.mxu0 %v530
        %1189 = vmatprep.subr.mxu0 0.0
        %1190 = vmatpush1.msra.mxu0 %v531
        %1191 = vmatprep.subr.mxu0 0.0
        %1192 = vmatpush1.msra.mxu0 %v532
        %1193 = vmatprep.subr.mxu0 0.0
        %1194 = vmatpush1.msra.mxu0 %v533
        %1195 = vmatprep.subr.mxu0 0.0
        %1196 = vmatpush1.msra.mxu0 %v534
        %1197 = vmatprep.subr.mxu0 0.0
        %1198 = vmatpush1.msra.mxu0 %v535
        %1199 = vmatprep.subr.mxu0 0.0
        %1200 = vmatpush1.msra.mxu0 %v536
        %1201 = vmatprep.subr.mxu0 0.0
        %1202 = vmatpush1.msra.mxu0 %v537
        %1203 = vmatprep.subr.mxu0 0.0
        %1204 = vmatpush1.msra.mxu0 %v538
        %1205 = vmatprep.subr.mxu0 0.0
        %1206 = vmatpush1.msra.mxu0 %v539
        %1207 = vmatprep.subr.mxu0 0.0
        %1208 = vmatpush1.msra.mxu0 %v540
        %1209 = vmatprep.subr.mxu0 0.0
        %1210 = vmatpush1.msra.mxu0 %v541
        %1211 = vmatprep.subr.mxu0 0.0
        %1212 = vmatpush1.msra.mxu0 %v542
        %1213 = vmatprep.subr.mxu0 0.0
        %1214 = vmatpush1.msra.mxu0 %v543
        %1215 = vmatprep.subr.mxu0 0.0
        %1216 = vmatpush1.msra.mxu0 %v544
        %1217 = vmatprep.subr.mxu0 0.0
        %1218 = vmatpush1.msra.mxu0 %v545
        %1219 = vmatprep.subr.mxu0 0.0
        %1220 = vmatpush1.msra.mxu0 %v546
        %1221 = vmatprep.subr.mxu0 0.0
        %1222 = vmatpush1.msra.mxu0 %v547
        %1223 = vmatprep.subr.mxu0 0.0
        %1224 = vmatpush1.msra.mxu0 %v548
        %1225 = vmatprep.mubr.f32.mxu0 %v1154
        %1226 = vmatmul.mubr.f32.gmra.mrb[0].mxu0 %v1151
        %v1227 = vpop.f32.mrb[0].mxu0
        %v1228 = vadd.f32 %v1158, %v1227
        %v1229 = vpop.f32.mrb[0].mxu0
        %1230 = vdwg.mxu0
        %1231 = vmatprep.subr.mxu0 0.0
        %1232 = vmatpush1.msra.mxu0 %v549
        %1233 = vmatprep.subr.mxu0 0.0
        %1234 = vmatpush1.msra.mxu0 %v550
        %1235 = vmatprep.subr.mxu0 0.0
        %1236 = vmatpush1.msra.mxu0 %v551
        %1237 = vmatprep.subr.mxu0 0.0
        %1238 = vmatpush1.msra.mxu0 %v552
        %1239 = vmatprep.subr.mxu0 0.0
        %1240 = vmatpush1.msra.mxu0 0.0
        %1241 = vmatprep.subr.mxu0 0.0
        %1242 = vmatpush1.msra.mxu0 0.0
        %1243 = vmatprep.subr.mxu0 0.0
        %1244 = vmatpush1.msra.mxu0 0.0
        %1245 = vmatprep.subr.mxu0 0.0
        %1246 = vmatpush1.msra.mxu0 0.0
        %1247 = vmatprep.subr.mxu0 0.0
        %1248 = vmatpush1.msra.mxu0 0.0
        %1249 = vmatprep.subr.mxu0 0.0
        %1250 = vmatpush1.msra.mxu0 0.0
        %1251 = vmatprep.subr.mxu0 0.0
        %1252 = vmatpush1.msra.mxu0 0.0
        %1253 = vmatprep.subr.mxu0 0.0
        %1254 = vmatpush1.msra.mxu0 0.0
        %1255 = vmatprep.subr.mxu0 0.0
        %1256 = vmatpush1.msra.mxu0 0.0
        %1257 = vmatprep.subr.mxu0 0.0
        %1258 = vmatpush1.msra.mxu0 0.0
        %1259 = vmatprep.subr.mxu0 0.0
        %1260 = vmatpush1.msra.mxu0 0.0
        %1261 = vmatprep.subr.mxu0 0.0
        %1262 = vmatpush1.msra.mxu0 0.0
        %1263 = vmatprep.subr.mxu0 0.0
        %1264 = vmatpush1.msra.mxu0 0.0
        %1265 = vmatprep.subr.mxu0 0.0
        %1266 = vmatpush1.msra.mxu0 0.0
        %1267 = vmatprep.subr.mxu0 0.0
        %1268 = vmatpush1.msra.mxu0 0.0
        %1269 = vmatprep.subr.mxu0 0.0
        %1270 = vmatpush1.msra.mxu0 0.0
        %1271 = vmatprep.subr.mxu0 0.0
        %1272 = vmatpush1.msra.mxu0 0.0
        %1273 = vmatprep.subr.mxu0 0.0
        %1274 = vmatpush1.msra.mxu0 0.0
        %1275 = vmatprep.subr.mxu0 0.0
        %1276 = vmatpush1.msra.mxu0 0.0
        %1277 = vmatprep.subr.mxu0 0.0
        %1278 = vmatpush1.msra.mxu0 0.0
        %1279 = vmatprep.subr.mxu0 0.0
        %1280 = vmatpush1.msra.mxu0 0.0
        %1281 = vmatprep.subr.mxu0 0.0
        %1282 = vmatpush1.msra.mxu0 0.0
        %1283 = vmatprep.subr.mxu0 0.0
        %1284 = vmatpush1.msra.mxu0 0.0
        %1285 = vmatprep.subr.mxu0 0.0
        %1286 = vmatpush1.msra.mxu0 0.0
        %1287 = vmatprep.subr.mxu0 0.0
        %1288 = vmatpush1.msra.mxu0 0.0
        %1289 = vmatprep.subr.mxu0 0.0
        %1290 = vmatpush1.msra.mxu0 0.0
        %1291 = vmatprep.subr.mxu0 0.0
        %1292 = vmatpush1.msra.mxu0 0.0
        %1293 = vmatprep.subr.mxu0 0.0
        %1294 = vmatpush1.msra.mxu0 0.0
        %1295 = vmatprep.mubr.f32.mxu0 0.0
        %1296 = vmatmul.mubr.f32.gmra.mrb[0].mxu0 %v1159
        %v1297 = vpop.f32.mrb[0].mxu0
        %v1298 = vadd.f32 %v1228, %v1297
        %v1299 = vpop.f32.mrb[0].mxu0
        %1300 = vdwg.mxu0
        %v1301 = vmax.f32 %v1298, 0.0
        %v1302 = vlaneseq
        %v1303 = vshrl.u32 %v1302, 7
        %v1304 = vsub.s32 5, %v1303
        %v1305 = vrot.slane %v561, %v1304
        %v1307 = vsel %vm1148, %v1301, 0
        %1309 = vmatprep.subr.mxu0 0.0
        %1310 = vmatpush1.msra.mxu0 %v553
        %1311 = vmatprep.subr.mxu0 0.0
        %1312 = vmatpush1.msra.mxu0 %v554
        %1313 = vmatprep.subr.mxu0 0.0
        %1314 = vmatpush1.msra.mxu0 %v555
        %1315 = vmatprep.subr.mxu0 0.0
        %1316 = vmatpush1.msra.mxu0 %v556
        %1317 = vmatprep.subr.mxu0 0.0
        %1318 = vmatpush1.msra.mxu0 %v557
        %1319 = vmatprep.subr.mxu0 0.0
        %1320 = vmatpush1.msra.mxu0 %v558
        %1321 = vmatprep.subr.mxu0 0.0
        %1322 = vmatpush1.msra.mxu0 %v559
        %1323 = vmatprep.subr.mxu0 0.0
        %1324 = vmatpush1.msra.mxu0 %v560
        %1325 = vmatprep.subr.mxu0 0.0
        %1326 = vmatpush1.msra.mxu0 0.0
        %1327 = vmatprep.subr.mxu0 0.0
        %1328 = vmatpush1.msra.mxu0 0.0
        %1329 = vmatprep.subr.mxu0 0.0
        %1330 = vmatpush1.msra.mxu0 0.0
        %1331 = vmatprep.subr.mxu0 0.0
        %1332 = vmatpush1.msra.mxu0 0.0
        %1333 = vmatprep.subr.mxu0 0.0
        %1334 = vmatpush1.msra.mxu0 0.0
        %1335 = vmatprep.subr.mxu0 0.0
        %1336 = vmatpush1.msra.mxu0 0.0
        %1337 = vmatprep.subr.mxu0 0.0
        %1338 = vmatpush1.msra.mxu0 0.0
        %1339 = vmatprep.subr.mxu0 0.0
        %1340 = vmatpush1.msra.mxu0 0.0
        %1341 = vmatprep.subr.mxu0 0.0
        %1342 = vmatpush1.msra.mxu0 0.0
        %1343 = vmatprep.subr.mxu0 0.0
        %1344 = vmatpush1.msra.mxu0 0.0
        %1345 = vmatprep.subr.mxu0 0.0
        %1346 = vmatpush1.msra.mxu0 0.0
        %1347 = vmatprep.subr.mxu0 0.0
        %1348 = vmatpush1.msra.mxu0 0.0
        %1349 = vmatprep.subr.mxu0 0.0
        %1350 = vmatpush1.msra.mxu0 0.0
        %1351 = vmatprep.subr.mxu0 0.0
        %1352 = vmatpush1.msra.mxu0 0.0
        %1353 = vmatprep.subr.mxu0 0.0
        %1354 = vmatpush1.msra.mxu0 0.0
        %1355 = vmatprep.subr.mxu0 0.0
        %1356 = vmatpush1.msra.mxu0 0.0
        %1357 = vmatprep.subr.mxu0 0.0
        %1358 = vmatpush1.msra.mxu0 0.0
        %1359 = vmatprep.subr.mxu0 0.0
        %1360 = vmatpush1.msra.mxu0 0.0
        %1361 = vmatprep.subr.mxu0 0.0
        %1362 = vmatpush1.msra.mxu0 0.0
        %1363 = vmatprep.subr.mxu0 0.0
        %1364 = vmatpush1.msra.mxu0 0.0
        %1365 = vmatprep.subr.mxu0 0.0
        %1366 = vmatpush1.msra.mxu0 0.0
        %1367 = vmatprep.subr.mxu0 0.0
        %1368 = vmatpush1.msra.mxu0 0.0
        %1369 = vmatprep.subr.mxu0 0.0
        %1370 = vmatpush1.msra.mxu0 0.0
        %1371 = vmatprep.subr.mxu0 0.0
        %1372 = vmatpush1.msra.mxu0 0.0
        %1373 = vmatprep.mubr.f32.mxu0 0.0
        %1374 = vmatmul.mubr.f32.gmra.mrb[0].mxu0 %v1307
        %v1375 = vpop.f32.mrb[0].mxu0
        %v1376 = vadd.f32 %v1305, %v1375
        %v1377 = vpop.f32.mrb[0].mxu0
        %1378 = vdwg.mxu0
        %v1379 = vadd.f32 %v1376, %v1092
        %v1380 = vsel %vm566, %v1379, 0.0
        %1381 = vadd.xlane.f32.xlu0 %v1380
        %v1382 = vpop.xlane.xlu0 %1381
        %v1383 = vmul.f32 %v1382, %v1066
        %v1384 = vsub.f32 %v1379, %v1383
        %v1385 = vmul.f32 %v1384, %v1384
        %v1386 = vsel %vm566, %v1385, 0.0
        %1387 = vadd.xlane.f32.xlu0 %v1386
        %v1388 = vpop.xlane.xlu0 %1387
        %v1389 = vmul.f32 %v1388, %v1066
        %v1390 = vadd.f32 %v1389, 1e-05
        %v1391 = vrsqrt.pop %v1390
        %v1392 = vmul.f32 %v1384, %v1391
        %v1393 = vlaneseq
        %v1394 = vshrl.u32 %v1393, 7
        %v1395 = vsub.s32 6, %v1394
        %v1396 = vrot.slane %v561, %v1395
        %v1397 = vmul.f32 %v1392, %v1396
        %v1398 = vlaneseq
        %v1399 = vshrl.u32 %v1398, 7
        %v1400 = vsub.s32 7, %v1399
        %v1401 = vrot.slane %v561, %v1400
        %v1402 = vadd.f32 %v1397, %v1401
        %v1403 = vmul.f32 %v1402, %v1090
        %1404 = vst.msk [vmem:[%s497] sm:$0xff] %vm566, %v1403
        %p1405 = scmp.lt.s32.totalorder %s29, 1
        %s1406 = scalar_select %p1405, %s29, 1
        %s1407 = smul.addr %s1406, 8
        %s1408 = scalar_lea.vmem %s8, %s1407
        // Predicated region
        $region69: #{fastspeech2_forward.4} parent=51 // pred_check
          %p1409 = pneg %p263
        $region70: #{fastspeech2_forward.4} parent=51 // pred_check_branch
          %1411 = sbr.rel (%p1409) target = $region72
        $region71: #{fastspeech2_forward.4} parent=51 // pred_region
          _
        $region72: #{fastspeech2_forward.4} parent=51 // pred_fallthru
          _
      $region52: #{fastspeech2_forward.4} parent=5 // pred_fallthru
        _
      %p1412 = scmp.le.s32.totalorder 2, %s20
      // Predicated region
      $region73: #{fastspeech2_forward.4} parent=5 // pred_check
        %p1413 = pneg %p1412
      $region74: #{fastspeech2_forward.4} parent=5 // pred_check_branch
        %1415 = sbr.rel (%p1413) target = $region76
      $region75: #{fastspeech2_forward.4} parent=5 // pred_region
        %s1416 = ssub.s32 %s20, 2
        // Predicated region
        $region77: #{fastspeech2_forward.4} parent=75 // pred_check
          %p1417 = pneg %p269
        $region78: #{fastspeech2_forward.4} parent=75 // pred_check_branch
          %1419 = sbr.rel (%p1417) target = $region80
        $region79: #{fastspeech2_forward.4} parent=75 // pred_region
          %p1420 = scmp.lt.s32.totalorder %s31, 1
          %s1421 = scalar_select %p1420, %s31, 1
          %s1422 = smul.addr %s1421, 8
          %s1423 = scalar_lea.vmem %s8, %s1422
        $region80: #{fastspeech2_forward.4} parent=75 // pred_fallthru
          _
      $region76: #{fastspeech2_forward.4} parent=5 // pred_fallthru
        _
    $region6: #{fastspeech2_forward.4} parent=1 // loop_footer
      %s24 = sadd.s32 1, %s20
    $region7: #{fastspeech2_forward.4} parent=1 // loop_footer_branch
      %19 = sbr.rel target = $region3
    $region8: #{fastspeech2_forward.4} parent=1 // loop_exit
      _
    %1424 = vsyncpa [#allocation3], 1
    %s1425 = scalar_lea.sflag [#allocation3], 1
    %1426 = vsyncpa %s1425, 1
    %1427 = vsyncpa [#allocation5], 1
    %s1428 = scalar_lea.sflag [#allocation5], 1
    %1429 = vsyncpa %s1428, 1

// kernel: fastspeech2_forward.5
$region0: #{fastspeech2_forward.5}
  #allocation0 [shape = 'u32[]', space=smem, size = 0x4, offset = 0x4, fixed_abs, tag = 'smem constant byte address 0x4 - core index']
  #allocation1 [shape = 'u32[144,128]{1,0:T(1,128)}', space=vmem, size = 0x12000, scoped, tag = 'internal scratch']
  %s0 = inlined_call_operand.vmem [shape: f32[2,8,32], index: 0, kind: input, shape index: {}]
  %s1 = inlined_call_operand.vmem [shape: f32[2,8,1], index: 1, kind: input, shape index: {}]
  %s2 = inlined_call_operand.vmem [shape: f32[2,8,32], index: 2, kind: input, shape index: {}]
  %s3 = inlined_call_operand.vmem [shape: f32[2,8,32], index: 3, kind: input, shape index: {}]
  %s4 = inlined_call_operand.vmem [shape: f32[3,96,32], index: 4, kind: input, shape index: {}]
  %s5 = inlined_call_operand.vmem [shape: f32[3,96,32], index: 5, kind: input, shape index: {}]
  %s6 = inlined_call_operand.vmem [shape: f32[3,32,128], index: 6, kind: input, shape index: {}]
  %s7 = inlined_call_operand.vmem [shape: f32[3,8,128], index: 7, kind: input, shape index: {}]
  %s8 = inlined_call_operand.vmem [shape: f32[2,8,32], index: 8, kind: output, shape index: {0}]
  %s9 = inlined_call_operand.vmem [shape: f32[2,8,128], index: 9, kind: output, shape index: {1}]
  %10 = xla_tuple %s8, %s9
  %s11 = sld [smem:[#allocation0]]
  $region73: #{fastspeech2_forward.5} parent=0
    _
  %s13 = ssub.s32 1, %s11
  %s14 = scalar_select 0, %s13, %s11
  loop: start=0, step=1, limit=4
  $region2: #{fastspeech2_forward.5} parent=0 // loop_pre_header
    _
  $region3: #{fastspeech2_forward.5} parent=0 // loop_header
    %s16 = sphi 0, %s20
    %p17 = scmp.ge.s32.totalorder %s16, 4
    %s26 = sphi 0, %s28
    %s29 = sphi 0, %s26
    %s30 = sphi 0, %s29
    %s46 = sphi 0, %s30
    %s52 = sphi 0, %s54
    %s55 = sphi 0, %s52
    %s56 = sphi 0, %s55
    %s72 = sphi 0, %s56
    %s78 = sphi 0, %s80
    %s81 = sphi 0, %s78
    %s82 = sphi 0, %s81
    %s98 = sphi 0, %s82
    %s104 = sphi 0, %s106
    %s107 = sphi 0, %s104
    %s108 = sphi 0, %s107
    %s124 = sphi 0, %s108
    %s128 = sphi 0, %s128
    %s130 = sphi 0, %s128
    %s131 = sphi 0, %s130
    %s145 = sphi 0, %s131
    %s149 = sphi 0, %s149
    %s151 = sphi 0, %s149
    %s152 = sphi 0, %s151
    %s166 = sphi 0, %s152
    %s170 = sphi 0, %s170
    %s172 = sphi 0, %s170
    %s173 = sphi 0, %s172
    %s187 = sphi 0, %s173
    %s191 = sphi 0, %s191
    %s193 = sphi 0, %s191
    %s194 = sphi 0, %s193
    %s208 = sphi 0, %s194
    %s214 = sphi 0, %s216
    %s217 = sphi 0, %s214
    %s218 = sphi 0, %s217
    %s234 = sphi 0, %s218
    %s240 = sphi 0, %s242
    %s243 = sphi 0, %s240
    %s244 = sphi 0, %s243
    %s260 = sphi 0, %s244
  $region4: #{fastspeech2_forward.5} parent=0 // loop_header_branch
    %19 = sbr.rel (%p17) target = $region8
  $region5: #{fastspeech2_forward.5} parent=0 // loop_body
    %s21 = ssub.s32 %s16, 1
    %s22 = ssub.s32 %s16, 2
    %s23 = sadd.s32 %s16, 1
    %s24 = ssub.s32 %s16, %s23
    %p25 = scmp.eq.s32.totalorder %s24, 0
    %s27 = sadd.s32 %s26, 1
    %s28 = scalar_select %p25, %s26, %s27
    %p31 = pneg %p25
    %p32 = scmp.eq.s32.totalorder %s16, 1
    %p33 = por %p31, %p32
    %p34 = scmp.ne.s32.totalorder %s26, %s29
    %p35 = scmp.eq.s32.totalorder %s16, 0
    %p36 = por %p34, %p35
    %p37 = scmp.ne.s32.totalorder %s26, %s29
    %p38 = scmp.eq.s32.totalorder %s21, 1
    %p39 = por %p37, %p38
    %p40 = scmp.ne.s32.totalorder %s29, %s30
    %p41 = scmp.eq.s32.totalorder %s21, 0
    %p42 = por %p40, %p41
    %p43 = scmp.ne.s32.totalorder %s29, %s30
    %p44 = scmp.eq.s32.totalorder %s22, 1
    %p45 = por %p43, %p44
    %p47 = scmp.ne.s32.totalorder %s30, %s46
    %p48 = scmp.eq.s32.totalorder %s22, 0
    %p49 = por %p47, %p48
    %s50 = ssub.s32 %s16, %s23
    %p51 = scmp.eq.s32.totalorder %s50, 0
    %s53 = sadd.s32 %s52, 1
    %s54 = scalar_select %p51, %s52, %s53
    %p57 = pneg %p51
    %p58 = scmp.eq.s32.totalorder %s16, 1
    %p59 = por %p57, %p58
    %p60 = scmp.ne.s32.totalorder %s52, %s55
    %p61 = scmp.eq.s32.totalorder %s16, 0
    %p62 = por %p60, %p61
    %p63 = scmp.ne.s32.totalorder %s52, %s55
    %p64 = scmp.eq.s32.totalorder %s21, 1
    %p65 = por %p63, %p64
    %p66 = scmp.ne.s32.totalorder %s55, %s56
    %p67 = scmp.eq.s32.totalorder %s21, 0
    %p68 = por %p66, %p67
    %p69 = scmp.ne.s32.totalorder %s55, %s56
    %p70 = scmp.eq.s32.totalorder %s22, 1
    %p71 = por %p69, %p70
    %p73 = scmp.ne.s32.totalorder %s56, %s72
    %p74 = scmp.eq.s32.totalorder %s22, 0
    %p75 = por %p73, %p74
    %s76 = ssub.s32 %s16, %s23
    %p77 = scmp.eq.s32.totalorder %s76, 0
    %s79 = sadd.s32 %s78, 1
    %s80 = scalar_select %p77, %s78, %s79
    %p83 = pneg %p77
    %p84 = scmp.eq.s32.totalorder %s16, 1
    %p85 = por %p83, %p84
    %p86 = scmp.ne.s32.totalorder %s78, %s81
    %p87 = scmp.eq.s32.totalorder %s16, 0
    %p88 = por %p86, %p87
    %p89 = scmp.ne.s32.totalorder %s78, %s81
    %p90 = scmp.eq.s32.totalorder %s21, 1
    %p91 = por %p89, %p90
    %p92 = scmp.ne.s32.totalorder %s81, %s82
    %p93 = scmp.eq.s32.totalorder %s21, 0
    %p94 = por %p92, %p93
    %p95 = scmp.ne.s32.totalorder %s81, %s82
    %p96 = scmp.eq.s32.totalorder %s22, 1
    %p97 = por %p95, %p96
    %p99 = scmp.ne.s32.totalorder %s82, %s98
    %p100 = scmp.eq.s32.totalorder %s22, 0
    %p101 = por %p99, %p100
    %s102 = ssub.s32 %s16, %s23
    %p103 = scmp.eq.s32.totalorder %s102, 0
    %s105 = sadd.s32 %s104, 1
    %s106 = scalar_select %p103, %s104, %s105
    %p109 = pneg %p103
    %p110 = scmp.eq.s32.totalorder %s16, 1
    %p111 = por %p109, %p110
    %p112 = scmp.ne.s32.totalorder %s104, %s107
    %p113 = scmp.eq.s32.totalorder %s16, 0
    %p114 = por %p112, %p113
    %p115 = scmp.ne.s32.totalorder %s104, %s107
    %p116 = scmp.eq.s32.totalorder %s21, 1
    %p117 = por %p115, %p116
    %p118 = scmp.ne.s32.totalorder %s107, %s108
    %p119 = scmp.eq.s32.totalorder %s21, 0
    %p120 = por %p118, %p119
    %p121 = scmp.ne.s32.totalorder %s107, %s108
    %p122 = scmp.eq.s32.totalorder %s22, 1
    %p123 = por %p121, %p122
    %p125 = scmp.ne.s32.totalorder %s108, %s124
    %p126 = scmp.eq.s32.totalorder %s22, 0
    %p127 = por %p125, %p126
    %s129 = sadd.s32 %s128, 1
    %p132 = scmp.eq.s32.totalorder %s16, 1
    %p133 = scmp.ne.s32.totalorder %s128, %s130
    %p134 = scmp.eq.s32.totalorder %s16, 0
    %p135 = por %p133, %p134
    %p136 = scmp.ne.s32.totalorder %s128, %s130
    %p137 = scmp.eq.s32.totalorder %s21, 1
    %p138 = por %p136, %p137
    %p139 = scmp.ne.s32.totalorder %s130, %s131
    %p140 = scmp.eq.s32.totalorder %s21, 0
    %p141 = por %p139, %p140
    %p142 = scmp.ne.s32.totalorder %s130, %s131
    %p143 = scmp.eq.s32.totalorder %s22, 1
    %p144 = por %p142, %p143
    %p146 = scmp.ne.s32.totalorder %s131, %s145
    %p147 = scmp.eq.s32.totalorder %s22, 0
    %p148 = por %p146, %p147
    %s150 = sadd.s32 %s149, 1
    %p153 = scmp.eq.s32.totalorder %s16, 1
    %p154 = scmp.ne.s32.totalorder %s149, %s151
    %p155 = scmp.eq.s32.totalorder %s16, 0
    %p156 = por %p154, %p155
    %p157 = scmp.ne.s32.totalorder %s149, %s151
    %p158 = scmp.eq.s32.totalorder %s21, 1
    %p159 = por %p157, %p158
    %p160 = scmp.ne.s32.totalorder %s151, %s152
    %p161 = scmp.eq.s32.totalorder %s21, 0
    %p162 = por %p160, %p161
    %p163 = scmp.ne.s32.totalorder %s151, %s152
    %p164 = scmp.eq.s32.totalorder %s22, 1
    %p165 = por %p163, %p164
    %p167 = scmp.ne.s32.totalorder %s152, %s166
    %p168 = scmp.eq.s32.totalorder %s22, 0
    %p169 = por %p167, %p168
    %s171 = sadd.s32 %s170, 1
    %p174 = scmp.eq.s32.totalorder %s16, 1
    %p175 = scmp.ne.s32.totalorder %s170, %s172
    %p176 = scmp.eq.s32.totalorder %s16, 0
    %p177 = por %p175, %p176
    %p178 = scmp.ne.s32.totalorder %s170, %s172
    %p179 = scmp.eq.s32.totalorder %s21, 1
    %p180 = por %p178, %p179
    %p181 = scmp.ne.s32.totalorder %s172, %s173
    %p182 = scmp.eq.s32.totalorder %s21, 0
    %p183 = por %p181, %p182
    %p184 = scmp.ne.s32.totalorder %s172, %s173
    %p185 = scmp.eq.s32.totalorder %s22, 1
    %p186 = por %p184, %p185
    %p188 = scmp.ne.s32.totalorder %s173, %s187
    %p189 = scmp.eq.s32.totalorder %s22, 0
    %p190 = por %p188, %p189
    %s192 = sadd.s32 %s191, 1
    %p195 = scmp.eq.s32.totalorder %s16, 1
    %p196 = scmp.ne.s32.totalorder %s191, %s193
    %p197 = scmp.eq.s32.totalorder %s16, 0
    %p198 = por %p196, %p197
    %p199 = scmp.ne.s32.totalorder %s191, %s193
    %p200 = scmp.eq.s32.totalorder %s21, 1
    %p201 = por %p199, %p200
    %p202 = scmp.ne.s32.totalorder %s193, %s194
    %p203 = scmp.eq.s32.totalorder %s21, 0
    %p204 = por %p202, %p203
    %p205 = scmp.ne.s32.totalorder %s193, %s194
    %p206 = scmp.eq.s32.totalorder %s22, 1
    %p207 = por %p205, %p206
    %p209 = scmp.ne.s32.totalorder %s194, %s208
    %p210 = scmp.eq.s32.totalorder %s22, 0
    %p211 = por %p209, %p210
    %s212 = ssub.s32 %s16, %s23
    %p213 = scmp.eq.s32.totalorder %s212, 0
    %s215 = sadd.s32 %s214, 1
    %s216 = scalar_select %p213, %s214, %s215
    %p219 = pneg %p213
    %p220 = scmp.eq.s32.totalorder %s16, 1
    %p221 = por %p219, %p220
    %p222 = scmp.ne.s32.totalorder %s214, %s217
    %p223 = scmp.eq.s32.totalorder %s16, 0
    %p224 = por %p222, %p223
    %p225 = scmp.ne.s32.totalorder %s214, %s217
    %p226 = scmp.eq.s32.totalorder %s21, 1
    %p227 = por %p225, %p226
    %p228 = scmp.ne.s32.totalorder %s217, %s218
    %p229 = scmp.eq.s32.totalorder %s21, 0
    %p230 = por %p228, %p229
    %p231 = scmp.ne.s32.totalorder %s217, %s218
    %p232 = scmp.eq.s32.totalorder %s22, 1
    %p233 = por %p231, %p232
    %p235 = scmp.ne.s32.totalorder %s218, %s234
    %p236 = scmp.eq.s32.totalorder %s22, 0
    %p237 = por %p235, %p236
    %s238 = ssub.s32 %s16, %s23
    %p239 = scmp.eq.s32.totalorder %s238, 0
    %s241 = sadd.s32 %s240, 1
    %s242 = scalar_select %p239, %s240, %s241
    %p245 = pneg %p239
    %p246 = scmp.eq.s32.totalorder %s16, 1
    %p247 = por %p245, %p246
    %p248 = scmp.ne.s32.totalorder %s240, %s243
    %p249 = scmp.eq.s32.totalorder %s16, 0
    %p250 = por %p248, %p249
    %p251 = scmp.ne.s32.totalorder %s240, %s243
    %p252 = scmp.eq.s32.totalorder %s21, 1
    %p253 = por %p251, %p252
    %p254 = scmp.ne.s32.totalorder %s243, %s244
    %p255 = scmp.eq.s32.totalorder %s21, 0
    %p256 = por %p254, %p255
    %p257 = scmp.ne.s32.totalorder %s243, %s244
    %p258 = scmp.eq.s32.totalorder %s22, 1
    %p259 = por %p257, %p258
    %p261 = scmp.ne.s32.totalorder %s244, %s260
    %p262 = scmp.eq.s32.totalorder %s22, 0
    %p263 = por %p261, %p262
    %p264 = scmp.le.s32.totalorder 1, %s16
    %p265 = scmp.lt.s32.totalorder %s16, 3
    %p266 = pnand %p264, %p265
    %p267 = pneg %p266
    // Predicated region
    $region9: #{fastspeech2_forward.5} parent=5 // pred_check
      _
    $region10: #{fastspeech2_forward.5} parent=5 // pred_check_branch
      %269 = sbr.rel (%p266) target = $region12
    $region11: #{fastspeech2_forward.5} parent=5 // pred_region
      %s270 = ssub.s32 %s16, 1
      // Predicated region
      $region13: #{fastspeech2_forward.5} parent=11 // pred_check
        %p271 = pneg %p141
      $region14: #{fastspeech2_forward.5} parent=11 // pred_check_branch
        %273 = sbr.rel (%p271) target = $region16
      $region15: #{fastspeech2_forward.5} parent=11 // pred_region
        _
      $region16: #{fastspeech2_forward.5} parent=11 // pred_fallthru
        _
      // Predicated region
      $region17: #{fastspeech2_forward.5} parent=11 // pred_check
        %p274 = pneg %p162
      $region18: #{fastspeech2_forward.5} parent=11 // pred_check_branch
        %276 = sbr.rel (%p274) target = $region20
      $region19: #{fastspeech2_forward.5} parent=11 // pred_region
        _
      $region20: #{fastspeech2_forward.5} parent=11 // pred_fallthru
        _
      // Predicated region
      $region21: #{fastspeech2_forward.5} parent=11 // pred_check
        %p277 = pneg %p183
      $region22: #{fastspeech2_forward.5} parent=11 // pred_check_branch
        %279 = sbr.rel (%p277) target = $region24
      $region23: #{fastspeech2_forward.5} parent=11 // pred_region
        _
      $region24: #{fastspeech2_forward.5} parent=11 // pred_fallthru
        _
      // Predicated region
      $region25: #{fastspeech2_forward.5} parent=11 // pred_check
        %p280 = pneg %p204
      $region26: #{fastspeech2_forward.5} parent=11 // pred_check_branch
        %282 = sbr.rel (%p280) target = $region28
      $region27: #{fastspeech2_forward.5} parent=11 // pred_region
        _
      $region28: #{fastspeech2_forward.5} parent=11 // pred_fallthru
        _
    $region12: #{fastspeech2_forward.5} parent=5 // pred_fallthru
      _
    %p283 = scmp.lt.s32.totalorder %s16, 2
    // Predicated region
    $region29: #{fastspeech2_forward.5} parent=5 // pred_check
      %p284 = pneg %p283
    $region30: #{fastspeech2_forward.5} parent=5 // pred_check_branch
      %286 = sbr.rel (%p284) target = $region32
    $region31: #{fastspeech2_forward.5} parent=5 // pred_region
      // Predicated region
      $region33: #{fastspeech2_forward.5} parent=31 // pred_check
        %p287 = pneg %p36
      $region34: #{fastspeech2_forward.5} parent=31 // pred_check_branch
        %289 = sbr.rel (%p287) target = $region36
      $region35: #{fastspeech2_forward.5} parent=31 // pred_region
        %p290 = scmp.lt.s32.totalorder %s16, 1
        %s291 = scalar_select %p290, %s16, 1
        %s292 = smul.addr %s291, 8
        %s293 = scalar_lea.vmem %s0, %s292
      $region36: #{fastspeech2_forward.5} parent=31 // pred_fallthru
        _
      // Predicated region
      $region37: #{fastspeech2_forward.5} parent=31 // pred_check
        %p294 = pneg %p62
      $region38: #{fastspeech2_forward.5} parent=31 // pred_check_branch
        %296 = sbr.rel (%p294) target = $region40
      $region39: #{fastspeech2_forward.5} parent=31 // pred_region
        %p297 = scmp.lt.s32.totalorder %s16, 1
        %s298 = scalar_select %p297, %s16, 1
        %s299 = smul.addr %s298, 8
        %s300 = scalar_lea.vmem %s1, %s299
      $region40: #{fastspeech2_forward.5} parent=31 // pred_fallthru
        _
      // Predicated region
      $region41: #{fastspeech2_forward.5} parent=31 // pred_check
        %p301 = pneg %p88
      $region42: #{fastspeech2_forward.5} parent=31 // pred_check_branch
        %303 = sbr.rel (%p301) target = $region44
      $region43: #{fastspeech2_forward.5} parent=31 // pred_region
        %p304 = scmp.lt.s32.totalorder %s16, 1
        %s305 = scalar_select %p304, %s16, 1
        %s306 = smul.addr %s305, 8
        %s307 = scalar_lea.vmem %s2, %s306
      $region44: #{fastspeech2_forward.5} parent=31 // pred_fallthru
        _
      // Predicated region
      $region45: #{fastspeech2_forward.5} parent=31 // pred_check
        %p308 = pneg %p114
      $region46: #{fastspeech2_forward.5} parent=31 // pred_check_branch
        %310 = sbr.rel (%p308) target = $region48
      $region47: #{fastspeech2_forward.5} parent=31 // pred_region
        %p311 = scmp.lt.s32.totalorder %s16, 1
        %s312 = scalar_select %p311, %s16, 1
        %s313 = smul.addr %s312, 8
        %s314 = scalar_lea.vmem %s3, %s313
      $region48: #{fastspeech2_forward.5} parent=31 // pred_fallthru
        _
    $region32: #{fastspeech2_forward.5} parent=5 // pred_fallthru
      _
    %p315 = scmp.le.s32.totalorder 1, %s16
    %p316 = scmp.lt.s32.totalorder %s16, 3
    %p317 = pnand %p315, %p316
    %p318 = pneg %p317
    // Predicated region
    $region49: #{fastspeech2_forward.5} parent=5 // pred_check
      _
    $region50: #{fastspeech2_forward.5} parent=5 // pred_check_branch
      %320 = sbr.rel (%p317) target = $region52
    $region51: #{fastspeech2_forward.5} parent=5 // pred_region
      %s321 = ssub.s32 %s16, 1
      %p322 = scmp.lt.s32.totalorder %s21, 1
      %s323 = scalar_select %p322, %s21, 1
      %s324 = smul.addr %s323, 8
      %s325 = scalar_lea.vmem %s0, %s324
      %p326 = pneg %p42
      %p327 = pneg %p39
      %p328 = scmp.lt.s32.totalorder %s21, 1
      %s329 = scalar_select %p328, %s21, 1
      %s330 = smul.addr %s329, 8
      %s331 = scalar_lea.vmem %s1, %s330
      %p332 = pneg %p68
      %p333 = pneg %p65
      %p334 = scmp.lt.s32.totalorder %s21, 1
      %s335 = scalar_select %p334, %s21, 1
      %s336 = smul.addr %s335, 8
      %s337 = scalar_lea.vmem %s2, %s336
      %p338 = pneg %p94
      %p339 = pneg %p91
      %p340 = scmp.lt.s32.totalorder %s21, 1
      %s341 = scalar_select %p340, %s21, 1
      %s342 = smul.addr %s341, 8
      %s343 = scalar_lea.vmem %s3, %s342
      %p344 = pneg %p120
      %p345 = pneg %p117
      %p346 = pneg %p141
      %p347 = pneg %p138
      %p348 = pneg %p162
      %p349 = pneg %p159
      %p350 = pneg %p183
      %p351 = pneg %p180
      %p352 = pneg %p204
      %p353 = pneg %p201
      %p354 = pneg %p230
      %p355 = pneg %p227
      %p356 = scmp.lt.s32.totalorder %s21, 1
      %s357 = scalar_select %p356, %s21, 1
      %s358 = smul.addr %s357, 8
      %s359 = scalar_lea.vmem %s8, %s358
      %p360 = pneg %p256
      %p361 = pneg %p253
      %p362 = scmp.lt.s32.totalorder %s21, 1
      %s363 = scalar_select %p362, %s21, 1
      %s364 = smul.addr %s363, 8
      %s365 = scalar_lea.vmem %s9, %s364
      %p366 = scmp.lt.s32.totalorder %s21, 1
      %s367 = scalar_select %p366, %s21, 1
      %s368 = smul.addr %s367, 8
      %s369 = scalar_lea.vmem %s0, %s368
      %p370 = scmp.lt.s32.totalorder %s21, 1
      %s371 = scalar_select %p370, %s21, 1
      %s372 = smul.addr %s371, 8
      %s373 = scalar_lea.vmem %s1, %s372
      %p374 = scmp.lt.s32.totalorder %s21, 1
      %s375 = scalar_select %p374, %s21, 1
      %s376 = smul.addr %s375, 8
      %s377 = scalar_lea.vmem %s2, %s376
      %p378 = scmp.lt.s32.totalorder %s21, 1
      %s379 = scalar_select %p378, %s21, 1
      %s380 = smul.addr %s379, 8
      %s381 = scalar_lea.vmem %s3, %s380
      %p382 = scmp.lt.s32.totalorder %s21, 1
      %s383 = scalar_select %p382, %s21, 1
      %s384 = smul.addr %s383, 8
      %s385 = scalar_lea.vmem %s8, %s384
      %p386 = scmp.lt.s32.totalorder %s21, 1
      %s387 = scalar_select %p386, %s21, 1
      %s388 = smul.addr %s387, 8
      %s389 = scalar_lea.vmem %s9, %s388
      %v390 = vld [vmem:[%s369] sm:$0xff]
      %v391 = vld [vmem:[%s373] sm:$0xff]
      %v392 = vsub.f32 1.0, %v391
      %v393 = vld [vmem:[%s4] sm:$0xff]
      %v394 = vld [vmem:[%s4 + $0x8] sm:$0xff]
      %v395 = vld [vmem:[%s4 + $0x10] sm:$0xff]
      %v396 = vld [vmem:[%s4 + $0x18] sm:$0xff]
      %v397 = vld [vmem:[%s4 + $0x20] sm:$0xff]
      %v398 = vld [vmem:[%s4 + $0x28] sm:$0xff]
      %v399 = vld [vmem:[%s4 + $0x30] sm:$0xff]
      %v400 = vld [vmem:[%s4 + $0x38] sm:$0xff]
      %v401 = vld [vmem:[%s4 + $0x40] sm:$0xff]
      %v402 = vld [vmem:[%s4 + $0x48] sm:$0xff]
      %v403 = vld [vmem:[%s4 + $0x50] sm:$0xff]
      %v404 = vld [vmem:[%s4 + $0x58] sm:$0xff]
      %v405 = vld [vmem:[%s5] sm:$0xff]
      %v406 = vld [vmem:[%s5 + $0x8] sm:$0xff]
      %v407 = vld [vmem:[%s5 + $0x10] sm:$0xff]
      %v408 = vld [vmem:[%s5 + $0x18] sm:$0xff]
      %v409 = vld [vmem:[%s5 + $0x20] sm:$0xff]
      %v410 = vld [vmem:[%s5 + $0x28] sm:$0xff]
      %v411 = vld [vmem:[%s5 + $0x30] sm:$0xff]
      %v412 = vld [vmem:[%s5 + $0x38] sm:$0xff]
      %v413 = vld [vmem:[%s5 + $0x40] sm:$0xff]
      %v414 = vld [vmem:[%s5 + $0x48] sm:$0xff]
      %v415 = vld [vmem:[%s5 + $0x50] sm:$0xff]
      %v416 = vld [vmem:[%s5 + $0x58] sm:$0xff]
      %v417 = vld [vmem:[%s6] sm:$0xff]
      %v418 = vld [vmem:[%s6 + $0x8] sm:$0xff]
      %v419 = vld [vmem:[%s6 + $0x10] sm:$0xff]
      %v420 = vld [vmem:[%s6 + $0x18] sm:$0xff]
      %v421 = vld [vmem:[%s7] sm:$0xff]
      %v423 = vrot.slane %v390, 7
      %vm425 = vcmask 1040384
      %v426 = vsel %vm425, 0.0, %v423
      %v427 = vsel %vm425, %v423, 0.0
      %vm430 = vcmask 1046528
      %v431 = vrot.slane %v426, 1
      %v432 = vrot.slane %v427, 1
      %v433 = vsel %vm430, %v431, %v432
      %434 = vrot.lane.b32.xlu0 %v433, 32
      %v435 = vpop.permute.xlu0 %434
      %vm437 = vcmask 1045504
      %v438 = vrot.slane %v426, 2
      %v439 = vrot.slane %v427, 2
      %v440 = vsel %vm437, %v438, %v439
      %441 = vrot.lane.b32.xlu0 %v440, 64
      %v442 = vpop.permute.xlu0 %441
      %vm444 = vcmask 261120
      %v445 = vsel %vm444, %v426, %v435
      %vm446 = vcmask 523264
      %v447 = vsel %vm446, %v445, %v442
      %v448 = vlaneseq
      %v449 = vshrl.u32 %v448, 7
      %v450 = vsub.s32 0, %v449
      %v451 = vrot.slane %v421, %v450
      %vm452 = vcmask 785408
      %v454 = vsel %vm452, %v447, 0
      %456 = vmatprep.subr.mxu0 0.0
      %457 = vmatpush1.msra.mxu0 %v393
      %458 = vmatprep.subr.mxu0 0.0
      %459 = vmatpush1.msra.mxu0 %v394
      %460 = vmatprep.subr.mxu0 0.0
      %461 = vmatpush1.msra.mxu0 %v395
      %462 = vmatprep.subr.mxu0 0.0
      %463 = vmatpush1.msra.mxu0 %v396
      %464 = vmatprep.subr.mxu0 0.0
      %465 = vmatpush1.msra.mxu0 %v397
      %466 = vmatprep.subr.mxu0 0.0
      %467 = vmatpush1.msra.mxu0 %v398
      %468 = vmatprep.subr.mxu0 0.0
      %469 = vmatpush1.msra.mxu0 %v399
      %470 = vmatprep.subr.mxu0 0.0
      %471 = vmatpush1.msra.mxu0 %v400
      %472 = vmatprep.subr.mxu0 0.0
      %473 = vmatpush1.msra.mxu0 %v401
      %474 = vmatprep.subr.mxu0 0.0
      %475 = vmatpush1.msra.mxu0 %v402
      %476 = vmatprep.subr.mxu0 0.0
      %477 = vmatpush1.msra.mxu0 %v403
      %478 = vmatprep.subr.mxu0 0.0
      %479 = vmatpush1.msra.mxu0 %v404
      %480 = vmatprep.subr.mxu0 0.0
      %481 = vmatpush1.msra.mxu0 0.0
      %482 = vmatprep.subr.mxu0 0.0
      %483 = vmatpush1.msra.mxu0 0.0
      %484 = vmatprep.subr.mxu0 0.0
      %485 = vmatpush1.msra.mxu0 0.0
      %486 = vmatprep.subr.mxu0 0.0
      %487 = vmatpush1.msra.mxu0 0.0
      %488 = vmatprep.subr.mxu0 0.0
      %489 = vmatpush1.msra.mxu0 0.0
      %490 = vmatprep.subr.mxu0 0.0
      %491 = vmatpush1.msra.mxu0 0.0
      %492 = vmatprep.subr.mxu0 0.0
      %493 = vmatpush1.msra.mxu0 0.0
      %494 = vmatprep.subr.mxu0 0.0
      %495 = vmatpush1.msra.mxu0 0.0
      %496 = vmatprep.subr.mxu0 0.0
      %497 = vmatpush1.msra.mxu0 0.0
      %498 = vmatprep.subr.mxu0 0.0
      %499 = vmatpush1.msra.mxu0 0.0
      %500 = vmatprep.subr.mxu0 0.0
      %501 = vmatpush1.msra.mxu0 0.0
      %502 = vmatprep.subr.mxu0 0.0
      %503 = vmatpush1.msra.mxu0 0.0
      %504 = vmatprep.subr.mxu0 0.0
      %505 = vmatpush1.msra.mxu0 0.0
      %506 = vmatprep.subr.mxu0 0.0
      %507 = vmatpush1.msra.mxu0 0.0
      %508 = vmatprep.subr.mxu0 0.0
      %509 = vmatpush1.msra.mxu0 0.0
      %510 = vmatprep.subr.mxu0 0.0
      %511 = vmatpush1.msra.mxu0 0.0
      %512 = vmatprep.subr.mxu0 0.0
      %513 = vmatpush1.msra.mxu0 0.0
      %514 = vmatprep.subr.mxu0 0.0
      %515 = vmatpush1.msra.mxu0 0.0
      %516 = vmatprep.subr.mxu0 0.0
      %517 = vmatpush1.msra.mxu0 0.0
      %518 = vmatprep.subr.mxu0 0.0
      %519 = vmatpush1.msra.mxu0 0.0
      %520 = vmatprep.mubr.f32.mxu0 0.0
      %521 = vmatmul.mubr.f32.gmra.mrb[0].mxu0 %v454
      %v522 = vpop.f32.mrb[0].mxu0
      %v523 = vadd.f32 %v451, %v522
      %v524 = vpop.f32.mrb[0].mxu0
      %525 = vdwg.mxu0
      %v526 = vmax.f32 %v523, 0.0
      %v527 = vsel %vm444, %v526, 0.0
      %528 = vadd.xlane.f32.xlu0 %v527
      %v529 = vpop.xlane.xlu0 %528
      %v530 = vrcp.pop 32.0
      %v531 = vmul.f32 %v529, %v530
      %v532 = vsub.f32 %v526, %v531
      %v533 = vmul.f32 %v532, %v532
      %v534 = vsel %vm444, %v533, 0.0
      %535 = vadd.xlane.f32.xlu0 %v534
      %v536 = vpop.xlane.xlu0 %535
      %v537 = vmul.f32 %v536, %v530
      %v538 = vadd.f32 %v537, 1e-05
      %v539 = vrsqrt.pop %v538
      %v540 = vmul.f32 %v532, %v539
      %v541 = vlaneseq
      %v542 = vshrl.u32 %v541, 7
      %v543 = vsub.s32 1, %v542
      %v544 = vrot.slane %v421, %v543
      %v545 = vmul.f32 %v540, %v544
      %v546 = vlaneseq
      %v547 = vshrl.u32 %v546, 7
      %v548 = vsub.s32 2, %v547
      %v549 = vrot.slane %v421, %v548
      %v550 = vadd.f32 %v545, %v549
      %v552 = vrot.slane %v550, 7
      %v554 = vsel %vm425, 0.0, %v552
      %v555 = vsel %vm425, %v552, 0.0
      %v558 = vrot.slane %v554, 1
      %v559 = vrot.slane %v555, 1
      %v560 = vsel %vm430, %v558, %v559
      %561 = vrot.lane.b32.xlu0 %v560, 32
      %v562 = vpop.permute.xlu0 %561
      %v564 = vrot.slane %v554, 2
      %v565 = vrot.slane %v555, 2
      %v566 = vsel %vm437, %v564, %v565
      %567 = vrot.lane.b32.xlu0 %v566, 64
      %v568 = vpop.permute.xlu0 %567
      %v570 = vsel %vm444, %v554, %v562
      %v571 = vsel %vm446, %v570, %v568
      %v572 = vlaneseq
      %v573 = vshrl.u32 %v572, 7
      %v574 = vsub.s32 3, %v573
      %v575 = vrot.slane %v421, %v574
      %v577 = vsel %vm452, %v571, 0
      %579 = vmatprep.subr.mxu0 0.0
      %580 = vmatpush1.msra.mxu0 %v405
      %581 = vmatprep.subr.mxu0 0.0
      %582 = vmatpush1.msra.mxu0 %v406
      %583 = vmatprep.subr.mxu0 0.0
      %584 = vmatpush1.msra.mxu0 %v407
      %585 = vmatprep.subr.mxu0 0.0
      %586 = vmatpush1.msra.mxu0 %v408
      %587 = vmatprep.subr.mxu0 0.0
      %588 = vmatpush1.msra.mxu0 %v409
      %589 = vmatprep.subr.mxu0 0.0
      %590 = vmatpush1.msra.mxu0 %v410
      %591 = vmatprep.subr.mxu0 0.0
      %592 = vmatpush1.msra.mxu0 %v411
      %593 = vmatprep.subr.mxu0 0.0
      %594 = vmatpush1.msra.mxu0 %v412
      %595 = vmatprep.subr.mxu0 0.0
      %596 = vmatpush1.msra.mxu0 %v413
      %597 = vmatprep.subr.mxu0 0.0
      %598 = vmatpush1.msra.mxu0 %v414
      %599 = vmatprep.subr.mxu0 0.0
      %600 = vmatpush1.msra.mxu0 %v415
      %601 = vmatprep.subr.mxu0 0.0
      %602 = vmatpush1.msra.mxu0 %v416
      %603 = vmatprep.subr.mxu0 0.0
      %604 = vmatpush1.msra.mxu0 0.0
      %605 = vmatprep.subr.mxu0 0.0
      %606 = vmatpush1.msra.mxu0 0.0
      %607 = vmatprep.subr.mxu0 0.0
      %608 = vmatpush1.msra.mxu0 0.0
      %609 = vmatprep.subr.mxu0 0.0
      %610 = vmatpush1.msra.mxu0 0.0
      %611 = vmatprep.subr.mxu0 0.0
      %612 = vmatpush1.msra.mxu0 0.0
      %613 = vmatprep.subr.mxu0 0.0
      %614 = vmatpush1.msra.mxu0 0.0
      %615 = vmatprep.subr.mxu0 0.0
      %616 = vmatpush1.msra.mxu0 0.0
      %617 = vmatprep.subr.mxu0 0.0
      %618 = vmatpush1.msra.mxu0 0.0
      %619 = vmatprep.subr.mxu0 0.0
      %620 = vmatpush1.msra.mxu0 0.0
      %621 = vmatprep.subr.mxu0 0.0
      %622 = vmatpush1.msra.mxu0 0.0
      %623 = vmatprep.subr.mxu0 0.0
      %624 = vmatpush1.msra.mxu0 0.0
      %625 = vmatprep.subr.mxu0 0.0
      %626 = vmatpush1.msra.mxu0 0.0
      %627 = vmatprep.subr.mxu0 0.0
      %628 = vmatpush1.msra.mxu0 0.0
      %629 = vmatprep.subr.mxu0 0.0
      %630 = vmatpush1.msra.mxu0 0.0
      %631 = vmatprep.subr.mxu0 0.0
      %632 = vmatpush1.msra.mxu0 0.0
      %633 = vmatprep.subr.mxu0 0.0
      %634 = vmatpush1.msra.mxu0 0.0
      %635 = vmatprep.subr.mxu0 0.0
      %636 = vmatpush1.msra.mxu0 0.0
      %637 = vmatprep.subr.mxu0 0.0
      %638 = vmatpush1.msra.mxu0 0.0
      %639 = vmatprep.subr.mxu0 0.0
      %640 = vmatpush1.msra.mxu0 0.0
      %641 = vmatprep.subr.mxu0 0.0
      %642 = vmatpush1.msra.mxu0 0.0
      %643 = vmatprep.mubr.f32.mxu0 0.0
      %644 = vmatmul.mubr.f32.gmra.mrb[0].mxu0 %v577
      %v645 = vpop.f32.mrb[0].mxu0
      %v646 = vadd.f32 %v575, %v645
      %v647 = vpop.f32.mrb[0].mxu0
      %648 = vdwg.mxu0
      %v649 = vmax.f32 %v646, 0.0
      %v650 = vsel %vm444, %v649, 0.0
      %651 = vadd.xlane.f32.xlu0 %v650
      %v652 = vpop.xlane.xlu0 %651
      %v653 = vmul.f32 %v652, %v530
      %v654 = vsub.f32 %v649, %v653
      %v655 = vmul.f32 %v654, %v654
      %v656 = vsel %vm444, %v655, 0.0
      %657 = vadd.xlane.f32.xlu0 %v656
      %v658 = vpop.xlane.xlu0 %657
      %v659 = vmul.f32 %v658, %v530
      %v660 = vadd.f32 %v659, 1e-05
      %v661 = vrsqrt.pop %v660
      %v662 = vmul.f32 %v654, %v661
      %v663 = vlaneseq
      %v664 = vshrl.u32 %v663, 7
      %v665 = vsub.s32 4, %v664
      %v666 = vrot.slane %v421, %v665
      %v667 = vmul.f32 %v662, %v666
      %v668 = vlaneseq
      %v669 = vshrl.u32 %v668, 7
      %v670 = vsub.s32 5, %v669
      %v671 = vrot.slane %v421, %v670
      %v672 = vadd.f32 %v667, %v671
      %v673 = vlaneseq
      %v674 = vshrl.u32 %v673, 7
      %v675 = vsub.s32 6, %v674
      %v676 = vrot.slane %v421, %v675
      %v678 = vsel %vm444, %v672, 0
      %680 = vmatprep.subr.mxu0 0.0
      %681 = vmatpush1.msra.mxu0 %v417
      %682 = vmatprep.subr.mxu0 0.0
      %683 = vmatpush1.msra.mxu0 %v418
      %684 = vmatprep.subr.mxu0 0.0
      %685 = vmatpush1.msra.mxu0 %v419
      %686 = vmatprep.subr.mxu0 0.0
      %687 = vmatpush1.msra.mxu0 %v420
      %688 = vmatprep.subr.mxu0 0.0
      %689 = vmatpush1.msra.mxu0 0.0
      %690 = vmatprep.subr.mxu0 0.0
      %691 = vmatpush1.msra.mxu0 0.0
      %692 = vmatprep.subr.mxu0 0.0
      %693 = vmatpush1.msra.mxu0 0.0
      %694 = vmatprep.subr.mxu0 0.0
      %695 = vmatpush1.msra.mxu0 0.0
      %696 = vmatprep.subr.mxu0 0.0
      %697 = vmatpush1.msra.mxu0 0.0
      %698 = vmatprep.subr.mxu0 0.0
      %699 = vmatpush1.msra.mxu0 0.0
      %700 = vmatprep.subr.mxu0 0.0
      %701 = vmatpush1.msra.mxu0 0.0
      %702 = vmatprep.subr.mxu0 0.0
      %703 = vmatpush1.msra.mxu0 0.0
      %704 = vmatprep.subr.mxu0 0.0
      %705 = vmatpush1.msra.mxu0 0.0
      %706 = vmatprep.subr.mxu0 0.0
      %707 = vmatpush1.msra.mxu0 0.0
      %708 = vmatprep.subr.mxu0 0.0
      %709 = vmatpush1.msra.mxu0 0.0
      %710 = vmatprep.subr.mxu0 0.0
      %711 = vmatpush1.msra.mxu0 0.0
      %712 = vmatprep.subr.mxu0 0.0
      %713 = vmatpush1.msra.mxu0 0.0
      %714 = vmatprep.subr.mxu0 0.0
      %715 = vmatpush1.msra.mxu0 0.0
      %716 = vmatprep.subr.mxu0 0.0
      %717 = vmatpush1.msra.mxu0 0.0
      %718 = vmatprep.subr.mxu0 0.0
      %719 = vmatpush1.msra.mxu0 0.0
      %720 = vmatprep.subr.mxu0 0.0
      %721 = vmatpush1.msra.mxu0 0.0
      %722 = vmatprep.subr.mxu0 0.0
      %723 = vmatpush1.msra.mxu0 0.0
      %724 = vmatprep.subr.mxu0 0.0
      %725 = vmatpush1.msra.mxu0 0.0
      %726 = vmatprep.subr.mxu0 0.0
      %727 = vmatpush1.msra.mxu0 0.0
      %728 = vmatprep.subr.mxu0 0.0
      %729 = vmatpush1.msra.mxu0 0.0
      %730 = vmatprep.subr.mxu0 0.0
      %731 = vmatpush1.msra.mxu0 0.0
      %732 = vmatprep.subr.mxu0 0.0
      %733 = vmatpush1.msra.mxu0 0.0
      %734 = vmatprep.subr.mxu0 0.0
      %735 = vmatpush1.msra.mxu0 0.0
      %736 = vmatprep.subr.mxu0 0.0
      %737 = vmatpush1.msra.mxu0 0.0
      %738 = vmatprep.subr.mxu0 0.0
      %739 = vmatpush1.msra.mxu0 0.0
      %740 = vmatprep.subr.mxu0 0.0
      %741 = vmatpush1.msra.mxu0 0.0
      %742 = vmatprep.subr.mxu0 0.0
      %743 = vmatpush1.msra.mxu0 0.0
      %744 = vmatprep.mubr.f32.mxu0 0.0
      %745 = vmatmul.mubr.f32.gmra.mrb[0].mxu0 %v678
      %v746 = vpop.f32.mrb[0].mxu0
      %v747 = vadd.f32 %v676, %v746
      %v748 = vpop.f32.mrb[0].mxu0
      %749 = vdwg.mxu0
      %751 = vset.pattern.permute.xlu0 0
      %752 = vperm.xlu0 %751, %v392
      %v753 = vpop.permute.xlu0 %752
      %v755 = vmul.f32 %v747, %v753
      %s756 = scalar_lea.vmem %s4, 96
      %v757 = vld [vmem:[%s756] sm:$0xff]
      %v758 = vld [vmem:[%s756 + $0x8] sm:$0xff]
      %v759 = vld [vmem:[%s756 + $0x10] sm:$0xff]
      %v760 = vld [vmem:[%s756 + $0x18] sm:$0xff]
      %v761 = vld [vmem:[%s756 + $0x20] sm:$0xff]
      %v762 = vld [vmem:[%s756 + $0x28] sm:$0xff]
      %v763 = vld [vmem:[%s756 + $0x30] sm:$0xff]
      %v764 = vld [vmem:[%s756 + $0x38] sm:$0xff]
      %v765 = vld [vmem:[%s756 + $0x40] sm:$0xff]
      %v766 = vld [vmem:[%s756 + $0x48] sm:$0xff]
      %v767 = vld [vmem:[%s756 + $0x50] sm:$0xff]
      %v768 = vld [vmem:[%s756 + $0x58] sm:$0xff]
      %s769 = scalar_lea.vmem %s5, 96
      %v770 = vld [vmem:[%s769] sm:$0xff]
      %v771 = vld [vmem:[%s769 + $0x8] sm:$0xff]
      %v772 = vld [vmem:[%s769 + $0x10] sm:$0xff]
      %v773 = vld [vmem:[%s769 + $0x18] sm:$0xff]
      %v774 = vld [vmem:[%s769 + $0x20] sm:$0xff]
      %v775 = vld [vmem:[%s769 + $0x28] sm:$0xff]
      %v776 = vld [vmem:[%s769 + $0x30] sm:$0xff]
      %v777 = vld [vmem:[%s769 + $0x38] sm:$0xff]
      %v778 = vld [vmem:[%s769 + $0x40] sm:$0xff]
      %v779 = vld [vmem:[%s769 + $0x48] sm:$0xff]
      %v780 = vld [vmem:[%s769 + $0x50] sm:$0xff]
      %v781 = vld [vmem:[%s769 + $0x58] sm:$0xff]
      %s782 = scalar_lea.vmem %s6, 32
      %v783 = vld [vmem:[%s782] sm:$0xff]
      %v784 = vld [vmem:[%s782 + $0x8] sm:$0xff]
      %v785 = vld [vmem:[%s782 + $0x10] sm:$0xff]
      %v786 = vld [vmem:[%s782 + $0x18] sm:$0xff]
      %s787 = scalar_lea.vmem %s7, 8
      %v788 = vld [vmem:[%s787] sm:$0xff]
      %v789 = vlaneseq
      %v790 = vshrl.u32 %v789, 7
      %v791 = vsub.s32 0, %v790
      %v792 = vrot.slane %v788, %v791
      %793 = vmatprep.subr.mxu0 0.0
      %794 = vmatpush1.msra.mxu0 %v757
      %795 = vmatprep.subr.mxu0 0.0
      %796 = vmatpush1.msra.mxu0 %v758
      %797 = vmatprep.subr.mxu0 0.0
      %798 = vmatpush1.msra.mxu0 %v759
      %799 = vmatprep.subr.mxu0 0.0
      %800 = vmatpush1.msra.mxu0 %v760
      %801 = vmatprep.subr.mxu0 0.0
      %802 = vmatpush1.msra.mxu0 %v761
      %803 = vmatprep.subr.mxu0 0.0
      %804 = vmatpush1.msra.mxu0 %v762
      %805 = vmatprep.subr.mxu0 0.0
      %806 = vmatpush1.msra.mxu0 %v763
      %807 = vmatprep.subr.mxu0 0.0
      %808 = vmatpush1.msra.mxu0 %v764
      %809 = vmatprep.subr.mxu0 0.0
      %810 = vmatpush1.msra.mxu0 %v765
      %811 = vmatprep.subr.mxu0 0.0
      %812 = vmatpush1.msra.mxu0 %v766
      %813 = vmatprep.subr.mxu0 0.0
      %814 = vmatpush1.msra.mxu0 %v767
      %815 = vmatprep.subr.mxu0 0.0
      %816 = vmatpush1.msra.mxu0 %v768
      %817 = vmatprep.subr.mxu0 0.0
      %818 = vmatpush1.msra.mxu0 0.0
      %819 = vmatprep.subr.mxu0 0.0
      %820 = vmatpush1.msra.mxu0 0.0
      %821 = vmatprep.subr.mxu0 0.0
      %822 = vmatpush1.msra.mxu0 0.0
      %823 = vmatprep.subr.mxu0 0.0
      %824 = vmatpush1.msra.mxu0 0.0
      %825 = vmatprep.subr.mxu0 0.0
      %826 = vmatpush1.msra.mxu0 0.0
      %827 = vmatprep.subr.mxu0 0.0
      %828 = vmatpush1.msra.mxu0 0.0
      %829 = vmatprep.subr.mxu0 0.0
      %830 = vmatpush1.msra.mxu0 0.0
      %831 = vmatprep.subr.mxu0 0.0
      %832 = vmatpush1.msra.mxu0 0.0
      %833 = vmatprep.subr.mxu0 0.0
      %834 = vmatpush1.msra.mxu0 0.0
      %835 = vmatprep.subr.mxu0 0.0
      %836 = vmatpush1.msra.mxu0 0.0
      %837 = vmatprep.subr.mxu0 0.0
      %838 = vmatpush1.msra.mxu0 0.0
      %839 = vmatprep.subr.mxu0 0.0
      %840 = vmatpush1.msra.mxu0 0.0
      %841 = vmatprep.subr.mxu0 0.0
      %842 = vmatpush1.msra.mxu0 0.0
      %843 = vmatprep.subr.mxu0 0.0
      %844 = vmatpush1.msra.mxu0 0.0
      %845 = vmatprep.subr.mxu0 0.0
      %846 = vmatpush1.msra.mxu0 0.0
      %847 = vmatprep.subr.mxu0 0.0
      %848 = vmatpush1.msra.mxu0 0.0
      %849 = vmatprep.subr.mxu0 0.0
      %850 = vmatpush1.msra.mxu0 0.0
      %851 = vmatprep.subr.mxu0 0.0
      %852 = vmatpush1.msra.mxu0 0.0
      %853 = vmatprep.subr.mxu0 0.0
      %854 = vmatpush1.msra.mxu0 0.0
      %855 = vmatprep.subr.mxu0 0.0
      %856 = vmatpush1.msra.mxu0 0.0
      %857 = vmatprep.mubr.f32.mxu0 0.0
      %858 = vmatmul.mubr.f32.gmra.mrb[0].mxu0 %v454
      %v859 = vpop.f32.mrb[0].mxu0
      %v860 = vadd.f32 %v792, %v859
      %v861 = vpop.f32.mrb[0].mxu0
      %862 = vdwg.mxu0
      %v863 = vmax.f32 %v860, 0.0
      %v864 = vsel %vm444, %v863, 0.0
      %865 = vadd.xlane.f32.xlu0 %v864
      %v866 = vpop.xlane.xlu0 %865
      %v867 = vmul.f32 %v866, %v530
      %v868 = vsub.f32 %v863, %v867
      %v869 = vmul.f32 %v868, %v868
      %v870 = vsel %vm444, %v869, 0.0
      %871 = vadd.xlane.f32.xlu0 %v870
      %v872 = vpop.xlane.xlu0 %871
      %v873 = vmul.f32 %v872, %v530
      %v874 = vadd.f32 %v873, 1e-05
      %v875 = vrsqrt.pop %v874
      %v876 = vmul.f32 %v868, %v875
      %v877 = vlaneseq
      %v878 = vshrl.u32 %v877, 7
      %v879 = vsub.s32 1, %v878
      %v880 = vrot.slane %v788, %v879
      %v881 = vmul.f32 %v876, %v880
      %v882 = vlaneseq
      %v883 = vshrl.u32 %v882, 7
      %v884 = vsub.s32 2, %v883
      %v885 = vrot.slane %v788, %v884
      %v886 = vadd.f32 %v881, %v885
      %v888 = vrot.slane %v886, 7
      %v890 = vsel %vm425, 0.0, %v888
      %v891 = vsel %vm425, %v888, 0.0
      %v894 = vrot.slane %v890, 1
      %v895 = vrot.slane %v891, 1
      %v896 = vsel %vm430, %v894, %v895
      %897 = vrot.lane.b32.xlu0 %v896, 32
      %v898 = vpop.permute.xlu0 %897
      %v900 = vrot.slane %v890, 2
      %v901 = vrot.slane %v891, 2
      %v902 = vsel %vm437, %v900, %v901
      %903 = vrot.lane.b32.xlu0 %v902, 64
      %v904 = vpop.permute.xlu0 %903
      %v906 = vsel %vm444, %v890, %v898
      %v907 = vsel %vm446, %v906, %v904
      %v908 = vlaneseq
      %v909 = vshrl.u32 %v908, 7
      %v910 = vsub.s32 3, %v909
      %v911 = vrot.slane %v788, %v910
      %v913 = vsel %vm452, %v907, 0
      %915 = vmatprep.subr.mxu0 0.0
      %916 = vmatpush1.msra.mxu0 %v770
      %917 = vmatprep.subr.mxu0 0.0
      %918 = vmatpush1.msra.mxu0 %v771
      %919 = vmatprep.subr.mxu0 0.0
      %920 = vmatpush1.msra.mxu0 %v772
      %921 = vmatprep.subr.mxu0 0.0
      %922 = vmatpush1.msra.mxu0 %v773
      %923 = vmatprep.subr.mxu0 0.0
      %924 = vmatpush1.msra.mxu0 %v774
      %925 = vmatprep.subr.mxu0 0.0
      %926 = vmatpush1.msra.mxu0 %v775
      %927 = vmatprep.subr.mxu0 0.0
      %928 = vmatpush1.msra.mxu0 %v776
      %929 = vmatprep.subr.mxu0 0.0
      %930 = vmatpush1.msra.mxu0 %v777
      %931 = vmatprep.subr.mxu0 0.0
      %932 = vmatpush1.msra.mxu0 %v778
      %933 = vmatprep.subr.mxu0 0.0
      %934 = vmatpush1.msra.mxu0 %v779
      %935 = vmatprep.subr.mxu0 0.0
      %936 = vmatpush1.msra.mxu0 %v780
      %937 = vmatprep.subr.mxu0 0.0
      %938 = vmatpush1.msra.mxu0 %v781
      %939 = vmatprep.subr.mxu0 0.0
      %940 = vmatpush1.msra.mxu0 0.0
      %941 = vmatprep.subr.mxu0 0.0
      %942 = vmatpush1.msra.mxu0 0.0
      %943 = vmatprep.subr.mxu0 0.0
      %944 = vmatpush1.msra.mxu0 0.0
      %945 = vmatprep.subr.mxu0 0.0
      %946 = vmatpush1.msra.mxu0 0.0
      %947 = vmatprep.subr.mxu0 0.0
      %948 = vmatpush1.msra.mxu0 0.0
      %949 = vmatprep.subr.mxu0 0.0
      %950 = vmatpush1.msra.mxu0 0.0
      %951 = vmatprep.subr.mxu0 0.0
      %952 = vmatpush1.msra.mxu0 0.0
      %953 = vmatprep.subr.mxu0 0.0
      %954 = vmatpush1.msra.mxu0 0.0
      %955 = vmatprep.subr.mxu0 0.0
      %956 = vmatpush1.msra.mxu0 0.0
      %957 = vmatprep.subr.mxu0 0.0
      %958 = vmatpush1.msra.mxu0 0.0
      %959 = vmatprep.subr.mxu0 0.0
      %960 = vmatpush1.msra.mxu0 0.0
      %961 = vmatprep.subr.mxu0 0.0
      %962 = vmatpush1.msra.mxu0 0.0
      %963 = vmatprep.subr.mxu0 0.0
      %964 = vmatpush1.msra.mxu0 0.0
      %965 = vmatprep.subr.mxu0 0.0
      %966 = vmatpush1.msra.mxu0 0.0
      %967 = vmatprep.subr.mxu0 0.0
      %968 = vmatpush1.msra.mxu0 0.0
      %969 = vmatprep.subr.mxu0 0.0
      %970 = vmatpush1.msra.mxu0 0.0
      %971 = vmatprep.subr.mxu0 0.0
      %972 = vmatpush1.msra.mxu0 0.0
      %973 = vmatprep.subr.mxu0 0.0
      %974 = vmatpush1.msra.mxu0 0.0
      %975 = vmatprep.subr.mxu0 0.0
      %976 = vmatpush1.msra.mxu0 0.0
      %977 = vmatprep.subr.mxu0 0.0
      %978 = vmatpush1.msra.mxu0 0.0
      %979 = vmatprep.mubr.f32.mxu0 0.0
      %980 = vmatmul.mubr.f32.gmra.mrb[0].mxu0 %v913
      %v981 = vpop.f32.mrb[0].mxu0
      %v982 = vadd.f32 %v911, %v981
      %v983 = vpop.f32.mrb[0].mxu0
      %984 = vdwg.mxu0
      %v985 = vmax.f32 %v982, 0.0
      %v986 = vsel %vm444, %v985, 0.0
      %987 = vadd.xlane.f32.xlu0 %v986
      %v988 = vpop.xlane.xlu0 %987
      %v989 = vmul.f32 %v988, %v530
      %v990 = vsub.f32 %v985, %v989
      %v991 = vmul.f32 %v990, %v990
      %v992 = vsel %vm444, %v991, 0.0
      %993 = vadd.xlane.f32.xlu0 %v992
      %v994 = vpop.xlane.xlu0 %993
      %v995 = vmul.f32 %v994, %v530
      %v996 = vadd.f32 %v995, 1e-05
      %v997 = vrsqrt.pop %v996
      %v998 = vmul.f32 %v990, %v997
      %v999 = vlaneseq
      %v1000 = vshrl.u32 %v999, 7
      %v1001 = vsub.s32 4, %v1000
      %v1002 = vrot.slane %v788, %v1001
      %v1003 = vmul.f32 %v998, %v1002
      %v1004 = vlaneseq
      %v1005 = vshrl.u32 %v1004, 7
      %v1006 = vsub.s32 5, %v1005
      %v1007 = vrot.slane %v788, %v1006
      %v1008 = vadd.f32 %v1003, %v1007
      %v1009 = vlaneseq
      %v1010 = vshrl.u32 %v1009, 7
      %v1011 = vsub.s32 6, %v1010
      %v1012 = vrot.slane %v788, %v1011
      %v1014 = vsel %vm444, %v1008, 0
      %1016 = vmatprep.subr.mxu0 0.0
      %1017 = vmatpush1.msra.mxu0 %v783
      %1018 = vmatprep.subr.mxu0 0.0
      %1019 = vmatpush1.msra.mxu0 %v784
      %1020 = vmatprep.subr.mxu0 0.0
      %1021 = vmatpush1.msra.mxu0 %v785
      %1022 = vmatprep.subr.mxu0 0.0
      %1023 = vmatpush1.msra.mxu0 %v786
      %1024 = vmatprep.subr.mxu0 0.0
      %1025 = vmatpush1.msra.mxu0 0.0
      %1026 = vmatprep.subr.mxu0 0.0
      %1027 = vmatpush1.msra.mxu0 0.0
      %1028 = vmatprep.subr.mxu0 0.0
      %1029 = vmatpush1.msra.mxu0 0.0
      %1030 = vmatprep.subr.mxu0 0.0
      %1031 = vmatpush1.msra.mxu0 0.0
      %1032 = vmatprep.subr.mxu0 0.0
      %1033 = vmatpush1.msra.mxu0 0.0
      %1034 = vmatprep.subr.mxu0 0.0
      %1035 = vmatpush1.msra.mxu0 0.0
      %1036 = vmatprep.subr.mxu0 0.0
      %1037 = vmatpush1.msra.mxu0 0.0
      %1038 = vmatprep.subr.mxu0 0.0
      %1039 = vmatpush1.msra.mxu0 0.0
      %1040 = vmatprep.subr.mxu0 0.0
      %1041 = vmatpush1.msra.mxu0 0.0
      %1042 = vmatprep.subr.mxu0 0.0
      %1043 = vmatpush1.msra.mxu0 0.0
      %1044 = vmatprep.subr.mxu0 0.0
      %1045 = vmatpush1.msra.mxu0 0.0
      %1046 = vmatprep.subr.mxu0 0.0
      %1047 = vmatpush1.msra.mxu0 0.0
      %1048 = vmatprep.subr.mxu0 0.0
      %1049 = vmatpush1.msra.mxu0 0.0
      %1050 = vmatprep.subr.mxu0 0.0
      %1051 = vmatpush1.msra.mxu0 0.0
      %1052 = vmatprep.subr.mxu0 0.0
      %1053 = vmatpush1.msra.mxu0 0.0
      %1054 = vmatprep.subr.mxu0 0.0
      %1055 = vmatpush1.msra.mxu0 0.0
      %1056 = vmatprep.subr.mxu0 0.0
      %1057 = vmatpush1.msra.mxu0 0.0
      %1058 = vmatprep.subr.mxu0 0.0
      %1059 = vmatpush1.msra.mxu0 0.0
      %1060 = vmatprep.subr.mxu0 0.0
      %1061 = vmatpush1.msra.mxu0 0.0
      %1062 = vmatprep.subr.mxu0 0.0
      %1063 = vmatpush1.msra.mxu0 0.0
      %1064 = vmatprep.subr.mxu0 0.0
      %1065 = vmatpush1.msra.mxu0 0.0
      %1066 = vmatprep.subr.mxu0 0.0
      %1067 = vmatpush1.msra.mxu0 0.0
      %1068 = vmatprep.subr.mxu0 0.0
      %1069 = vmatpush1.msra.mxu0 0.0
      %1070 = vmatprep.subr.mxu0 0.0
      %1071 = vmatpush1.msra.mxu0 0.0
      %1072 = vmatprep.subr.mxu0 0.0
      %1073 = vmatpush1.msra.mxu0 0.0
      %1074 = vmatprep.subr.mxu0 0.0
      %1075 = vmatpush1.msra.mxu0 0.0
      %1076 = vmatprep.subr.mxu0 0.0
      %1077 = vmatpush1.msra.mxu0 0.0
      %1078 = vmatprep.subr.mxu0 0.0
      %1079 = vmatpush1.msra.mxu0 0.0
      %1080 = vmatprep.mubr.f32.mxu0 0.0
      %1081 = vmatmul.mubr.f32.gmra.mrb[0].mxu0 %v1014
      %v1082 = vpop.f32.mrb[0].mxu0
      %v1083 = vadd.f32 %v1012, %v1082
      %v1084 = vpop.f32.mrb[0].mxu0
      %1085 = vdwg.mxu0
      %v1086 = vmul.f32 %v1083, %v753
      %v1087 = vld [vmem:[%s377] sm:$0xff]
      %v1088 = vadd.f32 %v390, %v1087
      %s1089 = scalar_lea.vmem %s4, 192
      %v1090 = vld [vmem:[%s1089] sm:$0xff]
      %v1091 = vld [vmem:[%s1089 + $0x8] sm:$0xff]
      %v1092 = vld [vmem:[%s1089 + $0x10] sm:$0xff]
      %v1093 = vld [vmem:[%s1089 + $0x18] sm:$0xff]
      %v1094 = vld [vmem:[%s1089 + $0x20] sm:$0xff]
      %v1095 = vld [vmem:[%s1089 + $0x28] sm:$0xff]
      %v1096 = vld [vmem:[%s1089 + $0x30] sm:$0xff]
      %v1097 = vld [vmem:[%s1089 + $0x38] sm:$0xff]
      %v1098 = vld [vmem:[%s1089 + $0x40] sm:$0xff]
      %v1099 = vld [vmem:[%s1089 + $0x48] sm:$0xff]
      %v1100 = vld [vmem:[%s1089 + $0x50] sm:$0xff]
      %v1101 = vld [vmem:[%s1089 + $0x58] sm:$0xff]
      %s1102 = scalar_lea.vmem %s5, 192
      %v1103 = vld [vmem:[%s1102] sm:$0xff]
      %v1104 = vld [vmem:[%s1102 + $0x8] sm:$0xff]
      %v1105 = vld [vmem:[%s1102 + $0x10] sm:$0xff]
      %v1106 = vld [vmem:[%s1102 + $0x18] sm:$0xff]
      %v1107 = vld [vmem:[%s1102 + $0x20] sm:$0xff]
      %v1108 = vld [vmem:[%s1102 + $0x28] sm:$0xff]
      %v1109 = vld [vmem:[%s1102 + $0x30] sm:$0xff]
      %v1110 = vld [vmem:[%s1102 + $0x38] sm:$0xff]
      %v1111 = vld [vmem:[%s1102 + $0x40] sm:$0xff]
      %v1112 = vld [vmem:[%s1102 + $0x48] sm:$0xff]
      %v1113 = vld [vmem:[%s1102 + $0x50] sm:$0xff]
      %v1114 = vld [vmem:[%s1102 + $0x58] sm:$0xff]
      %s1115 = scalar_lea.vmem %s6, 64
      %v1116 = vld [vmem:[%s1115] sm:$0xff]
      %v1117 = vld [vmem:[%s1115 + $0x8] sm:$0xff]
      %v1118 = vld [vmem:[%s1115 + $0x10] sm:$0xff]
      %v1119 = vld [vmem:[%s1115 + $0x18] sm:$0xff]
      %s1120 = scalar_lea.vmem %s7, 16
      %v1121 = vld [vmem:[%s1120] sm:$0xff]
      %v1123 = vrot.slane %v1088, 7
      %v1125 = vsel %vm425, 0.0, %v1123
      %v1126 = vsel %vm425, %v1123, 0.0
      %v1129 = vrot.slane %v1125, 1
      %v1130 = vrot.slane %v1126, 1
      %v1131 = vsel %vm430, %v1129, %v1130
      %1132 = vrot.lane.b32.xlu0 %v1131, 32
      %v1133 = vpop.permute.xlu0 %1132
      %v1135 = vrot.slane %v1125, 2
      %v1136 = vrot.slane %v1126, 2
      %v1137 = vsel %vm437, %v1135, %v1136
      %1138 = vrot.lane.b32.xlu0 %v1137, 64
      %v1139 = vpop.permute.xlu0 %1138
      %v1141 = vsel %vm444, %v1125, %v1133
      %v1142 = vsel %vm446, %v1141, %v1139
      %v1143 = vlaneseq
      %v1144 = vshrl.u32 %v1143, 7
      %v1145 = vsub.s32 0, %v1144
      %v1146 = vrot.slane %v1121, %v1145
      %v1148 = vsel %vm452, %v1142, 0
      %1150 = vmatprep.subr.mxu0 0.0
      %1151 = vmatpush1.msra.mxu0 %v1090
      %1152 = vmatprep.subr.mxu0 0.0
      %1153 = vmatpush1.msra.mxu0 %v1091
      %1154 = vmatprep.subr.mxu0 0.0
      %1155 = vmatpush1.msra.mxu0 %v1092
      %1156 = vmatprep.subr.mxu0 0.0
      %1157 = vmatpush1.msra.mxu0 %v1093
      %1158 = vmatprep.subr.mxu0 0.0
      %1159 = vmatpush1.msra.mxu0 %v1094
      %1160 = vmatprep.subr.mxu0 0.0
      %1161 = vmatpush1.msra.mxu0 %v1095
      %1162 = vmatprep.subr.mxu0 0.0
      %1163 = vmatpush1.msra.mxu0 %v1096
      %1164 = vmatprep.subr.mxu0 0.0
      %1165 = vmatpush1.msra.mxu0 %v1097
      %1166 = vmatprep.subr.mxu0 0.0
      %1167 = vmatpush1.msra.mxu0 %v1098
      %1168 = vmatprep.subr.mxu0 0.0
      %1169 = vmatpush1.msra.mxu0 %v1099
      %1170 = vmatprep.subr.mxu0 0.0
      %1171 = vmatpush1.msra.mxu0 %v1100
      %1172 = vmatprep.subr.mxu0 0.0
      %1173 = vmatpush1.msra.mxu0 %v1101
      %1174 = vmatprep.subr.mxu0 0.0
      %1175 = vmatpush1.msra.mxu0 0.0
      %1176 = vmatprep.subr.mxu0 0.0
      %1177 = vmatpush1.msra.mxu0 0.0
      %1178 = vmatprep.subr.mxu0 0.0
      %1179 = vmatpush1.msra.mxu0 0.0
      %1180 = vmatprep.subr.mxu0 0.0
      %1181 = vmatpush1.msra.mxu0 0.0
      %1182 = vmatprep.subr.mxu0 0.0
      %1183 = vmatpush1.msra.mxu0 0.0
      %1184 = vmatprep.subr.mxu0 0.0
      %1185 = vmatpush1.msra.mxu0 0.0
      %1186 = vmatprep.subr.mxu0 0.0
      %1187 = vmatpush1.msra.mxu0 0.0
      %1188 = vmatprep.subr.mxu0 0.0
      %1189 = vmatpush1.msra.mxu0 0.0
      %1190 = vmatprep.subr.mxu0 0.0
      %1191 = vmatpush1.msra.mxu0 0.0
      %1192 = vmatprep.subr.mxu0 0.0
      %1193 = vmatpush1.msra.mxu0 0.0
      %1194 = vmatprep.subr.mxu0 0.0
      %1195 = vmatpush1.msra.mxu0 0.0
      %1196 = vmatprep.subr.mxu0 0.0
      %1197 = vmatpush1.msra.mxu0 0.0
      %1198 = vmatprep.subr.mxu0 0.0
      %1199 = vmatpush1.msra.mxu0 0.0
      %1200 = vmatprep.subr.mxu0 0.0
      %1201 = vmatpush1.msra.mxu0 0.0
      %1202 = vmatprep.subr.mxu0 0.0
      %1203 = vmatpush1.msra.mxu0 0.0
      %1204 = vmatprep.subr.mxu0 0.0
      %1205 = vmatpush1.msra.mxu0 0.0
      %1206 = vmatprep.subr.mxu0 0.0
      %1207 = vmatpush1.msra.mxu0 0.0
      %1208 = vmatprep.subr.mxu0 0.0
      %1209 = vmatpush1.msra.mxu0 0.0
      %1210 = vmatprep.subr.mxu0 0.0
      %1211 = vmatpush1.msra.mxu0 0.0
      %1212 = vmatprep.subr.mxu0 0.0
      %1213 = vmatpush1.msra.mxu0 0.0
      %1214 = vmatprep.mubr.f32.mxu0 0.0
      %1215 = vmatmul.mubr.f32.gmra.mrb[0].mxu0 %v1148
      %v1216 = vpop.f32.mrb[0].mxu0
      %v1217 = vadd.f32 %v1146, %v1216
      %v1218 = vpop.f32.mrb[0].mxu0
      %1219 = vdwg.mxu0
      %v1220 = vmax.f32 %v1217, 0.0
      %v1221 = vsel %vm444, %v1220, 0.0
      %1222 = vadd.xlane.f32.xlu0 %v1221
      %v1223 = vpop.xlane.xlu0 %1222
      %v1224 = vmul.f32 %v1223, %v530
      %v1225 = vsub.f32 %v1220, %v1224
      %v1226 = vmul.f32 %v1225, %v1225
      %v1227 = vsel %vm444, %v1226, 0.0
      %1228 = vadd.xlane.f32.xlu0 %v1227
      %v1229 = vpop.xlane.xlu0 %1228
      %v1230 = vmul.f32 %v1229, %v530
      %v1231 = vadd.f32 %v1230, 1e-05
      %v1232 = vrsqrt.pop %v1231
      %v1233 = vmul.f32 %v1225, %v1232
      %v1234 = vlaneseq
      %v1235 = vshrl.u32 %v1234, 7
      %v1236 = vsub.s32 1, %v1235
      %v1237 = vrot.slane %v1121, %v1236
      %v1238 = vmul.f32 %v1233, %v1237
      %v1239 = vlaneseq
      %v1240 = vshrl.u32 %v1239, 7
      %v1241 = vsub.s32 2, %v1240
      %v1242 = vrot.slane %v1121, %v1241
      %v1243 = vadd.f32 %v1238, %v1242
      %v1245 = vrot.slane %v1243, 7
      %v1247 = vsel %vm425, 0.0, %v1245
      %v1248 = vsel %vm425, %v1245, 0.0
      %v1251 = vrot.slane %v1247, 1
      %v1252 = vrot.slane %v1248, 1
      %v1253 = vsel %vm430, %v1251, %v1252
      %1254 = vrot.lane.b32.xlu0 %v1253, 32
      %v1255 = vpop.permute.xlu0 %1254
      %v1257 = vrot.slane %v1247, 2
      %v1258 = vrot.slane %v1248, 2
      %v1259 = vsel %vm437, %v1257, %v1258
      %1260 = vrot.lane.b32.xlu0 %v1259, 64
      %v1261 = vpop.permute.xlu0 %1260
      %v1263 = vsel %vm444, %v1247, %v1255
      %v1264 = vsel %vm446, %v1263, %v1261
      %v1265 = vlaneseq
      %v1266 = vshrl.u32 %v1265, 7
      %v1267 = vsub.s32 3, %v1266
      %v1268 = vrot.slane %v1121, %v1267
      %v1270 = vsel %vm452, %v1264, 0
      %1272 = vmatprep.subr.mxu0 0.0
      %1273 = vmatpush1.msra.mxu0 %v1103
      %1274 = vmatprep.subr.mxu0 0.0
      %1275 = vmatpush1.msra.mxu0 %v1104
      %1276 = vmatprep.subr.mxu0 0.0
      %1277 = vmatpush1.msra.mxu0 %v1105
      %1278 = vmatprep.subr.mxu0 0.0
      %1279 = vmatpush1.msra.mxu0 %v1106
      %1280 = vmatprep.subr.mxu0 0.0
      %1281 = vmatpush1.msra.mxu0 %v1107
      %1282 = vmatprep.subr.mxu0 0.0
      %1283 = vmatpush1.msra.mxu0 %v1108
      %1284 = vmatprep.subr.mxu0 0.0
      %1285 = vmatpush1.msra.mxu0 %v1109
      %1286 = vmatprep.subr.mxu0 0.0
      %1287 = vmatpush1.msra.mxu0 %v1110
      %1288 = vmatprep.subr.mxu0 0.0
      %1289 = vmatpush1.msra.mxu0 %v1111
      %1290 = vmatprep.subr.mxu0 0.0
      %1291 = vmatpush1.msra.mxu0 %v1112
      %1292 = vmatprep.subr.mxu0 0.0
      %1293 = vmatpush1.msra.mxu0 %v1113
      %1294 = vmatprep.subr.mxu0 0.0
      %1295 = vmatpush1.msra.mxu0 %v1114
      %1296 = vmatprep.subr.mxu0 0.0
      %1297 = vmatpush1.msra.mxu0 0.0
      %1298 = vmatprep.subr.mxu0 0.0
      %1299 = vmatpush1.msra.mxu0 0.0
      %1300 = vmatprep.subr.mxu0 0.0
      %1301 = vmatpush1.msra.mxu0 0.0
      %1302 = vmatprep.subr.mxu0 0.0
      %1303 = vmatpush1.msra.mxu0 0.0
      %1304 = vmatprep.subr.mxu0 0.0
      %1305 = vmatpush1.msra.mxu0 0.0
      %1306 = vmatprep.subr.mxu0 0.0
      %1307 = vmatpush1.msra.mxu0 0.0
      %1308 = vmatprep.subr.mxu0 0.0
      %1309 = vmatpush1.msra.mxu0 0.0
      %1310 = vmatprep.subr.mxu0 0.0
      %1311 = vmatpush1.msra.mxu0 0.0
      %1312 = vmatprep.subr.mxu0 0.0
      %1313 = vmatpush1.msra.mxu0 0.0
      %1314 = vmatprep.subr.mxu0 0.0
      %1315 = vmatpush1.msra.mxu0 0.0
      %1316 = vmatprep.subr.mxu0 0.0
      %1317 = vmatpush1.msra.mxu0 0.0
      %1318 = vmatprep.subr.mxu0 0.0
      %1319 = vmatpush1.msra.mxu0 0.0
      %1320 = vmatprep.subr.mxu0 0.0
      %1321 = vmatpush1.msra.mxu0 0.0
      %1322 = vmatprep.subr.mxu0 0.0
      %1323 = vmatpush1.msra.mxu0 0.0
      %1324 = vmatprep.subr.mxu0 0.0
      %1325 = vmatpush1.msra.mxu0 0.0
      %1326 = vmatprep.subr.mxu0 0.0
      %1327 = vmatpush1.msra.mxu0 0.0
      %1328 = vmatprep.subr.mxu0 0.0
      %1329 = vmatpush1.msra.mxu0 0.0
      %1330 = vmatprep.subr.mxu0 0.0
      %1331 = vmatpush1.msra.mxu0 0.0
      %1332 = vmatprep.subr.mxu0 0.0
      %1333 = vmatpush1.msra.mxu0 0.0
      %1334 = vmatprep.subr.mxu0 0.0
      %1335 = vmatpush1.msra.mxu0 0.0
      %1336 = vmatprep.mubr.f32.mxu0 0.0
      %1337 = vmatmul.mubr.f32.gmra.mrb[0].mxu0 %v1270
      %v1338 = vpop.f32.mrb[0].mxu0
      %v1339 = vadd.f32 %v1268, %v1338
      %v1340 = vpop.f32.mrb[0].mxu0
      %1341 = vdwg.mxu0
      %v1342 = vmax.f32 %v1339, 0.0
      %v1343 = vsel %vm444, %v1342, 0.0
      %1344 = vadd.xlane.f32.xlu0 %v1343
      %v1345 = vpop.xlane.xlu0 %1344
      %v1346 = vmul.f32 %v1345, %v530
      %v1347 = vsub.f32 %v1342, %v1346
      %v1348 = vmul.f32 %v1347, %v1347
      %v1349 = vsel %vm444, %v1348, 0.0
      %1350 = vadd.xlane.f32.xlu0 %v1349
      %v1351 = vpop.xlane.xlu0 %1350
      %v1352 = vmul.f32 %v1351, %v530
      %v1353 = vadd.f32 %v1352, 1e-05
      %v1354 = vrsqrt.pop %v1353
      %v1355 = vmul.f32 %v1347, %v1354
      %v1356 = vlaneseq
      %v1357 = vshrl.u32 %v1356, 7
      %v1358 = vsub.s32 4, %v1357
      %v1359 = vrot.slane %v1121, %v1358
      %v1360 = vmul.f32 %v1355, %v1359
      %v1361 = vlaneseq
      %v1362 = vshrl.u32 %v1361, 7
      %v1363 = vsub.s32 5, %v1362
      %v1364 = vrot.slane %v1121, %v1363
      %v1365 = vadd.f32 %v1360, %v1364
      %v1366 = vlaneseq
      %v1367 = vshrl.u32 %v1366, 7
      %v1368 = vsub.s32 6, %v1367
      %v1369 = vrot.slane %v1121, %v1368
      %v1371 = vsel %vm444, %v1365, 0
      %1373 = vmatprep.subr.mxu0 0.0
      %1374 = vmatpush1.msra.mxu0 %v1116
      %1375 = vmatprep.subr.mxu0 0.0
      %1376 = vmatpush1.msra.mxu0 %v1117
      %1377 = vmatprep.subr.mxu0 0.0
      %1378 = vmatpush1.msra.mxu0 %v1118
      %1379 = vmatprep.subr.mxu0 0.0
      %1380 = vmatpush1.msra.mxu0 %v1119
      %1381 = vmatprep.subr.mxu0 0.0
      %1382 = vmatpush1.msra.mxu0 0.0
      %1383 = vmatprep.subr.mxu0 0.0
      %1384 = vmatpush1.msra.mxu0 0.0
      %1385 = vmatprep.subr.mxu0 0.0
      %1386 = vmatpush1.msra.mxu0 0.0
      %1387 = vmatprep.subr.mxu0 0.0
      %1388 = vmatpush1.msra.mxu0 0.0
      %1389 = vmatprep.subr.mxu0 0.0
      %1390 = vmatpush1.msra.mxu0 0.0
      %1391 = vmatprep.subr.mxu0 0.0
      %1392 = vmatpush1.msra.mxu0 0.0
      %1393 = vmatprep.subr.mxu0 0.0
      %1394 = vmatpush1.msra.mxu0 0.0
      %1395 = vmatprep.subr.mxu0 0.0
      %1396 = vmatpush1.msra.mxu0 0.0
      %1397 = vmatprep.subr.mxu0 0.0
      %1398 = vmatpush1.msra.mxu0 0.0
      %1399 = vmatprep.subr.mxu0 0.0
      %1400 = vmatpush1.msra.mxu0 0.0
      %1401 = vmatprep.subr.mxu0 0.0
      %1402 = vmatpush1.msra.mxu0 0.0
      %1403 = vmatprep.subr.mxu0 0.0
      %1404 = vmatpush1.msra.mxu0 0.0
      %1405 = vmatprep.subr.mxu0 0.0
      %1406 = vmatpush1.msra.mxu0 0.0
      %1407 = vmatprep.subr.mxu0 0.0
      %1408 = vmatpush1.msra.mxu0 0.0
      %1409 = vmatprep.subr.mxu0 0.0
      %1410 = vmatpush1.msra.mxu0 0.0
      %1411 = vmatprep.subr.mxu0 0.0
      %1412 = vmatpush1.msra.mxu0 0.0
      %1413 = vmatprep.subr.mxu0 0.0
      %1414 = vmatpush1.msra.mxu0 0.0
      %1415 = vmatprep.subr.mxu0 0.0
      %1416 = vmatpush1.msra.mxu0 0.0
      %1417 = vmatprep.subr.mxu0 0.0
      %1418 = vmatpush1.msra.mxu0 0.0
      %1419 = vmatprep.subr.mxu0 0.0
      %1420 = vmatpush1.msra.mxu0 0.0
      %1421 = vmatprep.subr.mxu0 0.0
      %1422 = vmatpush1.msra.mxu0 0.0
      %1423 = vmatprep.subr.mxu0 0.0
      %1424 = vmatpush1.msra.mxu0 0.0
      %1425 = vmatprep.subr.mxu0 0.0
      %1426 = vmatpush1.msra.mxu0 0.0
      %1427 = vmatprep.subr.mxu0 0.0
      %1428 = vmatpush1.msra.mxu0 0.0
      %1429 = vmatprep.subr.mxu0 0.0
      %1430 = vmatpush1.msra.mxu0 0.0
      %1431 = vmatprep.subr.mxu0 0.0
      %1432 = vmatpush1.msra.mxu0 0.0
      %1433 = vmatprep.subr.mxu0 0.0
      %1434 = vmatpush1.msra.mxu0 0.0
      %1435 = vmatprep.subr.mxu0 0.0
      %1436 = vmatpush1.msra.mxu0 0.0
      %1437 = vmatprep.mubr.f32.mxu0 0.0
      %1438 = vmatmul.mubr.f32.gmra.mrb[0].mxu0 %v1371
      %v1439 = vpop.f32.mrb[0].mxu0
      %v1440 = vadd.f32 %v1369, %v1439
      %v1441 = vpop.f32.mrb[0].mxu0
      %1442 = vdwg.mxu0
      %v1443 = vmul.f32 %v1440, %v753
      %v1444 = vld [vmem:[%s381] sm:$0xff]
      %v1445 = vadd.f32 %v1088, %v1444
      %1446 = vst.msk [vmem:[%s385] sm:$0xff] %vm444, %v1445
      %v1447 = vadd.f32 %v755, %v1086
      %v1448 = vadd.f32 %v1447, %v1443
      %1449 = vst [vmem:[%s389] sm:$0xff] %v1448
      %p1450 = scmp.lt.s32.totalorder %s21, 1
      %s1451 = scalar_select %p1450, %s21, 1
      %s1452 = smul.addr %s1451, 8
      %s1453 = scalar_lea.vmem %s8, %s1452
      %p1454 = scmp.lt.s32.totalorder %s21, 1
      %s1455 = scalar_select %p1454, %s21, 1
      %s1456 = smul.addr %s1455, 8
      %s1457 = scalar_lea.vmem %s9, %s1456
      // Predicated region
      $region53: #{fastspeech2_forward.5} parent=51 // pred_check
        %p1458 = pneg %p227
      $region54: #{fastspeech2_forward.5} parent=51 // pred_check_branch
        %1460 = sbr.rel (%p1458) target = $region56
      $region55: #{fastspeech2_forward.5} parent=51 // pred_region
        _
      $region56: #{fastspeech2_forward.5} parent=51 // pred_fallthru
        _
      // Predicated region
      $region57: #{fastspeech2_forward.5} parent=51 // pred_check
        %p1461 = pneg %p253
      $region58: #{fastspeech2_forward.5} parent=51 // pred_check_branch
        %1463 = sbr.rel (%p1461) target = $region60
      $region59: #{fastspeech2_forward.5} parent=51 // pred_region
        _
      $region60: #{fastspeech2_forward.5} parent=51 // pred_fallthru
        _
    $region52: #{fastspeech2_forward.5} parent=5 // pred_fallthru
      _
    %p1464 = scmp.le.s32.totalorder 2, %s16
    // Predicated region
    $region61: #{fastspeech2_forward.5} parent=5 // pred_check
      %p1465 = pneg %p1464
    $region62: #{fastspeech2_forward.5} parent=5 // pred_check_branch
      %1467 = sbr.rel (%p1465) target = $region64
    $region63: #{fastspeech2_forward.5} parent=5 // pred_region
      %s1468 = ssub.s32 %s16, 2
      // Predicated region
      $region65: #{fastspeech2_forward.5} parent=63 // pred_check
        %p1469 = pneg %p233
      $region66: #{fastspeech2_forward.5} parent=63 // pred_check_branch
        %1471 = sbr.rel (%p1469) target = $region68
      $region67: #{fastspeech2_forward.5} parent=63 // pred_region
        %p1472 = scmp.lt.s32.totalorder %s22, 1
        %s1473 = scalar_select %p1472, %s22, 1
        %s1474 = smul.addr %s1473, 8
        %s1475 = scalar_lea.vmem %s8, %s1474
      $region68: #{fastspeech2_forward.5} parent=63 // pred_fallthru
        _
      // Predicated region
      $region69: #{fastspeech2_forward.5} parent=63 // pred_check
        %p1476 = pneg %p259
      $region70: #{fastspeech2_forward.5} parent=63 // pred_check_branch
        %1478 = sbr.rel (%p1476) target = $region72
      $region71: #{fastspeech2_forward.5} parent=63 // pred_region
        %p1479 = scmp.lt.s32.totalorder %s22, 1
        %s1480 = scalar_select %p1479, %s22, 1
        %s1481 = smul.addr %s1480, 8
        %s1482 = scalar_lea.vmem %s9, %s1481
      $region72: #{fastspeech2_forward.5} parent=63 // pred_fallthru
        _
    $region64: #{fastspeech2_forward.5} parent=5 // pred_fallthru
      _
  $region6: #{fastspeech2_forward.5} parent=0 // loop_footer
    %s20 = sadd.s32 1, %s16
  $region7: #{fastspeech2_forward.5} parent=0 // loop_footer_branch
    %15 = sbr.rel target = $region3
  $region8: #{fastspeech2_forward.5} parent=0 // loop_exit
    _

// kernel: fastspeech2_forward.6
$region0: #{fastspeech2_forward.6}
  #allocation0 [shape = 'u32[]', space=smem, size = 0x4, offset = 0x4, fixed_abs, tag = 'smem constant byte address 0x4 - core index']
  #allocation1 [shape = 'u32[144,128]{1,0:T(1,128)}', space=vmem, size = 0x12000, scoped, tag = 'internal scratch']
  %s0 = inlined_call_operand.vmem [shape: f32[2,24,32], index: 0, kind: input, shape index: {}]
  %s1 = inlined_call_operand.vmem [shape: f32[2,1,24], index: 1, kind: input, shape index: {}]
  %s2 = inlined_call_operand.vmem [shape: f32[2,24,1], index: 2, kind: input, shape index: {}]
  %s3 = inlined_call_operand.vmem [shape: f32[2,32,96], index: 3, kind: input, shape index: {}]
  %s4 = inlined_call_operand.vmem [shape: f32[2,32,32], index: 4, kind: input, shape index: {}]
  %s5 = inlined_call_operand.vmem [shape: f32[2,288,64], index: 5, kind: input, shape index: {}]
  %s6 = inlined_call_operand.vmem [shape: f32[2,64,32], index: 6, kind: input, shape index: {}]
  %s7 = inlined_call_operand.vmem [shape: f32[2,8,128], index: 7, kind: input, shape index: {}]
  %s8 = inlined_call_operand.vmem [shape: f32[2,24,32], index: 8, kind: output, shape index: {}]
  %s9 = sld [smem:[#allocation0]]
  $region69: #{fastspeech2_forward.6} parent=0
    _
  %s11 = ssub.s32 1, %s9
  %s12 = scalar_select 0, %s11, %s9
  loop: start=0, step=1, limit=6
  $region2: #{fastspeech2_forward.6} parent=0 // loop_pre_header
    _
  $region3: #{fastspeech2_forward.6} parent=0 // loop_header
    %s14 = sphi 0, %s18
    %p15 = scmp.ge.s32.totalorder %s14, 6
    %s21 = sphi 0, %s33
    %s22 = sphi 0, %s29
    %s23 = sphi 0, %s21
    %s24 = sphi 0, %s22
    %s25 = sphi 0, %s23
    %s26 = sphi 0, %s24
    %s36 = sphi 0, %s38
    %s39 = sphi 0, %s36
    %s40 = sphi 0, %s39
    %s56 = sphi 0, %s40
    %s62 = sphi 0, %s64
    %s65 = sphi 0, %s62
    %s66 = sphi 0, %s65
    %s82 = sphi 0, %s66
    %s88 = sphi 0, %s90
    %s91 = sphi 0, %s88
    %s92 = sphi 0, %s91
    %s108 = sphi 0, %s92
    %s114 = sphi 0, %s116
    %s117 = sphi 0, %s114
    %s118 = sphi 0, %s117
    %s134 = sphi 0, %s118
    %s140 = sphi 0, %s142
    %s143 = sphi 0, %s140
    %s144 = sphi 0, %s143
    %s160 = sphi 0, %s144
    %s166 = sphi 0, %s168
    %s169 = sphi 0, %s166
    %s170 = sphi 0, %s169
    %s186 = sphi 0, %s170
    %s192 = sphi 0, %s194
    %s195 = sphi 0, %s192
    %s196 = sphi 0, %s195
    %s212 = sphi 0, %s196
    %s218 = sphi 0, %s220
    %s221 = sphi 0, %s218
    %s222 = sphi 0, %s221
    %s238 = sphi 0, %s222
    %s244 = sphi 0, %s246
    %s247 = sphi 0, %s244
    %s248 = sphi 0, %s247
    %s264 = sphi 0, %s248
  $region4: #{fastspeech2_forward.6} parent=0 // loop_header_branch
    %17 = sbr.rel (%p15) target = $region8
  $region5: #{fastspeech2_forward.6} parent=0 // loop_body
    %s19 = ssub.s32 %s14, 1
    %s20 = ssub.s32 %s14, 2
    %s27 = sadd.s32 1, %s22
    %p28 = scmp.ge.s32.totalorder %s27, 2
    %s29 = scalar_select %p28, 0, %s27
    %s30 = sadd.s32 1, %s21
    %s31 = scalar_select %p28, %s30, %s21
    %p32 = scmp.ge.s32.totalorder %s31, 2
    %s33 = scalar_select %p32, 0, %s31
    %s34 = ssub.s32 %s21, %s33
    %p35 = scmp.eq.s32.totalorder %s34, 0
    %s37 = sadd.s32 %s36, 1
    %s38 = scalar_select %p35, %s36, %s37
    %p41 = pneg %p35
    %p42 = scmp.eq.s32.totalorder %s14, 3
    %p43 = por %p41, %p42
    %p44 = scmp.ne.s32.totalorder %s36, %s39
    %p45 = scmp.eq.s32.totalorder %s14, 0
    %p46 = por %p44, %p45
    %p47 = scmp.ne.s32.totalorder %s36, %s39
    %p48 = scmp.eq.s32.totalorder %s19, 3
    %p49 = por %p47, %p48
    %p50 = scmp.ne.s32.totalorder %s39, %s40
    %p51 = scmp.eq.s32.totalorder %s19, 0
    %p52 = por %p50, %p51
    %p53 = scmp.ne.s32.totalorder %s39, %s40
    %p54 = scmp.eq.s32.totalorder %s20, 3
    %p55 = por %p53, %p54
    %p57 = scmp.ne.s32.totalorder %s40, %s56
    %p58 = scmp.eq.s32.totalorder %s20, 0
    %p59 = por %p57, %p58
    %s60 = ssub.s32 %s21, %s33
    %p61 = scmp.eq.s32.totalorder %s60, 0
    %s63 = sadd.s32 %s62, 1
    %s64 = scalar_select %p61, %s62, %s63
    %p67 = pneg %p61
    %p68 = scmp.eq.s32.totalorder %s14, 3
    %p69 = por %p67, %p68
    %p70 = scmp.ne.s32.totalorder %s62, %s65
    %p71 = scmp.eq.s32.totalorder %s14, 0
    %p72 = por %p70, %p71
    %p73 = scmp.ne.s32.totalorder %s62, %s65
    %p74 = scmp.eq.s32.totalorder %s19, 3
    %p75 = por %p73, %p74
    %p76 = scmp.ne.s32.totalorder %s65, %s66
    %p77 = scmp.eq.s32.totalorder %s19, 0
    %p78 = por %p76, %p77
    %p79 = scmp.ne.s32.totalorder %s65, %s66
    %p80 = scmp.eq.s32.totalorder %s20, 3
    %p81 = por %p79, %p80
    %p83 = scmp.ne.s32.totalorder %s66, %s82
    %p84 = scmp.eq.s32.totalorder %s20, 0
    %p85 = por %p83, %p84
    %s86 = ssub.s32 %s21, %s33
    %p87 = scmp.eq.s32.totalorder %s86, 0
    %s89 = sadd.s32 %s88, 1
    %s90 = scalar_select %p87, %s88, %s89
    %p93 = pneg %p87
    %p94 = scmp.eq.s32.totalorder %s14, 3
    %p95 = por %p93, %p94
    %p96 = scmp.ne.s32.totalorder %s88, %s91
    %p97 = scmp.eq.s32.totalorder %s14, 0
    %p98 = por %p96, %p97
    %p99 = scmp.ne.s32.totalorder %s88, %s91
    %p100 = scmp.eq.s32.totalorder %s19, 3
    %p101 = por %p99, %p100
    %p102 = scmp.ne.s32.totalorder %s91, %s92
    %p103 = scmp.eq.s32.totalorder %s19, 0
    %p104 = por %p102, %p103
    %p105 = scmp.ne.s32.totalorder %s91, %s92
    %p106 = scmp.eq.s32.totalorder %s20, 3
    %p107 = por %p105, %p106
    %p109 = scmp.ne.s32.totalorder %s92, %s108
    %p110 = scmp.eq.s32.totalorder %s20, 0
    %p111 = por %p109, %p110
    %s112 = ssub.s32 %s22, %s29
    %p113 = scmp.eq.s32.totalorder %s112, 0
    %s115 = sadd.s32 %s114, 1
    %s116 = scalar_select %p113, %s114, %s115
    %p119 = pneg %p113
    %p120 = scmp.eq.s32.totalorder %s14, 3
    %p121 = por %p119, %p120
    %p122 = scmp.ne.s32.totalorder %s114, %s117
    %p123 = scmp.eq.s32.totalorder %s14, 0
    %p124 = por %p122, %p123
    %p125 = scmp.ne.s32.totalorder %s114, %s117
    %p126 = scmp.eq.s32.totalorder %s19, 3
    %p127 = por %p125, %p126
    %p128 = scmp.ne.s32.totalorder %s117, %s118
    %p129 = scmp.eq.s32.totalorder %s19, 0
    %p130 = por %p128, %p129
    %p131 = scmp.ne.s32.totalorder %s117, %s118
    %p132 = scmp.eq.s32.totalorder %s20, 3
    %p133 = por %p131, %p132
    %p135 = scmp.ne.s32.totalorder %s118, %s134
    %p136 = scmp.eq.s32.totalorder %s20, 0
    %p137 = por %p135, %p136
    %s138 = ssub.s32 %s22, %s29
    %p139 = scmp.eq.s32.totalorder %s138, 0
    %s141 = sadd.s32 %s140, 1
    %s142 = scalar_select %p139, %s140, %s141
    %p145 = pneg %p139
    %p146 = scmp.eq.s32.totalorder %s14, 3
    %p147 = por %p145, %p146
    %p148 = scmp.ne.s32.totalorder %s140, %s143
    %p149 = scmp.eq.s32.totalorder %s14, 0
    %p150 = por %p148, %p149
    %p151 = scmp.ne.s32.totalorder %s140, %s143
    %p152 = scmp.eq.s32.totalorder %s19, 3
    %p153 = por %p151, %p152
    %p154 = scmp.ne.s32.totalorder %s143, %s144
    %p155 = scmp.eq.s32.totalorder %s19, 0
    %p156 = por %p154, %p155
    %p157 = scmp.ne.s32.totalorder %s143, %s144
    %p158 = scmp.eq.s32.totalorder %s20, 3
    %p159 = por %p157, %p158
    %p161 = scmp.ne.s32.totalorder %s144, %s160
    %p162 = scmp.eq.s32.totalorder %s20, 0
    %p163 = por %p161, %p162
    %s164 = ssub.s32 %s22, %s29
    %p165 = scmp.eq.s32.totalorder %s164, 0
    %s167 = sadd.s32 %s166, 1
    %s168 = scalar_select %p165, %s166, %s167
    %p171 = pneg %p165
    %p172 = scmp.eq.s32.totalorder %s14, 3
    %p173 = por %p171, %p172
    %p174 = scmp.ne.s32.totalorder %s166, %s169
    %p175 = scmp.eq.s32.totalorder %s14, 0
    %p176 = por %p174, %p175
    %p177 = scmp.ne.s32.totalorder %s166, %s169
    %p178 = scmp.eq.s32.totalorder %s19, 3
    %p179 = por %p177, %p178
    %p180 = scmp.ne.s32.totalorder %s169, %s170
    %p181 = scmp.eq.s32.totalorder %s19, 0
    %p182 = por %p180, %p181
    %p183 = scmp.ne.s32.totalorder %s169, %s170
    %p184 = scmp.eq.s32.totalorder %s20, 3
    %p185 = por %p183, %p184
    %p187 = scmp.ne.s32.totalorder %s170, %s186
    %p188 = scmp.eq.s32.totalorder %s20, 0
    %p189 = por %p187, %p188
    %s190 = ssub.s32 %s22, %s29
    %p191 = scmp.eq.s32.totalorder %s190, 0
    %s193 = sadd.s32 %s192, 1
    %s194 = scalar_select %p191, %s192, %s193
    %p197 = pneg %p191
    %p198 = scmp.eq.s32.totalorder %s14, 3
    %p199 = por %p197, %p198
    %p200 = scmp.ne.s32.totalorder %s192, %s195
    %p201 = scmp.eq.s32.totalorder %s14, 0
    %p202 = por %p200, %p201
    %p203 = scmp.ne.s32.totalorder %s192, %s195
    %p204 = scmp.eq.s32.totalorder %s19, 3
    %p205 = por %p203, %p204
    %p206 = scmp.ne.s32.totalorder %s195, %s196
    %p207 = scmp.eq.s32.totalorder %s19, 0
    %p208 = por %p206, %p207
    %p209 = scmp.ne.s32.totalorder %s195, %s196
    %p210 = scmp.eq.s32.totalorder %s20, 3
    %p211 = por %p209, %p210
    %p213 = scmp.ne.s32.totalorder %s196, %s212
    %p214 = scmp.eq.s32.totalorder %s20, 0
    %p215 = por %p213, %p214
    %s216 = ssub.s32 %s22, %s29
    %p217 = scmp.eq.s32.totalorder %s216, 0
    %s219 = sadd.s32 %s218, 1
    %s220 = scalar_select %p217, %s218, %s219
    %p223 = pneg %p217
    %p224 = scmp.eq.s32.totalorder %s14, 3
    %p225 = por %p223, %p224
    %p226 = scmp.ne.s32.totalorder %s218, %s221
    %p227 = scmp.eq.s32.totalorder %s14, 0
    %p228 = por %p226, %p227
    %p229 = scmp.ne.s32.totalorder %s218, %s221
    %p230 = scmp.eq.s32.totalorder %s19, 3
    %p231 = por %p229, %p230
    %p232 = scmp.ne.s32.totalorder %s221, %s222
    %p233 = scmp.eq.s32.totalorder %s19, 0
    %p234 = por %p232, %p233
    %p235 = scmp.ne.s32.totalorder %s221, %s222
    %p236 = scmp.eq.s32.totalorder %s20, 3
    %p237 = por %p235, %p236
    %p239 = scmp.ne.s32.totalorder %s222, %s238
    %p240 = scmp.eq.s32.totalorder %s20, 0
    %p241 = por %p239, %p240
    %s242 = ssub.s32 %s21, %s33
    %p243 = scmp.eq.s32.totalorder %s242, 0
    %s245 = sadd.s32 %s244, 1
    %s246 = scalar_select %p243, %s244, %s245
    %p249 = pneg %p243
    %p250 = scmp.eq.s32.totalorder %s14, 3
    %p251 = por %p249, %p250
    %p252 = scmp.ne.s32.totalorder %s244, %s247
    %p253 = scmp.eq.s32.totalorder %s14, 0
    %p254 = por %p252, %p253
    %p255 = scmp.ne.s32.totalorder %s244, %s247
    %p256 = scmp.eq.s32.totalorder %s19, 3
    %p257 = por %p255, %p256
    %p258 = scmp.ne.s32.totalorder %s247, %s248
    %p259 = scmp.eq.s32.totalorder %s19, 0
    %p260 = por %p258, %p259
    %p261 = scmp.ne.s32.totalorder %s247, %s248
    %p262 = scmp.eq.s32.totalorder %s20, 3
    %p263 = por %p261, %p262
    %p265 = scmp.ne.s32.totalorder %s248, %s264
    %p266 = scmp.eq.s32.totalorder %s20, 0
    %p267 = por %p265, %p266
    %p268 = scmp.le.s32.totalorder 1, %s14
    %p269 = scmp.lt.s32.totalorder %s14, 5
    %p270 = pnand %p268, %p269
    %p271 = pneg %p270
    // Predicated region
    $region9: #{fastspeech2_forward.6} parent=5 // pred_check
      _
    $region10: #{fastspeech2_forward.6} parent=5 // pred_check_branch
      %273 = sbr.rel (%p270) target = $region12
    $region11: #{fastspeech2_forward.6} parent=5 // pred_region
      %s274 = ssub.s32 %s14, 1
    $region12: #{fastspeech2_forward.6} parent=5 // pred_fallthru
      _
    %p275 = scmp.lt.s32.totalorder %s14, 4
    // Predicated region
    $region13: #{fastspeech2_forward.6} parent=5 // pred_check
      %p276 = pneg %p275
    $region14: #{fastspeech2_forward.6} parent=5 // pred_check_branch
      %278 = sbr.rel (%p276) target = $region16
    $region15: #{fastspeech2_forward.6} parent=5 // pred_region
      // Predicated region
      $region17: #{fastspeech2_forward.6} parent=15 // pred_check
        %p279 = pneg %p46
      $region18: #{fastspeech2_forward.6} parent=15 // pred_check_branch
        %281 = sbr.rel (%p279) target = $region20
      $region19: #{fastspeech2_forward.6} parent=15 // pred_region
        %p282 = scmp.lt.s32.totalorder %s21, 1
        %s283 = scalar_select %p282, %s21, 1
        %s284 = smul.addr %s283, 3
        %s285 = smul.addr %s284, 8
        %s286 = scalar_lea.vmem %s0, %s285
      $region20: #{fastspeech2_forward.6} parent=15 // pred_fallthru
        _
      // Predicated region
      $region21: #{fastspeech2_forward.6} parent=15 // pred_check
        %p287 = pneg %p72
      $region22: #{fastspeech2_forward.6} parent=15 // pred_check_branch
        %289 = sbr.rel (%p287) target = $region24
      $region23: #{fastspeech2_forward.6} parent=15 // pred_region
        %p290 = scmp.lt.s32.totalorder %s21, 1
        %s291 = scalar_select %p290, %s21, 1
        %s292 = scalar_lea.vmem %s1, %s291
      $region24: #{fastspeech2_forward.6} parent=15 // pred_fallthru
        _
      // Predicated region
      $region25: #{fastspeech2_forward.6} parent=15 // pred_check
        %p293 = pneg %p98
      $region26: #{fastspeech2_forward.6} parent=15 // pred_check_branch
        %295 = sbr.rel (%p293) target = $region28
      $region27: #{fastspeech2_forward.6} parent=15 // pred_region
        %p296 = scmp.lt.s32.totalorder %s21, 1
        %s297 = scalar_select %p296, %s21, 1
        %s298 = smul.addr %s297, 3
        %s299 = smul.addr %s298, 8
        %s300 = scalar_lea.vmem %s2, %s299
      $region28: #{fastspeech2_forward.6} parent=15 // pred_fallthru
        _
      // Predicated region
      $region29: #{fastspeech2_forward.6} parent=15 // pred_check
        %p301 = pneg %p124
      $region30: #{fastspeech2_forward.6} parent=15 // pred_check_branch
        %303 = sbr.rel (%p301) target = $region32
      $region31: #{fastspeech2_forward.6} parent=15 // pred_region
        %p304 = scmp.lt.s32.totalorder %s22, 1
        %s305 = scalar_select %p304, %s22, 1
        %s306 = smul.addr %s305, 4
        %s307 = smul.addr %s306, 8
        %s308 = scalar_lea.vmem %s3, %s307
      $region32: #{fastspeech2_forward.6} parent=15 // pred_fallthru
        _
      // Predicated region
      $region33: #{fastspeech2_forward.6} parent=15 // pred_check
        %p309 = pneg %p150
      $region34: #{fastspeech2_forward.6} parent=15 // pred_check_branch
        %311 = sbr.rel (%p309) target = $region36
      $region35: #{fastspeech2_forward.6} parent=15 // pred_region
        %p312 = scmp.lt.s32.totalorder %s22, 1
        %s313 = scalar_select %p312, %s22, 1
        %s314 = smul.addr %s313, 4
        %s315 = smul.addr %s314, 8
        %s316 = scalar_lea.vmem %s4, %s315
      $region36: #{fastspeech2_forward.6} parent=15 // pred_fallthru
        _
      // Predicated region
      $region37: #{fastspeech2_forward.6} parent=15 // pred_check
        %p317 = pneg %p176
      $region38: #{fastspeech2_forward.6} parent=15 // pred_check_branch
        %319 = sbr.rel (%p317) target = $region40
      $region39: #{fastspeech2_forward.6} parent=15 // pred_region
        %p320 = scmp.lt.s32.totalorder %s22, 1
        %s321 = scalar_select %p320, %s22, 1
        %s322 = smul.addr %s321, 36
        %s323 = smul.addr %s322, 8
        %s324 = scalar_lea.vmem %s5, %s323
      $region40: #{fastspeech2_forward.6} parent=15 // pred_fallthru
        _
      // Predicated region
      $region41: #{fastspeech2_forward.6} parent=15 // pred_check
        %p325 = pneg %p202
      $region42: #{fastspeech2_forward.6} parent=15 // pred_check_branch
        %327 = sbr.rel (%p325) target = $region44
      $region43: #{fastspeech2_forward.6} parent=15 // pred_region
        %p328 = scmp.lt.s32.totalorder %s22, 1
        %s329 = scalar_select %p328, %s22, 1
        %s330 = smul.addr %s329, 8
        %s331 = smul.addr %s330, 8
        %s332 = scalar_lea.vmem %s6, %s331
      $region44: #{fastspeech2_forward.6} parent=15 // pred_fallthru
        _
      // Predicated region
      $region45: #{fastspeech2_forward.6} parent=15 // pred_check
        %p333 = pneg %p228
      $region46: #{fastspeech2_forward.6} parent=15 // pred_check_branch
        %335 = sbr.rel (%p333) target = $region48
      $region47: #{fastspeech2_forward.6} parent=15 // pred_region
        %p336 = scmp.lt.s32.totalorder %s22, 1
        %s337 = scalar_select %p336, %s22, 1
        %s338 = smul.addr %s337, 8
        %s339 = scalar_lea.vmem %s7, %s338
      $region48: #{fastspeech2_forward.6} parent=15 // pred_fallthru
        _
    $region16: #{fastspeech2_forward.6} parent=5 // pred_fallthru
      _
    %p340 = scmp.le.s32.totalorder 1, %s14
    %p341 = scmp.lt.s32.totalorder %s14, 5
    %p342 = pnand %p340, %p341
    %p343 = pneg %p342
    // Predicated region
    $region49: #{fastspeech2_forward.6} parent=5 // pred_check
      _
    $region50: #{fastspeech2_forward.6} parent=5 // pred_check_branch
      %345 = sbr.rel (%p342) target = $region52
    $region51: #{fastspeech2_forward.6} parent=5 // pred_region
      %s346 = ssub.s32 %s14, 1
      %p347 = scmp.lt.s32.totalorder %s23, 1
      %s348 = scalar_select %p347, %s23, 1
      %s349 = smul.addr %s348, 3
      %s350 = smul.addr %s349, 8
      %s351 = scalar_lea.vmem %s0, %s350
      %p352 = pneg %p52
      %p353 = pneg %p49
      %p354 = scmp.lt.s32.totalorder %s23, 1
      %s355 = scalar_select %p354, %s23, 1
      %s356 = scalar_lea.vmem %s1, %s355
      %p357 = pneg %p78
      %p358 = pneg %p75
      %p359 = scmp.lt.s32.totalorder %s23, 1
      %s360 = scalar_select %p359, %s23, 1
      %s361 = smul.addr %s360, 3
      %s362 = smul.addr %s361, 8
      %s363 = scalar_lea.vmem %s2, %s362
      %p364 = pneg %p104
      %p365 = pneg %p101
      %p366 = scmp.lt.s32.totalorder %s24, 1
      %s367 = scalar_select %p366, %s24, 1
      %s368 = smul.addr %s367, 4
      %s369 = smul.addr %s368, 8
      %s370 = scalar_lea.vmem %s3, %s369
      %p371 = pneg %p130
      %p372 = pneg %p127
      %p373 = scmp.lt.s32.totalorder %s24, 1
      %s374 = scalar_select %p373, %s24, 1
      %s375 = smul.addr %s374, 4
      %s376 = smul.addr %s375, 8
      %s377 = scalar_lea.vmem %s4, %s376
      %p378 = pneg %p156
      %p379 = pneg %p153
      %p380 = scmp.lt.s32.totalorder %s24, 1
      %s381 = scalar_select %p380, %s24, 1
      %s382 = smul.addr %s381, 36
      %s383 = smul.addr %s382, 8
      %s384 = scalar_lea.vmem %s5, %s383
      %p385 = pneg %p182
      %p386 = pneg %p179
      %p387 = scmp.lt.s32.totalorder %s24, 1
      %s388 = scalar_select %p387, %s24, 1
      %s389 = smul.addr %s388, 8
      %s390 = smul.addr %s389, 8
      %s391 = scalar_lea.vmem %s6, %s390
      %p392 = pneg %p208
      %p393 = pneg %p205
      %p394 = scmp.lt.s32.totalorder %s24, 1
      %s395 = scalar_select %p394, %s24, 1
      %s396 = smul.addr %s395, 8
      %s397 = scalar_lea.vmem %s7, %s396
      %p398 = pneg %p234
      %p399 = pneg %p231
      %p400 = pneg %p260
      %p401 = pneg %p257
      %p402 = scmp.lt.s32.totalorder %s23, 1
      %s403 = scalar_select %p402, %s23, 1
      %s404 = smul.addr %s403, 3
      %s405 = smul.addr %s404, 8
      %s406 = scalar_lea.vmem %s8, %s405
      %p407 = scmp.lt.s32.totalorder %s23, 1
      %s408 = scalar_select %p407, %s23, 1
      %s409 = smul.addr %s408, 3
      %s410 = smul.addr %s409, 8
      %s411 = scalar_lea.vmem %s0, %s410
      %p412 = scmp.lt.s32.totalorder %s23, 1
      %s413 = scalar_select %p412, %s23, 1
      %s414 = scalar_lea.vmem %s1, %s413
      %p415 = scmp.lt.s32.totalorder %s23, 1
      %s416 = scalar_select %p415, %s23, 1
      %s417 = smul.addr %s416, 3
      %s418 = smul.addr %s417, 8
      %s419 = scalar_lea.vmem %s2, %s418
      %p420 = scmp.lt.s32.totalorder %s24, 1
      %s421 = scalar_select %p420, %s24, 1
      %s422 = smul.addr %s421, 4
      %s423 = smul.addr %s422, 8
      %s424 = scalar_lea.vmem %s3, %s423
      %p425 = scmp.lt.s32.totalorder %s24, 1
      %s426 = scalar_select %p425, %s24, 1
      %s427 = smul.addr %s426, 4
      %s428 = smul.addr %s427, 8
      %s429 = scalar_lea.vmem %s4, %s428
      %p430 = scmp.lt.s32.totalorder %s24, 1
      %s431 = scalar_select %p430, %s24, 1
      %s432 = smul.addr %s431, 36
      %s433 = smul.addr %s432, 8
      %s434 = scalar_lea.vmem %s5, %s433
      %p435 = scmp.lt.s32.totalorder %s24, 1
      %s436 = scalar_select %p435, %s24, 1
      %s437 = smul.addr %s436, 8
      %s438 = smul.addr %s437, 8
      %s439 = scalar_lea.vmem %s6, %s438
      %p440 = scmp.lt.s32.totalorder %s24, 1
      %s441 = scalar_select %p440, %s24, 1
      %s442 = smul.addr %s441, 8
      %s443 = scalar_lea.vmem %s7, %s442
      %p444 = scmp.lt.s32.totalorder %s23, 1
      %s445 = scalar_select %p444, %s23, 1
      %s446 = smul.addr %s445, 3
      %s447 = smul.addr %s446, 8
      %s448 = scalar_lea.vmem %s8, %s447
      %p449 = scmp.eq.s32.totalorder %s24, 0
      // Predicated region
      $region53: #{fastspeech2_forward.6} parent=51 // pred_check
        %p450 = pneg %p449
      $region54: #{fastspeech2_forward.6} parent=51 // pred_check_branch
        %452 = sbr.rel (%p450) target = $region56
      $region55: #{fastspeech2_forward.6} parent=51 // pred_region
        %v453 = vld [vmem:[%s411] sm:$0xff]
        %v454 = vld [vmem:[%s411 + $0x8] sm:$0xff]
        %v455 = vld [vmem:[%s411 + $0x10] sm:$0xff]
        %vm456 = vcmask 261120
        %457 = vst.msk [vmem:[%s448] sm:$0xff] %vm456, %v453
        %458 = vst.msk [vmem:[%s448 + $0x8] sm:$0xff] %vm456, %v454
        %459 = vst.msk [vmem:[%s448 + $0x10] sm:$0xff] %vm456, %v455
      $region56: #{fastspeech2_forward.6} parent=51 // pred_fallthru
        _
      %v460 = vld [vmem:[%s448] sm:$0xff]
      %v461 = vld [vmem:[%s448 + $0x8] sm:$0xff]
      %v462 = vld [vmem:[%s448 + $0x10] sm:$0xff]
      %v463 = vld [vmem:[%s414] sm:$0x1]
      %v464 = vld [vmem:[%s419] sm:$0xff]
      %v465 = vld [vmem:[%s419 + $0x8] sm:$0xff]
      %v466 = vld [vmem:[%s419 + $0x10] sm:$0xff]
      %v467 = vsub.f32 1.0, %v464
      %v468 = vsub.f32 1.0, %v465
      %v469 = vsub.f32 1.0, %v466
      %v470 = vld [vmem:[%s424] sm:$0xff]
      %v471 = vld [vmem:[%s424 + $0x8] sm:$0xff]
      %v472 = vld [vmem:[%s424 + $0x10] sm:$0xff]
      %v473 = vld [vmem:[%s424 + $0x18] sm:$0xff]
      %v474 = vld [vmem:[%s429] sm:$0xff]
      %v475 = vld [vmem:[%s429 + $0x8] sm:$0xff]
      %v476 = vld [vmem:[%s429 + $0x10] sm:$0xff]
      %v477 = vld [vmem:[%s429 + $0x18] sm:$0xff]
      %v478 = vld [vmem:[%s434] sm:$0xff]
      %v479 = vld [vmem:[%s434 + $0x8] sm:$0xff]
      %v480 = vld [vmem:[%s434 + $0x10] sm:$0xff]
      %v481 = vld [vmem:[%s434 + $0x18] sm:$0xff]
      %v482 = vld [vmem:[%s434 + $0x20] sm:$0xff]
      %v483 = vld [vmem:[%s434 + $0x28] sm:$0xff]
      %v484 = vld [vmem:[%s434 + $0x30] sm:$0xff]
      %v485 = vld [vmem:[%s434 + $0x38] sm:$0xff]
      %v486 = vld [vmem:[%s434 + $0x40] sm:$0xff]
      %v487 = vld [vmem:[%s434 + $0x48] sm:$0xff]
      %v488 = vld [vmem:[%s434 + $0x50] sm:$0xff]
      %v489 = vld [vmem:[%s434 + $0x58] sm:$0xff]
      %v490 = vld [vmem:[%s434 + $0x60] sm:$0xff]
      %v491 = vld [vmem:[%s434 + $0x68] sm:$0xff]
      %v492 = vld [vmem:[%s434 + $0x70] sm:$0xff]
      %v493 = vld [vmem:[%s434 + $0x78] sm:$0xff]
      %v494 = vld [vmem:[%s434 + $0x80] sm:$0xff]
      %v495 = vld [vmem:[%s434 + $0x88] sm:$0xff]
      %v496 = vld [vmem:[%s434 + $0x90] sm:$0xff]
      %v497 = vld [vmem:[%s434 + $0x98] sm:$0xff]
      %v498 = vld [vmem:[%s434 + $0xa0] sm:$0xff]
      %v499 = vld [vmem:[%s434 + $0xa8] sm:$0xff]
      %v500 = vld [vmem:[%s434 + $0xb0] sm:$0xff]
      %v501 = vld [vmem:[%s434 + $0xb8] sm:$0xff]
      %v502 = vld [vmem:[%s434 + $0xc0] sm:$0xff]
      %v503 = vld [vmem:[%s434 + $0xc8] sm:$0xff]
      %v504 = vld [vmem:[%s434 + $0xd0] sm:$0xff]
      %v505 = vld [vmem:[%s434 + $0xd8] sm:$0xff]
      %v506 = vld [vmem:[%s434 + $0xe0] sm:$0xff]
      %v507 = vld [vmem:[%s434 + $0xe8] sm:$0xff]
      %v508 = vld [vmem:[%s434 + $0xf0] sm:$0xff]
      %v509 = vld [vmem:[%s434 + $0xf8] sm:$0xff]
      %v510 = vld [vmem:[%s434 + $0x100] sm:$0xff]
      %v511 = vld [vmem:[%s434 + $0x108] sm:$0xff]
      %v512 = vld [vmem:[%s434 + $0x110] sm:$0xff]
      %v513 = vld [vmem:[%s434 + $0x118] sm:$0xff]
      %v514 = vld [vmem:[%s439] sm:$0xff]
      %v515 = vld [vmem:[%s439 + $0x8] sm:$0xff]
      %v516 = vld [vmem:[%s439 + $0x10] sm:$0xff]
      %v517 = vld [vmem:[%s439 + $0x18] sm:$0xff]
      %v518 = vld [vmem:[%s439 + $0x20] sm:$0xff]
      %v519 = vld [vmem:[%s439 + $0x28] sm:$0xff]
      %v520 = vld [vmem:[%s439 + $0x30] sm:$0xff]
      %v521 = vld [vmem:[%s439 + $0x38] sm:$0xff]
      %v522 = vld [vmem:[%s443] sm:$0xff]
      %v523 = vlaneseq
      %v524 = vshrl.u32 %v523, 7
      %v525 = vsub.s32 0, %v524
      %v526 = vrot.slane %v522, %v525
      %vm527 = vcmask 261120
      %v529 = vsel %vm527, %v460, 0
      %v532 = vsel %vm527, %v461, 0
      %v535 = vsel %vm527, %v462, 0
      %537 = vmatprep.subr.mxu0 0.0
      %538 = vmatpush1.msra.mxu0 %v470
      %539 = vmatprep.subr.mxu0 0.0
      %540 = vmatpush1.msra.mxu0 %v471
      %541 = vmatprep.subr.mxu0 0.0
      %542 = vmatpush1.msra.mxu0 %v472
      %543 = vmatprep.subr.mxu0 0.0
      %544 = vmatpush1.msra.mxu0 %v473
      %545 = vmatprep.subr.mxu0 0.0
      %546 = vmatpush1.msra.mxu0 0.0
      %547 = vmatprep.subr.mxu0 0.0
      %548 = vmatpush1.msra.mxu0 0.0
      %549 = vmatprep.subr.mxu0 0.0
      %550 = vmatpush1.msra.mxu0 0.0
      %551 = vmatprep.subr.mxu0 0.0
      %552 = vmatpush1.msra.mxu0 0.0
      %553 = vmatprep.subr.mxu0 0.0
      %554 = vmatpush1.msra.mxu0 0.0
      %555 = vmatprep.subr.mxu0 0.0
      %556 = vmatpush1.msra.mxu0 0.0
      %557 = vmatprep.subr.mxu0 0.0
      %558 = vmatpush1.msra.mxu0 0.0
      %559 = vmatprep.subr.mxu0 0.0
      %560 = vmatpush1.msra.mxu0 0.0
      %561 = vmatprep.subr.mxu0 0.0
      %562 = vmatpush1.msra.mxu0 0.0
      %563 = vmatprep.subr.mxu0 0.0
      %564 = vmatpush1.msra.mxu0 0.0
      %565 = vmatprep.subr.mxu0 0.0
      %566 = vmatpush1.msra.mxu0 0.0
      %567 = vmatprep.subr.mxu0 0.0
      %568 = vmatpush1.msra.mxu0 0.0
      %569 = vmatprep.subr.mxu0 0.0
      %570 = vmatpush1.msra.mxu0 0.0
      %571 = vmatprep.subr.mxu0 0.0
      %572 = vmatpush1.msra.mxu0 0.0
      %573 = vmatprep.subr.mxu0 0.0
      %574 = vmatpush1.msra.mxu0 0.0
      %575 = vmatprep.subr.mxu0 0.0
      %576 = vmatpush1.msra.mxu0 0.0
      %577 = vmatprep.subr.mxu0 0.0
      %578 = vmatpush1.msra.mxu0 0.0
      %579 = vmatprep.subr.mxu0 0.0
      %580 = vmatpush1.msra.mxu0 0.0
      %581 = vmatprep.subr.mxu0 0.0
      %582 = vmatpush1.msra.mxu0 0.0
      %583 = vmatprep.subr.mxu0 0.0
      %584 = vmatpush1.msra.mxu0 0.0
      %585 = vmatprep.subr.mxu0 0.0
      %586 = vmatpush1.msra.mxu0 0.0
      %587 = vmatprep.subr.mxu0 0.0
      %588 = vmatpush1.msra.mxu0 0.0
      %589 = vmatprep.subr.mxu0 0.0
      %590 = vmatpush1.msra.mxu0 0.0
      %591 = vmatprep.subr.mxu0 0.0
      %592 = vmatpush1.msra.mxu0 0.0
      %593 = vmatprep.subr.mxu0 0.0
      %594 = vmatpush1.msra.mxu0 0.0
      %595 = vmatprep.subr.mxu0 0.0
      %596 = vmatpush1.msra.mxu0 0.0
      %597 = vmatprep.subr.mxu0 0.0
      %598 = vmatpush1.msra.mxu0 0.0
      %599 = vmatprep.subr.mxu0 0.0
      %600 = vmatpush1.msra.mxu0 0.0
      %601 = vmatprep.mubr.f32.mxu0 0.0
      %602 = vmatmul.mubr.f32.gmra.mrb[0].mxu0 %v529
      %v603 = vpop.f32.mrb[0].mxu0
      %v604 = vadd.f32 %v526, %v603
      %v605 = vpop.f32.mrb[0].mxu0
      %606 = vmatprep.mubr.f32.mxu0 0.0
      %607 = vmatmul.mubr.f32.gmra.mrb[0].mxu0 %v532
      %v608 = vpop.f32.mrb[0].mxu0
      %v609 = vadd.f32 %v526, %v608
      %v610 = vpop.f32.mrb[0].mxu0
      %611 = vmatprep.mubr.f32.mxu0 0.0
      %612 = vmatmul.mubr.f32.gmra.mrb[0].mxu0 %v535
      %v613 = vpop.f32.mrb[0].mxu0
      %v614 = vadd.f32 %v526, %v613
      %v615 = vpop.f32.mrb[0].mxu0
      %616 = vdwg.mxu0
      %620 = vrot.lane.b32.xlu0 %v604, 96
      %v621 = vpop.permute.xlu0 %620
      %622 = vrot.lane.b32.xlu0 %v609, 96
      %v623 = vpop.permute.xlu0 %622
      %624 = vrot.lane.b32.xlu0 %v614, 96
      %v625 = vpop.permute.xlu0 %624
      %vm626 = vcmask 130048
      %v627 = vsel %vm626, %v604, 0
      %v629 = vsel %vm626, %v609, 0
      %v631 = vsel %vm626, %v614, 0
      %v633 = vsel %vm626, %v621, 0
      %v635 = vsel %vm626, %v623, 0
      %v637 = vsel %vm626, %v625, 0
      %639 = vmatprep.subr.mxu0 0.0
      %640 = vmatpush1.xpose.msra.mxu0 %v633
      %641 = vmatprep.subr.mxu0 0.0
      %642 = vmatpush1.xpose.msra.mxu0 %v635
      %643 = vmatprep.subr.mxu0 0.0
      %644 = vmatpush1.xpose.msra.mxu0 %v637
      %645 = vmatprep.subr.mxu0 0.0
      %646 = vmatpush1.xpose.msra.mxu0 0.0
      %647 = vmatprep.subr.mxu0 0.0
      %648 = vmatpush1.xpose.msra.mxu0 0.0
      %649 = vmatprep.subr.mxu0 0.0
      %650 = vmatpush1.xpose.msra.mxu0 0.0
      %651 = vmatprep.subr.mxu0 0.0
      %652 = vmatpush1.xpose.msra.mxu0 0.0
      %653 = vmatprep.subr.mxu0 0.0
      %654 = vmatpush1.xpose.msra.mxu0 0.0
      %655 = vmatprep.subr.mxu0 0.0
      %656 = vmatpush1.xpose.msra.mxu0 0.0
      %657 = vmatprep.subr.mxu0 0.0
      %658 = vmatpush1.xpose.msra.mxu0 0.0
      %659 = vmatprep.subr.mxu0 0.0
      %660 = vmatpush1.xpose.msra.mxu0 0.0
      %661 = vmatprep.subr.mxu0 0.0
      %662 = vmatpush1.xpose.msra.mxu0 0.0
      %663 = vmatprep.subr.mxu0 0.0
      %664 = vmatpush1.xpose.msra.mxu0 0.0
      %665 = vmatprep.subr.mxu0 0.0
      %666 = vmatpush1.xpose.msra.mxu0 0.0
      %667 = vmatprep.subr.mxu0 0.0
      %668 = vmatpush1.xpose.msra.mxu0 0.0
      %669 = vmatprep.subr.mxu0 0.0
      %670 = vmatpush1.xpose.msra.mxu0 0.0
      %671 = vmatprep.subr.mxu0 0.0
      %672 = vmatpush1.xpose.msra.mxu0 0.0
      %673 = vmatprep.subr.mxu0 0.0
      %674 = vmatpush1.xpose.msra.mxu0 0.0
      %675 = vmatprep.subr.mxu0 0.0
      %676 = vmatpush1.xpose.msra.mxu0 0.0
      %677 = vmatprep.subr.mxu0 0.0
      %678 = vmatpush1.xpose.msra.mxu0 0.0
      %679 = vmatprep.subr.mxu0 0.0
      %680 = vmatpush1.xpose.msra.mxu0 0.0
      %681 = vmatprep.subr.mxu0 0.0
      %682 = vmatpush1.xpose.msra.mxu0 0.0
      %683 = vmatprep.subr.mxu0 0.0
      %684 = vmatpush1.xpose.msra.mxu0 0.0
      %685 = vmatprep.subr.mxu0 0.0
      %686 = vmatpush1.xpose.msra.mxu0 0.0
      %687 = vmatprep.subr.mxu0 0.0
      %688 = vmatpush1.xpose.msra.mxu0 0.0
      %689 = vmatprep.subr.mxu0 0.0
      %690 = vmatpush1.xpose.msra.mxu0 0.0
      %691 = vmatprep.subr.mxu0 0.0
      %692 = vmatpush1.xpose.msra.mxu0 0.0
      %693 = vmatprep.subr.mxu0 0.0
      %694 = vmatpush1.xpose.msra.mxu0 0.0
      %695 = vmatprep.subr.mxu0 0.0
      %696 = vmatpush1.xpose.msra.mxu0 0.0
      %697 = vmatprep.subr.mxu0 0.0
      %698 = vmatpush1.xpose.msra.mxu0 0.0
      %699 = vmatprep.subr.mxu0 0.0
      %700 = vmatpush1.xpose.msra.mxu0 0.0
      %701 = vmatprep.subr.mxu0 0.0
      %702 = vmatpush1.xpose.msra.mxu0 0.0
      %703 = vmatprep.mubr.f32.mxu0 0.0
      %704 = vmatmul.mubr.f32.gmra.mrb[0].mxu0 %v627
      %v705 = vpop.f32.mrb[0].mxu0
      %v706 = vadd.f32 0.0, %v705
      %v707 = vpop.f32.mrb[0].mxu0
      %708 = vmatprep.mubr.f32.mxu0 0.0
      %709 = vmatmul.mubr.f32.gmra.mrb[0].mxu0 %v629
      %v710 = vpop.f32.mrb[0].mxu0
      %v711 = vadd.f32 0.0, %v710
      %v712 = vpop.f32.mrb[0].mxu0
      %713 = vmatprep.mubr.f32.mxu0 0.0
      %714 = vmatmul.mubr.f32.gmra.mrb[0].mxu0 %v631
      %v715 = vpop.f32.mrb[0].mxu0
      %v716 = vadd.f32 0.0, %v715
      %v717 = vpop.f32.mrb[0].mxu0
      %718 = vdwg.mxu0
      %vm719 = vcmp.gt.f32.partialorder %v463, 0.5
      %v720 = vsel %vm719, 1, 0
      %v721 = vlaneseq
      %v722 = vshrl.u32 %v721, 7
      %v723 = vsub.s32 0, %v722
      %v724 = vrot.slane %v720, %v723
      %vm725 = vcmp.eq.s32.totalorder %v724, 1
      %v726 = vsel %vm725, -1e+30, %v706
      %v727 = vsel %vm725, -1e+30, %v711
      %v728 = vsel %vm725, -1e+30, %v716
      %vm729 = vcmask 195584
      %v730 = vsel %vm729, %v726, -inf
      %731 = vmax.xlane.f32.xlu0 %v730
      %v732 = vpop.xlane.xlu0 %731
      %v733 = vsel %vm729, %v727, -inf
      %734 = vmax.xlane.f32.xlu0 %v733
      %v735 = vpop.xlane.xlu0 %734
      %v736 = vsel %vm729, %v728, -inf
      %737 = vmax.xlane.f32.xlu0 %v736
      %v738 = vpop.xlane.xlu0 %737
      %v739 = vsub.f32 %v726, %v732
      %v740 = vsub.f32 %v727, %v735
      %v741 = vsub.f32 %v728, %v738
      %v742 = vmul.f32 %v739, 1.442695
      %v743 = vpow.pop %v742
      %v744 = vmul.f32 %v740, 1.442695
      %v745 = vpow.pop %v744
      %v746 = vmul.f32 %v741, 1.442695
      %v747 = vpow.pop %v746
      %v748 = vsel %vm729, %v743, 0.0
      %749 = vadd.xlane.f32.xlu0 %v748
      %v750 = vpop.xlane.xlu0 %749
      %v751 = vsel %vm729, %v745, 0.0
      %752 = vadd.xlane.f32.xlu0 %v751
      %v753 = vpop.xlane.xlu0 %752
      %v754 = vsel %vm729, %v747, 0.0
      %755 = vadd.xlane.f32.xlu0 %v754
      %v756 = vpop.xlane.xlu0 %755
      %v757 = vrcp.pop %v750
      %v758 = vrcp.pop %v753
      %v759 = vrcp.pop %v756
      %v760 = vmul.f32 %v743, %v757
      %v761 = vmul.f32 %v745, %v758
      %v762 = vmul.f32 %v747, %v759
      %763 = vrot.lane.b32.xlu0 %v604, 64
      %v764 = vpop.permute.xlu0 %763
      %765 = vrot.lane.b32.xlu0 %v609, 64
      %v766 = vpop.permute.xlu0 %765
      %767 = vrot.lane.b32.xlu0 %v614, 64
      %v768 = vpop.permute.xlu0 %767
      %v773 = vsel %vm729, %v760, 0
      %v776 = vsel %vm729, %v761, 0
      %v779 = vsel %vm729, %v762, 0
      %781 = vmatprep.subr.mxu0 0.0
      %782 = vmatpush1.msra.mxu0 %v764
      %783 = vmatprep.subr.mxu0 0.0
      %784 = vmatpush1.msra.mxu0 %v766
      %785 = vmatprep.subr.mxu0 0.0
      %786 = vmatpush1.msra.mxu0 %v768
      %787 = vmatprep.subr.mxu0 0.0
      %788 = vmatpush1.msra.mxu0 0.0
      %789 = vmatprep.subr.mxu0 0.0
      %790 = vmatpush1.msra.mxu0 0.0
      %791 = vmatprep.subr.mxu0 0.0
      %792 = vmatpush1.msra.mxu0 0.0
      %793 = vmatprep.subr.mxu0 0.0
      %794 = vmatpush1.msra.mxu0 0.0
      %795 = vmatprep.subr.mxu0 0.0
      %796 = vmatpush1.msra.mxu0 0.0
      %797 = vmatprep.subr.mxu0 0.0
      %798 = vmatpush1.msra.mxu0 0.0
      %799 = vmatprep.subr.mxu0 0.0
      %800 = vmatpush1.msra.mxu0 0.0
      %801 = vmatprep.subr.mxu0 0.0
      %802 = vmatpush1.msra.mxu0 0.0
      %803 = vmatprep.subr.mxu0 0.0
      %804 = vmatpush1.msra.mxu0 0.0
      %805 = vmatprep.subr.mxu0 0.0
      %806 = vmatpush1.msra.mxu0 0.0
      %807 = vmatprep.subr.mxu0 0.0
      %808 = vmatpush1.msra.mxu0 0.0
      %809 = vmatprep.subr.mxu0 0.0
      %810 = vmatpush1.msra.mxu0 0.0
      %811 = vmatprep.subr.mxu0 0.0
      %812 = vmatpush1.msra.mxu0 0.0
      %813 = vmatprep.subr.mxu0 0.0
      %814 = vmatpush1.msra.mxu0 0.0
      %815 = vmatprep.subr.mxu0 0.0
      %816 = vmatpush1.msra.mxu0 0.0
      %817 = vmatprep.subr.mxu0 0.0
      %818 = vmatpush1.msra.mxu0 0.0
      %819 = vmatprep.subr.mxu0 0.0
      %820 = vmatpush1.msra.mxu0 0.0
      %821 = vmatprep.subr.mxu0 0.0
      %822 = vmatpush1.msra.mxu0 0.0
      %823 = vmatprep.subr.mxu0 0.0
      %824 = vmatpush1.msra.mxu0 0.0
      %825 = vmatprep.subr.mxu0 0.0
      %826 = vmatpush1.msra.mxu0 0.0
      %827 = vmatprep.subr.mxu0 0.0
      %828 = vmatpush1.msra.mxu0 0.0
      %829 = vmatprep.subr.mxu0 0.0
      %830 = vmatpush1.msra.mxu0 0.0
      %831 = vmatprep.subr.mxu0 0.0
      %832 = vmatpush1.msra.mxu0 0.0
      %833 = vmatprep.subr.mxu0 0.0
      %834 = vmatpush1.msra.mxu0 0.0
      %835 = vmatprep.subr.mxu0 0.0
      %836 = vmatpush1.msra.mxu0 0.0
      %837 = vmatprep.subr.mxu0 0.0
      %838 = vmatpush1.msra.mxu0 0.0
      %839 = vmatprep.subr.mxu0 0.0
      %840 = vmatpush1.msra.mxu0 0.0
      %841 = vmatprep.subr.mxu0 0.0
      %842 = vmatpush1.msra.mxu0 0.0
      %843 = vmatprep.subr.mxu0 0.0
      %844 = vmatpush1.msra.mxu0 0.0
      %845 = vmatprep.mubr.f32.mxu0 0.0
      %846 = vmatmul.mubr.f32.gmra.mrb[0].mxu0 %v773
      %v847 = vpop.f32.mrb[0].mxu0
      %v848 = vadd.f32 0.0, %v847
      %v849 = vpop.f32.mrb[0].mxu0
      %850 = vmatprep.mubr.f32.mxu0 0.0
      %851 = vmatmul.mubr.f32.gmra.mrb[0].mxu0 %v776
      %v852 = vpop.f32.mrb[0].mxu0
      %v853 = vadd.f32 0.0, %v852
      %v854 = vpop.f32.mrb[0].mxu0
      %855 = vmatprep.mubr.f32.mxu0 0.0
      %856 = vmatmul.mubr.f32.gmra.mrb[0].mxu0 %v779
      %v857 = vpop.f32.mrb[0].mxu0
      %v858 = vadd.f32 0.0, %v857
      %v859 = vpop.f32.mrb[0].mxu0
      %860 = vdwg.mxu0
      %861 = vrot.lane.b32.xlu0 %v604, 112
      %v862 = vpop.permute.xlu0 %861
      %863 = vrot.lane.b32.xlu0 %v609, 112
      %v864 = vpop.permute.xlu0 %863
      %865 = vrot.lane.b32.xlu0 %v614, 112
      %v866 = vpop.permute.xlu0 %865
      %867 = vrot.lane.b32.xlu0 %v604, 80
      %v868 = vpop.permute.xlu0 %867
      %869 = vrot.lane.b32.xlu0 %v609, 80
      %v870 = vpop.permute.xlu0 %869
      %871 = vrot.lane.b32.xlu0 %v614, 80
      %v872 = vpop.permute.xlu0 %871
      %v873 = vsel %vm626, %v862, 0
      %v875 = vsel %vm626, %v864, 0
      %v877 = vsel %vm626, %v866, 0
      %v879 = vsel %vm626, %v868, 0
      %v881 = vsel %vm626, %v870, 0
      %v883 = vsel %vm626, %v872, 0
      %885 = vmatprep.subr.mxu0 0.0
      %886 = vmatpush1.xpose.msra.mxu0 %v879
      %887 = vmatprep.subr.mxu0 0.0
      %888 = vmatpush1.xpose.msra.mxu0 %v881
      %889 = vmatprep.subr.mxu0 0.0
      %890 = vmatpush1.xpose.msra.mxu0 %v883
      %891 = vmatprep.subr.mxu0 0.0
      %892 = vmatpush1.xpose.msra.mxu0 0.0
      %893 = vmatprep.subr.mxu0 0.0
      %894 = vmatpush1.xpose.msra.mxu0 0.0
      %895 = vmatprep.subr.mxu0 0.0
      %896 = vmatpush1.xpose.msra.mxu0 0.0
      %897 = vmatprep.subr.mxu0 0.0
      %898 = vmatpush1.xpose.msra.mxu0 0.0
      %899 = vmatprep.subr.mxu0 0.0
      %900 = vmatpush1.xpose.msra.mxu0 0.0
      %901 = vmatprep.subr.mxu0 0.0
      %902 = vmatpush1.xpose.msra.mxu0 0.0
      %903 = vmatprep.subr.mxu0 0.0
      %904 = vmatpush1.xpose.msra.mxu0 0.0
      %905 = vmatprep.subr.mxu0 0.0
      %906 = vmatpush1.xpose.msra.mxu0 0.0
      %907 = vmatprep.subr.mxu0 0.0
      %908 = vmatpush1.xpose.msra.mxu0 0.0
      %909 = vmatprep.subr.mxu0 0.0
      %910 = vmatpush1.xpose.msra.mxu0 0.0
      %911 = vmatprep.subr.mxu0 0.0
      %912 = vmatpush1.xpose.msra.mxu0 0.0
      %913 = vmatprep.subr.mxu0 0.0
      %914 = vmatpush1.xpose.msra.mxu0 0.0
      %915 = vmatprep.subr.mxu0 0.0
      %916 = vmatpush1.xpose.msra.mxu0 0.0
      %917 = vmatprep.subr.mxu0 0.0
      %918 = vmatpush1.xpose.msra.mxu0 0.0
      %919 = vmatprep.subr.mxu0 0.0
      %920 = vmatpush1.xpose.msra.mxu0 0.0
      %921 = vmatprep.subr.mxu0 0.0
      %922 = vmatpush1.xpose.msra.mxu0 0.0
      %923 = vmatprep.subr.mxu0 0.0
      %924 = vmatpush1.xpose.msra.mxu0 0.0
      %925 = vmatprep.subr.mxu0 0.0
      %926 = vmatpush1.xpose.msra.mxu0 0.0
      %927 = vmatprep.subr.mxu0 0.0
      %928 = vmatpush1.xpose.msra.mxu0 0.0
      %929 = vmatprep.subr.mxu0 0.0
      %930 = vmatpush1.xpose.msra.mxu0 0.0
      %931 = vmatprep.subr.mxu0 0.0
      %932 = vmatpush1.xpose.msra.mxu0 0.0
      %933 = vmatprep.subr.mxu0 0.0
      %934 = vmatpush1.xpose.msra.mxu0 0.0
      %935 = vmatprep.subr.mxu0 0.0
      %936 = vmatpush1.xpose.msra.mxu0 0.0
      %937 = vmatprep.subr.mxu0 0.0
      %938 = vmatpush1.xpose.msra.mxu0 0.0
      %939 = vmatprep.subr.mxu0 0.0
      %940 = vmatpush1.xpose.msra.mxu0 0.0
      %941 = vmatprep.subr.mxu0 0.0
      %942 = vmatpush1.xpose.msra.mxu0 0.0
      %943 = vmatprep.subr.mxu0 0.0
      %944 = vmatpush1.xpose.msra.mxu0 0.0
      %945 = vmatprep.subr.mxu0 0.0
      %946 = vmatpush1.xpose.msra.mxu0 0.0
      %947 = vmatprep.subr.mxu0 0.0
      %948 = vmatpush1.xpose.msra.mxu0 0.0
      %949 = vmatprep.mubr.f32.mxu0 0.0
      %950 = vmatmul.mubr.f32.gmra.mrb[0].mxu0 %v873
      %v951 = vpop.f32.mrb[0].mxu0
      %v952 = vadd.f32 0.0, %v951
      %v953 = vpop.f32.mrb[0].mxu0
      %954 = vmatprep.mubr.f32.mxu0 0.0
      %955 = vmatmul.mubr.f32.gmra.mrb[0].mxu0 %v875
      %v956 = vpop.f32.mrb[0].mxu0
      %v957 = vadd.f32 0.0, %v956
      %v958 = vpop.f32.mrb[0].mxu0
      %959 = vmatprep.mubr.f32.mxu0 0.0
      %960 = vmatmul.mubr.f32.gmra.mrb[0].mxu0 %v877
      %v961 = vpop.f32.mrb[0].mxu0
      %v962 = vadd.f32 0.0, %v961
      %v963 = vpop.f32.mrb[0].mxu0
      %964 = vdwg.mxu0
      %v965 = vsel %vm725, -1e+30, %v952
      %v966 = vsel %vm725, -1e+30, %v957
      %v967 = vsel %vm725, -1e+30, %v962
      %v968 = vsel %vm729, %v965, -inf
      %969 = vmax.xlane.f32.xlu0 %v968
      %v970 = vpop.xlane.xlu0 %969
      %v971 = vsel %vm729, %v966, -inf
      %972 = vmax.xlane.f32.xlu0 %v971
      %v973 = vpop.xlane.xlu0 %972
      %v974 = vsel %vm729, %v967, -inf
      %975 = vmax.xlane.f32.xlu0 %v974
      %v976 = vpop.xlane.xlu0 %975
      %v977 = vsub.f32 %v965, %v970
      %v978 = vsub.f32 %v966, %v973
      %v979 = vsub.f32 %v967, %v976
      %v980 = vmul.f32 %v977, 1.442695
      %v981 = vpow.pop %v980
      %v982 = vmul.f32 %v978, 1.442695
      %v983 = vpow.pop %v982
      %v984 = vmul.f32 %v979, 1.442695
      %v985 = vpow.pop %v984
      %v986 = vsel %vm729, %v981, 0.0
      %987 = vadd.xlane.f32.xlu0 %v986
      %v988 = vpop.xlane.xlu0 %987
      %v989 = vsel %vm729, %v983, 0.0
      %990 = vadd.xlane.f32.xlu0 %v989
      %v991 = vpop.xlane.xlu0 %990
      %v992 = vsel %vm729, %v985, 0.0
      %993 = vadd.xlane.f32.xlu0 %v992
      %v994 = vpop.xlane.xlu0 %993
      %v995 = vrcp.pop %v988
      %v996 = vrcp.pop %v991
      %v997 = vrcp.pop %v994
      %v998 = vmul.f32 %v981, %v995
      %v999 = vmul.f32 %v983, %v996
      %v1000 = vmul.f32 %v985, %v997
      %1001 = vrot.lane.b32.xlu0 %v604, 48
      %v1002 = vpop.permute.xlu0 %1001
      %1003 = vrot.lane.b32.xlu0 %v609, 48
      %v1004 = vpop.permute.xlu0 %1003
      %1005 = vrot.lane.b32.xlu0 %v614, 48
      %v1006 = vpop.permute.xlu0 %1005
      %v1011 = vsel %vm729, %v998, 0
      %v1014 = vsel %vm729, %v999, 0
      %v1017 = vsel %vm729, %v1000, 0
      %1019 = vmatprep.subr.mxu0 0.0
      %1020 = vmatpush1.msra.mxu0 %v1002
      %1021 = vmatprep.subr.mxu0 0.0
      %1022 = vmatpush1.msra.mxu0 %v1004
      %1023 = vmatprep.subr.mxu0 0.0
      %1024 = vmatpush1.msra.mxu0 %v1006
      %1025 = vmatprep.subr.mxu0 0.0
      %1026 = vmatpush1.msra.mxu0 0.0
      %1027 = vmatprep.subr.mxu0 0.0
      %1028 = vmatpush1.msra.mxu0 0.0
      %1029 = vmatprep.subr.mxu0 0.0
      %1030 = vmatpush1.msra.mxu0 0.0
      %1031 = vmatprep.subr.mxu0 0.0
      %1032 = vmatpush1.msra.mxu0 0.0
      %1033 = vmatprep.subr.mxu0 0.0
      %1034 = vmatpush1.msra.mxu0 0.0
      %1035 = vmatprep.subr.mxu0 0.0
      %1036 = vmatpush1.msra.mxu0 0.0
      %1037 = vmatprep.subr.mxu0 0.0
      %1038 = vmatpush1.msra.mxu0 0.0
      %1039 = vmatprep.subr.mxu0 0.0
      %1040 = vmatpush1.msra.mxu0 0.0
      %1041 = vmatprep.subr.mxu0 0.0
      %1042 = vmatpush1.msra.mxu0 0.0
      %1043 = vmatprep.subr.mxu0 0.0
      %1044 = vmatpush1.msra.mxu0 0.0
      %1045 = vmatprep.subr.mxu0 0.0
      %1046 = vmatpush1.msra.mxu0 0.0
      %1047 = vmatprep.subr.mxu0 0.0
      %1048 = vmatpush1.msra.mxu0 0.0
      %1049 = vmatprep.subr.mxu0 0.0
      %1050 = vmatpush1.msra.mxu0 0.0
      %1051 = vmatprep.subr.mxu0 0.0
      %1052 = vmatpush1.msra.mxu0 0.0
      %1053 = vmatprep.subr.mxu0 0.0
      %1054 = vmatpush1.msra.mxu0 0.0
      %1055 = vmatprep.subr.mxu0 0.0
      %1056 = vmatpush1.msra.mxu0 0.0
      %1057 = vmatprep.subr.mxu0 0.0
      %1058 = vmatpush1.msra.mxu0 0.0
      %1059 = vmatprep.subr.mxu0 0.0
      %1060 = vmatpush1.msra.mxu0 0.0
      %1061 = vmatprep.subr.mxu0 0.0
      %1062 = vmatpush1.msra.mxu0 0.0
      %1063 = vmatprep.subr.mxu0 0.0
      %1064 = vmatpush1.msra.mxu0 0.0
      %1065 = vmatprep.subr.mxu0 0.0
      %1066 = vmatpush1.msra.mxu0 0.0
      %1067 = vmatprep.subr.mxu0 0.0
      %1068 = vmatpush1.msra.mxu0 0.0
      %1069 = vmatprep.subr.mxu0 0.0
      %1070 = vmatpush1.msra.mxu0 0.0
      %1071 = vmatprep.subr.mxu0 0.0
      %1072 = vmatpush1.msra.mxu0 0.0
      %1073 = vmatprep.subr.mxu0 0.0
      %1074 = vmatpush1.msra.mxu0 0.0
      %1075 = vmatprep.subr.mxu0 0.0
      %1076 = vmatpush1.msra.mxu0 0.0
      %1077 = vmatprep.subr.mxu0 0.0
      %1078 = vmatpush1.msra.mxu0 0.0
      %1079 = vmatprep.subr.mxu0 0.0
      %1080 = vmatpush1.msra.mxu0 0.0
      %1081 = vmatprep.subr.mxu0 0.0
      %1082 = vmatpush1.msra.mxu0 0.0
      %1083 = vmatprep.mubr.f32.mxu0 0.0
      %1084 = vmatmul.mubr.f32.gmra.mrb[0].mxu0 %v1011
      %v1085 = vpop.f32.mrb[0].mxu0
      %v1086 = vadd.f32 0.0, %v1085
      %v1087 = vpop.f32.mrb[0].mxu0
      %1088 = vmatprep.mubr.f32.mxu0 0.0
      %1089 = vmatmul.mubr.f32.gmra.mrb[0].mxu0 %v1014
      %v1090 = vpop.f32.mrb[0].mxu0
      %v1091 = vadd.f32 0.0, %v1090
      %v1092 = vpop.f32.mrb[0].mxu0
      %1093 = vmatprep.mubr.f32.mxu0 0.0
      %1094 = vmatmul.mubr.f32.gmra.mrb[0].mxu0 %v1017
      %v1095 = vpop.f32.mrb[0].mxu0
      %v1096 = vadd.f32 0.0, %v1095
      %v1097 = vpop.f32.mrb[0].mxu0
      %1098 = vdwg.mxu0
      %1102 = vrot.lane.b32.xlu0 %v1086, 16
      %v1103 = vpop.permute.xlu0 %1102
      %1104 = vrot.lane.b32.xlu0 %v1091, 16
      %v1105 = vpop.permute.xlu0 %1104
      %1106 = vrot.lane.b32.xlu0 %v1096, 16
      %v1107 = vpop.permute.xlu0 %1106
      %v1111 = vsel %vm626, %v848, %v1103
      %v1112 = vsel %vm626, %v853, %v1105
      %v1113 = vsel %vm626, %v858, %v1107
      %v1114 = vlaneseq
      %v1115 = vshrl.u32 %v1114, 7
      %v1116 = vsub.s32 1, %v1115
      %v1117 = vrot.slane %v522, %v1116
      %v1119 = vsel %vm527, %v1111, 0
      %v1122 = vsel %vm527, %v1112, 0
      %v1125 = vsel %vm527, %v1113, 0
      %1127 = vmatprep.subr.mxu0 0.0
      %1128 = vmatpush1.msra.mxu0 %v474
      %1129 = vmatprep.subr.mxu0 0.0
      %1130 = vmatpush1.msra.mxu0 %v475
      %1131 = vmatprep.subr.mxu0 0.0
      %1132 = vmatpush1.msra.mxu0 %v476
      %1133 = vmatprep.subr.mxu0 0.0
      %1134 = vmatpush1.msra.mxu0 %v477
      %1135 = vmatprep.subr.mxu0 0.0
      %1136 = vmatpush1.msra.mxu0 0.0
      %1137 = vmatprep.subr.mxu0 0.0
      %1138 = vmatpush1.msra.mxu0 0.0
      %1139 = vmatprep.subr.mxu0 0.0
      %1140 = vmatpush1.msra.mxu0 0.0
      %1141 = vmatprep.subr.mxu0 0.0
      %1142 = vmatpush1.msra.mxu0 0.0
      %1143 = vmatprep.subr.mxu0 0.0
      %1144 = vmatpush1.msra.mxu0 0.0
      %1145 = vmatprep.subr.mxu0 0.0
      %1146 = vmatpush1.msra.mxu0 0.0
      %1147 = vmatprep.subr.mxu0 0.0
      %1148 = vmatpush1.msra.mxu0 0.0
      %1149 = vmatprep.subr.mxu0 0.0
      %1150 = vmatpush1.msra.mxu0 0.0
      %1151 = vmatprep.subr.mxu0 0.0
      %1152 = vmatpush1.msra.mxu0 0.0
      %1153 = vmatprep.subr.mxu0 0.0
      %1154 = vmatpush1.msra.mxu0 0.0
      %1155 = vmatprep.subr.mxu0 0.0
      %1156 = vmatpush1.msra.mxu0 0.0
      %1157 = vmatprep.subr.mxu0 0.0
      %1158 = vmatpush1.msra.mxu0 0.0
      %1159 = vmatprep.subr.mxu0 0.0
      %1160 = vmatpush1.msra.mxu0 0.0
      %1161 = vmatprep.subr.mxu0 0.0
      %1162 = vmatpush1.msra.mxu0 0.0
      %1163 = vmatprep.subr.mxu0 0.0
      %1164 = vmatpush1.msra.mxu0 0.0
      %1165 = vmatprep.subr.mxu0 0.0
      %1166 = vmatpush1.msra.mxu0 0.0
      %1167 = vmatprep.subr.mxu0 0.0
      %1168 = vmatpush1.msra.mxu0 0.0
      %1169 = vmatprep.subr.mxu0 0.0
      %1170 = vmatpush1.msra.mxu0 0.0
      %1171 = vmatprep.subr.mxu0 0.0
      %1172 = vmatpush1.msra.mxu0 0.0
      %1173 = vmatprep.subr.mxu0 0.0
      %1174 = vmatpush1.msra.mxu0 0.0
      %1175 = vmatprep.subr.mxu0 0.0
      %1176 = vmatpush1.msra.mxu0 0.0
      %1177 = vmatprep.subr.mxu0 0.0
      %1178 = vmatpush1.msra.mxu0 0.0
      %1179 = vmatprep.subr.mxu0 0.0
      %1180 = vmatpush1.msra.mxu0 0.0
      %1181 = vmatprep.subr.mxu0 0.0
      %1182 = vmatpush1.msra.mxu0 0.0
      %1183 = vmatprep.subr.mxu0 0.0
      %1184 = vmatpush1.msra.mxu0 0.0
      %1185 = vmatprep.subr.mxu0 0.0
      %1186 = vmatpush1.msra.mxu0 0.0
      %1187 = vmatprep.subr.mxu0 0.0
      %1188 = vmatpush1.msra.mxu0 0.0
      %1189 = vmatprep.subr.mxu0 0.0
      %1190 = vmatpush1.msra.mxu0 0.0
      %1191 = vmatprep.mubr.f32.mxu0 0.0
      %1192 = vmatmul.mubr.f32.gmra.mrb[0].mxu0 %v1119
      %v1193 = vpop.f32.mrb[0].mxu0
      %v1194 = vadd.f32 %v1117, %v1193
      %v1195 = vpop.f32.mrb[0].mxu0
      %1196 = vmatprep.mubr.f32.mxu0 0.0
      %1197 = vmatmul.mubr.f32.gmra.mrb[0].mxu0 %v1122
      %v1198 = vpop.f32.mrb[0].mxu0
      %v1199 = vadd.f32 %v1117, %v1198
      %v1200 = vpop.f32.mrb[0].mxu0
      %1201 = vmatprep.mubr.f32.mxu0 0.0
      %1202 = vmatmul.mubr.f32.gmra.mrb[0].mxu0 %v1125
      %v1203 = vpop.f32.mrb[0].mxu0
      %v1204 = vadd.f32 %v1117, %v1203
      %v1205 = vpop.f32.mrb[0].mxu0
      %1206 = vdwg.mxu0
      %v1207 = vadd.f32 %v1194, %v460
      %v1208 = vadd.f32 %v1199, %v461
      %v1209 = vadd.f32 %v1204, %v462
      %v1210 = vsel %vm527, %v1207, 0.0
      %1211 = vadd.xlane.f32.xlu0 %v1210
      %v1212 = vpop.xlane.xlu0 %1211
      %v1213 = vsel %vm527, %v1208, 0.0
      %1214 = vadd.xlane.f32.xlu0 %v1213
      %v1215 = vpop.xlane.xlu0 %1214
      %v1216 = vsel %vm527, %v1209, 0.0
      %1217 = vadd.xlane.f32.xlu0 %v1216
      %v1218 = vpop.xlane.xlu0 %1217
      %v1219 = vrcp.pop 32.0
      %v1220 = vmul.f32 %v1212, %v1219
      %v1221 = vmul.f32 %v1215, %v1219
      %v1222 = vmul.f32 %v1218, %v1219
      %v1223 = vsub.f32 %v1207, %v1220
      %v1224 = vsub.f32 %v1208, %v1221
      %v1225 = vsub.f32 %v1209, %v1222
      %v1226 = vmul.f32 %v1223, %v1223
      %v1227 = vmul.f32 %v1224, %v1224
      %v1228 = vmul.f32 %v1225, %v1225
      %v1229 = vsel %vm527, %v1226, 0.0
      %1230 = vadd.xlane.f32.xlu0 %v1229
      %v1231 = vpop.xlane.xlu0 %1230
      %v1232 = vsel %vm527, %v1227, 0.0
      %1233 = vadd.xlane.f32.xlu0 %v1232
      %v1234 = vpop.xlane.xlu0 %1233
      %v1235 = vsel %vm527, %v1228, 0.0
      %1236 = vadd.xlane.f32.xlu0 %v1235
      %v1237 = vpop.xlane.xlu0 %1236
      %v1238 = vmul.f32 %v1231, %v1219
      %v1239 = vmul.f32 %v1234, %v1219
      %v1240 = vmul.f32 %v1237, %v1219
      %v1241 = vadd.f32 %v1238, 1e-05
      %v1242 = vadd.f32 %v1239, 1e-05
      %v1243 = vadd.f32 %v1240, 1e-05
      %v1244 = vrsqrt.pop %v1241
      %v1245 = vrsqrt.pop %v1242
      %v1246 = vrsqrt.pop %v1243
      %v1247 = vmul.f32 %v1223, %v1244
      %v1248 = vmul.f32 %v1224, %v1245
      %v1249 = vmul.f32 %v1225, %v1246
      %v1250 = vlaneseq
      %v1251 = vshrl.u32 %v1250, 7
      %v1252 = vsub.s32 2, %v1251
      %v1253 = vrot.slane %v522, %v1252
      %v1254 = vmul.f32 %v1247, %v1253
      %v1255 = vmul.f32 %v1248, %v1253
      %v1256 = vmul.f32 %v1249, %v1253
      %v1257 = vlaneseq
      %v1258 = vshrl.u32 %v1257, 7
      %v1259 = vsub.s32 3, %v1258
      %v1260 = vrot.slane %v522, %v1259
      %v1261 = vadd.f32 %v1254, %v1260
      %v1262 = vadd.f32 %v1255, %v1260
      %v1263 = vadd.f32 %v1256, %v1260
      %1265 = vset.pattern.permute.xlu0 0
      %1266 = vperm.xlu0 %1265, %v467
      %v1267 = vpop.permute.xlu0 %1266
      %1270 = vset.pattern.permute.xlu0 0
      %1271 = vperm.xlu0 %1270, %v468
      %v1272 = vpop.permute.xlu0 %1271
      %1275 = vset.pattern.permute.xlu0 0
      %1276 = vperm.xlu0 %1275, %v469
      %v1277 = vpop.permute.xlu0 %1276
      %v1279 = vmul.f32 %v1261, %v1267
      %v1280 = vmul.f32 %v1262, %v1272
      %v1281 = vmul.f32 %v1263, %v1277
      %vm1285 = vcmask 1043456
      %v1286 = vrot.slane %v1279, 4
      %v1287 = vrot.slane %v1280, 4
      %v1288 = vsel %vm1285, %v1286, %v1287
      %v1289 = vrot.slane %v1281, 4
      %v1290 = vsel %vm1285, %v1287, %v1289
      %v1295 = vsel %vm1285, 0.0, %v1286
      %v1296 = vsel %vm1285, %v1289, 0.0
      %vm1299 = vcmask 1046528
      %v1300 = vrot.slane %v1295, 1
      %v1301 = vrot.slane %v1288, 1
      %v1302 = vsel %vm1299, %v1300, %v1301
      %v1303 = vrot.slane %v1290, 1
      %v1304 = vsel %vm1299, %v1301, %v1303
      %v1305 = vrot.slane %v1296, 1
      %v1306 = vsel %vm1299, %v1303, %v1305
      %1307 = vrot.lane.b32.xlu0 %v1302, 32
      %v1308 = vpop.permute.xlu0 %1307
      %1309 = vrot.lane.b32.xlu0 %v1304, 32
      %v1310 = vpop.permute.xlu0 %1309
      %1311 = vrot.lane.b32.xlu0 %v1306, 32
      %v1312 = vpop.permute.xlu0 %1311
      %vm1316 = vcmask 1045504
      %v1317 = vrot.slane %v1295, 2
      %v1318 = vrot.slane %v1288, 2
      %v1319 = vsel %vm1316, %v1317, %v1318
      %v1320 = vrot.slane %v1290, 2
      %v1321 = vsel %vm1316, %v1318, %v1320
      %v1322 = vrot.slane %v1296, 2
      %v1323 = vsel %vm1316, %v1320, %v1322
      %1324 = vrot.lane.b32.xlu0 %v1319, 64
      %v1325 = vpop.permute.xlu0 %1324
      %1326 = vrot.lane.b32.xlu0 %v1321, 64
      %v1327 = vpop.permute.xlu0 %1326
      %1328 = vrot.lane.b32.xlu0 %v1323, 64
      %v1329 = vpop.permute.xlu0 %1328
      %vm1333 = vcmask 1044480
      %v1334 = vrot.slane %v1295, 3
      %v1335 = vrot.slane %v1288, 3
      %v1336 = vsel %vm1333, %v1334, %v1335
      %v1337 = vrot.slane %v1290, 3
      %v1338 = vsel %vm1333, %v1335, %v1337
      %v1339 = vrot.slane %v1296, 3
      %v1340 = vsel %vm1333, %v1337, %v1339
      %1341 = vrot.lane.b32.xlu0 %v1336, 96
      %v1342 = vpop.permute.xlu0 %1341
      %1343 = vrot.lane.b32.xlu0 %v1338, 96
      %v1344 = vpop.permute.xlu0 %1343
      %1345 = vrot.lane.b32.xlu0 %v1340, 96
      %v1346 = vpop.permute.xlu0 %1345
      %v1350 = vrot.slane %v1295, 4
      %v1351 = vrot.slane %v1288, 4
      %v1352 = vsel %vm1285, %v1350, %v1351
      %v1353 = vrot.slane %v1290, 4
      %v1354 = vsel %vm1285, %v1351, %v1353
      %v1355 = vrot.slane %v1296, 4
      %v1356 = vsel %vm1285, %v1353, %v1355
      %vm1360 = vcmask 1042432
      %v1361 = vrot.slane %v1295, 5
      %v1362 = vrot.slane %v1288, 5
      %v1363 = vsel %vm1360, %v1361, %v1362
      %v1364 = vrot.slane %v1290, 5
      %v1365 = vsel %vm1360, %v1362, %v1364
      %v1366 = vrot.slane %v1296, 5
      %v1367 = vsel %vm1360, %v1364, %v1366
      %1368 = vrot.lane.b32.xlu0 %v1363, 32
      %v1369 = vpop.permute.xlu0 %1368
      %1370 = vrot.lane.b32.xlu0 %v1365, 32
      %v1371 = vpop.permute.xlu0 %1370
      %1372 = vrot.lane.b32.xlu0 %v1367, 32
      %v1373 = vpop.permute.xlu0 %1372
      %vm1377 = vcmask 1041408
      %v1378 = vrot.slane %v1295, 6
      %v1379 = vrot.slane %v1288, 6
      %v1380 = vsel %vm1377, %v1378, %v1379
      %v1381 = vrot.slane %v1290, 6
      %v1382 = vsel %vm1377, %v1379, %v1381
      %v1383 = vrot.slane %v1296, 6
      %v1384 = vsel %vm1377, %v1381, %v1383
      %1385 = vrot.lane.b32.xlu0 %v1380, 64
      %v1386 = vpop.permute.xlu0 %1385
      %1387 = vrot.lane.b32.xlu0 %v1382, 64
      %v1388 = vpop.permute.xlu0 %1387
      %1389 = vrot.lane.b32.xlu0 %v1384, 64
      %v1390 = vpop.permute.xlu0 %1389
      %vm1394 = vcmask 1040384
      %v1395 = vrot.slane %v1295, 7
      %v1396 = vrot.slane %v1288, 7
      %v1397 = vsel %vm1394, %v1395, %v1396
      %v1398 = vrot.slane %v1290, 7
      %v1399 = vsel %vm1394, %v1396, %v1398
      %v1400 = vrot.slane %v1296, 7
      %v1401 = vsel %vm1394, %v1398, %v1400
      %1402 = vrot.lane.b32.xlu0 %v1397, 96
      %v1403 = vpop.permute.xlu0 %1402
      %1404 = vrot.lane.b32.xlu0 %v1399, 96
      %v1405 = vpop.permute.xlu0 %1404
      %1406 = vrot.lane.b32.xlu0 %v1401, 96
      %v1407 = vpop.permute.xlu0 %1406
      %v1411 = vsel %vm527, %v1295, %v1308
      %v1412 = vsel %vm527, %v1288, %v1310
      %v1413 = vsel %vm527, %v1290, %v1312
      %vm1414 = vcmask 523264
      %v1415 = vsel %vm1414, %v1411, %v1325
      %v1416 = vsel %vm1414, %v1412, %v1327
      %v1417 = vsel %vm1414, %v1413, %v1329
      %vm1418 = vcmask 785408
      %v1419 = vsel %vm1418, %v1415, %v1342
      %v1420 = vsel %vm1418, %v1416, %v1344
      %v1421 = vsel %vm1418, %v1417, %v1346
      %v1422 = vsel %vm527, %v1352, %v1369
      %v1423 = vsel %vm527, %v1354, %v1371
      %v1424 = vsel %vm527, %v1356, %v1373
      %v1425 = vsel %vm1414, %v1422, %v1386
      %v1426 = vsel %vm1414, %v1423, %v1388
      %v1427 = vsel %vm1414, %v1424, %v1390
      %v1428 = vsel %vm1418, %v1425, %v1403
      %v1429 = vsel %vm1418, %v1426, %v1405
      %v1430 = vsel %vm1418, %v1427, %v1407
      %v1431 = vlaneseq
      %v1432 = vshrl.u32 %v1431, 7
      %v1433 = vsub.s32 4, %v1432
      %v1434 = vrot.slane %v522, %v1433
      %v1435 = vsel %vm527, %v1288, 0
      %v1437 = vsel %vm527, %v1290, 0
      %v1439 = vsel %vm527, %v1296, 0
      %1441 = vmatprep.subr.mxu0 0.0
      %1442 = vmatpush1.msra.mxu0 %v478
      %1443 = vmatprep.subr.mxu0 0.0
      %1444 = vmatpush1.msra.mxu0 %v479
      %1445 = vmatprep.subr.mxu0 0.0
      %1446 = vmatpush1.msra.mxu0 %v480
      %1447 = vmatprep.subr.mxu0 0.0
      %1448 = vmatpush1.msra.mxu0 %v481
      %1449 = vmatprep.subr.mxu0 0.0
      %1450 = vmatpush1.msra.mxu0 %v482
      %1451 = vmatprep.subr.mxu0 0.0
      %1452 = vmatpush1.msra.mxu0 %v483
      %1453 = vmatprep.subr.mxu0 0.0
      %1454 = vmatpush1.msra.mxu0 %v484
      %1455 = vmatprep.subr.mxu0 0.0
      %1456 = vmatpush1.msra.mxu0 %v485
      %1457 = vmatprep.subr.mxu0 0.0
      %1458 = vmatpush1.msra.mxu0 %v486
      %1459 = vmatprep.subr.mxu0 0.0
      %1460 = vmatpush1.msra.mxu0 %v487
      %1461 = vmatprep.subr.mxu0 0.0
      %1462 = vmatpush1.msra.mxu0 %v488
      %1463 = vmatprep.subr.mxu0 0.0
      %1464 = vmatpush1.msra.mxu0 %v489
      %1465 = vmatprep.subr.mxu0 0.0
      %1466 = vmatpush1.msra.mxu0 %v490
      %1467 = vmatprep.subr.mxu0 0.0
      %1468 = vmatpush1.msra.mxu0 %v491
      %1469 = vmatprep.subr.mxu0 0.0
      %1470 = vmatpush1.msra.mxu0 %v492
      %1471 = vmatprep.subr.mxu0 0.0
      %1472 = vmatpush1.msra.mxu0 %v493
      %1473 = vmatprep.subr.mxu0 0.0
      %1474 = vmatpush1.msra.mxu0 %v494
      %1475 = vmatprep.subr.mxu0 0.0
      %1476 = vmatpush1.msra.mxu0 %v495
      %1477 = vmatprep.subr.mxu0 0.0
      %1478 = vmatpush1.msra.mxu0 %v496
      %1479 = vmatprep.subr.mxu0 0.0
      %1480 = vmatpush1.msra.mxu0 %v497
      %1481 = vmatprep.subr.mxu0 0.0
      %1482 = vmatpush1.msra.mxu0 %v498
      %1483 = vmatprep.subr.mxu0 0.0
      %1484 = vmatpush1.msra.mxu0 %v499
      %1485 = vmatprep.subr.mxu0 0.0
      %1486 = vmatpush1.msra.mxu0 %v500
      %1487 = vmatprep.subr.mxu0 0.0
      %1488 = vmatpush1.msra.mxu0 %v501
      %1489 = vmatprep.subr.mxu0 0.0
      %1490 = vmatpush1.msra.mxu0 %v502
      %1491 = vmatprep.subr.mxu0 0.0
      %1492 = vmatpush1.msra.mxu0 %v503
      %1493 = vmatprep.subr.mxu0 0.0
      %1494 = vmatpush1.msra.mxu0 %v504
      %1495 = vmatprep.subr.mxu0 0.0
      %1496 = vmatpush1.msra.mxu0 %v505
      %1497 = vmatprep.subr.mxu0 0.0
      %1498 = vmatpush1.msra.mxu0 %v506
      %1499 = vmatprep.subr.mxu0 0.0
      %1500 = vmatpush1.msra.mxu0 %v507
      %1501 = vmatprep.subr.mxu0 0.0
      %1502 = vmatpush1.msra.mxu0 %v508
      %1503 = vmatprep.subr.mxu0 0.0
      %1504 = vmatpush1.msra.mxu0 %v509
      %1505 = vmatprep.mubr.f32.mxu0 %v1428
      %1506 = vmatmul.mubr.f32.gmra.mrb[0].mxu0 %v1419
      %v1507 = vpop.f32.mrb[0].mxu0
      %v1508 = vadd.f32 %v1434, %v1507
      %v1509 = vpop.f32.mrb[0].mxu0
      %1510 = vmatprep.mubr.f32.mxu0 %v1429
      %1511 = vmatmul.mubr.f32.gmra.mrb[0].mxu0 %v1420
      %v1512 = vpop.f32.mrb[0].mxu0
      %v1513 = vadd.f32 %v1434, %v1512
      %v1514 = vpop.f32.mrb[0].mxu0
      %1515 = vmatprep.mubr.f32.mxu0 %v1430
      %1516 = vmatmul.mubr.f32.gmra.mrb[0].mxu0 %v1421
      %v1517 = vpop.f32.mrb[0].mxu0
      %v1518 = vadd.f32 %v1434, %v1517
      %v1519 = vpop.f32.mrb[0].mxu0
      %1520 = vdwg.mxu0
      %1521 = vmatprep.subr.mxu0 0.0
      %1522 = vmatpush1.msra.mxu0 %v510
      %1523 = vmatprep.subr.mxu0 0.0
      %1524 = vmatpush1.msra.mxu0 %v511
      %1525 = vmatprep.subr.mxu0 0.0
      %1526 = vmatpush1.msra.mxu0 %v512
      %1527 = vmatprep.subr.mxu0 0.0
      %1528 = vmatpush1.msra.mxu0 %v513
      %1529 = vmatprep.subr.mxu0 0.0
      %1530 = vmatpush1.msra.mxu0 0.0
      %1531 = vmatprep.subr.mxu0 0.0
      %1532 = vmatpush1.msra.mxu0 0.0
      %1533 = vmatprep.subr.mxu0 0.0
      %1534 = vmatpush1.msra.mxu0 0.0
      %1535 = vmatprep.subr.mxu0 0.0
      %1536 = vmatpush1.msra.mxu0 0.0
      %1537 = vmatprep.subr.mxu0 0.0
      %1538 = vmatpush1.msra.mxu0 0.0
      %1539 = vmatprep.subr.mxu0 0.0
      %1540 = vmatpush1.msra.mxu0 0.0
      %1541 = vmatprep.subr.mxu0 0.0
      %1542 = vmatpush1.msra.mxu0 0.0
      %1543 = vmatprep.subr.mxu0 0.0
      %1544 = vmatpush1.msra.mxu0 0.0
      %1545 = vmatprep.subr.mxu0 0.0
      %1546 = vmatpush1.msra.mxu0 0.0
      %1547 = vmatprep.subr.mxu0 0.0
      %1548 = vmatpush1.msra.mxu0 0.0
      %1549 = vmatprep.subr.mxu0 0.0
      %1550 = vmatpush1.msra.mxu0 0.0
      %1551 = vmatprep.subr.mxu0 0.0
      %1552 = vmatpush1.msra.mxu0 0.0
      %1553 = vmatprep.subr.mxu0 0.0
      %1554 = vmatpush1.msra.mxu0 0.0
      %1555 = vmatprep.subr.mxu0 0.0
      %1556 = vmatpush1.msra.mxu0 0.0
      %1557 = vmatprep.subr.mxu0 0.0
      %1558 = vmatpush1.msra.mxu0 0.0
      %1559 = vmatprep.subr.mxu0 0.0
      %1560 = vmatpush1.msra.mxu0 0.0
      %1561 = vmatprep.subr.mxu0 0.0
      %1562 = vmatpush1.msra.mxu0 0.0
      %1563 = vmatprep.subr.mxu0 0.0
      %1564 = vmatpush1.msra.mxu0 0.0
      %1565 = vmatprep.subr.mxu0 0.0
      %1566 = vmatpush1.msra.mxu0 0.0
      %1567 = vmatprep.subr.mxu0 0.0
      %1568 = vmatpush1.msra.mxu0 0.0
      %1569 = vmatprep.subr.mxu0 0.0
      %1570 = vmatpush1.msra.mxu0 0.0
      %1571 = vmatprep.subr.mxu0 0.0
      %1572 = vmatpush1.msra.mxu0 0.0
      %1573 = vmatprep.subr.mxu0 0.0
      %1574 = vmatpush1.msra.mxu0 0.0
      %1575 = vmatprep.subr.mxu0 0.0
      %1576 = vmatpush1.msra.mxu0 0.0
      %1577 = vmatprep.subr.mxu0 0.0
      %1578 = vmatpush1.msra.mxu0 0.0
      %1579 = vmatprep.subr.mxu0 0.0
      %1580 = vmatpush1.msra.mxu0 0.0
      %1581 = vmatprep.subr.mxu0 0.0
      %1582 = vmatpush1.msra.mxu0 0.0
      %1583 = vmatprep.subr.mxu0 0.0
      %1584 = vmatpush1.msra.mxu0 0.0
      %1585 = vmatprep.mubr.f32.mxu0 0.0
      %1586 = vmatmul.mubr.f32.gmra.mrb[0].mxu0 %v1435
      %v1587 = vpop.f32.mrb[0].mxu0
      %v1588 = vadd.f32 %v1508, %v1587
      %v1589 = vpop.f32.mrb[0].mxu0
      %1590 = vmatprep.mubr.f32.mxu0 0.0
      %1591 = vmatmul.mubr.f32.gmra.mrb[0].mxu0 %v1437
      %v1592 = vpop.f32.mrb[0].mxu0
      %v1593 = vadd.f32 %v1513, %v1592
      %v1594 = vpop.f32.mrb[0].mxu0
      %1595 = vmatprep.mubr.f32.mxu0 0.0
      %1596 = vmatmul.mubr.f32.gmra.mrb[0].mxu0 %v1439
      %v1597 = vpop.f32.mrb[0].mxu0
      %v1598 = vadd.f32 %v1518, %v1597
      %v1599 = vpop.f32.mrb[0].mxu0
      %1600 = vdwg.mxu0
      %v1601 = vmax.f32 %v1588, 0.0
      %v1602 = vmax.f32 %v1593, 0.0
      %v1603 = vmax.f32 %v1598, 0.0
      %v1604 = vlaneseq
      %v1605 = vshrl.u32 %v1604, 7
      %v1606 = vsub.s32 5, %v1605
      %v1607 = vrot.slane %v522, %v1606
      %v1609 = vsel %vm1414, %v1601, 0
      %v1612 = vsel %vm1414, %v1602, 0
      %v1615 = vsel %vm1414, %v1603, 0
      %1617 = vmatprep.subr.mxu0 0.0
      %1618 = vmatpush1.msra.mxu0 %v514
      %1619 = vmatprep.subr.mxu0 0.0
      %1620 = vmatpush1.msra.mxu0 %v515
      %1621 = vmatprep.subr.mxu0 0.0
      %1622 = vmatpush1.msra.mxu0 %v516
      %1623 = vmatprep.subr.mxu0 0.0
      %1624 = vmatpush1.msra.mxu0 %v517
      %1625 = vmatprep.subr.mxu0 0.0
      %1626 = vmatpush1.msra.mxu0 %v518
      %1627 = vmatprep.subr.mxu0 0.0
      %1628 = vmatpush1.msra.mxu0 %v519
      %1629 = vmatprep.subr.mxu0 0.0
      %1630 = vmatpush1.msra.mxu0 %v520
      %1631 = vmatprep.subr.mxu0 0.0
      %1632 = vmatpush1.msra.mxu0 %v521
      %1633 = vmatprep.subr.mxu0 0.0
      %1634 = vmatpush1.msra.mxu0 0.0
      %1635 = vmatprep.subr.mxu0 0.0
      %1636 = vmatpush1.msra.mxu0 0.0
      %1637 = vmatprep.subr.mxu0 0.0
      %1638 = vmatpush1.msra.mxu0 0.0
      %1639 = vmatprep.subr.mxu0 0.0
      %1640 = vmatpush1.msra.mxu0 0.0
      %1641 = vmatprep.subr.mxu0 0.0
      %1642 = vmatpush1.msra.mxu0 0.0
      %1643 = vmatprep.subr.mxu0 0.0
      %1644 = vmatpush1.msra.mxu0 0.0
      %1645 = vmatprep.subr.mxu0 0.0
      %1646 = vmatpush1.msra.mxu0 0.0
      %1647 = vmatprep.subr.mxu0 0.0
      %1648 = vmatpush1.msra.mxu0 0.0
      %1649 = vmatprep.subr.mxu0 0.0
      %1650 = vmatpush1.msra.mxu0 0.0
      %1651 = vmatprep.subr.mxu0 0.0
      %1652 = vmatpush1.msra.mxu0 0.0
      %1653 = vmatprep.subr.mxu0 0.0
      %1654 = vmatpush1.msra.mxu0 0.0
      %1655 = vmatprep.subr.mxu0 0.0
      %1656 = vmatpush1.msra.mxu0 0.0
      %1657 = vmatprep.subr.mxu0 0.0
      %1658 = vmatpush1.msra.mxu0 0.0
      %1659 = vmatprep.subr.mxu0 0.0
      %1660 = vmatpush1.msra.mxu0 0.0
      %1661 = vmatprep.subr.mxu0 0.0
      %1662 = vmatpush1.msra.mxu0 0.0
      %1663 = vmatprep.subr.mxu0 0.0
      %1664 = vmatpush1.msra.mxu0 0.0
      %1665 = vmatprep.subr.mxu0 0.0
      %1666 = vmatpush1.msra.mxu0 0.0
      %1667 = vmatprep.subr.mxu0 0.0
      %1668 = vmatpush1.msra.mxu0 0.0
      %1669 = vmatprep.subr.mxu0 0.0
      %1670 = vmatpush1.msra.mxu0 0.0
      %1671 = vmatprep.subr.mxu0 0.0
      %1672 = vmatpush1.msra.mxu0 0.0
      %1673 = vmatprep.subr.mxu0 0.0
      %1674 = vmatpush1.msra.mxu0 0.0
      %1675 = vmatprep.subr.mxu0 0.0
      %1676 = vmatpush1.msra.mxu0 0.0
      %1677 = vmatprep.subr.mxu0 0.0
      %1678 = vmatpush1.msra.mxu0 0.0
      %1679 = vmatprep.subr.mxu0 0.0
      %1680 = vmatpush1.msra.mxu0 0.0
      %1681 = vmatprep.mubr.f32.mxu0 0.0
      %1682 = vmatmul.mubr.f32.gmra.mrb[0].mxu0 %v1609
      %v1683 = vpop.f32.mrb[0].mxu0
      %v1684 = vadd.f32 %v1607, %v1683
      %v1685 = vpop.f32.mrb[0].mxu0
      %1686 = vmatprep.mubr.f32.mxu0 0.0
      %1687 = vmatmul.mubr.f32.gmra.mrb[0].mxu0 %v1612
      %v1688 = vpop.f32.mrb[0].mxu0
      %v1689 = vadd.f32 %v1607, %v1688
      %v1690 = vpop.f32.mrb[0].mxu0
      %1691 = vmatprep.mubr.f32.mxu0 0.0
      %1692 = vmatmul.mubr.f32.gmra.mrb[0].mxu0 %v1615
      %v1693 = vpop.f32.mrb[0].mxu0
      %v1694 = vadd.f32 %v1607, %v1693
      %v1695 = vpop.f32.mrb[0].mxu0
      %1696 = vdwg.mxu0
      %v1697 = vadd.f32 %v1684, %v1279
      %v1698 = vadd.f32 %v1689, %v1280
      %v1699 = vadd.f32 %v1694, %v1281
      %v1700 = vsel %vm527, %v1697, 0.0
      %1701 = vadd.xlane.f32.xlu0 %v1700
      %v1702 = vpop.xlane.xlu0 %1701
      %v1703 = vsel %vm527, %v1698, 0.0
      %1704 = vadd.xlane.f32.xlu0 %v1703
      %v1705 = vpop.xlane.xlu0 %1704
      %v1706 = vsel %vm527, %v1699, 0.0
      %1707 = vadd.xlane.f32.xlu0 %v1706
      %v1708 = vpop.xlane.xlu0 %1707
      %v1709 = vmul.f32 %v1702, %v1219
      %v1710 = vmul.f32 %v1705, %v1219
      %v1711 = vmul.f32 %v1708, %v1219
      %v1712 = vsub.f32 %v1697, %v1709
      %v1713 = vsub.f32 %v1698, %v1710
      %v1714 = vsub.f32 %v1699, %v1711
      %v1715 = vmul.f32 %v1712, %v1712
      %v1716 = vmul.f32 %v1713, %v1713
      %v1717 = vmul.f32 %v1714, %v1714
      %v1718 = vsel %vm527, %v1715, 0.0
      %1719 = vadd.xlane.f32.xlu0 %v1718
      %v1720 = vpop.xlane.xlu0 %1719
      %v1721 = vsel %vm527, %v1716, 0.0
      %1722 = vadd.xlane.f32.xlu0 %v1721
      %v1723 = vpop.xlane.xlu0 %1722
      %v1724 = vsel %vm527, %v1717, 0.0
      %1725 = vadd.xlane.f32.xlu0 %v1724
      %v1726 = vpop.xlane.xlu0 %1725
      %v1727 = vmul.f32 %v1720, %v1219
      %v1728 = vmul.f32 %v1723, %v1219
      %v1729 = vmul.f32 %v1726, %v1219
      %v1730 = vadd.f32 %v1727, 1e-05
      %v1731 = vadd.f32 %v1728, 1e-05
      %v1732 = vadd.f32 %v1729, 1e-05
      %v1733 = vrsqrt.pop %v1730
      %v1734 = vrsqrt.pop %v1731
      %v1735 = vrsqrt.pop %v1732
      %v1736 = vmul.f32 %v1712, %v1733
      %v1737 = vmul.f32 %v1713, %v1734
      %v1738 = vmul.f32 %v1714, %v1735
      %v1739 = vlaneseq
      %v1740 = vshrl.u32 %v1739, 7
      %v1741 = vsub.s32 6, %v1740
      %v1742 = vrot.slane %v522, %v1741
      %v1743 = vmul.f32 %v1736, %v1742
      %v1744 = vmul.f32 %v1737, %v1742
      %v1745 = vmul.f32 %v1738, %v1742
      %v1746 = vlaneseq
      %v1747 = vshrl.u32 %v1746, 7
      %v1748 = vsub.s32 7, %v1747
      %v1749 = vrot.slane %v522, %v1748
      %v1750 = vadd.f32 %v1743, %v1749
      %v1751 = vadd.f32 %v1744, %v1749
      %v1752 = vadd.f32 %v1745, %v1749
      %v1753 = vmul.f32 %v1750, %v1267
      %v1754 = vmul.f32 %v1751, %v1272
      %v1755 = vmul.f32 %v1752, %v1277
      %1756 = vst.msk [vmem:[%s448] sm:$0xff] %vm527, %v1753
      %1757 = vst.msk [vmem:[%s448 + $0x8] sm:$0xff] %vm527, %v1754
      %1758 = vst.msk [vmem:[%s448 + $0x10] sm:$0xff] %vm527, %v1755
      %p1759 = scmp.lt.s32.totalorder %s23, 1
      %s1760 = scalar_select %p1759, %s23, 1
      %s1761 = smul.addr %s1760, 3
      %s1762 = smul.addr %s1761, 8
      %s1763 = scalar_lea.vmem %s8, %s1762
      // Predicated region
      $region57: #{fastspeech2_forward.6} parent=51 // pred_check
        %p1764 = pneg %p257
      $region58: #{fastspeech2_forward.6} parent=51 // pred_check_branch
        %1766 = sbr.rel (%p1764) target = $region60
      $region59: #{fastspeech2_forward.6} parent=51 // pred_region
        _
      $region60: #{fastspeech2_forward.6} parent=51 // pred_fallthru
        _
    $region52: #{fastspeech2_forward.6} parent=5 // pred_fallthru
      _
    %p1767 = scmp.le.s32.totalorder 2, %s14
    // Predicated region
    $region61: #{fastspeech2_forward.6} parent=5 // pred_check
      %p1768 = pneg %p1767
    $region62: #{fastspeech2_forward.6} parent=5 // pred_check_branch
      %1770 = sbr.rel (%p1768) target = $region64
    $region63: #{fastspeech2_forward.6} parent=5 // pred_region
      %s1771 = ssub.s32 %s14, 2
      // Predicated region
      $region65: #{fastspeech2_forward.6} parent=63 // pred_check
        %p1772 = pneg %p263
      $region66: #{fastspeech2_forward.6} parent=63 // pred_check_branch
        %1774 = sbr.rel (%p1772) target = $region68
      $region67: #{fastspeech2_forward.6} parent=63 // pred_region
        %p1775 = scmp.lt.s32.totalorder %s25, 1
        %s1776 = scalar_select %p1775, %s25, 1
        %s1777 = smul.addr %s1776, 3
        %s1778 = smul.addr %s1777, 8
        %s1779 = scalar_lea.vmem %s8, %s1778
      $region68: #{fastspeech2_forward.6} parent=63 // pred_fallthru
        _
    $region64: #{fastspeech2_forward.6} parent=5 // pred_fallthru
      _
  $region6: #{fastspeech2_forward.6} parent=0 // loop_footer
    %s18 = sadd.s32 1, %s14
  $region7: #{fastspeech2_forward.6} parent=0 // loop_footer_branch
    %13 = sbr.rel target = $region3
  $region8: #{fastspeech2_forward.6} parent=0 // loop_exit
    _

// kernel: fastspeech2_forward.7
$region0: #{fastspeech2_forward.7}
  #allocation0 [shape = 'u32[]', space=smem, size = 0x4, offset = 0x4, fixed_abs, tag = 'smem constant byte address 0x4 - core index']
  #allocation1 [shape = 'u32[144,128]{1,0:T(1,128)}', space=vmem, size = 0x12000, scoped, tag = 'internal scratch']
  %s0 = inlined_call_operand.vmem [shape: f32[2,24,32], index: 0, kind: input, shape index: {}]
  %s1 = inlined_call_operand.vmem [shape: f32[32,128], index: 1, kind: input, shape index: {}]
  %s2 = inlined_call_operand.vmem [shape: f32[1,128], index: 2, kind: input, shape index: {}]
  %s3 = inlined_call_operand.vmem [shape: f32[5,640,128], index: 3, kind: input, shape index: {}]
  %s4 = inlined_call_operand.vmem [shape: f32[5,1,128], index: 4, kind: input, shape index: {}]
  %s5 = inlined_call_operand.hbm [shape: f32[2,24,128], index: 5, kind: output, shape index: {0}]
  %s6 = inlined_call_operand.hbm [shape: f32[2,24,128], index: 6, kind: output, shape index: {1}]
  %7 = xla_tuple %s5, %s6
  %s8 = sld [smem:[#allocation0]]
  $region61: #{fastspeech2_forward.7} parent=0
    _
  %s10 = ssub.s32 1, %s8
  %s11 = scalar_select 0, %s10, %s8
  $region1: #{fastspeech2_forward.7} parent=0
    #allocation2 [shape = 'u8[24576]{0}', space=vmem, size = 0x6000, scoped, tag = 'output window, operand 0']
    #allocation3 [shape = 's32[2]{0}', space=sflag, size = 0x8, scoped, tag = 'scoped memory for fastspeech2_forward.7']
    #allocation4 [shape = 'u8[24576]{0}', space=vmem, size = 0x6000, scoped, tag = 'output window, operand 1']
    #allocation5 [shape = 's32[2]{0}', space=sflag, size = 0x8, scoped, tag = 'scoped memory for fastspeech2_forward.7']
    %12 = vsyncpa [#allocation3], 0
    %s13 = scalar_lea.sflag [#allocation3], 1
    %14 = vsyncpa %s13, 0
    %15 = vsyncpa [#allocation5], 0
    %s16 = scalar_lea.sflag [#allocation5], 1
    %17 = vsyncpa %s16, 0
    loop: start=0, step=1, limit=4
    $region2: #{fastspeech2_forward.7} parent=1 // loop_pre_header
      _
    $region3: #{fastspeech2_forward.7} parent=1 // loop_header
      %s19 = sphi 0, %s23
      %p20 = scmp.ge.s32.totalorder %s19, 4
      %s29 = sphi 0, %s31
      %s32 = sphi 0, %s29
      %s33 = sphi 0, %s32
      %s49 = sphi 0, %s33
      %s53 = sphi 0, %s53
      %s55 = sphi 0, %s53
      %s56 = sphi 0, %s55
      %s70 = sphi 0, %s56
      %s74 = sphi 0, %s74
      %s76 = sphi 0, %s74
      %s77 = sphi 0, %s76
      %s91 = sphi 0, %s77
      %s95 = sphi 0, %s95
      %s97 = sphi 0, %s95
      %s98 = sphi 0, %s97
      %s112 = sphi 0, %s98
      %s116 = sphi 0, %s116
      %s118 = sphi 0, %s116
      %s119 = sphi 0, %s118
      %s133 = sphi 0, %s119
      %s139 = sphi 0, %s141
      %s142 = sphi 0, %s139
      %s143 = sphi 0, %s142
      %s159 = sphi 0, %s143
      %s165 = sphi 0, %s167
      %s168 = sphi 0, %s165
      %s169 = sphi 0, %s168
      %s185 = sphi 0, %s169
    $region4: #{fastspeech2_forward.7} parent=1 // loop_header_branch
      %22 = sbr.rel (%p20) target = $region8
    $region5: #{fastspeech2_forward.7} parent=1 // loop_body
      %s24 = ssub.s32 %s19, 1
      %s25 = ssub.s32 %s19, 2
      %s26 = sadd.s32 %s19, 1
      %s27 = ssub.s32 %s19, %s26
      %p28 = scmp.eq.s32.totalorder %s27, 0
      %s30 = sadd.s32 %s29, 1
      %s31 = scalar_select %p28, %s29, %s30
      %p34 = pneg %p28
      %p35 = scmp.eq.s32.totalorder %s19, 1
      %p36 = por %p34, %p35
      %p37 = scmp.ne.s32.totalorder %s29, %s32
      %p38 = scmp.eq.s32.totalorder %s19, 0
      %p39 = por %p37, %p38
      %p40 = scmp.ne.s32.totalorder %s29, %s32
      %p41 = scmp.eq.s32.totalorder %s24, 1
      %p42 = por %p40, %p41
      %p43 = scmp.ne.s32.totalorder %s32, %s33
      %p44 = scmp.eq.s32.totalorder %s24, 0
      %p45 = por %p43, %p44
      %p46 = scmp.ne.s32.totalorder %s32, %s33
      %p47 = scmp.eq.s32.totalorder %s25, 1
      %p48 = por %p46, %p47
      %p50 = scmp.ne.s32.totalorder %s33, %s49
      %p51 = scmp.eq.s32.totalorder %s25, 0
      %p52 = por %p50, %p51
      %s54 = sadd.s32 %s53, 1
      %p57 = scmp.eq.s32.totalorder %s19, 1
      %p58 = scmp.ne.s32.totalorder %s53, %s55
      %p59 = scmp.eq.s32.totalorder %s19, 0
      %p60 = por %p58, %p59
      %p61 = scmp.ne.s32.totalorder %s53, %s55
      %p62 = scmp.eq.s32.totalorder %s24, 1
      %p63 = por %p61, %p62
      %p64 = scmp.ne.s32.totalorder %s55, %s56
      %p65 = scmp.eq.s32.totalorder %s24, 0
      %p66 = por %p64, %p65
      %p67 = scmp.ne.s32.totalorder %s55, %s56
      %p68 = scmp.eq.s32.totalorder %s25, 1
      %p69 = por %p67, %p68
      %p71 = scmp.ne.s32.totalorder %s56, %s70
      %p72 = scmp.eq.s32.totalorder %s25, 0
      %p73 = por %p71, %p72
      %s75 = sadd.s32 %s74, 1
      %p78 = scmp.eq.s32.totalorder %s19, 1
      %p79 = scmp.ne.s32.totalorder %s74, %s76
      %p80 = scmp.eq.s32.totalorder %s19, 0
      %p81 = por %p79, %p80
      %p82 = scmp.ne.s32.totalorder %s74, %s76
      %p83 = scmp.eq.s32.totalorder %s24, 1
      %p84 = por %p82, %p83
      %p85 = scmp.ne.s32.totalorder %s76, %s77
      %p86 = scmp.eq.s32.totalorder %s24, 0
      %p87 = por %p85, %p86
      %p88 = scmp.ne.s32.totalorder %s76, %s77
      %p89 = scmp.eq.s32.totalorder %s25, 1
      %p90 = por %p88, %p89
      %p92 = scmp.ne.s32.totalorder %s77, %s91
      %p93 = scmp.eq.s32.totalorder %s25, 0
      %p94 = por %p92, %p93
      %s96 = sadd.s32 %s95, 1
      %p99 = scmp.eq.s32.totalorder %s19, 1
      %p100 = scmp.ne.s32.totalorder %s95, %s97
      %p101 = scmp.eq.s32.totalorder %s19, 0
      %p102 = por %p100, %p101
      %p103 = scmp.ne.s32.totalorder %s95, %s97
      %p104 = scmp.eq.s32.totalorder %s24, 1
      %p105 = por %p103, %p104
      %p106 = scmp.ne.s32.totalorder %s97, %s98
      %p107 = scmp.eq.s32.totalorder %s24, 0
      %p108 = por %p106, %p107
      %p109 = scmp.ne.s32.totalorder %s97, %s98
      %p110 = scmp.eq.s32.totalorder %s25, 1
      %p111 = por %p109, %p110
      %p113 = scmp.ne.s32.totalorder %s98, %s112
      %p114 = scmp.eq.s32.totalorder %s25, 0
      %p115 = por %p113, %p114
      %s117 = sadd.s32 %s116, 1
      %p120 = scmp.eq.s32.totalorder %s19, 1
      %p121 = scmp.ne.s32.totalorder %s116, %s118
      %p122 = scmp.eq.s32.totalorder %s19, 0
      %p123 = por %p121, %p122
      %p124 = scmp.ne.s32.totalorder %s116, %s118
      %p125 = scmp.eq.s32.totalorder %s24, 1
      %p126 = por %p124, %p125
      %p127 = scmp.ne.s32.totalorder %s118, %s119
      %p128 = scmp.eq.s32.totalorder %s24, 0
      %p129 = por %p127, %p128
      %p130 = scmp.ne.s32.totalorder %s118, %s119
      %p131 = scmp.eq.s32.totalorder %s25, 1
      %p132 = por %p130, %p131
      %p134 = scmp.ne.s32.totalorder %s119, %s133
      %p135 = scmp.eq.s32.totalorder %s25, 0
      %p136 = por %p134, %p135
      %s137 = ssub.s32 %s19, %s26
      %p138 = scmp.eq.s32.totalorder %s137, 0
      %s140 = sadd.s32 %s139, 1
      %s141 = scalar_select %p138, %s139, %s140
      %p144 = pneg %p138
      %p145 = scmp.eq.s32.totalorder %s19, 1
      %p146 = por %p144, %p145
      %p147 = scmp.ne.s32.totalorder %s139, %s142
      %p148 = scmp.eq.s32.totalorder %s19, 0
      %p149 = por %p147, %p148
      %p150 = scmp.ne.s32.totalorder %s139, %s142
      %p151 = scmp.eq.s32.totalorder %s24, 1
      %p152 = por %p150, %p151
      %p153 = scmp.ne.s32.totalorder %s142, %s143
      %p154 = scmp.eq.s32.totalorder %s24, 0
      %p155 = por %p153, %p154
      %p156 = scmp.ne.s32.totalorder %s142, %s143
      %p157 = scmp.eq.s32.totalorder %s25, 1
      %p158 = por %p156, %p157
      %p160 = scmp.ne.s32.totalorder %s143, %s159
      %p161 = scmp.eq.s32.totalorder %s25, 0
      %p162 = por %p160, %p161
      %s163 = ssub.s32 %s19, %s26
      %p164 = scmp.eq.s32.totalorder %s163, 0
      %s166 = sadd.s32 %s165, 1
      %s167 = scalar_select %p164, %s165, %s166
      %p170 = pneg %p164
      %p171 = scmp.eq.s32.totalorder %s19, 1
      %p172 = por %p170, %p171
      %p173 = scmp.ne.s32.totalorder %s165, %s168
      %p174 = scmp.eq.s32.totalorder %s19, 0
      %p175 = por %p173, %p174
      %p176 = scmp.ne.s32.totalorder %s165, %s168
      %p177 = scmp.eq.s32.totalorder %s24, 1
      %p178 = por %p176, %p177
      %p179 = scmp.ne.s32.totalorder %s168, %s169
      %p180 = scmp.eq.s32.totalorder %s24, 0
      %p181 = por %p179, %p180
      %p182 = scmp.ne.s32.totalorder %s168, %s169
      %p183 = scmp.eq.s32.totalorder %s25, 1
      %p184 = por %p182, %p183
      %p186 = scmp.ne.s32.totalorder %s169, %s185
      %p187 = scmp.eq.s32.totalorder %s25, 0
      %p188 = por %p186, %p187
      %p189 = scmp.le.s32.totalorder 1, %s19
      %p190 = scmp.lt.s32.totalorder %s19, 3
      %p191 = pnand %p189, %p190
      %p192 = pneg %p191
      // Predicated region
      $region9: #{fastspeech2_forward.7} parent=5 // pred_check
        _
      $region10: #{fastspeech2_forward.7} parent=5 // pred_check_branch
        %194 = sbr.rel (%p191) target = $region12
      $region11: #{fastspeech2_forward.7} parent=5 // pred_region
        %s195 = ssub.s32 %s19, 1
        // Predicated region
        $region13: #{fastspeech2_forward.7} parent=11 // pred_check
          %p196 = pneg %p66
        $region14: #{fastspeech2_forward.7} parent=11 // pred_check_branch
          %198 = sbr.rel (%p196) target = $region16
        $region15: #{fastspeech2_forward.7} parent=11 // pred_region
          _
        $region16: #{fastspeech2_forward.7} parent=11 // pred_fallthru
          _
        // Predicated region
        $region17: #{fastspeech2_forward.7} parent=11 // pred_check
          %p199 = pneg %p87
        $region18: #{fastspeech2_forward.7} parent=11 // pred_check_branch
          %201 = sbr.rel (%p199) target = $region20
        $region19: #{fastspeech2_forward.7} parent=11 // pred_region
          _
        $region20: #{fastspeech2_forward.7} parent=11 // pred_fallthru
          _
        // Predicated region
        $region21: #{fastspeech2_forward.7} parent=11 // pred_check
          %p202 = pneg %p108
        $region22: #{fastspeech2_forward.7} parent=11 // pred_check_branch
          %204 = sbr.rel (%p202) target = $region24
        $region23: #{fastspeech2_forward.7} parent=11 // pred_region
          _
        $region24: #{fastspeech2_forward.7} parent=11 // pred_fallthru
          _
        // Predicated region
        $region25: #{fastspeech2_forward.7} parent=11 // pred_check
          %p205 = pneg %p129
        $region26: #{fastspeech2_forward.7} parent=11 // pred_check_branch
          %207 = sbr.rel (%p205) target = $region28
        $region27: #{fastspeech2_forward.7} parent=11 // pred_region
          _
        $region28: #{fastspeech2_forward.7} parent=11 // pred_fallthru
          _
      $region12: #{fastspeech2_forward.7} parent=5 // pred_fallthru
        _
      %p208 = scmp.lt.s32.totalorder %s19, 2
      // Predicated region
      $region29: #{fastspeech2_forward.7} parent=5 // pred_check
        %p209 = pneg %p208
      $region30: #{fastspeech2_forward.7} parent=5 // pred_check_branch
        %211 = sbr.rel (%p209) target = $region32
      $region31: #{fastspeech2_forward.7} parent=5 // pred_region
        // Predicated region
        $region33: #{fastspeech2_forward.7} parent=31 // pred_check
          %p212 = pneg %p39
        $region34: #{fastspeech2_forward.7} parent=31 // pred_check_branch
          %214 = sbr.rel (%p212) target = $region36
        $region35: #{fastspeech2_forward.7} parent=31 // pred_region
          %p215 = scmp.lt.s32.totalorder %s19, 1
          %s216 = scalar_select %p215, %s19, 1
          %s217 = smul.addr %s216, 3
          %s218 = smul.addr %s217, 8
          %s219 = scalar_lea.vmem %s0, %s218
        $region36: #{fastspeech2_forward.7} parent=31 // pred_fallthru
          _
      $region32: #{fastspeech2_forward.7} parent=5 // pred_fallthru
        _
      %p220 = scmp.le.s32.totalorder 1, %s19
      %p221 = scmp.lt.s32.totalorder %s19, 3
      %p222 = pnand %p220, %p221
      %p223 = pneg %p222
      // Predicated region
      $region37: #{fastspeech2_forward.7} parent=5 // pred_check
        _
      $region38: #{fastspeech2_forward.7} parent=5 // pred_check_branch
        %225 = sbr.rel (%p222) target = $region40
      $region39: #{fastspeech2_forward.7} parent=5 // pred_region
        %s226 = ssub.s32 %s19, 1
        %p227 = scmp.lt.s32.totalorder %s24, 1
        %s228 = scalar_select %p227, %s24, 1
        %s229 = smul.addr %s228, 3
        %s230 = smul.addr %s229, 8
        %s231 = scalar_lea.vmem %s0, %s230
        %p232 = pneg %p45
        %p233 = pneg %p42
        %p234 = pneg %p66
        %p235 = pneg %p63
        %p236 = pneg %p87
        %p237 = pneg %p84
        %p238 = pneg %p108
        %p239 = pneg %p105
        %p240 = pneg %p129
        %p241 = pneg %p126
        %p242 = pneg %p155
        %p243 = pneg %p152
        %s244 = sand.u32 %s142, 1
        %s245 = scalar_lea.sflag [#allocation3], %s244
        %s246 = sand.u32 %s142, 1
        %s247 = smul.addr %s246, 24
        %s248 = scalar_lea.vmem [#allocation2], %s247
        %p249 = pneg %p181
        %p250 = pneg %p178
        %s251 = sand.u32 %s168, 1
        %s252 = scalar_lea.sflag [#allocation5], %s251
        %s253 = sand.u32 %s168, 1
        %s254 = smul.addr %s253, 24
        %s255 = scalar_lea.vmem [#allocation4], %s254
        %p256 = scmp.lt.s32.totalorder %s24, 1
        %s257 = scalar_select %p256, %s24, 1
        %s258 = smul.addr %s257, 3
        %s259 = smul.addr %s258, 8
        %s260 = scalar_lea.vmem %s0, %s259
        %v261 = vld [vmem:[%s260] sm:$0xff]
        %v262 = vld [vmem:[%s260 + $0x8] sm:$0xff]
        %v263 = vld [vmem:[%s260 + $0x10] sm:$0xff]
        %v264 = vld [vmem:[%s1] sm:$0xff]
        %v265 = vld [vmem:[%s1 + $0x8] sm:$0xff]
        %v266 = vld [vmem:[%s1 + $0x10] sm:$0xff]
        %v267 = vld [vmem:[%s1 + $0x18] sm:$0xff]
        %v268 = vld [vmem:[%s2] sm:$0x1]
        %v270 = vlaneseq
        %v271 = vshrl.u32 %v270, 7
        %v272 = vsub.s32 0, %v271
        %v273 = vrot.slane %v268, %v272
        %vm275 = vcmask 261120
        %v277 = vsel %vm275, %v261, 0
        %v280 = vsel %vm275, %v262, 0
        %v283 = vsel %vm275, %v263, 0
        %285 = vmatprep.subr.mxu0 0.0
        %286 = vmatpush1.msra.mxu0 %v264
        %287 = vmatprep.subr.mxu0 0.0
        %288 = vmatpush1.msra.mxu0 %v265
        %289 = vmatprep.subr.mxu0 0.0
        %290 = vmatpush1.msra.mxu0 %v266
        %291 = vmatprep.subr.mxu0 0.0
        %292 = vmatpush1.msra.mxu0 %v267
        %293 = vmatprep.subr.mxu0 0.0
        %294 = vmatpush1.msra.mxu0 0.0
        %295 = vmatprep.subr.mxu0 0.0
        %296 = vmatpush1.msra.mxu0 0.0
        %297 = vmatprep.subr.mxu0 0.0
        %298 = vmatpush1.msra.mxu0 0.0
        %299 = vmatprep.subr.mxu0 0.0
        %300 = vmatpush1.msra.mxu0 0.0
        %301 = vmatprep.subr.mxu0 0.0
        %302 = vmatpush1.msra.mxu0 0.0
        %303 = vmatprep.subr.mxu0 0.0
        %304 = vmatpush1.msra.mxu0 0.0
        %305 = vmatprep.subr.mxu0 0.0
        %306 = vmatpush1.msra.mxu0 0.0
        %307 = vmatprep.subr.mxu0 0.0
        %308 = vmatpush1.msra.mxu0 0.0
        %309 = vmatprep.subr.mxu0 0.0
        %310 = vmatpush1.msra.mxu0 0.0
        %311 = vmatprep.subr.mxu0 0.0
        %312 = vmatpush1.msra.mxu0 0.0
        %313 = vmatprep.subr.mxu0 0.0
        %314 = vmatpush1.msra.mxu0 0.0
        %315 = vmatprep.subr.mxu0 0.0
        %316 = vmatpush1.msra.mxu0 0.0
        %317 = vmatprep.subr.mxu0 0.0
        %318 = vmatpush1.msra.mxu0 0.0
        %319 = vmatprep.subr.mxu0 0.0
        %320 = vmatpush1.msra.mxu0 0.0
        %321 = vmatprep.subr.mxu0 0.0
        %322 = vmatpush1.msra.mxu0 0.0
        %323 = vmatprep.subr.mxu0 0.0
        %324 = vmatpush1.msra.mxu0 0.0
        %325 = vmatprep.subr.mxu0 0.0
        %326 = vmatpush1.msra.mxu0 0.0
        %327 = vmatprep.subr.mxu0 0.0
        %328 = vmatpush1.msra.mxu0 0.0
        %329 = vmatprep.subr.mxu0 0.0
        %330 = vmatpush1.msra.mxu0 0.0
        %331 = vmatprep.subr.mxu0 0.0
        %332 = vmatpush1.msra.mxu0 0.0
        %333 = vmatprep.subr.mxu0 0.0
        %334 = vmatpush1.msra.mxu0 0.0
        %335 = vmatprep.subr.mxu0 0.0
        %336 = vmatpush1.msra.mxu0 0.0
        %337 = vmatprep.subr.mxu0 0.0
        %338 = vmatpush1.msra.mxu0 0.0
        %339 = vmatprep.subr.mxu0 0.0
        %340 = vmatpush1.msra.mxu0 0.0
        %341 = vmatprep.subr.mxu0 0.0
        %342 = vmatpush1.msra.mxu0 0.0
        %343 = vmatprep.subr.mxu0 0.0
        %344 = vmatpush1.msra.mxu0 0.0
        %345 = vmatprep.subr.mxu0 0.0
        %346 = vmatpush1.msra.mxu0 0.0
        %347 = vmatprep.subr.mxu0 0.0
        %348 = vmatpush1.msra.mxu0 0.0
        %349 = vmatprep.mubr.f32.mxu0 0.0
        %350 = vmatmul.mubr.f32.gmra.mrb[0].mxu0 %v277
        %v351 = vpop.f32.mrb[0].mxu0
        %v352 = vadd.f32 %v273, %v351
        %v353 = vpop.f32.mrb[0].mxu0
        %354 = vmatprep.mubr.f32.mxu0 0.0
        %355 = vmatmul.mubr.f32.gmra.mrb[0].mxu0 %v280
        %v356 = vpop.f32.mrb[0].mxu0
        %v357 = vadd.f32 %v273, %v356
        %v358 = vpop.f32.mrb[0].mxu0
        %359 = vmatprep.mubr.f32.mxu0 0.0
        %360 = vmatmul.mubr.f32.gmra.mrb[0].mxu0 %v283
        %v361 = vpop.f32.mrb[0].mxu0
        %v362 = vadd.f32 %v273, %v361
        %v363 = vpop.f32.mrb[0].mxu0
        %364 = vdwg.mxu0
        %365 = vst [vmem:[%s248] sm:$0xff] %v352
        %366 = vst [vmem:[%s248 + $0x8] sm:$0xff] %v357
        %367 = vst [vmem:[%s248 + $0x10] sm:$0xff] %v362
        %v368 = vld [vmem:[%s3] sm:$0xff]
        %v369 = vld [vmem:[%s3 + $0x8] sm:$0xff]
        %v370 = vld [vmem:[%s3 + $0x10] sm:$0xff]
        %v371 = vld [vmem:[%s3 + $0x18] sm:$0xff]
        %v372 = vld [vmem:[%s3 + $0x20] sm:$0xff]
        %v373 = vld [vmem:[%s3 + $0x28] sm:$0xff]
        %v374 = vld [vmem:[%s3 + $0x30] sm:$0xff]
        %v375 = vld [vmem:[%s3 + $0x38] sm:$0xff]
        %v376 = vld [vmem:[%s3 + $0x40] sm:$0xff]
        %v377 = vld [vmem:[%s3 + $0x48] sm:$0xff]
        %v378 = vld [vmem:[%s3 + $0x50] sm:$0xff]
        %v379 = vld [vmem:[%s3 + $0x58] sm:$0xff]
        %v380 = vld [vmem:[%s3 + $0x60] sm:$0xff]
        %v381 = vld [vmem:[%s3 + $0x68] sm:$0xff]
        %v382 = vld [vmem:[%s3 + $0x70] sm:$0xff]
        %v383 = vld [vmem:[%s3 + $0x78] sm:$0xff]
        %v384 = vld [vmem:[%s3 + $0x80] sm:$0xff]
        %v385 = vld [vmem:[%s3 + $0x88] sm:$0xff]
        %v386 = vld [vmem:[%s3 + $0x90] sm:$0xff]
        %v387 = vld [vmem:[%s3 + $0x98] sm:$0xff]
        %v388 = vld [vmem:[%s3 + $0xa0] sm:$0xff]
        %v389 = vld [vmem:[%s3 + $0xa8] sm:$0xff]
        %v390 = vld [vmem:[%s3 + $0xb0] sm:$0xff]
        %v391 = vld [vmem:[%s3 + $0xb8] sm:$0xff]
        %v392 = vld [vmem:[%s3 + $0xc0] sm:$0xff]
        %v393 = vld [vmem:[%s3 + $0xc8] sm:$0xff]
        %v394 = vld [vmem:[%s3 + $0xd0] sm:$0xff]
        %v395 = vld [vmem:[%s3 + $0xd8] sm:$0xff]
        %v396 = vld [vmem:[%s3 + $0xe0] sm:$0xff]
        %v397 = vld [vmem:[%s3 + $0xe8] sm:$0xff]
        %v398 = vld [vmem:[%s3 + $0xf0] sm:$0xff]
        %v399 = vld [vmem:[%s3 + $0xf8] sm:$0xff]
        %v400 = vld [vmem:[%s3 + $0x100] sm:$0xff]
        %v401 = vld [vmem:[%s3 + $0x108] sm:$0xff]
        %v402 = vld [vmem:[%s3 + $0x110] sm:$0xff]
        %v403 = vld [vmem:[%s3 + $0x118] sm:$0xff]
        %v404 = vld [vmem:[%s3 + $0x120] sm:$0xff]
        %v405 = vld [vmem:[%s3 + $0x128] sm:$0xff]
        %v406 = vld [vmem:[%s3 + $0x130] sm:$0xff]
        %v407 = vld [vmem:[%s3 + $0x138] sm:$0xff]
        %v408 = vld [vmem:[%s3 + $0x140] sm:$0xff]
        %v409 = vld [vmem:[%s3 + $0x148] sm:$0xff]
        %v410 = vld [vmem:[%s3 + $0x150] sm:$0xff]
        %v411 = vld [vmem:[%s3 + $0x158] sm:$0xff]
        %v412 = vld [vmem:[%s3 + $0x160] sm:$0xff]
        %v413 = vld [vmem:[%s3 + $0x168] sm:$0xff]
        %v414 = vld [vmem:[%s3 + $0x170] sm:$0xff]
        %v415 = vld [vmem:[%s3 + $0x178] sm:$0xff]
        %v416 = vld [vmem:[%s3 + $0x180] sm:$0xff]
        %v417 = vld [vmem:[%s3 + $0x188] sm:$0xff]
        %v418 = vld [vmem:[%s3 + $0x190] sm:$0xff]
        %v419 = vld [vmem:[%s3 + $0x198] sm:$0xff]
        %v420 = vld [vmem:[%s3 + $0x1a0] sm:$0xff]
        %v421 = vld [vmem:[%s3 + $0x1a8] sm:$0xff]
        %v422 = vld [vmem:[%s3 + $0x1b0] sm:$0xff]
        %v423 = vld [vmem:[%s3 + $0x1b8] sm:$0xff]
        %v424 = vld [vmem:[%s3 + $0x1c0] sm:$0xff]
        %v425 = vld [vmem:[%s3 + $0x1c8] sm:$0xff]
        %v426 = vld [vmem:[%s3 + $0x1d0] sm:$0xff]
        %v427 = vld [vmem:[%s3 + $0x1d8] sm:$0xff]
        %v428 = vld [vmem:[%s3 + $0x1e0] sm:$0xff]
        %v429 = vld [vmem:[%s3 + $0x1e8] sm:$0xff]
        %v430 = vld [vmem:[%s3 + $0x1f0] sm:$0xff]
        %v431 = vld [vmem:[%s3 + $0x1f8] sm:$0xff]
        %v432 = vld [vmem:[%s3 + $0x200] sm:$0xff]
        %v433 = vld [vmem:[%s3 + $0x208] sm:$0xff]
        %v434 = vld [vmem:[%s3 + $0x210] sm:$0xff]
        %v435 = vld [vmem:[%s3 + $0x218] sm:$0xff]
        %v436 = vld [vmem:[%s3 + $0x220] sm:$0xff]
        %v437 = vld [vmem:[%s3 + $0x228] sm:$0xff]
        %v438 = vld [vmem:[%s3 + $0x230] sm:$0xff]
        %v439 = vld [vmem:[%s3 + $0x238] sm:$0xff]
        %v440 = vld [vmem:[%s3 + $0x240] sm:$0xff]
        %v441 = vld [vmem:[%s3 + $0x248] sm:$0xff]
        %v442 = vld [vmem:[%s3 + $0x250] sm:$0xff]
        %v443 = vld [vmem:[%s3 + $0x258] sm:$0xff]
        %v444 = vld [vmem:[%s3 + $0x260] sm:$0xff]
        %v445 = vld [vmem:[%s3 + $0x268] sm:$0xff]
        %v446 = vld [vmem:[%s3 + $0x270] sm:$0xff]
        %v447 = vld [vmem:[%s3 + $0x278] sm:$0xff]
        %v448 = vld [vmem:[%s4] sm:$0x1]
        %vm452 = vcmask 1041408
        %v453 = vrot.slane %v352, 6
        %v454 = vrot.slane %v357, 6
        %v455 = vsel %vm452, %v453, %v454
        %v456 = vrot.slane %v362, 6
        %v457 = vsel %vm452, %v454, %v456
        %v462 = vsel %vm452, 0.0, %v453
        %v463 = vsel %vm452, %v456, 0.0
        %vm466 = vcmask 1046528
        %v467 = vrot.slane %v462, 1
        %v468 = vrot.slane %v455, 1
        %v469 = vsel %vm466, %v467, %v468
        %v470 = vrot.slane %v457, 1
        %v471 = vsel %vm466, %v468, %v470
        %v472 = vrot.slane %v463, 1
        %v473 = vsel %vm466, %v470, %v472
        %vm477 = vcmask 1045504
        %v478 = vrot.slane %v462, 2
        %v479 = vrot.slane %v455, 2
        %v480 = vsel %vm477, %v478, %v479
        %v481 = vrot.slane %v457, 2
        %v482 = vsel %vm477, %v479, %v481
        %v483 = vrot.slane %v463, 2
        %v484 = vsel %vm477, %v481, %v483
        %vm488 = vcmask 1044480
        %v489 = vrot.slane %v462, 3
        %v490 = vrot.slane %v455, 3
        %v491 = vsel %vm488, %v489, %v490
        %v492 = vrot.slane %v457, 3
        %v493 = vsel %vm488, %v490, %v492
        %v494 = vrot.slane %v463, 3
        %v495 = vsel %vm488, %v492, %v494
        %vm499 = vcmask 1043456
        %v500 = vrot.slane %v462, 4
        %v501 = vrot.slane %v455, 4
        %v502 = vsel %vm499, %v500, %v501
        %v503 = vrot.slane %v457, 4
        %v504 = vsel %vm499, %v501, %v503
        %v505 = vrot.slane %v463, 4
        %v506 = vsel %vm499, %v503, %v505
        %v511 = vlaneseq
        %v512 = vshrl.u32 %v511, 7
        %v513 = vsub.s32 0, %v512
        %v514 = vrot.slane %v448, %v513
        %516 = vmatprep.subr.mxu0 0.0
        %517 = vmatpush1.msra.mxu0 %v368
        %518 = vmatprep.subr.mxu0 0.0
        %519 = vmatpush1.msra.mxu0 %v369
        %520 = vmatprep.subr.mxu0 0.0
        %521 = vmatpush1.msra.mxu0 %v370
        %522 = vmatprep.subr.mxu0 0.0
        %523 = vmatpush1.msra.mxu0 %v371
        %524 = vmatprep.subr.mxu0 0.0
        %525 = vmatpush1.msra.mxu0 %v372
        %526 = vmatprep.subr.mxu0 0.0
        %527 = vmatpush1.msra.mxu0 %v373
        %528 = vmatprep.subr.mxu0 0.0
        %529 = vmatpush1.msra.mxu0 %v374
        %530 = vmatprep.subr.mxu0 0.0
        %531 = vmatpush1.msra.mxu0 %v375
        %532 = vmatprep.subr.mxu0 0.0
        %533 = vmatpush1.msra.mxu0 %v376
        %534 = vmatprep.subr.mxu0 0.0
        %535 = vmatpush1.msra.mxu0 %v377
        %536 = vmatprep.subr.mxu0 0.0
        %537 = vmatpush1.msra.mxu0 %v378
        %538 = vmatprep.subr.mxu0 0.0
        %539 = vmatpush1.msra.mxu0 %v379
        %540 = vmatprep.subr.mxu0 0.0
        %541 = vmatpush1.msra.mxu0 %v380
        %542 = vmatprep.subr.mxu0 0.0
        %543 = vmatpush1.msra.mxu0 %v381
        %544 = vmatprep.subr.mxu0 0.0
        %545 = vmatpush1.msra.mxu0 %v382
        %546 = vmatprep.subr.mxu0 0.0
        %547 = vmatpush1.msra.mxu0 %v383
        %548 = vmatprep.subr.mxu0 0.0
        %549 = vmatpush1.msra.mxu0 %v384
        %550 = vmatprep.subr.mxu0 0.0
        %551 = vmatpush1.msra.mxu0 %v385
        %552 = vmatprep.subr.mxu0 0.0
        %553 = vmatpush1.msra.mxu0 %v386
        %554 = vmatprep.subr.mxu0 0.0
        %555 = vmatpush1.msra.mxu0 %v387
        %556 = vmatprep.subr.mxu0 0.0
        %557 = vmatpush1.msra.mxu0 %v388
        %558 = vmatprep.subr.mxu0 0.0
        %559 = vmatpush1.msra.mxu0 %v389
        %560 = vmatprep.subr.mxu0 0.0
        %561 = vmatpush1.msra.mxu0 %v390
        %562 = vmatprep.subr.mxu0 0.0
        %563 = vmatpush1.msra.mxu0 %v391
        %564 = vmatprep.subr.mxu0 0.0
        %565 = vmatpush1.msra.mxu0 %v392
        %566 = vmatprep.subr.mxu0 0.0
        %567 = vmatpush1.msra.mxu0 %v393
        %568 = vmatprep.subr.mxu0 0.0
        %569 = vmatpush1.msra.mxu0 %v394
        %570 = vmatprep.subr.mxu0 0.0
        %571 = vmatpush1.msra.mxu0 %v395
        %572 = vmatprep.subr.mxu0 0.0
        %573 = vmatpush1.msra.mxu0 %v396
        %574 = vmatprep.subr.mxu0 0.0
        %575 = vmatpush1.msra.mxu0 %v397
        %576 = vmatprep.subr.mxu0 0.0
        %577 = vmatpush1.msra.mxu0 %v398
        %578 = vmatprep.subr.mxu0 0.0
        %579 = vmatpush1.msra.mxu0 %v399
        %580 = vmatprep.mubr.f32.mxu0 %v469
        %581 = vmatmul.mubr.f32.gmra.mrb[0].mxu0 %v462
        %v582 = vpop.f32.mrb[0].mxu0
        %v583 = vadd.f32 %v514, %v582
        %v584 = vpop.f32.mrb[0].mxu0
        %585 = vmatprep.mubr.f32.mxu0 %v471
        %586 = vmatmul.mubr.f32.gmra.mrb[0].mxu0 %v455
        %v587 = vpop.f32.mrb[0].mxu0
        %v588 = vadd.f32 %v514, %v587
        %v589 = vpop.f32.mrb[0].mxu0
        %590 = vmatprep.mubr.f32.mxu0 %v473
        %591 = vmatmul.mubr.f32.gmra.mrb[0].mxu0 %v457
        %v592 = vpop.f32.mrb[0].mxu0
        %v593 = vadd.f32 %v514, %v592
        %v594 = vpop.f32.mrb[0].mxu0
        %595 = vdwg.mxu0
        %596 = vmatprep.subr.mxu0 0.0
        %597 = vmatpush1.msra.mxu0 %v400
        %598 = vmatprep.subr.mxu0 0.0
        %599 = vmatpush1.msra.mxu0 %v401
        %600 = vmatprep.subr.mxu0 0.0
        %601 = vmatpush1.msra.mxu0 %v402
        %602 = vmatprep.subr.mxu0 0.0
        %603 = vmatpush1.msra.mxu0 %v403
        %604 = vmatprep.subr.mxu0 0.0
        %605 = vmatpush1.msra.mxu0 %v404
        %606 = vmatprep.subr.mxu0 0.0
        %607 = vmatpush1.msra.mxu0 %v405
        %608 = vmatprep.subr.mxu0 0.0
        %609 = vmatpush1.msra.mxu0 %v406
        %610 = vmatprep.subr.mxu0 0.0
        %611 = vmatpush1.msra.mxu0 %v407
        %612 = vmatprep.subr.mxu0 0.0
        %613 = vmatpush1.msra.mxu0 %v408
        %614 = vmatprep.subr.mxu0 0.0
        %615 = vmatpush1.msra.mxu0 %v409
        %616 = vmatprep.subr.mxu0 0.0
        %617 = vmatpush1.msra.mxu0 %v410
        %618 = vmatprep.subr.mxu0 0.0
        %619 = vmatpush1.msra.mxu0 %v411
        %620 = vmatprep.subr.mxu0 0.0
        %621 = vmatpush1.msra.mxu0 %v412
        %622 = vmatprep.subr.mxu0 0.0
        %623 = vmatpush1.msra.mxu0 %v413
        %624 = vmatprep.subr.mxu0 0.0
        %625 = vmatpush1.msra.mxu0 %v414
        %626 = vmatprep.subr.mxu0 0.0
        %627 = vmatpush1.msra.mxu0 %v415
        %628 = vmatprep.subr.mxu0 0.0
        %629 = vmatpush1.msra.mxu0 %v416
        %630 = vmatprep.subr.mxu0 0.0
        %631 = vmatpush1.msra.mxu0 %v417
        %632 = vmatprep.subr.mxu0 0.0
        %633 = vmatpush1.msra.mxu0 %v418
        %634 = vmatprep.subr.mxu0 0.0
        %635 = vmatpush1.msra.mxu0 %v419
        %636 = vmatprep.subr.mxu0 0.0
        %637 = vmatpush1.msra.mxu0 %v420
        %638 = vmatprep.subr.mxu0 0.0
        %639 = vmatpush1.msra.mxu0 %v421
        %640 = vmatprep.subr.mxu0 0.0
        %641 = vmatpush1.msra.mxu0 %v422
        %642 = vmatprep.subr.mxu0 0.0
        %643 = vmatpush1.msra.mxu0 %v423
        %644 = vmatprep.subr.mxu0 0.0
        %645 = vmatpush1.msra.mxu0 %v424
        %646 = vmatprep.subr.mxu0 0.0
        %647 = vmatpush1.msra.mxu0 %v425
        %648 = vmatprep.subr.mxu0 0.0
        %649 = vmatpush1.msra.mxu0 %v426
        %650 = vmatprep.subr.mxu0 0.0
        %651 = vmatpush1.msra.mxu0 %v427
        %652 = vmatprep.subr.mxu0 0.0
        %653 = vmatpush1.msra.mxu0 %v428
        %654 = vmatprep.subr.mxu0 0.0
        %655 = vmatpush1.msra.mxu0 %v429
        %656 = vmatprep.subr.mxu0 0.0
        %657 = vmatpush1.msra.mxu0 %v430
        %658 = vmatprep.subr.mxu0 0.0
        %659 = vmatpush1.msra.mxu0 %v431
        %660 = vmatprep.mubr.f32.mxu0 %v491
        %661 = vmatmul.mubr.f32.gmra.mrb[0].mxu0 %v480
        %v662 = vpop.f32.mrb[0].mxu0
        %v663 = vadd.f32 %v583, %v662
        %v664 = vpop.f32.mrb[0].mxu0
        %665 = vmatprep.mubr.f32.mxu0 %v493
        %666 = vmatmul.mubr.f32.gmra.mrb[0].mxu0 %v482
        %v667 = vpop.f32.mrb[0].mxu0
        %v668 = vadd.f32 %v588, %v667
        %v669 = vpop.f32.mrb[0].mxu0
        %670 = vmatprep.mubr.f32.mxu0 %v495
        %671 = vmatmul.mubr.f32.gmra.mrb[0].mxu0 %v484
        %v672 = vpop.f32.mrb[0].mxu0
        %v673 = vadd.f32 %v593, %v672
        %v674 = vpop.f32.mrb[0].mxu0
        %675 = vdwg.mxu0
        %676 = vmatprep.subr.mxu0 0.0
        %677 = vmatpush1.msra.mxu0 %v432
        %678 = vmatprep.subr.mxu0 0.0
        %679 = vmatpush1.msra.mxu0 %v433
        %680 = vmatprep.subr.mxu0 0.0
        %681 = vmatpush1.msra.mxu0 %v434
        %682 = vmatprep.subr.mxu0 0.0
        %683 = vmatpush1.msra.mxu0 %v435
        %684 = vmatprep.subr.mxu0 0.0
        %685 = vmatpush1.msra.mxu0 %v436
        %686 = vmatprep.subr.mxu0 0.0
        %687 = vmatpush1.msra.mxu0 %v437
        %688 = vmatprep.subr.mxu0 0.0
        %689 = vmatpush1.msra.mxu0 %v438
        %690 = vmatprep.subr.mxu0 0.0
        %691 = vmatpush1.msra.mxu0 %v439
        %692 = vmatprep.subr.mxu0 0.0
        %693 = vmatpush1.msra.mxu0 %v440
        %694 = vmatprep.subr.mxu0 0.0
        %695 = vmatpush1.msra.mxu0 %v441
        %696 = vmatprep.subr.mxu0 0.0
        %697 = vmatpush1.msra.mxu0 %v442
        %698 = vmatprep.subr.mxu0 0.0
        %699 = vmatpush1.msra.mxu0 %v443
        %700 = vmatprep.subr.mxu0 0.0
        %701 = vmatpush1.msra.mxu0 %v444
        %702 = vmatprep.subr.mxu0 0.0
        %703 = vmatpush1.msra.mxu0 %v445
        %704 = vmatprep.subr.mxu0 0.0
        %705 = vmatpush1.msra.mxu0 %v446
        %706 = vmatprep.subr.mxu0 0.0
        %707 = vmatpush1.msra.mxu0 %v447
        %708 = vmatprep.subr.mxu0 0.0
        %709 = vmatpush1.msra.mxu0 0.0
        %710 = vmatprep.subr.mxu0 0.0
        %711 = vmatpush1.msra.mxu0 0.0
        %712 = vmatprep.subr.mxu0 0.0
        %713 = vmatpush1.msra.mxu0 0.0
        %714 = vmatprep.subr.mxu0 0.0
        %715 = vmatpush1.msra.mxu0 0.0
        %716 = vmatprep.subr.mxu0 0.0
        %717 = vmatpush1.msra.mxu0 0.0
        %718 = vmatprep.subr.mxu0 0.0
        %719 = vmatpush1.msra.mxu0 0.0
        %720 = vmatprep.subr.mxu0 0.0
        %721 = vmatpush1.msra.mxu0 0.0
        %722 = vmatprep.subr.mxu0 0.0
        %723 = vmatpush1.msra.mxu0 0.0
        %724 = vmatprep.subr.mxu0 0.0
        %725 = vmatpush1.msra.mxu0 0.0
        %726 = vmatprep.subr.mxu0 0.0
        %727 = vmatpush1.msra.mxu0 0.0
        %728 = vmatprep.subr.mxu0 0.0
        %729 = vmatpush1.msra.mxu0 0.0
        %730 = vmatprep.subr.mxu0 0.0
        %731 = vmatpush1.msra.mxu0 0.0
        %732 = vmatprep.subr.mxu0 0.0
        %733 = vmatpush1.msra.mxu0 0.0
        %734 = vmatprep.subr.mxu0 0.0
        %735 = vmatpush1.msra.mxu0 0.0
        %736 = vmatprep.subr.mxu0 0.0
        %737 = vmatpush1.msra.mxu0 0.0
        %738 = vmatprep.subr.mxu0 0.0
        %739 = vmatpush1.msra.mxu0 0.0
        %740 = vmatprep.mubr.f32.mxu0 0.0
        %741 = vmatmul.mubr.f32.gmra.mrb[0].mxu0 %v502
        %v742 = vpop.f32.mrb[0].mxu0
        %v743 = vadd.f32 %v663, %v742
        %v744 = vpop.f32.mrb[0].mxu0
        %745 = vmatprep.mubr.f32.mxu0 0.0
        %746 = vmatmul.mubr.f32.gmra.mrb[0].mxu0 %v504
        %v747 = vpop.f32.mrb[0].mxu0
        %v748 = vadd.f32 %v668, %v747
        %v749 = vpop.f32.mrb[0].mxu0
        %750 = vmatprep.mubr.f32.mxu0 0.0
        %751 = vmatmul.mubr.f32.gmra.mrb[0].mxu0 %v506
        %v752 = vpop.f32.mrb[0].mxu0
        %v753 = vadd.f32 %v673, %v752
        %v754 = vpop.f32.mrb[0].mxu0
        %755 = vdwg.mxu0
        %v756 = vtanh.pop %v743
        %v757 = vtanh.pop %v748
        %v758 = vtanh.pop %v753
        %s759 = scalar_lea.vmem %s3, 640
        %v760 = vld [vmem:[%s759] sm:$0xff]
        %v761 = vld [vmem:[%s759 + $0x8] sm:$0xff]
        %v762 = vld [vmem:[%s759 + $0x10] sm:$0xff]
        %v763 = vld [vmem:[%s759 + $0x18] sm:$0xff]
        %v764 = vld [vmem:[%s759 + $0x20] sm:$0xff]
        %v765 = vld [vmem:[%s759 + $0x28] sm:$0xff]
        %v766 = vld [vmem:[%s759 + $0x30] sm:$0xff]
        %v767 = vld [vmem:[%s759 + $0x38] sm:$0xff]
        %v768 = vld [vmem:[%s759 + $0x40] sm:$0xff]
        %v769 = vld [vmem:[%s759 + $0x48] sm:$0xff]
        %v770 = vld [vmem:[%s759 + $0x50] sm:$0xff]
        %v771 = vld [vmem:[%s759 + $0x58] sm:$0xff]
        %v772 = vld [vmem:[%s759 + $0x60] sm:$0xff]
        %v773 = vld [vmem:[%s759 + $0x68] sm:$0xff]
        %v774 = vld [vmem:[%s759 + $0x70] sm:$0xff]
        %v775 = vld [vmem:[%s759 + $0x78] sm:$0xff]
        %v776 = vld [vmem:[%s759 + $0x80] sm:$0xff]
        %v777 = vld [vmem:[%s759 + $0x88] sm:$0xff]
        %v778 = vld [vmem:[%s759 + $0x90] sm:$0xff]
        %v779 = vld [vmem:[%s759 + $0x98] sm:$0xff]
        %v780 = vld [vmem:[%s759 + $0xa0] sm:$0xff]
        %v781 = vld [vmem:[%s759 + $0xa8] sm:$0xff]
        %v782 = vld [vmem:[%s759 + $0xb0] sm:$0xff]
        %v783 = vld [vmem:[%s759 + $0xb8] sm:$0xff]
        %v784 = vld [vmem:[%s759 + $0xc0] sm:$0xff]
        %v785 = vld [vmem:[%s759 + $0xc8] sm:$0xff]
        %v786 = vld [vmem:[%s759 + $0xd0] sm:$0xff]
        %v787 = vld [vmem:[%s759 + $0xd8] sm:$0xff]
        %v788 = vld [vmem:[%s759 + $0xe0] sm:$0xff]
        %v789 = vld [vmem:[%s759 + $0xe8] sm:$0xff]
        %v790 = vld [vmem:[%s759 + $0xf0] sm:$0xff]
        %v791 = vld [vmem:[%s759 + $0xf8] sm:$0xff]
        %v792 = vld [vmem:[%s759 + $0x100] sm:$0xff]
        %v793 = vld [vmem:[%s759 + $0x108] sm:$0xff]
        %v794 = vld [vmem:[%s759 + $0x110] sm:$0xff]
        %v795 = vld [vmem:[%s759 + $0x118] sm:$0xff]
        %v796 = vld [vmem:[%s759 + $0x120] sm:$0xff]
        %v797 = vld [vmem:[%s759 + $0x128] sm:$0xff]
        %v798 = vld [vmem:[%s759 + $0x130] sm:$0xff]
        %v799 = vld [vmem:[%s759 + $0x138] sm:$0xff]
        %v800 = vld [vmem:[%s759 + $0x140] sm:$0xff]
        %v801 = vld [vmem:[%s759 + $0x148] sm:$0xff]
        %v802 = vld [vmem:[%s759 + $0x150] sm:$0xff]
        %v803 = vld [vmem:[%s759 + $0x158] sm:$0xff]
        %v804 = vld [vmem:[%s759 + $0x160] sm:$0xff]
        %v805 = vld [vmem:[%s759 + $0x168] sm:$0xff]
        %v806 = vld [vmem:[%s759 + $0x170] sm:$0xff]
        %v807 = vld [vmem:[%s759 + $0x178] sm:$0xff]
        %v808 = vld [vmem:[%s759 + $0x180] sm:$0xff]
        %v809 = vld [vmem:[%s759 + $0x188] sm:$0xff]
        %v810 = vld [vmem:[%s759 + $0x190] sm:$0xff]
        %v811 = vld [vmem:[%s759 + $0x198] sm:$0xff]
        %v812 = vld [vmem:[%s759 + $0x1a0] sm:$0xff]
        %v813 = vld [vmem:[%s759 + $0x1a8] sm:$0xff]
        %v814 = vld [vmem:[%s759 + $0x1b0] sm:$0xff]
        %v815 = vld [vmem:[%s759 + $0x1b8] sm:$0xff]
        %v816 = vld [vmem:[%s759 + $0x1c0] sm:$0xff]
        %v817 = vld [vmem:[%s759 + $0x1c8] sm:$0xff]
        %v818 = vld [vmem:[%s759 + $0x1d0] sm:$0xff]
        %v819 = vld [vmem:[%s759 + $0x1d8] sm:$0xff]
        %v820 = vld [vmem:[%s759 + $0x1e0] sm:$0xff]
        %v821 = vld [vmem:[%s759 + $0x1e8] sm:$0xff]
        %v822 = vld [vmem:[%s759 + $0x1f0] sm:$0xff]
        %v823 = vld [vmem:[%s759 + $0x1f8] sm:$0xff]
        %v824 = vld [vmem:[%s759 + $0x200] sm:$0xff]
        %v825 = vld [vmem:[%s759 + $0x208] sm:$0xff]
        %v826 = vld [vmem:[%s759 + $0x210] sm:$0xff]
        %v827 = vld [vmem:[%s759 + $0x218] sm:$0xff]
        %v828 = vld [vmem:[%s759 + $0x220] sm:$0xff]
        %v829 = vld [vmem:[%s759 + $0x228] sm:$0xff]
        %v830 = vld [vmem:[%s759 + $0x230] sm:$0xff]
        %v831 = vld [vmem:[%s759 + $0x238] sm:$0xff]
        %v832 = vld [vmem:[%s759 + $0x240] sm:$0xff]
        %v833 = vld [vmem:[%s759 + $0x248] sm:$0xff]
        %v834 = vld [vmem:[%s759 + $0x250] sm:$0xff]
        %v835 = vld [vmem:[%s759 + $0x258] sm:$0xff]
        %v836 = vld [vmem:[%s759 + $0x260] sm:$0xff]
        %v837 = vld [vmem:[%s759 + $0x268] sm:$0xff]
        %v838 = vld [vmem:[%s759 + $0x270] sm:$0xff]
        %v839 = vld [vmem:[%s759 + $0x278] sm:$0xff]
        %s840 = scalar_lea.vmem %s4, 1
        %v841 = vld [vmem:[%s840] sm:$0x1]
        %v845 = vrot.slane %v756, 6
        %v846 = vrot.slane %v757, 6
        %v847 = vsel %vm452, %v845, %v846
        %v848 = vrot.slane %v758, 6
        %v849 = vsel %vm452, %v846, %v848
        %v854 = vsel %vm452, 0.0, %v845
        %v855 = vsel %vm452, %v848, 0.0
        %v858 = vrot.slane %v854, 1
        %v859 = vrot.slane %v847, 1
        %v860 = vsel %vm466, %v858, %v859
        %v861 = vrot.slane %v849, 1
        %v862 = vsel %vm466, %v859, %v861
        %v863 = vrot.slane %v855, 1
        %v864 = vsel %vm466, %v861, %v863
        %v868 = vrot.slane %v854, 2
        %v869 = vrot.slane %v847, 2
        %v870 = vsel %vm477, %v868, %v869
        %v871 = vrot.slane %v849, 2
        %v872 = vsel %vm477, %v869, %v871
        %v873 = vrot.slane %v855, 2
        %v874 = vsel %vm477, %v871, %v873
        %v878 = vrot.slane %v854, 3
        %v879 = vrot.slane %v847, 3
        %v880 = vsel %vm488, %v878, %v879
        %v881 = vrot.slane %v849, 3
        %v882 = vsel %vm488, %v879, %v881
        %v883 = vrot.slane %v855, 3
        %v884 = vsel %vm488, %v881, %v883
        %v888 = vrot.slane %v854, 4
        %v889 = vrot.slane %v847, 4
        %v890 = vsel %vm499, %v888, %v889
        %v891 = vrot.slane %v849, 4
        %v892 = vsel %vm499, %v889, %v891
        %v893 = vrot.slane %v855, 4
        %v894 = vsel %vm499, %v891, %v893
        %v899 = vlaneseq
        %v900 = vshrl.u32 %v899, 7
        %v901 = vsub.s32 0, %v900
        %v902 = vrot.slane %v841, %v901
        %904 = vmatprep.subr.mxu0 0.0
        %905 = vmatpush1.msra.mxu0 %v760
        %906 = vmatprep.subr.mxu0 0.0
        %907 = vmatpush1.msra.mxu0 %v761
        %908 = vmatprep.subr.mxu0 0.0
        %909 = vmatpush1.msra.mxu0 %v762
        %910 = vmatprep.subr.mxu0 0.0
        %911 = vmatpush1.msra.mxu0 %v763
        %912 = vmatprep.subr.mxu0 0.0
        %913 = vmatpush1.msra.mxu0 %v764
        %914 = vmatprep.subr.mxu0 0.0
        %915 = vmatpush1.msra.mxu0 %v765
        %916 = vmatprep.subr.mxu0 0.0
        %917 = vmatpush1.msra.mxu0 %v766
        %918 = vmatprep.subr.mxu0 0.0
        %919 = vmatpush1.msra.mxu0 %v767
        %920 = vmatprep.subr.mxu0 0.0
        %921 = vmatpush1.msra.mxu0 %v768
        %922 = vmatprep.subr.mxu0 0.0
        %923 = vmatpush1.msra.mxu0 %v769
        %924 = vmatprep.subr.mxu0 0.0
        %925 = vmatpush1.msra.mxu0 %v770
        %926 = vmatprep.subr.mxu0 0.0
        %927 = vmatpush1.msra.mxu0 %v771
        %928 = vmatprep.subr.mxu0 0.0
        %929 = vmatpush1.msra.mxu0 %v772
        %930 = vmatprep.subr.mxu0 0.0
        %931 = vmatpush1.msra.mxu0 %v773
        %932 = vmatprep.subr.mxu0 0.0
        %933 = vmatpush1.msra.mxu0 %v774
        %934 = vmatprep.subr.mxu0 0.0
        %935 = vmatpush1.msra.mxu0 %v775
        %936 = vmatprep.subr.mxu0 0.0
        %937 = vmatpush1.msra.mxu0 %v776
        %938 = vmatprep.subr.mxu0 0.0
        %939 = vmatpush1.msra.mxu0 %v777
        %940 = vmatprep.subr.mxu0 0.0
        %941 = vmatpush1.msra.mxu0 %v778
        %942 = vmatprep.subr.mxu0 0.0
        %943 = vmatpush1.msra.mxu0 %v779
        %944 = vmatprep.subr.mxu0 0.0
        %945 = vmatpush1.msra.mxu0 %v780
        %946 = vmatprep.subr.mxu0 0.0
        %947 = vmatpush1.msra.mxu0 %v781
        %948 = vmatprep.subr.mxu0 0.0
        %949 = vmatpush1.msra.mxu0 %v782
        %950 = vmatprep.subr.mxu0 0.0
        %951 = vmatpush1.msra.mxu0 %v783
        %952 = vmatprep.subr.mxu0 0.0
        %953 = vmatpush1.msra.mxu0 %v784
        %954 = vmatprep.subr.mxu0 0.0
        %955 = vmatpush1.msra.mxu0 %v785
        %956 = vmatprep.subr.mxu0 0.0
        %957 = vmatpush1.msra.mxu0 %v786
        %958 = vmatprep.subr.mxu0 0.0
        %959 = vmatpush1.msra.mxu0 %v787
        %960 = vmatprep.subr.mxu0 0.0
        %961 = vmatpush1.msra.mxu0 %v788
        %962 = vmatprep.subr.mxu0 0.0
        %963 = vmatpush1.msra.mxu0 %v789
        %964 = vmatprep.subr.mxu0 0.0
        %965 = vmatpush1.msra.mxu0 %v790
        %966 = vmatprep.subr.mxu0 0.0
        %967 = vmatpush1.msra.mxu0 %v791
        %968 = vmatprep.mubr.f32.mxu0 %v860
        %969 = vmatmul.mubr.f32.gmra.mrb[0].mxu0 %v854
        %v970 = vpop.f32.mrb[0].mxu0
        %v971 = vadd.f32 %v902, %v970
        %v972 = vpop.f32.mrb[0].mxu0
        %973 = vmatprep.mubr.f32.mxu0 %v862
        %974 = vmatmul.mubr.f32.gmra.mrb[0].mxu0 %v847
        %v975 = vpop.f32.mrb[0].mxu0
        %v976 = vadd.f32 %v902, %v975
        %v977 = vpop.f32.mrb[0].mxu0
        %978 = vmatprep.mubr.f32.mxu0 %v864
        %979 = vmatmul.mubr.f32.gmra.mrb[0].mxu0 %v849
        %v980 = vpop.f32.mrb[0].mxu0
        %v981 = vadd.f32 %v902, %v980
        %v982 = vpop.f32.mrb[0].mxu0
        %983 = vdwg.mxu0
        %984 = vmatprep.subr.mxu0 0.0
        %985 = vmatpush1.msra.mxu0 %v792
        %986 = vmatprep.subr.mxu0 0.0
        %987 = vmatpush1.msra.mxu0 %v793
        %988 = vmatprep.subr.mxu0 0.0
        %989 = vmatpush1.msra.mxu0 %v794
        %990 = vmatprep.subr.mxu0 0.0
        %991 = vmatpush1.msra.mxu0 %v795
        %992 = vmatprep.subr.mxu0 0.0
        %993 = vmatpush1.msra.mxu0 %v796
        %994 = vmatprep.subr.mxu0 0.0
        %995 = vmatpush1.msra.mxu0 %v797
        %996 = vmatprep.subr.mxu0 0.0
        %997 = vmatpush1.msra.mxu0 %v798
        %998 = vmatprep.subr.mxu0 0.0
        %999 = vmatpush1.msra.mxu0 %v799
        %1000 = vmatprep.subr.mxu0 0.0
        %1001 = vmatpush1.msra.mxu0 %v800
        %1002 = vmatprep.subr.mxu0 0.0
        %1003 = vmatpush1.msra.mxu0 %v801
        %1004 = vmatprep.subr.mxu0 0.0
        %1005 = vmatpush1.msra.mxu0 %v802
        %1006 = vmatprep.subr.mxu0 0.0
        %1007 = vmatpush1.msra.mxu0 %v803
        %1008 = vmatprep.subr.mxu0 0.0
        %1009 = vmatpush1.msra.mxu0 %v804
        %1010 = vmatprep.subr.mxu0 0.0
        %1011 = vmatpush1.msra.mxu0 %v805
        %1012 = vmatprep.subr.mxu0 0.0
        %1013 = vmatpush1.msra.mxu0 %v806
        %1014 = vmatprep.subr.mxu0 0.0
        %1015 = vmatpush1.msra.mxu0 %v807
        %1016 = vmatprep.subr.mxu0 0.0
        %1017 = vmatpush1.msra.mxu0 %v808
        %1018 = vmatprep.subr.mxu0 0.0
        %1019 = vmatpush1.msra.mxu0 %v809
        %1020 = vmatprep.subr.mxu0 0.0
        %1021 = vmatpush1.msra.mxu0 %v810
        %1022 = vmatprep.subr.mxu0 0.0
        %1023 = vmatpush1.msra.mxu0 %v811
        %1024 = vmatprep.subr.mxu0 0.0
        %1025 = vmatpush1.msra.mxu0 %v812
        %1026 = vmatprep.subr.mxu0 0.0
        %1027 = vmatpush1.msra.mxu0 %v813
        %1028 = vmatprep.subr.mxu0 0.0
        %1029 = vmatpush1.msra.mxu0 %v814
        %1030 = vmatprep.subr.mxu0 0.0
        %1031 = vmatpush1.msra.mxu0 %v815
        %1032 = vmatprep.subr.mxu0 0.0
        %1033 = vmatpush1.msra.mxu0 %v816
        %1034 = vmatprep.subr.mxu0 0.0
        %1035 = vmatpush1.msra.mxu0 %v817
        %1036 = vmatprep.subr.mxu0 0.0
        %1037 = vmatpush1.msra.mxu0 %v818
        %1038 = vmatprep.subr.mxu0 0.0
        %1039 = vmatpush1.msra.mxu0 %v819
        %1040 = vmatprep.subr.mxu0 0.0
        %1041 = vmatpush1.msra.mxu0 %v820
        %1042 = vmatprep.subr.mxu0 0.0
        %1043 = vmatpush1.msra.mxu0 %v821
        %1044 = vmatprep.subr.mxu0 0.0
        %1045 = vmatpush1.msra.mxu0 %v822
        %1046 = vmatprep.subr.mxu0 0.0
        %1047 = vmatpush1.msra.mxu0 %v823
        %1048 = vmatprep.mubr.f32.mxu0 %v880
        %1049 = vmatmul.mubr.f32.gmra.mrb[0].mxu0 %v870
        %v1050 = vpop.f32.mrb[0].mxu0
        %v1051 = vadd.f32 %v971, %v1050
        %v1052 = vpop.f32.mrb[0].mxu0
        %1053 = vmatprep.mubr.f32.mxu0 %v882
        %1054 = vmatmul.mubr.f32.gmra.mrb[0].mxu0 %v872
        %v1055 = vpop.f32.mrb[0].mxu0
        %v1056 = vadd.f32 %v976, %v1055
        %v1057 = vpop.f32.mrb[0].mxu0
        %1058 = vmatprep.mubr.f32.mxu0 %v884
        %1059 = vmatmul.mubr.f32.gmra.mrb[0].mxu0 %v874
        %v1060 = vpop.f32.mrb[0].mxu0
        %v1061 = vadd.f32 %v981, %v1060
        %v1062 = vpop.f32.mrb[0].mxu0
        %1063 = vdwg.mxu0
        %1064 = vmatprep.subr.mxu0 0.0
        %1065 = vmatpush1.msra.mxu0 %v824
        %1066 = vmatprep.subr.mxu0 0.0
        %1067 = vmatpush1.msra.mxu0 %v825
        %1068 = vmatprep.subr.mxu0 0.0
        %1069 = vmatpush1.msra.mxu0 %v826
        %1070 = vmatprep.subr.mxu0 0.0
        %1071 = vmatpush1.msra.mxu0 %v827
        %1072 = vmatprep.subr.mxu0 0.0
        %1073 = vmatpush1.msra.mxu0 %v828
        %1074 = vmatprep.subr.mxu0 0.0
        %1075 = vmatpush1.msra.mxu0 %v829
        %1076 = vmatprep.subr.mxu0 0.0
        %1077 = vmatpush1.msra.mxu0 %v830
        %1078 = vmatprep.subr.mxu0 0.0
        %1079 = vmatpush1.msra.mxu0 %v831
        %1080 = vmatprep.subr.mxu0 0.0
        %1081 = vmatpush1.msra.mxu0 %v832
        %1082 = vmatprep.subr.mxu0 0.0
        %1083 = vmatpush1.msra.mxu0 %v833
        %1084 = vmatprep.subr.mxu0 0.0
        %1085 = vmatpush1.msra.mxu0 %v834
        %1086 = vmatprep.subr.mxu0 0.0
        %1087 = vmatpush1.msra.mxu0 %v835
        %1088 = vmatprep.subr.mxu0 0.0
        %1089 = vmatpush1.msra.mxu0 %v836
        %1090 = vmatprep.subr.mxu0 0.0
        %1091 = vmatpush1.msra.mxu0 %v837
        %1092 = vmatprep.subr.mxu0 0.0
        %1093 = vmatpush1.msra.mxu0 %v838
        %1094 = vmatprep.subr.mxu0 0.0
        %1095 = vmatpush1.msra.mxu0 %v839
        %1096 = vmatprep.subr.mxu0 0.0
        %1097 = vmatpush1.msra.mxu0 0.0
        %1098 = vmatprep.subr.mxu0 0.0
        %1099 = vmatpush1.msra.mxu0 0.0
        %1100 = vmatprep.subr.mxu0 0.0
        %1101 = vmatpush1.msra.mxu0 0.0
        %1102 = vmatprep.subr.mxu0 0.0
        %1103 = vmatpush1.msra.mxu0 0.0
        %1104 = vmatprep.subr.mxu0 0.0
        %1105 = vmatpush1.msra.mxu0 0.0
        %1106 = vmatprep.subr.mxu0 0.0
        %1107 = vmatpush1.msra.mxu0 0.0
        %1108 = vmatprep.subr.mxu0 0.0
        %1109 = vmatpush1.msra.mxu0 0.0
        %1110 = vmatprep.subr.mxu0 0.0
        %1111 = vmatpush1.msra.mxu0 0.0
        %1112 = vmatprep.subr.mxu0 0.0
        %1113 = vmatpush1.msra.mxu0 0.0
        %1114 = vmatprep.subr.mxu0 0.0
        %1115 = vmatpush1.msra.mxu0 0.0
        %1116 = vmatprep.subr.mxu0 0.0
        %1117 = vmatpush1.msra.mxu0 0.0
        %1118 = vmatprep.subr.mxu0 0.0
        %1119 = vmatpush1.msra.mxu0 0.0
        %1120 = vmatprep.subr.mxu0 0.0
        %1121 = vmatpush1.msra.mxu0 0.0
        %1122 = vmatprep.subr.mxu0 0.0
        %1123 = vmatpush1.msra.mxu0 0.0
        %1124 = vmatprep.subr.mxu0 0.0
        %1125 = vmatpush1.msra.mxu0 0.0
        %1126 = vmatprep.subr.mxu0 0.0
        %1127 = vmatpush1.msra.mxu0 0.0
        %1128 = vmatprep.mubr.f32.mxu0 0.0
        %1129 = vmatmul.mubr.f32.gmra.mrb[0].mxu0 %v890
        %v1130 = vpop.f32.mrb[0].mxu0
        %v1131 = vadd.f32 %v1051, %v1130
        %v1132 = vpop.f32.mrb[0].mxu0
        %1133 = vmatprep.mubr.f32.mxu0 0.0
        %1134 = vmatmul.mubr.f32.gmra.mrb[0].mxu0 %v892
        %v1135 = vpop.f32.mrb[0].mxu0
        %v1136 = vadd.f32 %v1056, %v1135
        %v1137 = vpop.f32.mrb[0].mxu0
        %1138 = vmatprep.mubr.f32.mxu0 0.0
        %1139 = vmatmul.mubr.f32.gmra.mrb[0].mxu0 %v894
        %v1140 = vpop.f32.mrb[0].mxu0
        %v1141 = vadd.f32 %v1061, %v1140
        %v1142 = vpop.f32.mrb[0].mxu0
        %1143 = vdwg.mxu0
        %v1144 = vtanh.pop %v1131
        %v1145 = vtanh.pop %v1136
        %v1146 = vtanh.pop %v1141
        %s1147 = scalar_lea.vmem %s3, 1280
        %v1148 = vld [vmem:[%s1147] sm:$0xff]
        %v1149 = vld [vmem:[%s1147 + $0x8] sm:$0xff]
        %v1150 = vld [vmem:[%s1147 + $0x10] sm:$0xff]
        %v1151 = vld [vmem:[%s1147 + $0x18] sm:$0xff]
        %v1152 = vld [vmem:[%s1147 + $0x20] sm:$0xff]
        %v1153 = vld [vmem:[%s1147 + $0x28] sm:$0xff]
        %v1154 = vld [vmem:[%s1147 + $0x30] sm:$0xff]
        %v1155 = vld [vmem:[%s1147 + $0x38] sm:$0xff]
        %v1156 = vld [vmem:[%s1147 + $0x40] sm:$0xff]
        %v1157 = vld [vmem:[%s1147 + $0x48] sm:$0xff]
        %v1158 = vld [vmem:[%s1147 + $0x50] sm:$0xff]
        %v1159 = vld [vmem:[%s1147 + $0x58] sm:$0xff]
        %v1160 = vld [vmem:[%s1147 + $0x60] sm:$0xff]
        %v1161 = vld [vmem:[%s1147 + $0x68] sm:$0xff]
        %v1162 = vld [vmem:[%s1147 + $0x70] sm:$0xff]
        %v1163 = vld [vmem:[%s1147 + $0x78] sm:$0xff]
        %v1164 = vld [vmem:[%s1147 + $0x80] sm:$0xff]
        %v1165 = vld [vmem:[%s1147 + $0x88] sm:$0xff]
        %v1166 = vld [vmem:[%s1147 + $0x90] sm:$0xff]
        %v1167 = vld [vmem:[%s1147 + $0x98] sm:$0xff]
        %v1168 = vld [vmem:[%s1147 + $0xa0] sm:$0xff]
        %v1169 = vld [vmem:[%s1147 + $0xa8] sm:$0xff]
        %v1170 = vld [vmem:[%s1147 + $0xb0] sm:$0xff]
        %v1171 = vld [vmem:[%s1147 + $0xb8] sm:$0xff]
        %v1172 = vld [vmem:[%s1147 + $0xc0] sm:$0xff]
        %v1173 = vld [vmem:[%s1147 + $0xc8] sm:$0xff]
        %v1174 = vld [vmem:[%s1147 + $0xd0] sm:$0xff]
        %v1175 = vld [vmem:[%s1147 + $0xd8] sm:$0xff]
        %v1176 = vld [vmem:[%s1147 + $0xe0] sm:$0xff]
        %v1177 = vld [vmem:[%s1147 + $0xe8] sm:$0xff]
        %v1178 = vld [vmem:[%s1147 + $0xf0] sm:$0xff]
        %v1179 = vld [vmem:[%s1147 + $0xf8] sm:$0xff]
        %v1180 = vld [vmem:[%s1147 + $0x100] sm:$0xff]
        %v1181 = vld [vmem:[%s1147 + $0x108] sm:$0xff]
        %v1182 = vld [vmem:[%s1147 + $0x110] sm:$0xff]
        %v1183 = vld [vmem:[%s1147 + $0x118] sm:$0xff]
        %v1184 = vld [vmem:[%s1147 + $0x120] sm:$0xff]
        %v1185 = vld [vmem:[%s1147 + $0x128] sm:$0xff]
        %v1186 = vld [vmem:[%s1147 + $0x130] sm:$0xff]
        %v1187 = vld [vmem:[%s1147 + $0x138] sm:$0xff]
        %v1188 = vld [vmem:[%s1147 + $0x140] sm:$0xff]
        %v1189 = vld [vmem:[%s1147 + $0x148] sm:$0xff]
        %v1190 = vld [vmem:[%s1147 + $0x150] sm:$0xff]
        %v1191 = vld [vmem:[%s1147 + $0x158] sm:$0xff]
        %v1192 = vld [vmem:[%s1147 + $0x160] sm:$0xff]
        %v1193 = vld [vmem:[%s1147 + $0x168] sm:$0xff]
        %v1194 = vld [vmem:[%s1147 + $0x170] sm:$0xff]
        %v1195 = vld [vmem:[%s1147 + $0x178] sm:$0xff]
        %v1196 = vld [vmem:[%s1147 + $0x180] sm:$0xff]
        %v1197 = vld [vmem:[%s1147 + $0x188] sm:$0xff]
        %v1198 = vld [vmem:[%s1147 + $0x190] sm:$0xff]
        %v1199 = vld [vmem:[%s1147 + $0x198] sm:$0xff]
        %v1200 = vld [vmem:[%s1147 + $0x1a0] sm:$0xff]
        %v1201 = vld [vmem:[%s1147 + $0x1a8] sm:$0xff]
        %v1202 = vld [vmem:[%s1147 + $0x1b0] sm:$0xff]
        %v1203 = vld [vmem:[%s1147 + $0x1b8] sm:$0xff]
        %v1204 = vld [vmem:[%s1147 + $0x1c0] sm:$0xff]
        %v1205 = vld [vmem:[%s1147 + $0x1c8] sm:$0xff]
        %v1206 = vld [vmem:[%s1147 + $0x1d0] sm:$0xff]
        %v1207 = vld [vmem:[%s1147 + $0x1d8] sm:$0xff]
        %v1208 = vld [vmem:[%s1147 + $0x1e0] sm:$0xff]
        %v1209 = vld [vmem:[%s1147 + $0x1e8] sm:$0xff]
        %v1210 = vld [vmem:[%s1147 + $0x1f0] sm:$0xff]
        %v1211 = vld [vmem:[%s1147 + $0x1f8] sm:$0xff]
        %v1212 = vld [vmem:[%s1147 + $0x200] sm:$0xff]
        %v1213 = vld [vmem:[%s1147 + $0x208] sm:$0xff]
        %v1214 = vld [vmem:[%s1147 + $0x210] sm:$0xff]
        %v1215 = vld [vmem:[%s1147 + $0x218] sm:$0xff]
        %v1216 = vld [vmem:[%s1147 + $0x220] sm:$0xff]
        %v1217 = vld [vmem:[%s1147 + $0x228] sm:$0xff]
        %v1218 = vld [vmem:[%s1147 + $0x230] sm:$0xff]
        %v1219 = vld [vmem:[%s1147 + $0x238] sm:$0xff]
        %v1220 = vld [vmem:[%s1147 + $0x240] sm:$0xff]
        %v1221 = vld [vmem:[%s1147 + $0x248] sm:$0xff]
        %v1222 = vld [vmem:[%s1147 + $0x250] sm:$0xff]
        %v1223 = vld [vmem:[%s1147 + $0x258] sm:$0xff]
        %v1224 = vld [vmem:[%s1147 + $0x260] sm:$0xff]
        %v1225 = vld [vmem:[%s1147 + $0x268] sm:$0xff]
        %v1226 = vld [vmem:[%s1147 + $0x270] sm:$0xff]
        %v1227 = vld [vmem:[%s1147 + $0x278] sm:$0xff]
        %s1228 = scalar_lea.vmem %s4, 2
        %v1229 = vld [vmem:[%s1228] sm:$0x1]
        %v1233 = vrot.slane %v1144, 6
        %v1234 = vrot.slane %v1145, 6
        %v1235 = vsel %vm452, %v1233, %v1234
        %v1236 = vrot.slane %v1146, 6
        %v1237 = vsel %vm452, %v1234, %v1236
        %v1242 = vsel %vm452, 0.0, %v1233
        %v1243 = vsel %vm452, %v1236, 0.0
        %v1246 = vrot.slane %v1242, 1
        %v1247 = vrot.slane %v1235, 1
        %v1248 = vsel %vm466, %v1246, %v1247
        %v1249 = vrot.slane %v1237, 1
        %v1250 = vsel %vm466, %v1247, %v1249
        %v1251 = vrot.slane %v1243, 1
        %v1252 = vsel %vm466, %v1249, %v1251
        %v1256 = vrot.slane %v1242, 2
        %v1257 = vrot.slane %v1235, 2
        %v1258 = vsel %vm477, %v1256, %v1257
        %v1259 = vrot.slane %v1237, 2
        %v1260 = vsel %vm477, %v1257, %v1259
        %v1261 = vrot.slane %v1243, 2
        %v1262 = vsel %vm477, %v1259, %v1261
        %v1266 = vrot.slane %v1242, 3
        %v1267 = vrot.slane %v1235, 3
        %v1268 = vsel %vm488, %v1266, %v1267
        %v1269 = vrot.slane %v1237, 3
        %v1270 = vsel %vm488, %v1267, %v1269
        %v1271 = vrot.slane %v1243, 3
        %v1272 = vsel %vm488, %v1269, %v1271
        %v1276 = vrot.slane %v1242, 4
        %v1277 = vrot.slane %v1235, 4
        %v1278 = vsel %vm499, %v1276, %v1277
        %v1279 = vrot.slane %v1237, 4
        %v1280 = vsel %vm499, %v1277, %v1279
        %v1281 = vrot.slane %v1243, 4
        %v1282 = vsel %vm499, %v1279, %v1281
        %v1287 = vlaneseq
        %v1288 = vshrl.u32 %v1287, 7
        %v1289 = vsub.s32 0, %v1288
        %v1290 = vrot.slane %v1229, %v1289
        %1292 = vmatprep.subr.mxu0 0.0
        %1293 = vmatpush1.msra.mxu0 %v1148
        %1294 = vmatprep.subr.mxu0 0.0
        %1295 = vmatpush1.msra.mxu0 %v1149
        %1296 = vmatprep.subr.mxu0 0.0
        %1297 = vmatpush1.msra.mxu0 %v1150
        %1298 = vmatprep.subr.mxu0 0.0
        %1299 = vmatpush1.msra.mxu0 %v1151
        %1300 = vmatprep.subr.mxu0 0.0
        %1301 = vmatpush1.msra.mxu0 %v1152
        %1302 = vmatprep.subr.mxu0 0.0
        %1303 = vmatpush1.msra.mxu0 %v1153
        %1304 = vmatprep.subr.mxu0 0.0
        %1305 = vmatpush1.msra.mxu0 %v1154
        %1306 = vmatprep.subr.mxu0 0.0
        %1307 = vmatpush1.msra.mxu0 %v1155
        %1308 = vmatprep.subr.mxu0 0.0
        %1309 = vmatpush1.msra.mxu0 %v1156
        %1310 = vmatprep.subr.mxu0 0.0
        %1311 = vmatpush1.msra.mxu0 %v1157
        %1312 = vmatprep.subr.mxu0 0.0
        %1313 = vmatpush1.msra.mxu0 %v1158
        %1314 = vmatprep.subr.mxu0 0.0
        %1315 = vmatpush1.msra.mxu0 %v1159
        %1316 = vmatprep.subr.mxu0 0.0
        %1317 = vmatpush1.msra.mxu0 %v1160
        %1318 = vmatprep.subr.mxu0 0.0
        %1319 = vmatpush1.msra.mxu0 %v1161
        %1320 = vmatprep.subr.mxu0 0.0
        %1321 = vmatpush1.msra.mxu0 %v1162
        %1322 = vmatprep.subr.mxu0 0.0
        %1323 = vmatpush1.msra.mxu0 %v1163
        %1324 = vmatprep.subr.mxu0 0.0
        %1325 = vmatpush1.msra.mxu0 %v1164
        %1326 = vmatprep.subr.mxu0 0.0
        %1327 = vmatpush1.msra.mxu0 %v1165
        %1328 = vmatprep.subr.mxu0 0.0
        %1329 = vmatpush1.msra.mxu0 %v1166
        %1330 = vmatprep.subr.mxu0 0.0
        %1331 = vmatpush1.msra.mxu0 %v1167
        %1332 = vmatprep.subr.mxu0 0.0
        %1333 = vmatpush1.msra.mxu0 %v1168
        %1334 = vmatprep.subr.mxu0 0.0
        %1335 = vmatpush1.msra.mxu0 %v1169
        %1336 = vmatprep.subr.mxu0 0.0
        %1337 = vmatpush1.msra.mxu0 %v1170
        %1338 = vmatprep.subr.mxu0 0.0
        %1339 = vmatpush1.msra.mxu0 %v1171
        %1340 = vmatprep.subr.mxu0 0.0
        %1341 = vmatpush1.msra.mxu0 %v1172
        %1342 = vmatprep.subr.mxu0 0.0
        %1343 = vmatpush1.msra.mxu0 %v1173
        %1344 = vmatprep.subr.mxu0 0.0
        %1345 = vmatpush1.msra.mxu0 %v1174
        %1346 = vmatprep.subr.mxu0 0.0
        %1347 = vmatpush1.msra.mxu0 %v1175
        %1348 = vmatprep.subr.mxu0 0.0
        %1349 = vmatpush1.msra.mxu0 %v1176
        %1350 = vmatprep.subr.mxu0 0.0
        %1351 = vmatpush1.msra.mxu0 %v1177
        %1352 = vmatprep.subr.mxu0 0.0
        %1353 = vmatpush1.msra.mxu0 %v1178
        %1354 = vmatprep.subr.mxu0 0.0
        %1355 = vmatpush1.msra.mxu0 %v1179
        %1356 = vmatprep.mubr.f32.mxu0 %v1248
        %1357 = vmatmul.mubr.f32.gmra.mrb[0].mxu0 %v1242
        %v1358 = vpop.f32.mrb[0].mxu0
        %v1359 = vadd.f32 %v1290, %v1358
        %v1360 = vpop.f32.mrb[0].mxu0
        %1361 = vmatprep.mubr.f32.mxu0 %v1250
        %1362 = vmatmul.mubr.f32.gmra.mrb[0].mxu0 %v1235
        %v1363 = vpop.f32.mrb[0].mxu0
        %v1364 = vadd.f32 %v1290, %v1363
        %v1365 = vpop.f32.mrb[0].mxu0
        %1366 = vmatprep.mubr.f32.mxu0 %v1252
        %1367 = vmatmul.mubr.f32.gmra.mrb[0].mxu0 %v1237
        %v1368 = vpop.f32.mrb[0].mxu0
        %v1369 = vadd.f32 %v1290, %v1368
        %v1370 = vpop.f32.mrb[0].mxu0
        %1371 = vdwg.mxu0
        %1372 = vmatprep.subr.mxu0 0.0
        %1373 = vmatpush1.msra.mxu0 %v1180
        %1374 = vmatprep.subr.mxu0 0.0
        %1375 = vmatpush1.msra.mxu0 %v1181
        %1376 = vmatprep.subr.mxu0 0.0
        %1377 = vmatpush1.msra.mxu0 %v1182
        %1378 = vmatprep.subr.mxu0 0.0
        %1379 = vmatpush1.msra.mxu0 %v1183
        %1380 = vmatprep.subr.mxu0 0.0
        %1381 = vmatpush1.msra.mxu0 %v1184
        %1382 = vmatprep.subr.mxu0 0.0
        %1383 = vmatpush1.msra.mxu0 %v1185
        %1384 = vmatprep.subr.mxu0 0.0
        %1385 = vmatpush1.msra.mxu0 %v1186
        %1386 = vmatprep.subr.mxu0 0.0
        %1387 = vmatpush1.msra.mxu0 %v1187
        %1388 = vmatprep.subr.mxu0 0.0
        %1389 = vmatpush1.msra.mxu0 %v1188
        %1390 = vmatprep.subr.mxu0 0.0
        %1391 = vmatpush1.msra.mxu0 %v1189
        %1392 = vmatprep.subr.mxu0 0.0
        %1393 = vmatpush1.msra.mxu0 %v1190
        %1394 = vmatprep.subr.mxu0 0.0
        %1395 = vmatpush1.msra.mxu0 %v1191
        %1396 = vmatprep.subr.mxu0 0.0
        %1397 = vmatpush1.msra.mxu0 %v1192
        %1398 = vmatprep.subr.mxu0 0.0
        %1399 = vmatpush1.msra.mxu0 %v1193
        %1400 = vmatprep.subr.mxu0 0.0
        %1401 = vmatpush1.msra.mxu0 %v1194
        %1402 = vmatprep.subr.mxu0 0.0
        %1403 = vmatpush1.msra.mxu0 %v1195
        %1404 = vmatprep.subr.mxu0 0.0
        %1405 = vmatpush1.msra.mxu0 %v1196
        %1406 = vmatprep.subr.mxu0 0.0
        %1407 = vmatpush1.msra.mxu0 %v1197
        %1408 = vmatprep.subr.mxu0 0.0
        %1409 = vmatpush1.msra.mxu0 %v1198
        %1410 = vmatprep.subr.mxu0 0.0
        %1411 = vmatpush1.msra.mxu0 %v1199
        %1412 = vmatprep.subr.mxu0 0.0
        %1413 = vmatpush1.msra.mxu0 %v1200
        %1414 = vmatprep.subr.mxu0 0.0
        %1415 = vmatpush1.msra.mxu0 %v1201
        %1416 = vmatprep.subr.mxu0 0.0
        %1417 = vmatpush1.msra.mxu0 %v1202
        %1418 = vmatprep.subr.mxu0 0.0
        %1419 = vmatpush1.msra.mxu0 %v1203
        %1420 = vmatprep.subr.mxu0 0.0
        %1421 = vmatpush1.msra.mxu0 %v1204
        %1422 = vmatprep.subr.mxu0 0.0
        %1423 = vmatpush1.msra.mxu0 %v1205
        %1424 = vmatprep.subr.mxu0 0.0
        %1425 = vmatpush1.msra.mxu0 %v1206
        %1426 = vmatprep.subr.mxu0 0.0
        %1427 = vmatpush1.msra.mxu0 %v1207
        %1428 = vmatprep.subr.mxu0 0.0
        %1429 = vmatpush1.msra.mxu0 %v1208
        %1430 = vmatprep.subr.mxu0 0.0
        %1431 = vmatpush1.msra.mxu0 %v1209
        %1432 = vmatprep.subr.mxu0 0.0
        %1433 = vmatpush1.msra.mxu0 %v1210
        %1434 = vmatprep.subr.mxu0 0.0
        %1435 = vmatpush1.msra.mxu0 %v1211
        %1436 = vmatprep.mubr.f32.mxu0 %v1268
        %1437 = vmatmul.mubr.f32.gmra.mrb[0].mxu0 %v1258
        %v1438 = vpop.f32.mrb[0].mxu0
        %v1439 = vadd.f32 %v1359, %v1438
        %v1440 = vpop.f32.mrb[0].mxu0
        %1441 = vmatprep.mubr.f32.mxu0 %v1270
        %1442 = vmatmul.mubr.f32.gmra.mrb[0].mxu0 %v1260
        %v1443 = vpop.f32.mrb[0].mxu0
        %v1444 = vadd.f32 %v1364, %v1443
        %v1445 = vpop.f32.mrb[0].mxu0
        %1446 = vmatprep.mubr.f32.mxu0 %v1272
        %1447 = vmatmul.mubr.f32.gmra.mrb[0].mxu0 %v1262
        %v1448 = vpop.f32.mrb[0].mxu0
        %v1449 = vadd.f32 %v1369, %v1448
        %v1450 = vpop.f32.mrb[0].mxu0
        %1451 = vdwg.mxu0
        %1452 = vmatprep.subr.mxu0 0.0
        %1453 = vmatpush1.msra.mxu0 %v1212
        %1454 = vmatprep.subr.mxu0 0.0
        %1455 = vmatpush1.msra.mxu0 %v1213
        %1456 = vmatprep.subr.mxu0 0.0
        %1457 = vmatpush1.msra.mxu0 %v1214
        %1458 = vmatprep.subr.mxu0 0.0
        %1459 = vmatpush1.msra.mxu0 %v1215
        %1460 = vmatprep.subr.mxu0 0.0
        %1461 = vmatpush1.msra.mxu0 %v1216
        %1462 = vmatprep.subr.mxu0 0.0
        %1463 = vmatpush1.msra.mxu0 %v1217
        %1464 = vmatprep.subr.mxu0 0.0
        %1465 = vmatpush1.msra.mxu0 %v1218
        %1466 = vmatprep.subr.mxu0 0.0
        %1467 = vmatpush1.msra.mxu0 %v1219
        %1468 = vmatprep.subr.mxu0 0.0
        %1469 = vmatpush1.msra.mxu0 %v1220
        %1470 = vmatprep.subr.mxu0 0.0
        %1471 = vmatpush1.msra.mxu0 %v1221
        %1472 = vmatprep.subr.mxu0 0.0
        %1473 = vmatpush1.msra.mxu0 %v1222
        %1474 = vmatprep.subr.mxu0 0.0
        %1475 = vmatpush1.msra.mxu0 %v1223
        %1476 = vmatprep.subr.mxu0 0.0
        %1477 = vmatpush1.msra.mxu0 %v1224
        %1478 = vmatprep.subr.mxu0 0.0
        %1479 = vmatpush1.msra.mxu0 %v1225
        %1480 = vmatprep.subr.mxu0 0.0
        %1481 = vmatpush1.msra.mxu0 %v1226
        %1482 = vmatprep.subr.mxu0 0.0
        %1483 = vmatpush1.msra.mxu0 %v1227
        %1484 = vmatprep.subr.mxu0 0.0
        %1485 = vmatpush1.msra.mxu0 0.0
        %1486 = vmatprep.subr.mxu0 0.0
        %1487 = vmatpush1.msra.mxu0 0.0
        %1488 = vmatprep.subr.mxu0 0.0
        %1489 = vmatpush1.msra.mxu0 0.0
        %1490 = vmatprep.subr.mxu0 0.0
        %1491 = vmatpush1.msra.mxu0 0.0
        %1492 = vmatprep.subr.mxu0 0.0
        %1493 = vmatpush1.msra.mxu0 0.0
        %1494 = vmatprep.subr.mxu0 0.0
        %1495 = vmatpush1.msra.mxu0 0.0
        %1496 = vmatprep.subr.mxu0 0.0
        %1497 = vmatpush1.msra.mxu0 0.0
        %1498 = vmatprep.subr.mxu0 0.0
        %1499 = vmatpush1.msra.mxu0 0.0
        %1500 = vmatprep.subr.mxu0 0.0
        %1501 = vmatpush1.msra.mxu0 0.0
        %1502 = vmatprep.subr.mxu0 0.0
        %1503 = vmatpush1.msra.mxu0 0.0
        %1504 = vmatprep.subr.mxu0 0.0
        %1505 = vmatpush1.msra.mxu0 0.0
        %1506 = vmatprep.subr.mxu0 0.0
        %1507 = vmatpush1.msra.mxu0 0.0
        %1508 = vmatprep.subr.mxu0 0.0
        %1509 = vmatpush1.msra.mxu0 0.0
        %1510 = vmatprep.subr.mxu0 0.0
        %1511 = vmatpush1.msra.mxu0 0.0
        %1512 = vmatprep.subr.mxu0 0.0
        %1513 = vmatpush1.msra.mxu0 0.0
        %1514 = vmatprep.subr.mxu0 0.0
        %1515 = vmatpush1.msra.mxu0 0.0
        %1516 = vmatprep.mubr.f32.mxu0 0.0
        %1517 = vmatmul.mubr.f32.gmra.mrb[0].mxu0 %v1278
        %v1518 = vpop.f32.mrb[0].mxu0
        %v1519 = vadd.f32 %v1439, %v1518
        %v1520 = vpop.f32.mrb[0].mxu0
        %1521 = vmatprep.mubr.f32.mxu0 0.0
        %1522 = vmatmul.mubr.f32.gmra.mrb[0].mxu0 %v1280
        %v1523 = vpop.f32.mrb[0].mxu0
        %v1524 = vadd.f32 %v1444, %v1523
        %v1525 = vpop.f32.mrb[0].mxu0
        %1526 = vmatprep.mubr.f32.mxu0 0.0
        %1527 = vmatmul.mubr.f32.gmra.mrb[0].mxu0 %v1282
        %v1528 = vpop.f32.mrb[0].mxu0
        %v1529 = vadd.f32 %v1449, %v1528
        %v1530 = vpop.f32.mrb[0].mxu0
        %1531 = vdwg.mxu0
        %v1532 = vtanh.pop %v1519
        %v1533 = vtanh.pop %v1524
        %v1534 = vtanh.pop %v1529
        %s1535 = scalar_lea.vmem %s3, 1920
        %v1536 = vld [vmem:[%s1535] sm:$0xff]
        %v1537 = vld [vmem:[%s1535 + $0x8] sm:$0xff]
        %v1538 = vld [vmem:[%s1535 + $0x10] sm:$0xff]
        %v1539 = vld [vmem:[%s1535 + $0x18] sm:$0xff]
        %v1540 = vld [vmem:[%s1535 + $0x20] sm:$0xff]
        %v1541 = vld [vmem:[%s1535 + $0x28] sm:$0xff]
        %v1542 = vld [vmem:[%s1535 + $0x30] sm:$0xff]
        %v1543 = vld [vmem:[%s1535 + $0x38] sm:$0xff]
        %v1544 = vld [vmem:[%s1535 + $0x40] sm:$0xff]
        %v1545 = vld [vmem:[%s1535 + $0x48] sm:$0xff]
        %v1546 = vld [vmem:[%s1535 + $0x50] sm:$0xff]
        %v1547 = vld [vmem:[%s1535 + $0x58] sm:$0xff]
        %v1548 = vld [vmem:[%s1535 + $0x60] sm:$0xff]
        %v1549 = vld [vmem:[%s1535 + $0x68] sm:$0xff]
        %v1550 = vld [vmem:[%s1535 + $0x70] sm:$0xff]
        %v1551 = vld [vmem:[%s1535 + $0x78] sm:$0xff]
        %v1552 = vld [vmem:[%s1535 + $0x80] sm:$0xff]
        %v1553 = vld [vmem:[%s1535 + $0x88] sm:$0xff]
        %v1554 = vld [vmem:[%s1535 + $0x90] sm:$0xff]
        %v1555 = vld [vmem:[%s1535 + $0x98] sm:$0xff]
        %v1556 = vld [vmem:[%s1535 + $0xa0] sm:$0xff]
        %v1557 = vld [vmem:[%s1535 + $0xa8] sm:$0xff]
        %v1558 = vld [vmem:[%s1535 + $0xb0] sm:$0xff]
        %v1559 = vld [vmem:[%s1535 + $0xb8] sm:$0xff]
        %v1560 = vld [vmem:[%s1535 + $0xc0] sm:$0xff]
        %v1561 = vld [vmem:[%s1535 + $0xc8] sm:$0xff]
        %v1562 = vld [vmem:[%s1535 + $0xd0] sm:$0xff]
        %v1563 = vld [vmem:[%s1535 + $0xd8] sm:$0xff]
        %v1564 = vld [vmem:[%s1535 + $0xe0] sm:$0xff]
        %v1565 = vld [vmem:[%s1535 + $0xe8] sm:$0xff]
        %v1566 = vld [vmem:[%s1535 + $0xf0] sm:$0xff]
        %v1567 = vld [vmem:[%s1535 + $0xf8] sm:$0xff]
        %v1568 = vld [vmem:[%s1535 + $0x100] sm:$0xff]
        %v1569 = vld [vmem:[%s1535 + $0x108] sm:$0xff]
        %v1570 = vld [vmem:[%s1535 + $0x110] sm:$0xff]
        %v1571 = vld [vmem:[%s1535 + $0x118] sm:$0xff]
        %v1572 = vld [vmem:[%s1535 + $0x120] sm:$0xff]
        %v1573 = vld [vmem:[%s1535 + $0x128] sm:$0xff]
        %v1574 = vld [vmem:[%s1535 + $0x130] sm:$0xff]
        %v1575 = vld [vmem:[%s1535 + $0x138] sm:$0xff]
        %v1576 = vld [vmem:[%s1535 + $0x140] sm:$0xff]
        %v1577 = vld [vmem:[%s1535 + $0x148] sm:$0xff]
        %v1578 = vld [vmem:[%s1535 + $0x150] sm:$0xff]
        %v1579 = vld [vmem:[%s1535 + $0x158] sm:$0xff]
        %v1580 = vld [vmem:[%s1535 + $0x160] sm:$0xff]
        %v1581 = vld [vmem:[%s1535 + $0x168] sm:$0xff]
        %v1582 = vld [vmem:[%s1535 + $0x170] sm:$0xff]
        %v1583 = vld [vmem:[%s1535 + $0x178] sm:$0xff]
        %v1584 = vld [vmem:[%s1535 + $0x180] sm:$0xff]
        %v1585 = vld [vmem:[%s1535 + $0x188] sm:$0xff]
        %v1586 = vld [vmem:[%s1535 + $0x190] sm:$0xff]
        %v1587 = vld [vmem:[%s1535 + $0x198] sm:$0xff]
        %v1588 = vld [vmem:[%s1535 + $0x1a0] sm:$0xff]
        %v1589 = vld [vmem:[%s1535 + $0x1a8] sm:$0xff]
        %v1590 = vld [vmem:[%s1535 + $0x1b0] sm:$0xff]
        %v1591 = vld [vmem:[%s1535 + $0x1b8] sm:$0xff]
        %v1592 = vld [vmem:[%s1535 + $0x1c0] sm:$0xff]
        %v1593 = vld [vmem:[%s1535 + $0x1c8] sm:$0xff]
        %v1594 = vld [vmem:[%s1535 + $0x1d0] sm:$0xff]
        %v1595 = vld [vmem:[%s1535 + $0x1d8] sm:$0xff]
        %v1596 = vld [vmem:[%s1535 + $0x1e0] sm:$0xff]
        %v1597 = vld [vmem:[%s1535 + $0x1e8] sm:$0xff]
        %v1598 = vld [vmem:[%s1535 + $0x1f0] sm:$0xff]
        %v1599 = vld [vmem:[%s1535 + $0x1f8] sm:$0xff]
        %v1600 = vld [vmem:[%s1535 + $0x200] sm:$0xff]
        %v1601 = vld [vmem:[%s1535 + $0x208] sm:$0xff]
        %v1602 = vld [vmem:[%s1535 + $0x210] sm:$0xff]
        %v1603 = vld [vmem:[%s1535 + $0x218] sm:$0xff]
        %v1604 = vld [vmem:[%s1535 + $0x220] sm:$0xff]
        %v1605 = vld [vmem:[%s1535 + $0x228] sm:$0xff]
        %v1606 = vld [vmem:[%s1535 + $0x230] sm:$0xff]
        %v1607 = vld [vmem:[%s1535 + $0x238] sm:$0xff]
        %v1608 = vld [vmem:[%s1535 + $0x240] sm:$0xff]
        %v1609 = vld [vmem:[%s1535 + $0x248] sm:$0xff]
        %v1610 = vld [vmem:[%s1535 + $0x250] sm:$0xff]
        %v1611 = vld [vmem:[%s1535 + $0x258] sm:$0xff]
        %v1612 = vld [vmem:[%s1535 + $0x260] sm:$0xff]
        %v1613 = vld [vmem:[%s1535 + $0x268] sm:$0xff]
        %v1614 = vld [vmem:[%s1535 + $0x270] sm:$0xff]
        %v1615 = vld [vmem:[%s1535 + $0x278] sm:$0xff]
        %s1616 = scalar_lea.vmem %s4, 3
        %v1617 = vld [vmem:[%s1616] sm:$0x1]
        %v1621 = vrot.slane %v1532, 6
        %v1622 = vrot.slane %v1533, 6
        %v1623 = vsel %vm452, %v1621, %v1622
        %v1624 = vrot.slane %v1534, 6
        %v1625 = vsel %vm452, %v1622, %v1624
        %v1630 = vsel %vm452, 0.0, %v1621
        %v1631 = vsel %vm452, %v1624, 0.0
        %v1634 = vrot.slane %v1630, 1
        %v1635 = vrot.slane %v1623, 1
        %v1636 = vsel %vm466, %v1634, %v1635
        %v1637 = vrot.slane %v1625, 1
        %v1638 = vsel %vm466, %v1635, %v1637
        %v1639 = vrot.slane %v1631, 1
        %v1640 = vsel %vm466, %v1637, %v1639
        %v1644 = vrot.slane %v1630, 2
        %v1645 = vrot.slane %v1623, 2
        %v1646 = vsel %vm477, %v1644, %v1645
        %v1647 = vrot.slane %v1625, 2
        %v1648 = vsel %vm477, %v1645, %v1647
        %v1649 = vrot.slane %v1631, 2
        %v1650 = vsel %vm477, %v1647, %v1649
        %v1654 = vrot.slane %v1630, 3
        %v1655 = vrot.slane %v1623, 3
        %v1656 = vsel %vm488, %v1654, %v1655
        %v1657 = vrot.slane %v1625, 3
        %v1658 = vsel %vm488, %v1655, %v1657
        %v1659 = vrot.slane %v1631, 3
        %v1660 = vsel %vm488, %v1657, %v1659
        %v1664 = vrot.slane %v1630, 4
        %v1665 = vrot.slane %v1623, 4
        %v1666 = vsel %vm499, %v1664, %v1665
        %v1667 = vrot.slane %v1625, 4
        %v1668 = vsel %vm499, %v1665, %v1667
        %v1669 = vrot.slane %v1631, 4
        %v1670 = vsel %vm499, %v1667, %v1669
        %v1675 = vlaneseq
        %v1676 = vshrl.u32 %v1675, 7
        %v1677 = vsub.s32 0, %v1676
        %v1678 = vrot.slane %v1617, %v1677
        %1680 = vmatprep.subr.mxu0 0.0
        %1681 = vmatpush1.msra.mxu0 %v1536
        %1682 = vmatprep.subr.mxu0 0.0
        %1683 = vmatpush1.msra.mxu0 %v1537
        %1684 = vmatprep.subr.mxu0 0.0
        %1685 = vmatpush1.msra.mxu0 %v1538
        %1686 = vmatprep.subr.mxu0 0.0
        %1687 = vmatpush1.msra.mxu0 %v1539
        %1688 = vmatprep.subr.mxu0 0.0
        %1689 = vmatpush1.msra.mxu0 %v1540
        %1690 = vmatprep.subr.mxu0 0.0
        %1691 = vmatpush1.msra.mxu0 %v1541
        %1692 = vmatprep.subr.mxu0 0.0
        %1693 = vmatpush1.msra.mxu0 %v1542
        %1694 = vmatprep.subr.mxu0 0.0
        %1695 = vmatpush1.msra.mxu0 %v1543
        %1696 = vmatprep.subr.mxu0 0.0
        %1697 = vmatpush1.msra.mxu0 %v1544
        %1698 = vmatprep.subr.mxu0 0.0
        %1699 = vmatpush1.msra.mxu0 %v1545
        %1700 = vmatprep.subr.mxu0 0.0
        %1701 = vmatpush1.msra.mxu0 %v1546
        %1702 = vmatprep.subr.mxu0 0.0
        %1703 = vmatpush1.msra.mxu0 %v1547
        %1704 = vmatprep.subr.mxu0 0.0
        %1705 = vmatpush1.msra.mxu0 %v1548
        %1706 = vmatprep.subr.mxu0 0.0
        %1707 = vmatpush1.msra.mxu0 %v1549
        %1708 = vmatprep.subr.mxu0 0.0
        %1709 = vmatpush1.msra.mxu0 %v1550
        %1710 = vmatprep.subr.mxu0 0.0
        %1711 = vmatpush1.msra.mxu0 %v1551
        %1712 = vmatprep.subr.mxu0 0.0
        %1713 = vmatpush1.msra.mxu0 %v1552
        %1714 = vmatprep.subr.mxu0 0.0
        %1715 = vmatpush1.msra.mxu0 %v1553
        %1716 = vmatprep.subr.mxu0 0.0
        %1717 = vmatpush1.msra.mxu0 %v1554
        %1718 = vmatprep.subr.mxu0 0.0
        %1719 = vmatpush1.msra.mxu0 %v1555
        %1720 = vmatprep.subr.mxu0 0.0
        %1721 = vmatpush1.msra.mxu0 %v1556
        %1722 = vmatprep.subr.mxu0 0.0
        %1723 = vmatpush1.msra.mxu0 %v1557
        %1724 = vmatprep.subr.mxu0 0.0
        %1725 = vmatpush1.msra.mxu0 %v1558
        %1726 = vmatprep.subr.mxu0 0.0
        %1727 = vmatpush1.msra.mxu0 %v1559
        %1728 = vmatprep.subr.mxu0 0.0
        %1729 = vmatpush1.msra.mxu0 %v1560
        %1730 = vmatprep.subr.mxu0 0.0
        %1731 = vmatpush1.msra.mxu0 %v1561
        %1732 = vmatprep.subr.mxu0 0.0
        %1733 = vmatpush1.msra.mxu0 %v1562
        %1734 = vmatprep.subr.mxu0 0.0
        %1735 = vmatpush1.msra.mxu0 %v1563
        %1736 = vmatprep.subr.mxu0 0.0
        %1737 = vmatpush1.msra.mxu0 %v1564
        %1738 = vmatprep.subr.mxu0 0.0
        %1739 = vmatpush1.msra.mxu0 %v1565
        %1740 = vmatprep.subr.mxu0 0.0
        %1741 = vmatpush1.msra.mxu0 %v1566
        %1742 = vmatprep.subr.mxu0 0.0
        %1743 = vmatpush1.msra.mxu0 %v1567
        %1744 = vmatprep.mubr.f32.mxu0 %v1636
        %1745 = vmatmul.mubr.f32.gmra.mrb[0].mxu0 %v1630
        %v1746 = vpop.f32.mrb[0].mxu0
        %v1747 = vadd.f32 %v1678, %v1746
        %v1748 = vpop.f32.mrb[0].mxu0
        %1749 = vmatprep.mubr.f32.mxu0 %v1638
        %1750 = vmatmul.mubr.f32.gmra.mrb[0].mxu0 %v1623
        %v1751 = vpop.f32.mrb[0].mxu0
        %v1752 = vadd.f32 %v1678, %v1751
        %v1753 = vpop.f32.mrb[0].mxu0
        %1754 = vmatprep.mubr.f32.mxu0 %v1640
        %1755 = vmatmul.mubr.f32.gmra.mrb[0].mxu0 %v1625
        %v1756 = vpop.f32.mrb[0].mxu0
        %v1757 = vadd.f32 %v1678, %v1756
        %v1758 = vpop.f32.mrb[0].mxu0
        %1759 = vdwg.mxu0
        %1760 = vmatprep.subr.mxu0 0.0
        %1761 = vmatpush1.msra.mxu0 %v1568
        %1762 = vmatprep.subr.mxu0 0.0
        %1763 = vmatpush1.msra.mxu0 %v1569
        %1764 = vmatprep.subr.mxu0 0.0
        %1765 = vmatpush1.msra.mxu0 %v1570
        %1766 = vmatprep.subr.mxu0 0.0
        %1767 = vmatpush1.msra.mxu0 %v1571
        %1768 = vmatprep.subr.mxu0 0.0
        %1769 = vmatpush1.msra.mxu0 %v1572
        %1770 = vmatprep.subr.mxu0 0.0
        %1771 = vmatpush1.msra.mxu0 %v1573
        %1772 = vmatprep.subr.mxu0 0.0
        %1773 = vmatpush1.msra.mxu0 %v1574
        %1774 = vmatprep.subr.mxu0 0.0
        %1775 = vmatpush1.msra.mxu0 %v1575
        %1776 = vmatprep.subr.mxu0 0.0
        %1777 = vmatpush1.msra.mxu0 %v1576
        %1778 = vmatprep.subr.mxu0 0.0
        %1779 = vmatpush1.msra.mxu0 %v1577
        %1780 = vmatprep.subr.mxu0 0.0
        %1781 = vmatpush1.msra.mxu0 %v1578
        %1782 = vmatprep.subr.mxu0 0.0
        %1783 = vmatpush1.msra.mxu0 %v1579
        %1784 = vmatprep.subr.mxu0 0.0
        %1785 = vmatpush1.msra.mxu0 %v1580
        %1786 = vmatprep.subr.mxu0 0.0
        %1787 = vmatpush1.msra.mxu0 %v1581
        %1788 = vmatprep.subr.mxu0 0.0
        %1789 = vmatpush1.msra.mxu0 %v1582
        %1790 = vmatprep.subr.mxu0 0.0
        %1791 = vmatpush1.msra.mxu0 %v1583
        %1792 = vmatprep.subr.mxu0 0.0
        %1793 = vmatpush1.msra.mxu0 %v1584
        %1794 = vmatprep.subr.mxu0 0.0
        %1795 = vmatpush1.msra.mxu0 %v1585
        %1796 = vmatprep.subr.mxu0 0.0
        %1797 = vmatpush1.msra.mxu0 %v1586
        %1798 = vmatprep.subr.mxu0 0.0
        %1799 = vmatpush1.msra.mxu0 %v1587
        %1800 = vmatprep.subr.mxu0 0.0
        %1801 = vmatpush1.msra.mxu0 %v1588
        %1802 = vmatprep.subr.mxu0 0.0
        %1803 = vmatpush1.msra.mxu0 %v1589
        %1804 = vmatprep.subr.mxu0 0.0
        %1805 = vmatpush1.msra.mxu0 %v1590
        %1806 = vmatprep.subr.mxu0 0.0
        %1807 = vmatpush1.msra.mxu0 %v1591
        %1808 = vmatprep.subr.mxu0 0.0
        %1809 = vmatpush1.msra.mxu0 %v1592
        %1810 = vmatprep.subr.mxu0 0.0
        %1811 = vmatpush1.msra.mxu0 %v1593
        %1812 = vmatprep.subr.mxu0 0.0
        %1813 = vmatpush1.msra.mxu0 %v1594
        %1814 = vmatprep.subr.mxu0 0.0
        %1815 = vmatpush1.msra.mxu0 %v1595
        %1816 = vmatprep.subr.mxu0 0.0
        %1817 = vmatpush1.msra.mxu0 %v1596
        %1818 = vmatprep.subr.mxu0 0.0
        %1819 = vmatpush1.msra.mxu0 %v1597
        %1820 = vmatprep.subr.mxu0 0.0
        %1821 = vmatpush1.msra.mxu0 %v1598
        %1822 = vmatprep.subr.mxu0 0.0
        %1823 = vmatpush1.msra.mxu0 %v1599
        %1824 = vmatprep.mubr.f32.mxu0 %v1656
        %1825 = vmatmul.mubr.f32.gmra.mrb[0].mxu0 %v1646
        %v1826 = vpop.f32.mrb[0].mxu0
        %v1827 = vadd.f32 %v1747, %v1826
        %v1828 = vpop.f32.mrb[0].mxu0
        %1829 = vmatprep.mubr.f32.mxu0 %v1658
        %1830 = vmatmul.mubr.f32.gmra.mrb[0].mxu0 %v1648
        %v1831 = vpop.f32.mrb[0].mxu0
        %v1832 = vadd.f32 %v1752, %v1831
        %v1833 = vpop.f32.mrb[0].mxu0
        %1834 = vmatprep.mubr.f32.mxu0 %v1660
        %1835 = vmatmul.mubr.f32.gmra.mrb[0].mxu0 %v1650
        %v1836 = vpop.f32.mrb[0].mxu0
        %v1837 = vadd.f32 %v1757, %v1836
        %v1838 = vpop.f32.mrb[0].mxu0
        %1839 = vdwg.mxu0
        %1840 = vmatprep.subr.mxu0 0.0
        %1841 = vmatpush1.msra.mxu0 %v1600
        %1842 = vmatprep.subr.mxu0 0.0
        %1843 = vmatpush1.msra.mxu0 %v1601
        %1844 = vmatprep.subr.mxu0 0.0
        %1845 = vmatpush1.msra.mxu0 %v1602
        %1846 = vmatprep.subr.mxu0 0.0
        %1847 = vmatpush1.msra.mxu0 %v1603
        %1848 = vmatprep.subr.mxu0 0.0
        %1849 = vmatpush1.msra.mxu0 %v1604
        %1850 = vmatprep.subr.mxu0 0.0
        %1851 = vmatpush1.msra.mxu0 %v1605
        %1852 = vmatprep.subr.mxu0 0.0
        %1853 = vmatpush1.msra.mxu0 %v1606
        %1854 = vmatprep.subr.mxu0 0.0
        %1855 = vmatpush1.msra.mxu0 %v1607
        %1856 = vmatprep.subr.mxu0 0.0
        %1857 = vmatpush1.msra.mxu0 %v1608
        %1858 = vmatprep.subr.mxu0 0.0
        %1859 = vmatpush1.msra.mxu0 %v1609
        %1860 = vmatprep.subr.mxu0 0.0
        %1861 = vmatpush1.msra.mxu0 %v1610
        %1862 = vmatprep.subr.mxu0 0.0
        %1863 = vmatpush1.msra.mxu0 %v1611
        %1864 = vmatprep.subr.mxu0 0.0
        %1865 = vmatpush1.msra.mxu0 %v1612
        %1866 = vmatprep.subr.mxu0 0.0
        %1867 = vmatpush1.msra.mxu0 %v1613
        %1868 = vmatprep.subr.mxu0 0.0
        %1869 = vmatpush1.msra.mxu0 %v1614
        %1870 = vmatprep.subr.mxu0 0.0
        %1871 = vmatpush1.msra.mxu0 %v1615
        %1872 = vmatprep.subr.mxu0 0.0
        %1873 = vmatpush1.msra.mxu0 0.0
        %1874 = vmatprep.subr.mxu0 0.0
        %1875 = vmatpush1.msra.mxu0 0.0
        %1876 = vmatprep.subr.mxu0 0.0
        %1877 = vmatpush1.msra.mxu0 0.0
        %1878 = vmatprep.subr.mxu0 0.0
        %1879 = vmatpush1.msra.mxu0 0.0
        %1880 = vmatprep.subr.mxu0 0.0
        %1881 = vmatpush1.msra.mxu0 0.0
        %1882 = vmatprep.subr.mxu0 0.0
        %1883 = vmatpush1.msra.mxu0 0.0
        %1884 = vmatprep.subr.mxu0 0.0
        %1885 = vmatpush1.msra.mxu0 0.0
        %1886 = vmatprep.subr.mxu0 0.0
        %1887 = vmatpush1.msra.mxu0 0.0
        %1888 = vmatprep.subr.mxu0 0.0
        %1889 = vmatpush1.msra.mxu0 0.0
        %1890 = vmatprep.subr.mxu0 0.0
        %1891 = vmatpush1.msra.mxu0 0.0
        %1892 = vmatprep.subr.mxu0 0.0
        %1893 = vmatpush1.msra.mxu0 0.0
        %1894 = vmatprep.subr.mxu0 0.0
        %1895 = vmatpush1.msra.mxu0 0.0
        %1896 = vmatprep.subr.mxu0 0.0
        %1897 = vmatpush1.msra.mxu0 0.0
        %1898 = vmatprep.subr.mxu0 0.0
        %1899 = vmatpush1.msra.mxu0 0.0
        %1900 = vmatprep.subr.mxu0 0.0
        %1901 = vmatpush1.msra.mxu0 0.0
        %1902 = vmatprep.subr.mxu0 0.0
        %1903 = vmatpush1.msra.mxu0 0.0
        %1904 = vmatprep.mubr.f32.mxu0 0.0
        %1905 = vmatmul.mubr.f32.gmra.mrb[0].mxu0 %v1666
        %v1906 = vpop.f32.mrb[0].mxu0
        %v1907 = vadd.f32 %v1827, %v1906
        %v1908 = vpop.f32.mrb[0].mxu0
        %1909 = vmatprep.mubr.f32.mxu0 0.0
        %1910 = vmatmul.mubr.f32.gmra.mrb[0].mxu0 %v1668
        %v1911 = vpop.f32.mrb[0].mxu0
        %v1912 = vadd.f32 %v1832, %v1911
        %v1913 = vpop.f32.mrb[0].mxu0
        %1914 = vmatprep.mubr.f32.mxu0 0.0
        %1915 = vmatmul.mubr.f32.gmra.mrb[0].mxu0 %v1670
        %v1916 = vpop.f32.mrb[0].mxu0
        %v1917 = vadd.f32 %v1837, %v1916
        %v1918 = vpop.f32.mrb[0].mxu0
        %1919 = vdwg.mxu0
        %v1920 = vtanh.pop %v1907
        %v1921 = vtanh.pop %v1912
        %v1922 = vtanh.pop %v1917
        %s1923 = scalar_lea.vmem %s3, 2560
        %v1924 = vld [vmem:[%s1923] sm:$0xff]
        %v1925 = vld [vmem:[%s1923 + $0x8] sm:$0xff]
        %v1926 = vld [vmem:[%s1923 + $0x10] sm:$0xff]
        %v1927 = vld [vmem:[%s1923 + $0x18] sm:$0xff]
        %v1928 = vld [vmem:[%s1923 + $0x20] sm:$0xff]
        %v1929 = vld [vmem:[%s1923 + $0x28] sm:$0xff]
        %v1930 = vld [vmem:[%s1923 + $0x30] sm:$0xff]
        %v1931 = vld [vmem:[%s1923 + $0x38] sm:$0xff]
        %v1932 = vld [vmem:[%s1923 + $0x40] sm:$0xff]
        %v1933 = vld [vmem:[%s1923 + $0x48] sm:$0xff]
        %v1934 = vld [vmem:[%s1923 + $0x50] sm:$0xff]
        %v1935 = vld [vmem:[%s1923 + $0x58] sm:$0xff]
        %v1936 = vld [vmem:[%s1923 + $0x60] sm:$0xff]
        %v1937 = vld [vmem:[%s1923 + $0x68] sm:$0xff]
        %v1938 = vld [vmem:[%s1923 + $0x70] sm:$0xff]
        %v1939 = vld [vmem:[%s1923 + $0x78] sm:$0xff]
        %v1940 = vld [vmem:[%s1923 + $0x80] sm:$0xff]
        %v1941 = vld [vmem:[%s1923 + $0x88] sm:$0xff]
        %v1942 = vld [vmem:[%s1923 + $0x90] sm:$0xff]
        %v1943 = vld [vmem:[%s1923 + $0x98] sm:$0xff]
        %v1944 = vld [vmem:[%s1923 + $0xa0] sm:$0xff]
        %v1945 = vld [vmem:[%s1923 + $0xa8] sm:$0xff]
        %v1946 = vld [vmem:[%s1923 + $0xb0] sm:$0xff]
        %v1947 = vld [vmem:[%s1923 + $0xb8] sm:$0xff]
        %v1948 = vld [vmem:[%s1923 + $0xc0] sm:$0xff]
        %v1949 = vld [vmem:[%s1923 + $0xc8] sm:$0xff]
        %v1950 = vld [vmem:[%s1923 + $0xd0] sm:$0xff]
        %v1951 = vld [vmem:[%s1923 + $0xd8] sm:$0xff]
        %v1952 = vld [vmem:[%s1923 + $0xe0] sm:$0xff]
        %v1953 = vld [vmem:[%s1923 + $0xe8] sm:$0xff]
        %v1954 = vld [vmem:[%s1923 + $0xf0] sm:$0xff]
        %v1955 = vld [vmem:[%s1923 + $0xf8] sm:$0xff]
        %v1956 = vld [vmem:[%s1923 + $0x100] sm:$0xff]
        %v1957 = vld [vmem:[%s1923 + $0x108] sm:$0xff]
        %v1958 = vld [vmem:[%s1923 + $0x110] sm:$0xff]
        %v1959 = vld [vmem:[%s1923 + $0x118] sm:$0xff]
        %v1960 = vld [vmem:[%s1923 + $0x120] sm:$0xff]
        %v1961 = vld [vmem:[%s1923 + $0x128] sm:$0xff]
        %v1962 = vld [vmem:[%s1923 + $0x130] sm:$0xff]
        %v1963 = vld [vmem:[%s1923 + $0x138] sm:$0xff]
        %v1964 = vld [vmem:[%s1923 + $0x140] sm:$0xff]
        %v1965 = vld [vmem:[%s1923 + $0x148] sm:$0xff]
        %v1966 = vld [vmem:[%s1923 + $0x150] sm:$0xff]
        %v1967 = vld [vmem:[%s1923 + $0x158] sm:$0xff]
        %v1968 = vld [vmem:[%s1923 + $0x160] sm:$0xff]
        %v1969 = vld [vmem:[%s1923 + $0x168] sm:$0xff]
        %v1970 = vld [vmem:[%s1923 + $0x170] sm:$0xff]
        %v1971 = vld [vmem:[%s1923 + $0x178] sm:$0xff]
        %v1972 = vld [vmem:[%s1923 + $0x180] sm:$0xff]
        %v1973 = vld [vmem:[%s1923 + $0x188] sm:$0xff]
        %v1974 = vld [vmem:[%s1923 + $0x190] sm:$0xff]
        %v1975 = vld [vmem:[%s1923 + $0x198] sm:$0xff]
        %v1976 = vld [vmem:[%s1923 + $0x1a0] sm:$0xff]
        %v1977 = vld [vmem:[%s1923 + $0x1a8] sm:$0xff]
        %v1978 = vld [vmem:[%s1923 + $0x1b0] sm:$0xff]
        %v1979 = vld [vmem:[%s1923 + $0x1b8] sm:$0xff]
        %v1980 = vld [vmem:[%s1923 + $0x1c0] sm:$0xff]
        %v1981 = vld [vmem:[%s1923 + $0x1c8] sm:$0xff]
        %v1982 = vld [vmem:[%s1923 + $0x1d0] sm:$0xff]
        %v1983 = vld [vmem:[%s1923 + $0x1d8] sm:$0xff]
        %v1984 = vld [vmem:[%s1923 + $0x1e0] sm:$0xff]
        %v1985 = vld [vmem:[%s1923 + $0x1e8] sm:$0xff]
        %v1986 = vld [vmem:[%s1923 + $0x1f0] sm:$0xff]
        %v1987 = vld [vmem:[%s1923 + $0x1f8] sm:$0xff]
        %v1988 = vld [vmem:[%s1923 + $0x200] sm:$0xff]
        %v1989 = vld [vmem:[%s1923 + $0x208] sm:$0xff]
        %v1990 = vld [vmem:[%s1923 + $0x210] sm:$0xff]
        %v1991 = vld [vmem:[%s1923 + $0x218] sm:$0xff]
        %v1992 = vld [vmem:[%s1923 + $0x220] sm:$0xff]
        %v1993 = vld [vmem:[%s1923 + $0x228] sm:$0xff]
        %v1994 = vld [vmem:[%s1923 + $0x230] sm:$0xff]
        %v1995 = vld [vmem:[%s1923 + $0x238] sm:$0xff]
        %v1996 = vld [vmem:[%s1923 + $0x240] sm:$0xff]
        %v1997 = vld [vmem:[%s1923 + $0x248] sm:$0xff]
        %v1998 = vld [vmem:[%s1923 + $0x250] sm:$0xff]
        %v1999 = vld [vmem:[%s1923 + $0x258] sm:$0xff]
        %v2000 = vld [vmem:[%s1923 + $0x260] sm:$0xff]
        %v2001 = vld [vmem:[%s1923 + $0x268] sm:$0xff]
        %v2002 = vld [vmem:[%s1923 + $0x270] sm:$0xff]
        %v2003 = vld [vmem:[%s1923 + $0x278] sm:$0xff]
        %s2004 = scalar_lea.vmem %s4, 4
        %v2005 = vld [vmem:[%s2004] sm:$0x1]
        %v2009 = vrot.slane %v1920, 6
        %v2010 = vrot.slane %v1921, 6
        %v2011 = vsel %vm452, %v2009, %v2010
        %v2012 = vrot.slane %v1922, 6
        %v2013 = vsel %vm452, %v2010, %v2012
        %v2018 = vsel %vm452, 0.0, %v2009
        %v2019 = vsel %vm452, %v2012, 0.0
        %v2022 = vrot.slane %v2018, 1
        %v2023 = vrot.slane %v2011, 1
        %v2024 = vsel %vm466, %v2022, %v2023
        %v2025 = vrot.slane %v2013, 1
        %v2026 = vsel %vm466, %v2023, %v2025
        %v2027 = vrot.slane %v2019, 1
        %v2028 = vsel %vm466, %v2025, %v2027
        %v2032 = vrot.slane %v2018, 2
        %v2033 = vrot.slane %v2011, 2
        %v2034 = vsel %vm477, %v2032, %v2033
        %v2035 = vrot.slane %v2013, 2
        %v2036 = vsel %vm477, %v2033, %v2035
        %v2037 = vrot.slane %v2019, 2
        %v2038 = vsel %vm477, %v2035, %v2037
        %v2042 = vrot.slane %v2018, 3
        %v2043 = vrot.slane %v2011, 3
        %v2044 = vsel %vm488, %v2042, %v2043
        %v2045 = vrot.slane %v2013, 3
        %v2046 = vsel %vm488, %v2043, %v2045
        %v2047 = vrot.slane %v2019, 3
        %v2048 = vsel %vm488, %v2045, %v2047
        %v2052 = vrot.slane %v2018, 4
        %v2053 = vrot.slane %v2011, 4
        %v2054 = vsel %vm499, %v2052, %v2053
        %v2055 = vrot.slane %v2013, 4
        %v2056 = vsel %vm499, %v2053, %v2055
        %v2057 = vrot.slane %v2019, 4
        %v2058 = vsel %vm499, %v2055, %v2057
        %v2063 = vlaneseq
        %v2064 = vshrl.u32 %v2063, 7
        %v2065 = vsub.s32 0, %v2064
        %v2066 = vrot.slane %v2005, %v2065
        %2068 = vmatprep.subr.mxu0 0.0
        %2069 = vmatpush1.msra.mxu0 %v1924
        %2070 = vmatprep.subr.mxu0 0.0
        %2071 = vmatpush1.msra.mxu0 %v1925
        %2072 = vmatprep.subr.mxu0 0.0
        %2073 = vmatpush1.msra.mxu0 %v1926
        %2074 = vmatprep.subr.mxu0 0.0
        %2075 = vmatpush1.msra.mxu0 %v1927
        %2076 = vmatprep.subr.mxu0 0.0
        %2077 = vmatpush1.msra.mxu0 %v1928
        %2078 = vmatprep.subr.mxu0 0.0
        %2079 = vmatpush1.msra.mxu0 %v1929
        %2080 = vmatprep.subr.mxu0 0.0
        %2081 = vmatpush1.msra.mxu0 %v1930
        %2082 = vmatprep.subr.mxu0 0.0
        %2083 = vmatpush1.msra.mxu0 %v1931
        %2084 = vmatprep.subr.mxu0 0.0
        %2085 = vmatpush1.msra.mxu0 %v1932
        %2086 = vmatprep.subr.mxu0 0.0
        %2087 = vmatpush1.msra.mxu0 %v1933
        %2088 = vmatprep.subr.mxu0 0.0
        %2089 = vmatpush1.msra.mxu0 %v1934
        %2090 = vmatprep.subr.mxu0 0.0
        %2091 = vmatpush1.msra.mxu0 %v1935
        %2092 = vmatprep.subr.mxu0 0.0
        %2093 = vmatpush1.msra.mxu0 %v1936
        %2094 = vmatprep.subr.mxu0 0.0
        %2095 = vmatpush1.msra.mxu0 %v1937
        %2096 = vmatprep.subr.mxu0 0.0
        %2097 = vmatpush1.msra.mxu0 %v1938
        %2098 = vmatprep.subr.mxu0 0.0
        %2099 = vmatpush1.msra.mxu0 %v1939
        %2100 = vmatprep.subr.mxu0 0.0
        %2101 = vmatpush1.msra.mxu0 %v1940
        %2102 = vmatprep.subr.mxu0 0.0
        %2103 = vmatpush1.msra.mxu0 %v1941
        %2104 = vmatprep.subr.mxu0 0.0
        %2105 = vmatpush1.msra.mxu0 %v1942
        %2106 = vmatprep.subr.mxu0 0.0
        %2107 = vmatpush1.msra.mxu0 %v1943
        %2108 = vmatprep.subr.mxu0 0.0
        %2109 = vmatpush1.msra.mxu0 %v1944
        %2110 = vmatprep.subr.mxu0 0.0
        %2111 = vmatpush1.msra.mxu0 %v1945
        %2112 = vmatprep.subr.mxu0 0.0
        %2113 = vmatpush1.msra.mxu0 %v1946
        %2114 = vmatprep.subr.mxu0 0.0
        %2115 = vmatpush1.msra.mxu0 %v1947
        %2116 = vmatprep.subr.mxu0 0.0
        %2117 = vmatpush1.msra.mxu0 %v1948
        %2118 = vmatprep.subr.mxu0 0.0
        %2119 = vmatpush1.msra.mxu0 %v1949
        %2120 = vmatprep.subr.mxu0 0.0
        %2121 = vmatpush1.msra.mxu0 %v1950
        %2122 = vmatprep.subr.mxu0 0.0
        %2123 = vmatpush1.msra.mxu0 %v1951
        %2124 = vmatprep.subr.mxu0 0.0
        %2125 = vmatpush1.msra.mxu0 %v1952
        %2126 = vmatprep.subr.mxu0 0.0
        %2127 = vmatpush1.msra.mxu0 %v1953
        %2128 = vmatprep.subr.mxu0 0.0
        %2129 = vmatpush1.msra.mxu0 %v1954
        %2130 = vmatprep.subr.mxu0 0.0
        %2131 = vmatpush1.msra.mxu0 %v1955
        %2132 = vmatprep.mubr.f32.mxu0 %v2024
        %2133 = vmatmul.mubr.f32.gmra.mrb[0].mxu0 %v2018
        %v2134 = vpop.f32.mrb[0].mxu0
        %v2135 = vadd.f32 %v2066, %v2134
        %v2136 = vpop.f32.mrb[0].mxu0
        %2137 = vmatprep.mubr.f32.mxu0 %v2026
        %2138 = vmatmul.mubr.f32.gmra.mrb[0].mxu0 %v2011
        %v2139 = vpop.f32.mrb[0].mxu0
        %v2140 = vadd.f32 %v2066, %v2139
        %v2141 = vpop.f32.mrb[0].mxu0
        %2142 = vmatprep.mubr.f32.mxu0 %v2028
        %2143 = vmatmul.mubr.f32.gmra.mrb[0].mxu0 %v2013
        %v2144 = vpop.f32.mrb[0].mxu0
        %v2145 = vadd.f32 %v2066, %v2144
        %v2146 = vpop.f32.mrb[0].mxu0
        %2147 = vdwg.mxu0
        %2148 = vmatprep.subr.mxu0 0.0
        %2149 = vmatpush1.msra.mxu0 %v1956
        %2150 = vmatprep.subr.mxu0 0.0
        %2151 = vmatpush1.msra.mxu0 %v1957
        %2152 = vmatprep.subr.mxu0 0.0
        %2153 = vmatpush1.msra.mxu0 %v1958
        %2154 = vmatprep.subr.mxu0 0.0
        %2155 = vmatpush1.msra.mxu0 %v1959
        %2156 = vmatprep.subr.mxu0 0.0
        %2157 = vmatpush1.msra.mxu0 %v1960
        %2158 = vmatprep.subr.mxu0 0.0
        %2159 = vmatpush1.msra.mxu0 %v1961
        %2160 = vmatprep.subr.mxu0 0.0
        %2161 = vmatpush1.msra.mxu0 %v1962
        %2162 = vmatprep.subr.mxu0 0.0
        %2163 = vmatpush1.msra.mxu0 %v1963
        %2164 = vmatprep.subr.mxu0 0.0
        %2165 = vmatpush1.msra.mxu0 %v1964
        %2166 = vmatprep.subr.mxu0 0.0
        %2167 = vmatpush1.msra.mxu0 %v1965
        %2168 = vmatprep.subr.mxu0 0.0
        %2169 = vmatpush1.msra.mxu0 %v1966
        %2170 = vmatprep.subr.mxu0 0.0
        %2171 = vmatpush1.msra.mxu0 %v1967
        %2172 = vmatprep.subr.mxu0 0.0
        %2173 = vmatpush1.msra.mxu0 %v1968
        %2174 = vmatprep.subr.mxu0 0.0
        %2175 = vmatpush1.msra.mxu0 %v1969
        %2176 = vmatprep.subr.mxu0 0.0
        %2177 = vmatpush1.msra.mxu0 %v1970
        %2178 = vmatprep.subr.mxu0 0.0
        %2179 = vmatpush1.msra.mxu0 %v1971
        %2180 = vmatprep.subr.mxu0 0.0
        %2181 = vmatpush1.msra.mxu0 %v1972
        %2182 = vmatprep.subr.mxu0 0.0
        %2183 = vmatpush1.msra.mxu0 %v1973
        %2184 = vmatprep.subr.mxu0 0.0
        %2185 = vmatpush1.msra.mxu0 %v1974
        %2186 = vmatprep.subr.mxu0 0.0
        %2187 = vmatpush1.msra.mxu0 %v1975
        %2188 = vmatprep.subr.mxu0 0.0
        %2189 = vmatpush1.msra.mxu0 %v1976
        %2190 = vmatprep.subr.mxu0 0.0
        %2191 = vmatpush1.msra.mxu0 %v1977
        %2192 = vmatprep.subr.mxu0 0.0
        %2193 = vmatpush1.msra.mxu0 %v1978
        %2194 = vmatprep.subr.mxu0 0.0
        %2195 = vmatpush1.msra.mxu0 %v1979
        %2196 = vmatprep.subr.mxu0 0.0
        %2197 = vmatpush1.msra.mxu0 %v1980
        %2198 = vmatprep.subr.mxu0 0.0
        %2199 = vmatpush1.msra.mxu0 %v1981
        %2200 = vmatprep.subr.mxu0 0.0
        %2201 = vmatpush1.msra.mxu0 %v1982
        %2202 = vmatprep.subr.mxu0 0.0
        %2203 = vmatpush1.msra.mxu0 %v1983
        %2204 = vmatprep.subr.mxu0 0.0
        %2205 = vmatpush1.msra.mxu0 %v1984
        %2206 = vmatprep.subr.mxu0 0.0
        %2207 = vmatpush1.msra.mxu0 %v1985
        %2208 = vmatprep.subr.mxu0 0.0
        %2209 = vmatpush1.msra.mxu0 %v1986
        %2210 = vmatprep.subr.mxu0 0.0
        %2211 = vmatpush1.msra.mxu0 %v1987
        %2212 = vmatprep.mubr.f32.mxu0 %v2044
        %2213 = vmatmul.mubr.f32.gmra.mrb[0].mxu0 %v2034
        %v2214 = vpop.f32.mrb[0].mxu0
        %v2215 = vadd.f32 %v2135, %v2214
        %v2216 = vpop.f32.mrb[0].mxu0
        %2217 = vmatprep.mubr.f32.mxu0 %v2046
        %2218 = vmatmul.mubr.f32.gmra.mrb[0].mxu0 %v2036
        %v2219 = vpop.f32.mrb[0].mxu0
        %v2220 = vadd.f32 %v2140, %v2219
        %v2221 = vpop.f32.mrb[0].mxu0
        %2222 = vmatprep.mubr.f32.mxu0 %v2048
        %2223 = vmatmul.mubr.f32.gmra.mrb[0].mxu0 %v2038
        %v2224 = vpop.f32.mrb[0].mxu0
        %v2225 = vadd.f32 %v2145, %v2224
        %v2226 = vpop.f32.mrb[0].mxu0
        %2227 = vdwg.mxu0
        %2228 = vmatprep.subr.mxu0 0.0
        %2229 = vmatpush1.msra.mxu0 %v1988
        %2230 = vmatprep.subr.mxu0 0.0
        %2231 = vmatpush1.msra.mxu0 %v1989
        %2232 = vmatprep.subr.mxu0 0.0
        %2233 = vmatpush1.msra.mxu0 %v1990
        %2234 = vmatprep.subr.mxu0 0.0
        %2235 = vmatpush1.msra.mxu0 %v1991
        %2236 = vmatprep.subr.mxu0 0.0
        %2237 = vmatpush1.msra.mxu0 %v1992
        %2238 = vmatprep.subr.mxu0 0.0
        %2239 = vmatpush1.msra.mxu0 %v1993
        %2240 = vmatprep.subr.mxu0 0.0
        %2241 = vmatpush1.msra.mxu0 %v1994
        %2242 = vmatprep.subr.mxu0 0.0
        %2243 = vmatpush1.msra.mxu0 %v1995
        %2244 = vmatprep.subr.mxu0 0.0
        %2245 = vmatpush1.msra.mxu0 %v1996
        %2246 = vmatprep.subr.mxu0 0.0
        %2247 = vmatpush1.msra.mxu0 %v1997
        %2248 = vmatprep.subr.mxu0 0.0
        %2249 = vmatpush1.msra.mxu0 %v1998
        %2250 = vmatprep.subr.mxu0 0.0
        %2251 = vmatpush1.msra.mxu0 %v1999
        %2252 = vmatprep.subr.mxu0 0.0
        %2253 = vmatpush1.msra.mxu0 %v2000
        %2254 = vmatprep.subr.mxu0 0.0
        %2255 = vmatpush1.msra.mxu0 %v2001
        %2256 = vmatprep.subr.mxu0 0.0
        %2257 = vmatpush1.msra.mxu0 %v2002
        %2258 = vmatprep.subr.mxu0 0.0
        %2259 = vmatpush1.msra.mxu0 %v2003
        %2260 = vmatprep.subr.mxu0 0.0
        %2261 = vmatpush1.msra.mxu0 0.0
        %2262 = vmatprep.subr.mxu0 0.0
        %2263 = vmatpush1.msra.mxu0 0.0
        %2264 = vmatprep.subr.mxu0 0.0
        %2265 = vmatpush1.msra.mxu0 0.0
        %2266 = vmatprep.subr.mxu0 0.0
        %2267 = vmatpush1.msra.mxu0 0.0
        %2268 = vmatprep.subr.mxu0 0.0
        %2269 = vmatpush1.msra.mxu0 0.0
        %2270 = vmatprep.subr.mxu0 0.0
        %2271 = vmatpush1.msra.mxu0 0.0
        %2272 = vmatprep.subr.mxu0 0.0
        %2273 = vmatpush1.msra.mxu0 0.0
        %2274 = vmatprep.subr.mxu0 0.0
        %2275 = vmatpush1.msra.mxu0 0.0
        %2276 = vmatprep.subr.mxu0 0.0
        %2277 = vmatpush1.msra.mxu0 0.0
        %2278 = vmatprep.subr.mxu0 0.0
        %2279 = vmatpush1.msra.mxu0 0.0
        %2280 = vmatprep.subr.mxu0 0.0
        %2281 = vmatpush1.msra.mxu0 0.0
        %2282 = vmatprep.subr.mxu0 0.0
        %2283 = vmatpush1.msra.mxu0 0.0
        %2284 = vmatprep.subr.mxu0 0.0
        %2285 = vmatpush1.msra.mxu0 0.0
        %2286 = vmatprep.subr.mxu0 0.0
        %2287 = vmatpush1.msra.mxu0 0.0
        %2288 = vmatprep.subr.mxu0 0.0
        %2289 = vmatpush1.msra.mxu0 0.0
        %2290 = vmatprep.subr.mxu0 0.0
        %2291 = vmatpush1.msra.mxu0 0.0
        %2292 = vmatprep.mubr.f32.mxu0 0.0
        %2293 = vmatmul.mubr.f32.gmra.mrb[0].mxu0 %v2054
        %v2294 = vpop.f32.mrb[0].mxu0
        %v2295 = vadd.f32 %v2215, %v2294
        %v2296 = vpop.f32.mrb[0].mxu0
        %2297 = vmatprep.mubr.f32.mxu0 0.0
        %2298 = vmatmul.mubr.f32.gmra.mrb[0].mxu0 %v2056
        %v2299 = vpop.f32.mrb[0].mxu0
        %v2300 = vadd.f32 %v2220, %v2299
        %v2301 = vpop.f32.mrb[0].mxu0
        %2302 = vmatprep.mubr.f32.mxu0 0.0
        %2303 = vmatmul.mubr.f32.gmra.mrb[0].mxu0 %v2058
        %v2304 = vpop.f32.mrb[0].mxu0
        %v2305 = vadd.f32 %v2225, %v2304
        %v2306 = vpop.f32.mrb[0].mxu0
        %2307 = vdwg.mxu0
        %v2308 = vadd.f32 %v2295, %v352
        %v2309 = vadd.f32 %v2300, %v357
        %v2310 = vadd.f32 %v2305, %v362
        %2311 = vst [vmem:[%s255] sm:$0xff] %v2308
        %2312 = vst [vmem:[%s255 + $0x8] sm:$0xff] %v2309
        %2313 = vst [vmem:[%s255 + $0x10] sm:$0xff] %v2310
        %s2314 = sand.u32 %s142, 1
        %s2315 = scalar_lea.sflag [#allocation3], %s2314
        %s2316 = sand.u32 %s142, 1
        %s2317 = smul.addr %s2316, 24
        %s2318 = scalar_lea.vmem [#allocation2], %s2317
        %s2319 = sand.u32 %s168, 1
        %s2320 = scalar_lea.sflag [#allocation5], %s2319
        %s2321 = sand.u32 %s168, 1
        %s2322 = smul.addr %s2321, 24
        %s2323 = scalar_lea.vmem [#allocation4], %s2322
        // Predicated region
        $region41: #{fastspeech2_forward.7} parent=39 // pred_check
          %p2324 = pneg %p152
        $region42: #{fastspeech2_forward.7} parent=39 // pred_check_branch
          %2326 = sbr.rel (%p2324) target = $region44
        $region43: #{fastspeech2_forward.7} parent=39 // pred_region
          %s2328 = ssub.s32 384, 384
          %2329 = vsyncadd %s2315, %s2328
          %s2330 = smul.addr %s24, 3
          %s2331 = smul.addr %s2330, 128
          %s2332 = scalar_lea.hbm %s5, %s2331
          %s2333 = sshll.u32 %s2318, 4
          %s2334 = int_to_ptr.vmem [resolvable:$true] %s2333
          %2339 = dma.vmem_to_hbm [thread:$0]  %s2334, 384, %s2332, %s2315, 128, 128, 8
        $region44: #{fastspeech2_forward.7} parent=39 // pred_fallthru
          _
        // Predicated region
        $region45: #{fastspeech2_forward.7} parent=39 // pred_check
          %p2340 = pneg %p178
        $region46: #{fastspeech2_forward.7} parent=39 // pred_check_branch
          %2342 = sbr.rel (%p2340) target = $region48
        $region47: #{fastspeech2_forward.7} parent=39 // pred_region
          %s2344 = ssub.s32 384, 384
          %2345 = vsyncadd %s2320, %s2344
          %s2346 = smul.addr %s24, 3
          %s2347 = smul.addr %s2346, 128
          %s2348 = scalar_lea.hbm %s6, %s2347
          %s2349 = sshll.u32 %s2323, 4
          %s2350 = int_to_ptr.vmem [resolvable:$true] %s2349
          %2355 = dma.vmem_to_hbm [thread:$0]  %s2350, 384, %s2348, %s2320, 128, 128, 8
        $region48: #{fastspeech2_forward.7} parent=39 // pred_fallthru
          _
      $region40: #{fastspeech2_forward.7} parent=5 // pred_fallthru
        _
      %p2356 = scmp.le.s32.totalorder 2, %s19
      // Predicated region
      $region49: #{fastspeech2_forward.7} parent=5 // pred_check
        %p2357 = pneg %p2356
      $region50: #{fastspeech2_forward.7} parent=5 // pred_check_branch
        %2359 = sbr.rel (%p2357) target = $region52
      $region51: #{fastspeech2_forward.7} parent=5 // pred_region
        %s2360 = ssub.s32 %s19, 2
        // Predicated region
        $region53: #{fastspeech2_forward.7} parent=51 // pred_check
          %p2361 = pneg %p158
        $region54: #{fastspeech2_forward.7} parent=51 // pred_check_branch
          %2363 = sbr.rel (%p2361) target = $region56
        $region55: #{fastspeech2_forward.7} parent=51 // pred_region
          %s2364 = sand.u32 %s143, 1
          %s2365 = scalar_lea.sflag [#allocation3], %s2364
          %s2366 = sand.u32 %s143, 1
          %s2367 = smul.addr %s2366, 24
          %s2368 = scalar_lea.vmem [#allocation2], %s2367
          %2369 = dma.done %s2365, 384
        $region56: #{fastspeech2_forward.7} parent=51 // pred_fallthru
          _
        // Predicated region
        $region57: #{fastspeech2_forward.7} parent=51 // pred_check
          %p2370 = pneg %p184
        $region58: #{fastspeech2_forward.7} parent=51 // pred_check_branch
          %2372 = sbr.rel (%p2370) target = $region60
        $region59: #{fastspeech2_forward.7} parent=51 // pred_region
          %s2373 = sand.u32 %s169, 1
          %s2374 = scalar_lea.sflag [#allocation5], %s2373
          %s2375 = sand.u32 %s169, 1
          %s2376 = smul.addr %s2375, 24
          %s2377 = scalar_lea.vmem [#allocation4], %s2376
          %2378 = dma.done %s2374, 384
        $region60: #{fastspeech2_forward.7} parent=51 // pred_fallthru
          _
      $region52: #{fastspeech2_forward.7} parent=5 // pred_fallthru
        _
    $region6: #{fastspeech2_forward.7} parent=1 // loop_footer
      %s23 = sadd.s32 1, %s19
    $region7: #{fastspeech2_forward.7} parent=1 // loop_footer_branch
      %18 = sbr.rel target = $region3
    $region8: #{fastspeech2_forward.7} parent=1 // loop_exit
      _
    %2379 = vsyncpa [#allocation3], 1
    %s2380 = scalar_lea.sflag [#allocation3], 1
    %2381 = vsyncpa %s2380, 1
    %2382 = vsyncpa [#allocation5], 1
    %s2383 = scalar_lea.sflag [#allocation5], 1
    %2384 = vsyncpa %s2383, 1

</llo_original>
